<compile_context>
chip_gen: v7x
topology: tpu7x:2x2x1
jax: 0.10.0
libtpu: 0.0.40
codegen_flags: <defaults>
</compile_context>

<pallas_src>
import functools

import jax
import jax.numpy as jnp
from jax.experimental import pallas as pl
from jax.experimental.pallas import tpu as pltpu

INPUT_DIM = 2048
HIDDEN_DIM = 1050
OUTPUT_DIM = 29

# Lane-aligned (multiples of 128) padded dims used inside the kernel.
HIDDEN_PAD = 1152   # 9 * 128
OUT_PAD = 128       # 1 * 128


def _classifier_kernel(x_ref, w1_ref, b1_ref, w2_ref, b2_ref, out_ref):
    """Fused MLP forward for one batch tile: relu(x @ W1 + b1) @ W2 + b2.

    x_ref  : (TB, INPUT_DIM)           VMEM (pipelined over the batch grid)
    w1_ref : (INPUT_DIM, HIDDEN_PAD)   VMEM (resident: constant index_map)
    b1_ref : (1, HIDDEN_PAD)  f32      VMEM (resident)
    w2_ref : (HIDDEN_PAD, OUT_PAD)     VMEM (resident)
    b2_ref : (1, OUT_PAD)     f32      VMEM (resident)
    out_ref: (TB, OUT_PAD)             VMEM (lane-dense -> unmasked vst)
    """
    # Cast x to the weight dtype so the MXU sees matching (e.g. bf16) inputs;
    # no-op when everything is f32. Accumulation is always f32.
    x = x_ref[...].astype(w1_ref.dtype)
    h = jnp.dot(x, w1_ref[...], preferred_element_type=jnp.float32)
    h = jnp.maximum(h + b1_ref[...], 0.0)          # bias + ReLU in f32 (VPU)
    # NOTE: intentional downcast of the ReLU activations to the W2 dtype
    # (bf16 when bf16 params are used) for the second MXU pass.
    o = jnp.dot(h.astype(w2_ref.dtype), w2_ref[...],
                preferred_element_type=jnp.float32)
    out_ref[...] = (o + b2_ref[...]).astype(out_ref.dtype)


def prepare_params(w1, b1, w2, b2, param_dtype=jnp.bfloat16):
    """One-time glue: PyTorch-layout params -> kernel-layout params.

    w1: (HIDDEN_DIM, INPUT_DIM), b1: (HIDDEN_DIM,),
    w2: (OUTPUT_DIM, HIDDEN_DIM), b2: (OUTPUT_DIM,).
    Returns (w1_t, b1_p, w2_t, b2_p) zero-padded, transposed to (in, out),
    with weights in `param_dtype` (default bf16: HBM-bound at small batch)
    and biases kept in f32.
    """
    w1_t = jnp.zeros((INPUT_DIM, HIDDEN_PAD), param_dtype)
    w1_t = w1_t.at[:, :HIDDEN_DIM].set(w1.T.astype(param_dtype))
    b1_p = jnp.zeros((1, HIDDEN_PAD), jnp.float32)
    b1_p = b1_p.at[:, :HIDDEN_DIM].set(b1.astype(jnp.float32))
    w2_t = jnp.zeros((HIDDEN_PAD, OUT_PAD), param_dtype)
    w2_t = w2_t.at[:HIDDEN_DIM, :OUTPUT_DIM].set(w2.T.astype(param_dtype))
    b2_p = jnp.zeros((1, OUT_PAD), jnp.float32)
    b2_p = b2_p.at[:, :OUTPUT_DIM].set(b2.astype(jnp.float32))
    return w1_t, b1_p, w2_t, b2_p


@functools.lru_cache(maxsize=1)
def _single_buffer_supported():
    """Probe once whether this JAX build honours pipeline_mode=pl.Buffered(1)."""
    def _copy(x_ref, o_ref):
        o_ref[...] = x_ref[...]
    try:
        fn = pl.pallas_call(
            _copy,
            out_shape=jax.ShapeDtypeStruct((8, 128), jnp.float32),
            grid=(1,),
            in_specs=[pl.BlockSpec((8, 128), lambda i: (0, 0),
                                   pipeline_mode=pl.Buffered(1))],
            out_specs=pl.BlockSpec((8, 128), lambda i: (0, 0)),
        )
        jax.jit(fn).lower(
            jax.ShapeDtypeStruct((8, 128), jnp.float32)).compile()
        return True
    except Exception:
        return False


def _resident_spec(shape):
    """Constant-index (VMEM-resident) block; single-buffered when supported."""
    if _single_buffer_supported():
        return pl.BlockSpec(shape, lambda i: (0, 0),
                            pipeline_mode=pl.Buffered(1))
    return pl.BlockSpec(shape, lambda i: (0, 0))


@functools.lru_cache(maxsize=1)
def _vmem_limit_bytes():
    """Per-generation scoped VMEM limit: ~3/4 of capacity, capped at 96 MiB."""
    try:
        cap = int(pltpu.get_tpu_info().vmem_capacity_bytes)
    except Exception:
        cap = 64 << 20                  # conservative (v7x per-core VMEM)
    return min((cap * 3) // 4, 96 << 20)


def classifier_forward(x, params, *, block_b=512, out_dtype=None):
    """x: (B, INPUT_DIM). params: output of prepare_params. Returns (B, 29).

    Output dtype follows x.dtype unless `out_dtype` is given (a bf16 x input
    therefore yields bf16 logits, matching the PyTorch module's behaviour).
    """
    w1_t, b1_p, w2_t, b2_p = params
    B = x.shape[0]
    out_dtype = x.dtype if out_dtype is None else out_dtype

    # Batch tile: multiple of 8 sublanes, capped at block_b.  No padding copy
    # of x — Pallas handles the ragged last block (OOB output rows dropped).
    b_round8 = pl.cdiv(max(B, 1), 8) * 8
    tb = min(block_b, b_round8)
    grid = (pl.cdiv(B, tb),)

    rows = grid[0] * tb
    itemsz = lambda a: a.size * a.dtype.itemsize
    cost = pl.CostEstimate(
        flops=2 * rows * (INPUT_DIM * HIDDEN_PAD + HIDDEN_PAD * OUT_PAD),
        transcendentals=0,
        bytes_accessed=(B * INPUT_DIM * x.dtype.itemsize
                        + itemsz(w1_t) + itemsz(b1_p)
                        + itemsz(w2_t) + itemsz(b2_p)
                        + B * OUT_PAD * jnp.dtype(out_dtype).itemsize),
    )

    out = pl.pallas_call(
        _classifier_kernel,
        out_shape=jax.ShapeDtypeStruct((B, OUT_PAD), out_dtype),
        grid=grid,
        in_specs=[
            pl.BlockSpec((tb, INPUT_DIM), lambda i: (i, 0)),   # x: pipelined
            _resident_spec((INPUT_DIM, HIDDEN_PAD)),           # W1 resident
            _resident_spec((1, HIDDEN_PAD)),                   # b1 resident
            _resident_spec((HIDDEN_PAD, OUT_PAD)),             # W2 resident
            _resident_spec((1, OUT_PAD)),                      # b2 resident
        ],
        out_specs=pl.BlockSpec((tb, OUT_PAD), lambda i: (i, 0)),
        compiler_params=pltpu.CompilerParams(
            dimension_semantics=("parallel",),   # megacore split on v7x
            vmem_limit_bytes=_vmem_limit_bytes(),
        ),
        cost_estimate=cost,
    )(x, w1_t, b1_p, w2_t, b2_p)

    # Slice off the lane padding only; out already has exactly B rows.
    return out[:, :OUTPUT_DIM]


def init_params(key):
    """Deterministic init mimicking PyTorch's default Linear init:
    U(-1/sqrt(fan_in), +1/sqrt(fan_in)) for both weight and bias."""
    k1, k2, k3, k4 = jax.random.split(key, 4)
    bound1 = 1.0 / (INPUT_DIM ** 0.5)
    w1 = jax.random.uniform(k1, (HIDDEN_DIM, INPUT_DIM), jnp.float32,
                            -bound1, bound1)
    b1 = jax.random.uniform(k2, (HIDDEN_DIM,), jnp.float32, -bound1, bound1)
    bound2 = 1.0 / (HIDDEN_DIM ** 0.5)
    w2 = jax.random.uniform(k3, (OUTPUT_DIM, HIDDEN_DIM), jnp.float32,
                            -bound2, bound2)
    b2 = jax.random.uniform(k4, (OUTPUT_DIM,), jnp.float32, -bound2, bound2)
    return w1, b1, w2, b2


if __name__ == "__main__":
    key = jax.random.PRNGKey(0)
    k_x, k_p = jax.random.split(key)

    w1, b1, w2, b2 = init_params(k_p)
    fwd = jax.jit(functools.partial(classifier_forward, block_b=512))

    # --- check 1: f32 params, B=8 (tight tolerance) --------------------------
    x8 = jax.random.normal(k_x, (8, INPUT_DIM), dtype=jnp.float32)
    ref8 = jnp.maximum(x8 @ w1.T + b1, 0.0) @ w2.T + b2
    params_f32 = prepare_params(w1, b1, w2, b2, param_dtype=jnp.float32)
    out8 = jax.block_until_ready(fwd(x8, params_f32))
    assert out8.shape == (8, OUTPUT_DIM), out8.shape
    assert jnp.allclose(out8, ref8, atol=1e-4, rtol=1e-4), "f32 mismatch"

    # --- check 2: default bf16 params (halves W1 HBM read), loose check ------
    params_bf16 = prepare_params(w1, b1, w2, b2)   # bf16 by default
    out8_bf16 = jax.block_until_ready(fwd(x8, params_bf16))
    assert out8_bf16.shape == (8, OUTPUT_DIM), out8_bf16.shape
    assert jnp.allclose(out8_bf16, ref8, atol=1e-1, rtol=1e-1), "bf16 mismatch"

    # --- check 3: ragged batch (B=13, not a multiple of the tile) ------------
    x13 = jax.random.normal(k_x, (13, INPUT_DIM), dtype=jnp.float32)
    ref13 = jnp.maximum(x13 @ w1.T + b1, 0.0) @ w2.T + b2
    out13 = jax.block_until_ready(fwd(x13, params_f32))
    assert out13.shape == (13, OUTPUT_DIM), out13.shape
    assert jnp.allclose(out13, ref13, atol=1e-4, rtol=1e-4), "ragged mismatch"

    print("KERNEL_OK")
</pallas_src>

<mosaic_0001>
module attributes {stable_mosaic.version = 11 : i64} {
  func.func @_classifier_kernel(%arg0: i32, %arg1: memref<8x2048xf32, #tpu.memory_space<vmem>>, %arg2: memref<2048x1152xf32, #tpu.memory_space<vmem>>, %arg3: memref<1x1152xf32, #tpu.memory_space<vmem>>, %arg4: memref<1152x128xf32, #tpu.memory_space<vmem>>, %arg5: memref<1x128xf32, #tpu.memory_space<vmem>>, %arg6: memref<8x128xf32, #tpu.memory_space<vmem>>) attributes {dimension_semantics = [#tpu.dimension_semantics<parallel>], iteration_bounds = array<i64: 1>, scalar_prefetch = 0 : i64, scratch_operands = 0 : i64, tpu.core_type = #tpu.core_type<tc>, window_params = [{transform_indices = @transform_0, window_bounds = array<i64: 8, 2048>}, {pipeline_mode = #tpu.pipeline_mode<synchronous>, transform_indices = @transform_1, window_bounds = array<i64: 2048, 1152>}, {pipeline_mode = #tpu.pipeline_mode<synchronous>, transform_indices = @transform_2, window_bounds = array<i64: 1, 1152>}, {pipeline_mode = #tpu.pipeline_mode<synchronous>, transform_indices = @transform_3, window_bounds = array<i64: 1152, 128>}, {pipeline_mode = #tpu.pipeline_mode<synchronous>, transform_indices = @transform_4, window_bounds = array<i64: 1, 128>}, {transform_indices = @transform_5, window_bounds = array<i64: 8, 128>}]} {
    %c0 = arith.constant 0 : index
    %c0_0 = arith.constant 0 : index
    %0 = vector.load %arg1[%c0, %c0_0] : memref<8x2048xf32, #tpu.memory_space<vmem>>, vector<8x2048xf32>
    %c0_1 = arith.constant 0 : index
    %c0_2 = arith.constant 0 : index
    %1 = vector.load %arg2[%c0_1, %c0_2] : memref<2048x1152xf32, #tpu.memory_space<vmem>>, vector<2048x1152xf32>
    %cst = arith.constant dense<0.000000e+00> : vector<8x1152xf32>
    %2 = tpu.matmul %0, %1, %cst {dimension_numbers = #tpu.dot_dimension_numbers<[1], [0], [0], [1], [0, 0, 1, 1], [], []>} : vector<8x2048xf32>, vector<2048x1152xf32>, vector<8x1152xf32> -> vector<8x1152xf32>
    %c0_3 = arith.constant 0 : index
    %c0_4 = arith.constant 0 : index
    %3 = vector.load %arg3[%c0_3, %c0_4] : memref<1x1152xf32, #tpu.memory_space<vmem>>, vector<1x1152xf32>
    %4 = vector.broadcast %3 : vector<1x1152xf32> to vector<8x1152xf32>
    %5 = arith.addf %2, %4 : vector<8x1152xf32>
    %cst_5 = arith.constant 0.000000e+00 : f32
    %6 = vector.broadcast %cst_5 : f32 to vector<8x1152xf32>
    %7 = arith.maximumf %5, %6 : vector<8x1152xf32>
    %c0_6 = arith.constant 0 : index
    %c0_7 = arith.constant 0 : index
    %8 = vector.load %arg4[%c0_6, %c0_7] : memref<1152x128xf32, #tpu.memory_space<vmem>>, vector<1152x128xf32>
    %cst_8 = arith.constant dense<0.000000e+00> : vector<8x128xf32>
    %9 = tpu.matmul %7, %8, %cst_8 {dimension_numbers = #tpu.dot_dimension_numbers<[1], [0], [0], [1], [0, 0, 1, 1], [], []>} : vector<8x1152xf32>, vector<1152x128xf32>, vector<8x128xf32> -> vector<8x128xf32>
    %c0_9 = arith.constant 0 : index
    %c0_10 = arith.constant 0 : index
    %10 = vector.load %arg5[%c0_9, %c0_10] : memref<1x128xf32, #tpu.memory_space<vmem>>, vector<1x128xf32>
    %11 = vector.broadcast %10 : vector<1x128xf32> to vector<8x128xf32>
    %12 = arith.addf %9, %11 : vector<8x128xf32>
    %c0_11 = arith.constant 0 : index
    %c0_12 = arith.constant 0 : index
    %13 = vector.load %arg6[%c0_11, %c0_12] : memref<8x128xf32, #tpu.memory_space<vmem>>, vector<8x128xf32>
    tpu.vector_store %arg6[%c0_11, %c0_12], %12 {strides = array<i32>} : memref<8x128xf32, #tpu.memory_space<vmem>>, vector<8x128xf32>,
    return
  }
  func.func @transform_0(%arg0: i32) -> (i32, i32) {
    %c0_i32 = arith.constant 0 : i32
    %c0_i32_0 = arith.constant 0 : i32
    return %arg0, %c0_i32 : i32, i32
  }
  func.func @transform_1(%arg0: i32) -> (i32, i32) {
    %c0_i32 = arith.constant 0 : i32
    %c0_i32_0 = arith.constant 0 : i32
    %c0_i32_1 = arith.constant 0 : i32
    return %c0_i32, %c0_i32_0 : i32, i32
  }
  func.func @transform_2(%arg0: i32) -> (i32, i32) {
    %c0_i32 = arith.constant 0 : i32
    %c0_i32_0 = arith.constant 0 : i32
    %c0_i32_1 = arith.constant 0 : i32
    return %c0_i32, %c0_i32_0 : i32, i32
  }
  func.func @transform_3(%arg0: i32) -> (i32, i32) {
    %c0_i32 = arith.constant 0 : i32
    %c0_i32_0 = arith.constant 0 : i32
    %c0_i32_1 = arith.constant 0 : i32
    return %c0_i32, %c0_i32_0 : i32, i32
  }
  func.func @transform_4(%arg0: i32) -> (i32, i32) {
    %c0_i32 = arith.constant 0 : i32
    %c0_i32_0 = arith.constant 0 : i32
    %c0_i32_1 = arith.constant 0 : i32
    return %c0_i32, %c0_i32_0 : i32, i32
  }
  func.func @transform_5(%arg0: i32) -> (i32, i32) {
    %c0_i32 = arith.constant 0 : i32
    %c0_i32_0 = arith.constant 0 : i32
    return %arg0, %c0_i32 : i32, i32
  }
}

</mosaic_0001>

<llo_original>
// kernel: classifier_forward.1
$region0: #{classifier_forward.1}
  #allocation0 [shape = 'u32[]', space=smem, size = 0x4, offset = 0x4, fixed_abs, tag = 'smem constant byte address 0x4 - core index']
  #allocation1 [shape = 'u32[144,128]{1,0:T(1,128)}', space=vmem, size = 0x12000, scoped, tag = 'internal scratch']
  %s0 = inlined_call_operand.hbm [shape: f32[8,2048], index: 0, kind: input, shape index: {}]
  %s1 = inlined_call_operand.hbm [shape: f32[2048,1152], index: 1, kind: input, shape index: {}]
  %s2 = inlined_call_operand.hbm [shape: f32[1,1152], index: 2, kind: input, shape index: {}]
  %s3 = inlined_call_operand.hbm [shape: f32[1152,128], index: 3, kind: input, shape index: {}]
  %s4 = inlined_call_operand.hbm [shape: f32[1,128], index: 4, kind: input, shape index: {}]
  %s5 = inlined_call_operand.hbm [shape: f32[8,128], index: 5, kind: output, shape index: {}]
  %s6 = sld [smem:[#allocation0]]
  $region50: #{classifier_forward.1} parent=0
    _
  %s8 = ssub.s32 1, %s6
  %s9 = scalar_select 0, %s8, %s6
  $region1: #{classifier_forward.1} parent=0
    #allocation2 [shape = 'u8[65536]{0}', space=vmem, size = 0x10000, scoped, tag = 'input window, operand 0, single buffered']
    #allocation3 [shape = 's32[1]{0}', space=sflag, size = 0x4, scoped, tag = 'scoped memory for classifier_forward.1']
    #allocation4 [shape = 's32[1]{0}', space=sflag, size = 0x4, scoped, tag = 'scoped memory for classifier_forward.1']
    #allocation5 [shape = 'u8[9437184]{0}', space=vmem, size = 0x900000, scoped, tag = 'input window, operand 1, single buffered']
    #allocation6 [shape = 's32[1]{0}', space=sflag, size = 0x4, scoped, tag = 'scoped memory for classifier_forward.1']
    #allocation7 [shape = 'u8[4608]{0}', space=vmem, size = 0x1400, scoped, tag = 'input window, operand 2, single buffered']
    #allocation8 [shape = 'u8[589824]{0}', space=vmem, size = 0x90000, scoped, tag = 'input window, operand 3, single buffered']
    #allocation9 [shape = 's32[1]{0}', space=sflag, size = 0x4, scoped, tag = 'scoped memory for classifier_forward.1']
    #allocation10 [shape = 'u8[512]{0}', space=vmem, size = 0x400, scoped, tag = 'input window, operand 4, single buffered']
    #allocation11 [shape = 'u8[4096]{0}', space=vmem, size = 0x1000, scoped, tag = 'output window, operand 0, single buffered']
    %10 = vsyncpa [#allocation3], 0
    %11 = vsyncpa [#allocation6], 0
    %12 = vsyncpa [#allocation9], 0
    %13 = vsyncpa [#allocation4], 0
    // Predicated region
    $region2: #{classifier_forward.1} parent=1 // pred_check
      _
    $region3: #{classifier_forward.1} parent=1 // pred_check_branch
      %15 = sbr.rel (0) target = $region5
    $region4: #{classifier_forward.1} parent=1 // pred_region
      %s17 = ssub.s32 2048, 2048
      %18 = vsyncadd [#allocation3], %s17
      %s20 = sshll.u32 [#allocation2], 4
      %s21 = int_to_ptr.vmem [resolvable:$true] %s20
      %23 = dma.hbm_to_vmem [thread:$0]  %s0, 2048, %s21, [#allocation3]
    $region5: #{classifier_forward.1} parent=1 // pred_fallthru
      _
    // Predicated region
    $region6: #{classifier_forward.1} parent=1 // pred_check
      _
    $region7: #{classifier_forward.1} parent=1 // pred_check_branch
      %25 = sbr.rel (0) target = $region9
    $region8: #{classifier_forward.1} parent=1 // pred_region
      %s27 = ssub.s32 294912, 294912
      %28 = vsyncadd [#allocation6], %s27
      %s29 = sshll.u32 [#allocation5], 4
      %s30 = int_to_ptr.vmem [resolvable:$true] %s29
      %35 = dma.hbm_to_vmem [thread:$0]  %s1, 294912, %s30, [#allocation6], 1152, 1152, 72
    $region9: #{classifier_forward.1} parent=1 // pred_fallthru
      _
    // Predicated region
    $region10: #{classifier_forward.1} parent=1 // pred_check
      _
    $region11: #{classifier_forward.1} parent=1 // pred_check_branch
      %37 = sbr.rel (0) target = $region13
    $region12: #{classifier_forward.1} parent=1 // pred_region
      %s39 = ssub.s32 144, 144
      %40 = vsyncadd [#allocation6], %s39
      %s42 = sshll.u32 [#allocation7], 4
      %s43 = int_to_ptr.vmem [resolvable:$true] %s42
      %45 = dma.hbm_to_vmem [thread:$0]  %s2, 144, %s43, [#allocation6]
    $region13: #{classifier_forward.1} parent=1 // pred_fallthru
      _
    // Predicated region
    $region14: #{classifier_forward.1} parent=1 // pred_check
      _
    $region15: #{classifier_forward.1} parent=1 // pred_check_branch
      %47 = sbr.rel (0) target = $region17
    $region16: #{classifier_forward.1} parent=1 // pred_region
      %s49 = ssub.s32 18432, 18432
      %50 = vsyncadd [#allocation9], %s49
      %s51 = sshll.u32 [#allocation8], 4
      %s52 = int_to_ptr.vmem [resolvable:$true] %s51
      %57 = dma.hbm_to_vmem [thread:$0]  %s3, 18432, %s52, [#allocation9], 128, 128, 8
    $region17: #{classifier_forward.1} parent=1 // pred_fallthru
      _
    // Predicated region
    $region18: #{classifier_forward.1} parent=1 // pred_check
      _
    $region19: #{classifier_forward.1} parent=1 // pred_check_branch
      %59 = sbr.rel (0) target = $region21
    $region20: #{classifier_forward.1} parent=1 // pred_region
      %s61 = ssub.s32 16, 16
      %62 = vsyncadd [#allocation9], %s61
      %s64 = sshll.u32 [#allocation10], 4
      %s65 = int_to_ptr.vmem [resolvable:$true] %s64
      %67 = dma.hbm_to_vmem [thread:$0]  %s4, 16, %s65, [#allocation9]
    $region21: #{classifier_forward.1} parent=1 // pred_fallthru
      _
    // Predicated region
    $region22: #{classifier_forward.1} parent=1 // pred_check
      _
    $region23: #{classifier_forward.1} parent=1 // pred_check_branch
      %69 = sbr.rel (0) target = $region25
    $region24: #{classifier_forward.1} parent=1 // pred_region
      %70 = dma.done [#allocation3], 2048
    $region25: #{classifier_forward.1} parent=1 // pred_fallthru
      _
    // Predicated region
    $region26: #{classifier_forward.1} parent=1 // pred_check
      _
    $region27: #{classifier_forward.1} parent=1 // pred_check_branch
      %72 = sbr.rel (0) target = $region29
    $region28: #{classifier_forward.1} parent=1 // pred_region
      %73 = dma.done [#allocation6], 294912
    $region29: #{classifier_forward.1} parent=1 // pred_fallthru
      _
    // Predicated region
    $region30: #{classifier_forward.1} parent=1 // pred_check
      _
    $region31: #{classifier_forward.1} parent=1 // pred_check_branch
      %75 = sbr.rel (0) target = $region33
    $region32: #{classifier_forward.1} parent=1 // pred_region
      %76 = dma.done [#allocation6], 144
    $region33: #{classifier_forward.1} parent=1 // pred_fallthru
      _
    // Predicated region
    $region34: #{classifier_forward.1} parent=1 // pred_check
      _
    $region35: #{classifier_forward.1} parent=1 // pred_check_branch
      %78 = sbr.rel (0) target = $region37
    $region36: #{classifier_forward.1} parent=1 // pred_region
      %79 = dma.done [#allocation9], 18432
    $region37: #{classifier_forward.1} parent=1 // pred_fallthru
      _
    // Predicated region
    $region38: #{classifier_forward.1} parent=1 // pred_check
      _
    $region39: #{classifier_forward.1} parent=1 // pred_check_branch
      %81 = sbr.rel (0) target = $region41
    $region40: #{classifier_forward.1} parent=1 // pred_region
      %82 = dma.done [#allocation9], 16
    $region41: #{classifier_forward.1} parent=1 // pred_fallthru
      _
    %v83 = vld [vmem:[#allocation2] sm:$0xff]
    %v84 = vld [vmem:[#allocation2 + $0x8] sm:$0xff]
    %v85 = vld [vmem:[#allocation2 + $0x10] sm:$0xff]
    %v86 = vld [vmem:[#allocation2 + $0x18] sm:$0xff]
    %v87 = vld [vmem:[#allocation2 + $0x20] sm:$0xff]
    %v88 = vld [vmem:[#allocation2 + $0x28] sm:$0xff]
    %v89 = vld [vmem:[#allocation2 + $0x30] sm:$0xff]
    %v90 = vld [vmem:[#allocation2 + $0x38] sm:$0xff]
    %v91 = vld [vmem:[#allocation2 + $0x40] sm:$0xff]
    %v92 = vld [vmem:[#allocation2 + $0x48] sm:$0xff]
    %v93 = vld [vmem:[#allocation2 + $0x50] sm:$0xff]
    %v94 = vld [vmem:[#allocation2 + $0x58] sm:$0xff]
    %v95 = vld [vmem:[#allocation2 + $0x60] sm:$0xff]
    %v96 = vld [vmem:[#allocation2 + $0x68] sm:$0xff]
    %v97 = vld [vmem:[#allocation2 + $0x70] sm:$0xff]
    %v98 = vld [vmem:[#allocation2 + $0x78] sm:$0xff]
    %v99 = vld [vmem:[#allocation5] sm:$0xff]
    %v100 = vld [vmem:[#allocation5 + $0x8] sm:$0xff]
    %v101 = vld [vmem:[#allocation5 + $0x10] sm:$0xff]
    %v102 = vld [vmem:[#allocation5 + $0x18] sm:$0xff]
    %v103 = vld [vmem:[#allocation5 + $0x20] sm:$0xff]
    %v104 = vld [vmem:[#allocation5 + $0x28] sm:$0xff]
    %v105 = vld [vmem:[#allocation5 + $0x30] sm:$0xff]
    %v106 = vld [vmem:[#allocation5 + $0x38] sm:$0xff]
    %v107 = vld [vmem:[#allocation5 + $0x40] sm:$0xff]
    %v108 = vld [vmem:[#allocation5 + $0x48] sm:$0xff]
    %v109 = vld [vmem:[#allocation5 + $0x50] sm:$0xff]
    %v110 = vld [vmem:[#allocation5 + $0x58] sm:$0xff]
    %v111 = vld [vmem:[#allocation5 + $0x60] sm:$0xff]
    %v112 = vld [vmem:[#allocation5 + $0x68] sm:$0xff]
    %v113 = vld [vmem:[#allocation5 + $0x70] sm:$0xff]
    %v114 = vld [vmem:[#allocation5 + $0x78] sm:$0xff]
    %v115 = vld [vmem:[#allocation5 + $0x80] sm:$0xff]
    %v116 = vld [vmem:[#allocation5 + $0x88] sm:$0xff]
    %v117 = vld [vmem:[#allocation5 + $0x90] sm:$0xff]
    %v118 = vld [vmem:[#allocation5 + $0x98] sm:$0xff]
    %v119 = vld [vmem:[#allocation5 + $0xa0] sm:$0xff]
    %v120 = vld [vmem:[#allocation5 + $0xa8] sm:$0xff]
    %v121 = vld [vmem:[#allocation5 + $0xb0] sm:$0xff]
    %v122 = vld [vmem:[#allocation5 + $0xb8] sm:$0xff]
    %v123 = vld [vmem:[#allocation5 + $0xc0] sm:$0xff]
    %v124 = vld [vmem:[#allocation5 + $0xc8] sm:$0xff]
    %v125 = vld [vmem:[#allocation5 + $0xd0] sm:$0xff]
    %v126 = vld [vmem:[#allocation5 + $0xd8] sm:$0xff]
    %v127 = vld [vmem:[#allocation5 + $0xe0] sm:$0xff]
    %v128 = vld [vmem:[#allocation5 + $0xe8] sm:$0xff]
    %v129 = vld [vmem:[#allocation5 + $0xf0] sm:$0xff]
    %v130 = vld [vmem:[#allocation5 + $0xf8] sm:$0xff]
    %v131 = vld [vmem:[#allocation5 + $0x100] sm:$0xff]
    %v132 = vld [vmem:[#allocation5 + $0x108] sm:$0xff]
    %v133 = vld [vmem:[#allocation5 + $0x110] sm:$0xff]
    %v134 = vld [vmem:[#allocation5 + $0x118] sm:$0xff]
    %v135 = vld [vmem:[#allocation5 + $0x120] sm:$0xff]
    %v136 = vld [vmem:[#allocation5 + $0x128] sm:$0xff]
    %v137 = vld [vmem:[#allocation5 + $0x130] sm:$0xff]
    %v138 = vld [vmem:[#allocation5 + $0x138] sm:$0xff]
    %v139 = vld [vmem:[#allocation5 + $0x140] sm:$0xff]
    %v140 = vld [vmem:[#allocation5 + $0x148] sm:$0xff]
    %v141 = vld [vmem:[#allocation5 + $0x150] sm:$0xff]
    %v142 = vld [vmem:[#allocation5 + $0x158] sm:$0xff]
    %v143 = vld [vmem:[#allocation5 + $0x160] sm:$0xff]
    %v144 = vld [vmem:[#allocation5 + $0x168] sm:$0xff]
    %v145 = vld [vmem:[#allocation5 + $0x170] sm:$0xff]
    %v146 = vld [vmem:[#allocation5 + $0x178] sm:$0xff]
    %v147 = vld [vmem:[#allocation5 + $0x180] sm:$0xff]
    %v148 = vld [vmem:[#allocation5 + $0x188] sm:$0xff]
    %v149 = vld [vmem:[#allocation5 + $0x190] sm:$0xff]
    %v150 = vld [vmem:[#allocation5 + $0x198] sm:$0xff]
    %v151 = vld [vmem:[#allocation5 + $0x1a0] sm:$0xff]
    %v152 = vld [vmem:[#allocation5 + $0x1a8] sm:$0xff]
    %v153 = vld [vmem:[#allocation5 + $0x1b0] sm:$0xff]
    %v154 = vld [vmem:[#allocation5 + $0x1b8] sm:$0xff]
    %v155 = vld [vmem:[#allocation5 + $0x1c0] sm:$0xff]
    %v156 = vld [vmem:[#allocation5 + $0x1c8] sm:$0xff]
    %v157 = vld [vmem:[#allocation5 + $0x1d0] sm:$0xff]
    %v158 = vld [vmem:[#allocation5 + $0x1d8] sm:$0xff]
    %v159 = vld [vmem:[#allocation5 + $0x1e0] sm:$0xff]
    %v160 = vld [vmem:[#allocation5 + $0x1e8] sm:$0xff]
    %v161 = vld [vmem:[#allocation5 + $0x1f0] sm:$0xff]
    %v162 = vld [vmem:[#allocation5 + $0x1f8] sm:$0xff]
    %v163 = vld [vmem:[#allocation5 + $0x200] sm:$0xff]
    %v164 = vld [vmem:[#allocation5 + $0x208] sm:$0xff]
    %v165 = vld [vmem:[#allocation5 + $0x210] sm:$0xff]
    %v166 = vld [vmem:[#allocation5 + $0x218] sm:$0xff]
    %v167 = vld [vmem:[#allocation5 + $0x220] sm:$0xff]
    %v168 = vld [vmem:[#allocation5 + $0x228] sm:$0xff]
    %v169 = vld [vmem:[#allocation5 + $0x230] sm:$0xff]
    %v170 = vld [vmem:[#allocation5 + $0x238] sm:$0xff]
    %v171 = vld [vmem:[#allocation5 + $0x240] sm:$0xff]
    %v172 = vld [vmem:[#allocation5 + $0x248] sm:$0xff]
    %v173 = vld [vmem:[#allocation5 + $0x250] sm:$0xff]
    %v174 = vld [vmem:[#allocation5 + $0x258] sm:$0xff]
    %v175 = vld [vmem:[#allocation5 + $0x260] sm:$0xff]
    %v176 = vld [vmem:[#allocation5 + $0x268] sm:$0xff]
    %v177 = vld [vmem:[#allocation5 + $0x270] sm:$0xff]
    %v178 = vld [vmem:[#allocation5 + $0x278] sm:$0xff]
    %v179 = vld [vmem:[#allocation5 + $0x280] sm:$0xff]
    %v180 = vld [vmem:[#allocation5 + $0x288] sm:$0xff]
    %v181 = vld [vmem:[#allocation5 + $0x290] sm:$0xff]
    %v182 = vld [vmem:[#allocation5 + $0x298] sm:$0xff]
    %v183 = vld [vmem:[#allocation5 + $0x2a0] sm:$0xff]
    %v184 = vld [vmem:[#allocation5 + $0x2a8] sm:$0xff]
    %v185 = vld [vmem:[#allocation5 + $0x2b0] sm:$0xff]
    %v186 = vld [vmem:[#allocation5 + $0x2b8] sm:$0xff]
    %v187 = vld [vmem:[#allocation5 + $0x2c0] sm:$0xff]
    %v188 = vld [vmem:[#allocation5 + $0x2c8] sm:$0xff]
    %v189 = vld [vmem:[#allocation5 + $0x2d0] sm:$0xff]
    %v190 = vld [vmem:[#allocation5 + $0x2d8] sm:$0xff]
    %v191 = vld [vmem:[#allocation5 + $0x2e0] sm:$0xff]
    %v192 = vld [vmem:[#allocation5 + $0x2e8] sm:$0xff]
    %v193 = vld [vmem:[#allocation5 + $0x2f0] sm:$0xff]
    %v194 = vld [vmem:[#allocation5 + $0x2f8] sm:$0xff]
    %v195 = vld [vmem:[#allocation5 + $0x300] sm:$0xff]
    %v196 = vld [vmem:[#allocation5 + $0x308] sm:$0xff]
    %v197 = vld [vmem:[#allocation5 + $0x310] sm:$0xff]
    %v198 = vld [vmem:[#allocation5 + $0x318] sm:$0xff]
    %v199 = vld [vmem:[#allocation5 + $0x320] sm:$0xff]
    %v200 = vld [vmem:[#allocation5 + $0x328] sm:$0xff]
    %v201 = vld [vmem:[#allocation5 + $0x330] sm:$0xff]
    %v202 = vld [vmem:[#allocation5 + $0x338] sm:$0xff]
    %v203 = vld [vmem:[#allocation5 + $0x340] sm:$0xff]
    %v204 = vld [vmem:[#allocation5 + $0x348] sm:$0xff]
    %v205 = vld [vmem:[#allocation5 + $0x350] sm:$0xff]
    %v206 = vld [vmem:[#allocation5 + $0x358] sm:$0xff]
    %v207 = vld [vmem:[#allocation5 + $0x360] sm:$0xff]
    %v208 = vld [vmem:[#allocation5 + $0x368] sm:$0xff]
    %v209 = vld [vmem:[#allocation5 + $0x370] sm:$0xff]
    %v210 = vld [vmem:[#allocation5 + $0x378] sm:$0xff]
    %v211 = vld [vmem:[#allocation5 + $0x380] sm:$0xff]
    %v212 = vld [vmem:[#allocation5 + $0x388] sm:$0xff]
    %v213 = vld [vmem:[#allocation5 + $0x390] sm:$0xff]
    %v214 = vld [vmem:[#allocation5 + $0x398] sm:$0xff]
    %v215 = vld [vmem:[#allocation5 + $0x3a0] sm:$0xff]
    %v216 = vld [vmem:[#allocation5 + $0x3a8] sm:$0xff]
    %v217 = vld [vmem:[#allocation5 + $0x3b0] sm:$0xff]
    %v218 = vld [vmem:[#allocation5 + $0x3b8] sm:$0xff]
    %v219 = vld [vmem:[#allocation5 + $0x3c0] sm:$0xff]
    %v220 = vld [vmem:[#allocation5 + $0x3c8] sm:$0xff]
    %v221 = vld [vmem:[#allocation5 + $0x3d0] sm:$0xff]
    %v222 = vld [vmem:[#allocation5 + $0x3d8] sm:$0xff]
    %v223 = vld [vmem:[#allocation5 + $0x3e0] sm:$0xff]
    %v224 = vld [vmem:[#allocation5 + $0x3e8] sm:$0xff]
    %v225 = vld [vmem:[#allocation5 + $0x3f0] sm:$0xff]
    %v226 = vld [vmem:[#allocation5 + $0x3f8] sm:$0xff]
    %v227 = vld [vmem:[#allocation5 + $0x400] sm:$0xff]
    %v228 = vld [vmem:[#allocation5 + $0x408] sm:$0xff]
    %v229 = vld [vmem:[#allocation5 + $0x410] sm:$0xff]
    %v230 = vld [vmem:[#allocation5 + $0x418] sm:$0xff]
    %v231 = vld [vmem:[#allocation5 + $0x420] sm:$0xff]
    %v232 = vld [vmem:[#allocation5 + $0x428] sm:$0xff]
    %v233 = vld [vmem:[#allocation5 + $0x430] sm:$0xff]
    %v234 = vld [vmem:[#allocation5 + $0x438] sm:$0xff]
    %v235 = vld [vmem:[#allocation5 + $0x440] sm:$0xff]
    %v236 = vld [vmem:[#allocation5 + $0x448] sm:$0xff]
    %v237 = vld [vmem:[#allocation5 + $0x450] sm:$0xff]
    %v238 = vld [vmem:[#allocation5 + $0x458] sm:$0xff]
    %v239 = vld [vmem:[#allocation5 + $0x460] sm:$0xff]
    %v240 = vld [vmem:[#allocation5 + $0x468] sm:$0xff]
    %v241 = vld [vmem:[#allocation5 + $0x470] sm:$0xff]
    %v242 = vld [vmem:[#allocation5 + $0x478] sm:$0xff]
    %v243 = vld [vmem:[#allocation5 + $0x480] sm:$0xff]
    %v244 = vld [vmem:[#allocation5 + $0x488] sm:$0xff]
    %v245 = vld [vmem:[#allocation5 + $0x490] sm:$0xff]
    %v246 = vld [vmem:[#allocation5 + $0x498] sm:$0xff]
    %v247 = vld [vmem:[#allocation5 + $0x4a0] sm:$0xff]
    %v248 = vld [vmem:[#allocation5 + $0x4a8] sm:$0xff]
    %v249 = vld [vmem:[#allocation5 + $0x4b0] sm:$0xff]
    %v250 = vld [vmem:[#allocation5 + $0x4b8] sm:$0xff]
    %v251 = vld [vmem:[#allocation5 + $0x4c0] sm:$0xff]
    %v252 = vld [vmem:[#allocation5 + $0x4c8] sm:$0xff]
    %v253 = vld [vmem:[#allocation5 + $0x4d0] sm:$0xff]
    %v254 = vld [vmem:[#allocation5 + $0x4d8] sm:$0xff]
    %v255 = vld [vmem:[#allocation5 + $0x4e0] sm:$0xff]
    %v256 = vld [vmem:[#allocation5 + $0x4e8] sm:$0xff]
    %v257 = vld [vmem:[#allocation5 + $0x4f0] sm:$0xff]
    %v258 = vld [vmem:[#allocation5 + $0x4f8] sm:$0xff]
    %v259 = vld [vmem:[#allocation5 + $0x500] sm:$0xff]
    %v260 = vld [vmem:[#allocation5 + $0x508] sm:$0xff]
    %v261 = vld [vmem:[#allocation5 + $0x510] sm:$0xff]
    %v262 = vld [vmem:[#allocation5 + $0x518] sm:$0xff]
    %v263 = vld [vmem:[#allocation5 + $0x520] sm:$0xff]
    %v264 = vld [vmem:[#allocation5 + $0x528] sm:$0xff]
    %v265 = vld [vmem:[#allocation5 + $0x530] sm:$0xff]
    %v266 = vld [vmem:[#allocation5 + $0x538] sm:$0xff]
    %v267 = vld [vmem:[#allocation5 + $0x540] sm:$0xff]
    %v268 = vld [vmem:[#allocation5 + $0x548] sm:$0xff]
    %v269 = vld [vmem:[#allocation5 + $0x550] sm:$0xff]
    %v270 = vld [vmem:[#allocation5 + $0x558] sm:$0xff]
    %v271 = vld [vmem:[#allocation5 + $0x560] sm:$0xff]
    %v272 = vld [vmem:[#allocation5 + $0x568] sm:$0xff]
    %v273 = vld [vmem:[#allocation5 + $0x570] sm:$0xff]
    %v274 = vld [vmem:[#allocation5 + $0x578] sm:$0xff]
    %v275 = vld [vmem:[#allocation5 + $0x580] sm:$0xff]
    %v276 = vld [vmem:[#allocation5 + $0x588] sm:$0xff]
    %v277 = vld [vmem:[#allocation5 + $0x590] sm:$0xff]
    %v278 = vld [vmem:[#allocation5 + $0x598] sm:$0xff]
    %v279 = vld [vmem:[#allocation5 + $0x5a0] sm:$0xff]
    %v280 = vld [vmem:[#allocation5 + $0x5a8] sm:$0xff]
    %v281 = vld [vmem:[#allocation5 + $0x5b0] sm:$0xff]
    %v282 = vld [vmem:[#allocation5 + $0x5b8] sm:$0xff]
    %v283 = vld [vmem:[#allocation5 + $0x5c0] sm:$0xff]
    %v284 = vld [vmem:[#allocation5 + $0x5c8] sm:$0xff]
    %v285 = vld [vmem:[#allocation5 + $0x5d0] sm:$0xff]
    %v286 = vld [vmem:[#allocation5 + $0x5d8] sm:$0xff]
    %v287 = vld [vmem:[#allocation5 + $0x5e0] sm:$0xff]
    %v288 = vld [vmem:[#allocation5 + $0x5e8] sm:$0xff]
    %v289 = vld [vmem:[#allocation5 + $0x5f0] sm:$0xff]
    %v290 = vld [vmem:[#allocation5 + $0x5f8] sm:$0xff]
    %v291 = vld [vmem:[#allocation5 + $0x600] sm:$0xff]
    %v292 = vld [vmem:[#allocation5 + $0x608] sm:$0xff]
    %v293 = vld [vmem:[#allocation5 + $0x610] sm:$0xff]
    %v294 = vld [vmem:[#allocation5 + $0x618] sm:$0xff]
    %v295 = vld [vmem:[#allocation5 + $0x620] sm:$0xff]
    %v296 = vld [vmem:[#allocation5 + $0x628] sm:$0xff]
    %v297 = vld [vmem:[#allocation5 + $0x630] sm:$0xff]
    %v298 = vld [vmem:[#allocation5 + $0x638] sm:$0xff]
    %v299 = vld [vmem:[#allocation5 + $0x640] sm:$0xff]
    %v300 = vld [vmem:[#allocation5 + $0x648] sm:$0xff]
    %v301 = vld [vmem:[#allocation5 + $0x650] sm:$0xff]
    %v302 = vld [vmem:[#allocation5 + $0x658] sm:$0xff]
    %v303 = vld [vmem:[#allocation5 + $0x660] sm:$0xff]
    %v304 = vld [vmem:[#allocation5 + $0x668] sm:$0xff]
    %v305 = vld [vmem:[#allocation5 + $0x670] sm:$0xff]
    %v306 = vld [vmem:[#allocation5 + $0x678] sm:$0xff]
    %v307 = vld [vmem:[#allocation5 + $0x680] sm:$0xff]
    %v308 = vld [vmem:[#allocation5 + $0x688] sm:$0xff]
    %v309 = vld [vmem:[#allocation5 + $0x690] sm:$0xff]
    %v310 = vld [vmem:[#allocation5 + $0x698] sm:$0xff]
    %v311 = vld [vmem:[#allocation5 + $0x6a0] sm:$0xff]
    %v312 = vld [vmem:[#allocation5 + $0x6a8] sm:$0xff]
    %v313 = vld [vmem:[#allocation5 + $0x6b0] sm:$0xff]
    %v314 = vld [vmem:[#allocation5 + $0x6b8] sm:$0xff]
    %v315 = vld [vmem:[#allocation5 + $0x6c0] sm:$0xff]
    %v316 = vld [vmem:[#allocation5 + $0x6c8] sm:$0xff]
    %v317 = vld [vmem:[#allocation5 + $0x6d0] sm:$0xff]
    %v318 = vld [vmem:[#allocation5 + $0x6d8] sm:$0xff]
    %v319 = vld [vmem:[#allocation5 + $0x6e0] sm:$0xff]
    %v320 = vld [vmem:[#allocation5 + $0x6e8] sm:$0xff]
    %v321 = vld [vmem:[#allocation5 + $0x6f0] sm:$0xff]
    %v322 = vld [vmem:[#allocation5 + $0x6f8] sm:$0xff]
    %v323 = vld [vmem:[#allocation5 + $0x700] sm:$0xff]
    %v324 = vld [vmem:[#allocation5 + $0x708] sm:$0xff]
    %v325 = vld [vmem:[#allocation5 + $0x710] sm:$0xff]
    %v326 = vld [vmem:[#allocation5 + $0x718] sm:$0xff]
    %v327 = vld [vmem:[#allocation5 + $0x720] sm:$0xff]
    %v328 = vld [vmem:[#allocation5 + $0x728] sm:$0xff]
    %v329 = vld [vmem:[#allocation5 + $0x730] sm:$0xff]
    %v330 = vld [vmem:[#allocation5 + $0x738] sm:$0xff]
    %v331 = vld [vmem:[#allocation5 + $0x740] sm:$0xff]
    %v332 = vld [vmem:[#allocation5 + $0x748] sm:$0xff]
    %v333 = vld [vmem:[#allocation5 + $0x750] sm:$0xff]
    %v334 = vld [vmem:[#allocation5 + $0x758] sm:$0xff]
    %v335 = vld [vmem:[#allocation5 + $0x760] sm:$0xff]
    %v336 = vld [vmem:[#allocation5 + $0x768] sm:$0xff]
    %v337 = vld [vmem:[#allocation5 + $0x770] sm:$0xff]
    %v338 = vld [vmem:[#allocation5 + $0x778] sm:$0xff]
    %v339 = vld [vmem:[#allocation5 + $0x780] sm:$0xff]
    %v340 = vld [vmem:[#allocation5 + $0x788] sm:$0xff]
    %v341 = vld [vmem:[#allocation5 + $0x790] sm:$0xff]
    %v342 = vld [vmem:[#allocation5 + $0x798] sm:$0xff]
    %v343 = vld [vmem:[#allocation5 + $0x7a0] sm:$0xff]
    %v344 = vld [vmem:[#allocation5 + $0x7a8] sm:$0xff]
    %v345 = vld [vmem:[#allocation5 + $0x7b0] sm:$0xff]
    %v346 = vld [vmem:[#allocation5 + $0x7b8] sm:$0xff]
    %v347 = vld [vmem:[#allocation5 + $0x7c0] sm:$0xff]
    %v348 = vld [vmem:[#allocation5 + $0x7c8] sm:$0xff]
    %v349 = vld [vmem:[#allocation5 + $0x7d0] sm:$0xff]
    %v350 = vld [vmem:[#allocation5 + $0x7d8] sm:$0xff]
    %v351 = vld [vmem:[#allocation5 + $0x7e0] sm:$0xff]
    %v352 = vld [vmem:[#allocation5 + $0x7e8] sm:$0xff]
    %v353 = vld [vmem:[#allocation5 + $0x7f0] sm:$0xff]
    %v354 = vld [vmem:[#allocation5 + $0x7f8] sm:$0xff]
    %v355 = vld [vmem:[#allocation5 + $0x800] sm:$0xff]
    %v356 = vld [vmem:[#allocation5 + $0x808] sm:$0xff]
    %v357 = vld [vmem:[#allocation5 + $0x810] sm:$0xff]
    %v358 = vld [vmem:[#allocation5 + $0x818] sm:$0xff]
    %v359 = vld [vmem:[#allocation5 + $0x820] sm:$0xff]
    %v360 = vld [vmem:[#allocation5 + $0x828] sm:$0xff]
    %v361 = vld [vmem:[#allocation5 + $0x830] sm:$0xff]
    %v362 = vld [vmem:[#allocation5 + $0x838] sm:$0xff]
    %v363 = vld [vmem:[#allocation5 + $0x840] sm:$0xff]
    %v364 = vld [vmem:[#allocation5 + $0x848] sm:$0xff]
    %v365 = vld [vmem:[#allocation5 + $0x850] sm:$0xff]
    %v366 = vld [vmem:[#allocation5 + $0x858] sm:$0xff]
    %v367 = vld [vmem:[#allocation5 + $0x860] sm:$0xff]
    %v368 = vld [vmem:[#allocation5 + $0x868] sm:$0xff]
    %v369 = vld [vmem:[#allocation5 + $0x870] sm:$0xff]
    %v370 = vld [vmem:[#allocation5 + $0x878] sm:$0xff]
    %v371 = vld [vmem:[#allocation5 + $0x880] sm:$0xff]
    %v372 = vld [vmem:[#allocation5 + $0x888] sm:$0xff]
    %v373 = vld [vmem:[#allocation5 + $0x890] sm:$0xff]
    %v374 = vld [vmem:[#allocation5 + $0x898] sm:$0xff]
    %v375 = vld [vmem:[#allocation5 + $0x8a0] sm:$0xff]
    %v376 = vld [vmem:[#allocation5 + $0x8a8] sm:$0xff]
    %v377 = vld [vmem:[#allocation5 + $0x8b0] sm:$0xff]
    %v378 = vld [vmem:[#allocation5 + $0x8b8] sm:$0xff]
    %v379 = vld [vmem:[#allocation5 + $0x8c0] sm:$0xff]
    %v380 = vld [vmem:[#allocation5 + $0x8c8] sm:$0xff]
    %v381 = vld [vmem:[#allocation5 + $0x8d0] sm:$0xff]
    %v382 = vld [vmem:[#allocation5 + $0x8d8] sm:$0xff]
    %v383 = vld [vmem:[#allocation5 + $0x8e0] sm:$0xff]
    %v384 = vld [vmem:[#allocation5 + $0x8e8] sm:$0xff]
    %v385 = vld [vmem:[#allocation5 + $0x8f0] sm:$0xff]
    %v386 = vld [vmem:[#allocation5 + $0x8f8] sm:$0xff]
    %v387 = vld [vmem:[#allocation5 + $0x900] sm:$0xff]
    %v388 = vld [vmem:[#allocation5 + $0x908] sm:$0xff]
    %v389 = vld [vmem:[#allocation5 + $0x910] sm:$0xff]
    %v390 = vld [vmem:[#allocation5 + $0x918] sm:$0xff]
    %v391 = vld [vmem:[#allocation5 + $0x920] sm:$0xff]
    %v392 = vld [vmem:[#allocation5 + $0x928] sm:$0xff]
    %v393 = vld [vmem:[#allocation5 + $0x930] sm:$0xff]
    %v394 = vld [vmem:[#allocation5 + $0x938] sm:$0xff]
    %v395 = vld [vmem:[#allocation5 + $0x940] sm:$0xff]
    %v396 = vld [vmem:[#allocation5 + $0x948] sm:$0xff]
    %v397 = vld [vmem:[#allocation5 + $0x950] sm:$0xff]
    %v398 = vld [vmem:[#allocation5 + $0x958] sm:$0xff]
    %v399 = vld [vmem:[#allocation5 + $0x960] sm:$0xff]
    %v400 = vld [vmem:[#allocation5 + $0x968] sm:$0xff]
    %v401 = vld [vmem:[#allocation5 + $0x970] sm:$0xff]
    %v402 = vld [vmem:[#allocation5 + $0x978] sm:$0xff]
    %v403 = vld [vmem:[#allocation5 + $0x980] sm:$0xff]
    %v404 = vld [vmem:[#allocation5 + $0x988] sm:$0xff]
    %v405 = vld [vmem:[#allocation5 + $0x990] sm:$0xff]
    %v406 = vld [vmem:[#allocation5 + $0x998] sm:$0xff]
    %v407 = vld [vmem:[#allocation5 + $0x9a0] sm:$0xff]
    %v408 = vld [vmem:[#allocation5 + $0x9a8] sm:$0xff]
    %v409 = vld [vmem:[#allocation5 + $0x9b0] sm:$0xff]
    %v410 = vld [vmem:[#allocation5 + $0x9b8] sm:$0xff]
    %v411 = vld [vmem:[#allocation5 + $0x9c0] sm:$0xff]
    %v412 = vld [vmem:[#allocation5 + $0x9c8] sm:$0xff]
    %v413 = vld [vmem:[#allocation5 + $0x9d0] sm:$0xff]
    %v414 = vld [vmem:[#allocation5 + $0x9d8] sm:$0xff]
    %v415 = vld [vmem:[#allocation5 + $0x9e0] sm:$0xff]
    %v416 = vld [vmem:[#allocation5 + $0x9e8] sm:$0xff]
    %v417 = vld [vmem:[#allocation5 + $0x9f0] sm:$0xff]
    %v418 = vld [vmem:[#allocation5 + $0x9f8] sm:$0xff]
    %v419 = vld [vmem:[#allocation5 + $0xa00] sm:$0xff]
    %v420 = vld [vmem:[#allocation5 + $0xa08] sm:$0xff]
    %v421 = vld [vmem:[#allocation5 + $0xa10] sm:$0xff]
    %v422 = vld [vmem:[#allocation5 + $0xa18] sm:$0xff]
    %v423 = vld [vmem:[#allocation5 + $0xa20] sm:$0xff]
    %v424 = vld [vmem:[#allocation5 + $0xa28] sm:$0xff]
    %v425 = vld [vmem:[#allocation5 + $0xa30] sm:$0xff]
    %v426 = vld [vmem:[#allocation5 + $0xa38] sm:$0xff]
    %v427 = vld [vmem:[#allocation5 + $0xa40] sm:$0xff]
    %v428 = vld [vmem:[#allocation5 + $0xa48] sm:$0xff]
    %v429 = vld [vmem:[#allocation5 + $0xa50] sm:$0xff]
    %v430 = vld [vmem:[#allocation5 + $0xa58] sm:$0xff]
    %v431 = vld [vmem:[#allocation5 + $0xa60] sm:$0xff]
    %v432 = vld [vmem:[#allocation5 + $0xa68] sm:$0xff]
    %v433 = vld [vmem:[#allocation5 + $0xa70] sm:$0xff]
    %v434 = vld [vmem:[#allocation5 + $0xa78] sm:$0xff]
    %v435 = vld [vmem:[#allocation5 + $0xa80] sm:$0xff]
    %v436 = vld [vmem:[#allocation5 + $0xa88] sm:$0xff]
    %v437 = vld [vmem:[#allocation5 + $0xa90] sm:$0xff]
    %v438 = vld [vmem:[#allocation5 + $0xa98] sm:$0xff]
    %v439 = vld [vmem:[#allocation5 + $0xaa0] sm:$0xff]
    %v440 = vld [vmem:[#allocation5 + $0xaa8] sm:$0xff]
    %v441 = vld [vmem:[#allocation5 + $0xab0] sm:$0xff]
    %v442 = vld [vmem:[#allocation5 + $0xab8] sm:$0xff]
    %v443 = vld [vmem:[#allocation5 + $0xac0] sm:$0xff]
    %v444 = vld [vmem:[#allocation5 + $0xac8] sm:$0xff]
    %v445 = vld [vmem:[#allocation5 + $0xad0] sm:$0xff]
    %v446 = vld [vmem:[#allocation5 + $0xad8] sm:$0xff]
    %v447 = vld [vmem:[#allocation5 + $0xae0] sm:$0xff]
    %v448 = vld [vmem:[#allocation5 + $0xae8] sm:$0xff]
    %v449 = vld [vmem:[#allocation5 + $0xaf0] sm:$0xff]
    %v450 = vld [vmem:[#allocation5 + $0xaf8] sm:$0xff]
    %v451 = vld [vmem:[#allocation5 + $0xb00] sm:$0xff]
    %v452 = vld [vmem:[#allocation5 + $0xb08] sm:$0xff]
    %v453 = vld [vmem:[#allocation5 + $0xb10] sm:$0xff]
    %v454 = vld [vmem:[#allocation5 + $0xb18] sm:$0xff]
    %v455 = vld [vmem:[#allocation5 + $0xb20] sm:$0xff]
    %v456 = vld [vmem:[#allocation5 + $0xb28] sm:$0xff]
    %v457 = vld [vmem:[#allocation5 + $0xb30] sm:$0xff]
    %v458 = vld [vmem:[#allocation5 + $0xb38] sm:$0xff]
    %v459 = vld [vmem:[#allocation5 + $0xb40] sm:$0xff]
    %v460 = vld [vmem:[#allocation5 + $0xb48] sm:$0xff]
    %v461 = vld [vmem:[#allocation5 + $0xb50] sm:$0xff]
    %v462 = vld [vmem:[#allocation5 + $0xb58] sm:$0xff]
    %v463 = vld [vmem:[#allocation5 + $0xb60] sm:$0xff]
    %v464 = vld [vmem:[#allocation5 + $0xb68] sm:$0xff]
    %v465 = vld [vmem:[#allocation5 + $0xb70] sm:$0xff]
    %v466 = vld [vmem:[#allocation5 + $0xb78] sm:$0xff]
    %v467 = vld [vmem:[#allocation5 + $0xb80] sm:$0xff]
    %v468 = vld [vmem:[#allocation5 + $0xb88] sm:$0xff]
    %v469 = vld [vmem:[#allocation5 + $0xb90] sm:$0xff]
    %v470 = vld [vmem:[#allocation5 + $0xb98] sm:$0xff]
    %v471 = vld [vmem:[#allocation5 + $0xba0] sm:$0xff]
    %v472 = vld [vmem:[#allocation5 + $0xba8] sm:$0xff]
    %v473 = vld [vmem:[#allocation5 + $0xbb0] sm:$0xff]
    %v474 = vld [vmem:[#allocation5 + $0xbb8] sm:$0xff]
    %v475 = vld [vmem:[#allocation5 + $0xbc0] sm:$0xff]
    %v476 = vld [vmem:[#allocation5 + $0xbc8] sm:$0xff]
    %v477 = vld [vmem:[#allocation5 + $0xbd0] sm:$0xff]
    %v478 = vld [vmem:[#allocation5 + $0xbd8] sm:$0xff]
    %v479 = vld [vmem:[#allocation5 + $0xbe0] sm:$0xff]
    %v480 = vld [vmem:[#allocation5 + $0xbe8] sm:$0xff]
    %v481 = vld [vmem:[#allocation5 + $0xbf0] sm:$0xff]
    %v482 = vld [vmem:[#allocation5 + $0xbf8] sm:$0xff]
    %v483 = vld [vmem:[#allocation5 + $0xc00] sm:$0xff]
    %v484 = vld [vmem:[#allocation5 + $0xc08] sm:$0xff]
    %v485 = vld [vmem:[#allocation5 + $0xc10] sm:$0xff]
    %v486 = vld [vmem:[#allocation5 + $0xc18] sm:$0xff]
    %v487 = vld [vmem:[#allocation5 + $0xc20] sm:$0xff]
    %v488 = vld [vmem:[#allocation5 + $0xc28] sm:$0xff]
    %v489 = vld [vmem:[#allocation5 + $0xc30] sm:$0xff]
    %v490 = vld [vmem:[#allocation5 + $0xc38] sm:$0xff]
    %v491 = vld [vmem:[#allocation5 + $0xc40] sm:$0xff]
    %v492 = vld [vmem:[#allocation5 + $0xc48] sm:$0xff]
    %v493 = vld [vmem:[#allocation5 + $0xc50] sm:$0xff]
    %v494 = vld [vmem:[#allocation5 + $0xc58] sm:$0xff]
    %v495 = vld [vmem:[#allocation5 + $0xc60] sm:$0xff]
    %v496 = vld [vmem:[#allocation5 + $0xc68] sm:$0xff]
    %v497 = vld [vmem:[#allocation5 + $0xc70] sm:$0xff]
    %v498 = vld [vmem:[#allocation5 + $0xc78] sm:$0xff]
    %v499 = vld [vmem:[#allocation5 + $0xc80] sm:$0xff]
    %v500 = vld [vmem:[#allocation5 + $0xc88] sm:$0xff]
    %v501 = vld [vmem:[#allocation5 + $0xc90] sm:$0xff]
    %v502 = vld [vmem:[#allocation5 + $0xc98] sm:$0xff]
    %v503 = vld [vmem:[#allocation5 + $0xca0] sm:$0xff]
    %v504 = vld [vmem:[#allocation5 + $0xca8] sm:$0xff]
    %v505 = vld [vmem:[#allocation5 + $0xcb0] sm:$0xff]
    %v506 = vld [vmem:[#allocation5 + $0xcb8] sm:$0xff]
    %v507 = vld [vmem:[#allocation5 + $0xcc0] sm:$0xff]
    %v508 = vld [vmem:[#allocation5 + $0xcc8] sm:$0xff]
    %v509 = vld [vmem:[#allocation5 + $0xcd0] sm:$0xff]
    %v510 = vld [vmem:[#allocation5 + $0xcd8] sm:$0xff]
    %v511 = vld [vmem:[#allocation5 + $0xce0] sm:$0xff]
    %v512 = vld [vmem:[#allocation5 + $0xce8] sm:$0xff]
    %v513 = vld [vmem:[#allocation5 + $0xcf0] sm:$0xff]
    %v514 = vld [vmem:[#allocation5 + $0xcf8] sm:$0xff]
    %v515 = vld [vmem:[#allocation5 + $0xd00] sm:$0xff]
    %v516 = vld [vmem:[#allocation5 + $0xd08] sm:$0xff]
    %v517 = vld [vmem:[#allocation5 + $0xd10] sm:$0xff]
    %v518 = vld [vmem:[#allocation5 + $0xd18] sm:$0xff]
    %v519 = vld [vmem:[#allocation5 + $0xd20] sm:$0xff]
    %v520 = vld [vmem:[#allocation5 + $0xd28] sm:$0xff]
    %v521 = vld [vmem:[#allocation5 + $0xd30] sm:$0xff]
    %v522 = vld [vmem:[#allocation5 + $0xd38] sm:$0xff]
    %v523 = vld [vmem:[#allocation5 + $0xd40] sm:$0xff]
    %v524 = vld [vmem:[#allocation5 + $0xd48] sm:$0xff]
    %v525 = vld [vmem:[#allocation5 + $0xd50] sm:$0xff]
    %v526 = vld [vmem:[#allocation5 + $0xd58] sm:$0xff]
    %v527 = vld [vmem:[#allocation5 + $0xd60] sm:$0xff]
    %v528 = vld [vmem:[#allocation5 + $0xd68] sm:$0xff]
    %v529 = vld [vmem:[#allocation5 + $0xd70] sm:$0xff]
    %v530 = vld [vmem:[#allocation5 + $0xd78] sm:$0xff]
    %v531 = vld [vmem:[#allocation5 + $0xd80] sm:$0xff]
    %v532 = vld [vmem:[#allocation5 + $0xd88] sm:$0xff]
    %v533 = vld [vmem:[#allocation5 + $0xd90] sm:$0xff]
    %v534 = vld [vmem:[#allocation5 + $0xd98] sm:$0xff]
    %v535 = vld [vmem:[#allocation5 + $0xda0] sm:$0xff]
    %v536 = vld [vmem:[#allocation5 + $0xda8] sm:$0xff]
    %v537 = vld [vmem:[#allocation5 + $0xdb0] sm:$0xff]
    %v538 = vld [vmem:[#allocation5 + $0xdb8] sm:$0xff]
    %v539 = vld [vmem:[#allocation5 + $0xdc0] sm:$0xff]
    %v540 = vld [vmem:[#allocation5 + $0xdc8] sm:$0xff]
    %v541 = vld [vmem:[#allocation5 + $0xdd0] sm:$0xff]
    %v542 = vld [vmem:[#allocation5 + $0xdd8] sm:$0xff]
    %v543 = vld [vmem:[#allocation5 + $0xde0] sm:$0xff]
    %v544 = vld [vmem:[#allocation5 + $0xde8] sm:$0xff]
    %v545 = vld [vmem:[#allocation5 + $0xdf0] sm:$0xff]
    %v546 = vld [vmem:[#allocation5 + $0xdf8] sm:$0xff]
    %v547 = vld [vmem:[#allocation5 + $0xe00] sm:$0xff]
    %v548 = vld [vmem:[#allocation5 + $0xe08] sm:$0xff]
    %v549 = vld [vmem:[#allocation5 + $0xe10] sm:$0xff]
    %v550 = vld [vmem:[#allocation5 + $0xe18] sm:$0xff]
    %v551 = vld [vmem:[#allocation5 + $0xe20] sm:$0xff]
    %v552 = vld [vmem:[#allocation5 + $0xe28] sm:$0xff]
    %v553 = vld [vmem:[#allocation5 + $0xe30] sm:$0xff]
    %v554 = vld [vmem:[#allocation5 + $0xe38] sm:$0xff]
    %v555 = vld [vmem:[#allocation5 + $0xe40] sm:$0xff]
    %v556 = vld [vmem:[#allocation5 + $0xe48] sm:$0xff]
    %v557 = vld [vmem:[#allocation5 + $0xe50] sm:$0xff]
    %v558 = vld [vmem:[#allocation5 + $0xe58] sm:$0xff]
    %v559 = vld [vmem:[#allocation5 + $0xe60] sm:$0xff]
    %v560 = vld [vmem:[#allocation5 + $0xe68] sm:$0xff]
    %v561 = vld [vmem:[#allocation5 + $0xe70] sm:$0xff]
    %v562 = vld [vmem:[#allocation5 + $0xe78] sm:$0xff]
    %v563 = vld [vmem:[#allocation5 + $0xe80] sm:$0xff]
    %v564 = vld [vmem:[#allocation5 + $0xe88] sm:$0xff]
    %v565 = vld [vmem:[#allocation5 + $0xe90] sm:$0xff]
    %v566 = vld [vmem:[#allocation5 + $0xe98] sm:$0xff]
    %v567 = vld [vmem:[#allocation5 + $0xea0] sm:$0xff]
    %v568 = vld [vmem:[#allocation5 + $0xea8] sm:$0xff]
    %v569 = vld [vmem:[#allocation5 + $0xeb0] sm:$0xff]
    %v570 = vld [vmem:[#allocation5 + $0xeb8] sm:$0xff]
    %v571 = vld [vmem:[#allocation5 + $0xec0] sm:$0xff]
    %v572 = vld [vmem:[#allocation5 + $0xec8] sm:$0xff]
    %v573 = vld [vmem:[#allocation5 + $0xed0] sm:$0xff]
    %v574 = vld [vmem:[#allocation5 + $0xed8] sm:$0xff]
    %v575 = vld [vmem:[#allocation5 + $0xee0] sm:$0xff]
    %v576 = vld [vmem:[#allocation5 + $0xee8] sm:$0xff]
    %v577 = vld [vmem:[#allocation5 + $0xef0] sm:$0xff]
    %v578 = vld [vmem:[#allocation5 + $0xef8] sm:$0xff]
    %v579 = vld [vmem:[#allocation5 + $0xf00] sm:$0xff]
    %v580 = vld [vmem:[#allocation5 + $0xf08] sm:$0xff]
    %v581 = vld [vmem:[#allocation5 + $0xf10] sm:$0xff]
    %v582 = vld [vmem:[#allocation5 + $0xf18] sm:$0xff]
    %v583 = vld [vmem:[#allocation5 + $0xf20] sm:$0xff]
    %v584 = vld [vmem:[#allocation5 + $0xf28] sm:$0xff]
    %v585 = vld [vmem:[#allocation5 + $0xf30] sm:$0xff]
    %v586 = vld [vmem:[#allocation5 + $0xf38] sm:$0xff]
    %v587 = vld [vmem:[#allocation5 + $0xf40] sm:$0xff]
    %v588 = vld [vmem:[#allocation5 + $0xf48] sm:$0xff]
    %v589 = vld [vmem:[#allocation5 + $0xf50] sm:$0xff]
    %v590 = vld [vmem:[#allocation5 + $0xf58] sm:$0xff]
    %v591 = vld [vmem:[#allocation5 + $0xf60] sm:$0xff]
    %v592 = vld [vmem:[#allocation5 + $0xf68] sm:$0xff]
    %v593 = vld [vmem:[#allocation5 + $0xf70] sm:$0xff]
    %v594 = vld [vmem:[#allocation5 + $0xf78] sm:$0xff]
    %v595 = vld [vmem:[#allocation5 + $0xf80] sm:$0xff]
    %v596 = vld [vmem:[#allocation5 + $0xf88] sm:$0xff]
    %v597 = vld [vmem:[#allocation5 + $0xf90] sm:$0xff]
    %v598 = vld [vmem:[#allocation5 + $0xf98] sm:$0xff]
    %v599 = vld [vmem:[#allocation5 + $0xfa0] sm:$0xff]
    %v600 = vld [vmem:[#allocation5 + $0xfa8] sm:$0xff]
    %v601 = vld [vmem:[#allocation5 + $0xfb0] sm:$0xff]
    %v602 = vld [vmem:[#allocation5 + $0xfb8] sm:$0xff]
    %v603 = vld [vmem:[#allocation5 + $0xfc0] sm:$0xff]
    %v604 = vld [vmem:[#allocation5 + $0xfc8] sm:$0xff]
    %v605 = vld [vmem:[#allocation5 + $0xfd0] sm:$0xff]
    %v606 = vld [vmem:[#allocation5 + $0xfd8] sm:$0xff]
    %v607 = vld [vmem:[#allocation5 + $0xfe0] sm:$0xff]
    %v608 = vld [vmem:[#allocation5 + $0xfe8] sm:$0xff]
    %v609 = vld [vmem:[#allocation5 + $0xff0] sm:$0xff]
    %v610 = vld [vmem:[#allocation5 + $0xff8] sm:$0xff]
    %v611 = vld [vmem:[#allocation5 + $0x1000] sm:$0xff]
    %v612 = vld [vmem:[#allocation5 + $0x1008] sm:$0xff]
    %v613 = vld [vmem:[#allocation5 + $0x1010] sm:$0xff]
    %v614 = vld [vmem:[#allocation5 + $0x1018] sm:$0xff]
    %v615 = vld [vmem:[#allocation5 + $0x1020] sm:$0xff]
    %v616 = vld [vmem:[#allocation5 + $0x1028] sm:$0xff]
    %v617 = vld [vmem:[#allocation5 + $0x1030] sm:$0xff]
    %v618 = vld [vmem:[#allocation5 + $0x1038] sm:$0xff]
    %v619 = vld [vmem:[#allocation5 + $0x1040] sm:$0xff]
    %v620 = vld [vmem:[#allocation5 + $0x1048] sm:$0xff]
    %v621 = vld [vmem:[#allocation5 + $0x1050] sm:$0xff]
    %v622 = vld [vmem:[#allocation5 + $0x1058] sm:$0xff]
    %v623 = vld [vmem:[#allocation5 + $0x1060] sm:$0xff]
    %v624 = vld [vmem:[#allocation5 + $0x1068] sm:$0xff]
    %v625 = vld [vmem:[#allocation5 + $0x1070] sm:$0xff]
    %v626 = vld [vmem:[#allocation5 + $0x1078] sm:$0xff]
    %v627 = vld [vmem:[#allocation5 + $0x1080] sm:$0xff]
    %v628 = vld [vmem:[#allocation5 + $0x1088] sm:$0xff]
    %v629 = vld [vmem:[#allocation5 + $0x1090] sm:$0xff]
    %v630 = vld [vmem:[#allocation5 + $0x1098] sm:$0xff]
    %v631 = vld [vmem:[#allocation5 + $0x10a0] sm:$0xff]
    %v632 = vld [vmem:[#allocation5 + $0x10a8] sm:$0xff]
    %v633 = vld [vmem:[#allocation5 + $0x10b0] sm:$0xff]
    %v634 = vld [vmem:[#allocation5 + $0x10b8] sm:$0xff]
    %v635 = vld [vmem:[#allocation5 + $0x10c0] sm:$0xff]
    %v636 = vld [vmem:[#allocation5 + $0x10c8] sm:$0xff]
    %v637 = vld [vmem:[#allocation5 + $0x10d0] sm:$0xff]
    %v638 = vld [vmem:[#allocation5 + $0x10d8] sm:$0xff]
    %v639 = vld [vmem:[#allocation5 + $0x10e0] sm:$0xff]
    %v640 = vld [vmem:[#allocation5 + $0x10e8] sm:$0xff]
    %v641 = vld [vmem:[#allocation5 + $0x10f0] sm:$0xff]
    %v642 = vld [vmem:[#allocation5 + $0x10f8] sm:$0xff]
    %v643 = vld [vmem:[#allocation5 + $0x1100] sm:$0xff]
    %v644 = vld [vmem:[#allocation5 + $0x1108] sm:$0xff]
    %v645 = vld [vmem:[#allocation5 + $0x1110] sm:$0xff]
    %v646 = vld [vmem:[#allocation5 + $0x1118] sm:$0xff]
    %v647 = vld [vmem:[#allocation5 + $0x1120] sm:$0xff]
    %v648 = vld [vmem:[#allocation5 + $0x1128] sm:$0xff]
    %v649 = vld [vmem:[#allocation5 + $0x1130] sm:$0xff]
    %v650 = vld [vmem:[#allocation5 + $0x1138] sm:$0xff]
    %v651 = vld [vmem:[#allocation5 + $0x1140] sm:$0xff]
    %v652 = vld [vmem:[#allocation5 + $0x1148] sm:$0xff]
    %v653 = vld [vmem:[#allocation5 + $0x1150] sm:$0xff]
    %v654 = vld [vmem:[#allocation5 + $0x1158] sm:$0xff]
    %v655 = vld [vmem:[#allocation5 + $0x1160] sm:$0xff]
    %v656 = vld [vmem:[#allocation5 + $0x1168] sm:$0xff]
    %v657 = vld [vmem:[#allocation5 + $0x1170] sm:$0xff]
    %v658 = vld [vmem:[#allocation5 + $0x1178] sm:$0xff]
    %v659 = vld [vmem:[#allocation5 + $0x1180] sm:$0xff]
    %v660 = vld [vmem:[#allocation5 + $0x1188] sm:$0xff]
    %v661 = vld [vmem:[#allocation5 + $0x1190] sm:$0xff]
    %v662 = vld [vmem:[#allocation5 + $0x1198] sm:$0xff]
    %v663 = vld [vmem:[#allocation5 + $0x11a0] sm:$0xff]
    %v664 = vld [vmem:[#allocation5 + $0x11a8] sm:$0xff]
    %v665 = vld [vmem:[#allocation5 + $0x11b0] sm:$0xff]
    %v666 = vld [vmem:[#allocation5 + $0x11b8] sm:$0xff]
    %v667 = vld [vmem:[#allocation5 + $0x11c0] sm:$0xff]
    %v668 = vld [vmem:[#allocation5 + $0x11c8] sm:$0xff]
    %v669 = vld [vmem:[#allocation5 + $0x11d0] sm:$0xff]
    %v670 = vld [vmem:[#allocation5 + $0x11d8] sm:$0xff]
    %v671 = vld [vmem:[#allocation5 + $0x11e0] sm:$0xff]
    %v672 = vld [vmem:[#allocation5 + $0x11e8] sm:$0xff]
    %v673 = vld [vmem:[#allocation5 + $0x11f0] sm:$0xff]
    %v674 = vld [vmem:[#allocation5 + $0x11f8] sm:$0xff]
    %v675 = vld [vmem:[#allocation5 + $0x1200] sm:$0xff]
    %v676 = vld [vmem:[#allocation5 + $0x1208] sm:$0xff]
    %v677 = vld [vmem:[#allocation5 + $0x1210] sm:$0xff]
    %v678 = vld [vmem:[#allocation5 + $0x1218] sm:$0xff]
    %v679 = vld [vmem:[#allocation5 + $0x1220] sm:$0xff]
    %v680 = vld [vmem:[#allocation5 + $0x1228] sm:$0xff]
    %v681 = vld [vmem:[#allocation5 + $0x1230] sm:$0xff]
    %v682 = vld [vmem:[#allocation5 + $0x1238] sm:$0xff]
    %v683 = vld [vmem:[#allocation5 + $0x1240] sm:$0xff]
    %v684 = vld [vmem:[#allocation5 + $0x1248] sm:$0xff]
    %v685 = vld [vmem:[#allocation5 + $0x1250] sm:$0xff]
    %v686 = vld [vmem:[#allocation5 + $0x1258] sm:$0xff]
    %v687 = vld [vmem:[#allocation5 + $0x1260] sm:$0xff]
    %v688 = vld [vmem:[#allocation5 + $0x1268] sm:$0xff]
    %v689 = vld [vmem:[#allocation5 + $0x1270] sm:$0xff]
    %v690 = vld [vmem:[#allocation5 + $0x1278] sm:$0xff]
    %v691 = vld [vmem:[#allocation5 + $0x1280] sm:$0xff]
    %v692 = vld [vmem:[#allocation5 + $0x1288] sm:$0xff]
    %v693 = vld [vmem:[#allocation5 + $0x1290] sm:$0xff]
    %v694 = vld [vmem:[#allocation5 + $0x1298] sm:$0xff]
    %v695 = vld [vmem:[#allocation5 + $0x12a0] sm:$0xff]
    %v696 = vld [vmem:[#allocation5 + $0x12a8] sm:$0xff]
    %v697 = vld [vmem:[#allocation5 + $0x12b0] sm:$0xff]
    %v698 = vld [vmem:[#allocation5 + $0x12b8] sm:$0xff]
    %v699 = vld [vmem:[#allocation5 + $0x12c0] sm:$0xff]
    %v700 = vld [vmem:[#allocation5 + $0x12c8] sm:$0xff]
    %v701 = vld [vmem:[#allocation5 + $0x12d0] sm:$0xff]
    %v702 = vld [vmem:[#allocation5 + $0x12d8] sm:$0xff]
    %v703 = vld [vmem:[#allocation5 + $0x12e0] sm:$0xff]
    %v704 = vld [vmem:[#allocation5 + $0x12e8] sm:$0xff]
    %v705 = vld [vmem:[#allocation5 + $0x12f0] sm:$0xff]
    %v706 = vld [vmem:[#allocation5 + $0x12f8] sm:$0xff]
    %v707 = vld [vmem:[#allocation5 + $0x1300] sm:$0xff]
    %v708 = vld [vmem:[#allocation5 + $0x1308] sm:$0xff]
    %v709 = vld [vmem:[#allocation5 + $0x1310] sm:$0xff]
    %v710 = vld [vmem:[#allocation5 + $0x1318] sm:$0xff]
    %v711 = vld [vmem:[#allocation5 + $0x1320] sm:$0xff]
    %v712 = vld [vmem:[#allocation5 + $0x1328] sm:$0xff]
    %v713 = vld [vmem:[#allocation5 + $0x1330] sm:$0xff]
    %v714 = vld [vmem:[#allocation5 + $0x1338] sm:$0xff]
    %v715 = vld [vmem:[#allocation5 + $0x1340] sm:$0xff]
    %v716 = vld [vmem:[#allocation5 + $0x1348] sm:$0xff]
    %v717 = vld [vmem:[#allocation5 + $0x1350] sm:$0xff]
    %v718 = vld [vmem:[#allocation5 + $0x1358] sm:$0xff]
    %v719 = vld [vmem:[#allocation5 + $0x1360] sm:$0xff]
    %v720 = vld [vmem:[#allocation5 + $0x1368] sm:$0xff]
    %v721 = vld [vmem:[#allocation5 + $0x1370] sm:$0xff]
    %v722 = vld [vmem:[#allocation5 + $0x1378] sm:$0xff]
    %v723 = vld [vmem:[#allocation5 + $0x1380] sm:$0xff]
    %v724 = vld [vmem:[#allocation5 + $0x1388] sm:$0xff]
    %v725 = vld [vmem:[#allocation5 + $0x1390] sm:$0xff]
    %v726 = vld [vmem:[#allocation5 + $0x1398] sm:$0xff]
    %v727 = vld [vmem:[#allocation5 + $0x13a0] sm:$0xff]
    %v728 = vld [vmem:[#allocation5 + $0x13a8] sm:$0xff]
    %v729 = vld [vmem:[#allocation5 + $0x13b0] sm:$0xff]
    %v730 = vld [vmem:[#allocation5 + $0x13b8] sm:$0xff]
    %v731 = vld [vmem:[#allocation5 + $0x13c0] sm:$0xff]
    %v732 = vld [vmem:[#allocation5 + $0x13c8] sm:$0xff]
    %v733 = vld [vmem:[#allocation5 + $0x13d0] sm:$0xff]
    %v734 = vld [vmem:[#allocation5 + $0x13d8] sm:$0xff]
    %v735 = vld [vmem:[#allocation5 + $0x13e0] sm:$0xff]
    %v736 = vld [vmem:[#allocation5 + $0x13e8] sm:$0xff]
    %v737 = vld [vmem:[#allocation5 + $0x13f0] sm:$0xff]
    %v738 = vld [vmem:[#allocation5 + $0x13f8] sm:$0xff]
    %v739 = vld [vmem:[#allocation5 + $0x1400] sm:$0xff]
    %v740 = vld [vmem:[#allocation5 + $0x1408] sm:$0xff]
    %v741 = vld [vmem:[#allocation5 + $0x1410] sm:$0xff]
    %v742 = vld [vmem:[#allocation5 + $0x1418] sm:$0xff]
    %v743 = vld [vmem:[#allocation5 + $0x1420] sm:$0xff]
    %v744 = vld [vmem:[#allocation5 + $0x1428] sm:$0xff]
    %v745 = vld [vmem:[#allocation5 + $0x1430] sm:$0xff]
    %v746 = vld [vmem:[#allocation5 + $0x1438] sm:$0xff]
    %v747 = vld [vmem:[#allocation5 + $0x1440] sm:$0xff]
    %v748 = vld [vmem:[#allocation5 + $0x1448] sm:$0xff]
    %v749 = vld [vmem:[#allocation5 + $0x1450] sm:$0xff]
    %v750 = vld [vmem:[#allocation5 + $0x1458] sm:$0xff]
    %v751 = vld [vmem:[#allocation5 + $0x1460] sm:$0xff]
    %v752 = vld [vmem:[#allocation5 + $0x1468] sm:$0xff]
    %v753 = vld [vmem:[#allocation5 + $0x1470] sm:$0xff]
    %v754 = vld [vmem:[#allocation5 + $0x1478] sm:$0xff]
    %v755 = vld [vmem:[#allocation5 + $0x1480] sm:$0xff]
    %v756 = vld [vmem:[#allocation5 + $0x1488] sm:$0xff]
    %v757 = vld [vmem:[#allocation5 + $0x1490] sm:$0xff]
    %v758 = vld [vmem:[#allocation5 + $0x1498] sm:$0xff]
    %v759 = vld [vmem:[#allocation5 + $0x14a0] sm:$0xff]
    %v760 = vld [vmem:[#allocation5 + $0x14a8] sm:$0xff]
    %v761 = vld [vmem:[#allocation5 + $0x14b0] sm:$0xff]
    %v762 = vld [vmem:[#allocation5 + $0x14b8] sm:$0xff]
    %v763 = vld [vmem:[#allocation5 + $0x14c0] sm:$0xff]
    %v764 = vld [vmem:[#allocation5 + $0x14c8] sm:$0xff]
    %v765 = vld [vmem:[#allocation5 + $0x14d0] sm:$0xff]
    %v766 = vld [vmem:[#allocation5 + $0x14d8] sm:$0xff]
    %v767 = vld [vmem:[#allocation5 + $0x14e0] sm:$0xff]
    %v768 = vld [vmem:[#allocation5 + $0x14e8] sm:$0xff]
    %v769 = vld [vmem:[#allocation5 + $0x14f0] sm:$0xff]
    %v770 = vld [vmem:[#allocation5 + $0x14f8] sm:$0xff]
    %v771 = vld [vmem:[#allocation5 + $0x1500] sm:$0xff]
    %v772 = vld [vmem:[#allocation5 + $0x1508] sm:$0xff]
    %v773 = vld [vmem:[#allocation5 + $0x1510] sm:$0xff]
    %v774 = vld [vmem:[#allocation5 + $0x1518] sm:$0xff]
    %v775 = vld [vmem:[#allocation5 + $0x1520] sm:$0xff]
    %v776 = vld [vmem:[#allocation5 + $0x1528] sm:$0xff]
    %v777 = vld [vmem:[#allocation5 + $0x1530] sm:$0xff]
    %v778 = vld [vmem:[#allocation5 + $0x1538] sm:$0xff]
    %v779 = vld [vmem:[#allocation5 + $0x1540] sm:$0xff]
    %v780 = vld [vmem:[#allocation5 + $0x1548] sm:$0xff]
    %v781 = vld [vmem:[#allocation5 + $0x1550] sm:$0xff]
    %v782 = vld [vmem:[#allocation5 + $0x1558] sm:$0xff]
    %v783 = vld [vmem:[#allocation5 + $0x1560] sm:$0xff]
    %v784 = vld [vmem:[#allocation5 + $0x1568] sm:$0xff]
    %v785 = vld [vmem:[#allocation5 + $0x1570] sm:$0xff]
    %v786 = vld [vmem:[#allocation5 + $0x1578] sm:$0xff]
    %v787 = vld [vmem:[#allocation5 + $0x1580] sm:$0xff]
    %v788 = vld [vmem:[#allocation5 + $0x1588] sm:$0xff]
    %v789 = vld [vmem:[#allocation5 + $0x1590] sm:$0xff]
    %v790 = vld [vmem:[#allocation5 + $0x1598] sm:$0xff]
    %v791 = vld [vmem:[#allocation5 + $0x15a0] sm:$0xff]
    %v792 = vld [vmem:[#allocation5 + $0x15a8] sm:$0xff]
    %v793 = vld [vmem:[#allocation5 + $0x15b0] sm:$0xff]
    %v794 = vld [vmem:[#allocation5 + $0x15b8] sm:$0xff]
    %v795 = vld [vmem:[#allocation5 + $0x15c0] sm:$0xff]
    %v796 = vld [vmem:[#allocation5 + $0x15c8] sm:$0xff]
    %v797 = vld [vmem:[#allocation5 + $0x15d0] sm:$0xff]
    %v798 = vld [vmem:[#allocation5 + $0x15d8] sm:$0xff]
    %v799 = vld [vmem:[#allocation5 + $0x15e0] sm:$0xff]
    %v800 = vld [vmem:[#allocation5 + $0x15e8] sm:$0xff]
    %v801 = vld [vmem:[#allocation5 + $0x15f0] sm:$0xff]
    %v802 = vld [vmem:[#allocation5 + $0x15f8] sm:$0xff]
    %v803 = vld [vmem:[#allocation5 + $0x1600] sm:$0xff]
    %v804 = vld [vmem:[#allocation5 + $0x1608] sm:$0xff]
    %v805 = vld [vmem:[#allocation5 + $0x1610] sm:$0xff]
    %v806 = vld [vmem:[#allocation5 + $0x1618] sm:$0xff]
    %v807 = vld [vmem:[#allocation5 + $0x1620] sm:$0xff]
    %v808 = vld [vmem:[#allocation5 + $0x1628] sm:$0xff]
    %v809 = vld [vmem:[#allocation5 + $0x1630] sm:$0xff]
    %v810 = vld [vmem:[#allocation5 + $0x1638] sm:$0xff]
    %v811 = vld [vmem:[#allocation5 + $0x1640] sm:$0xff]
    %v812 = vld [vmem:[#allocation5 + $0x1648] sm:$0xff]
    %v813 = vld [vmem:[#allocation5 + $0x1650] sm:$0xff]
    %v814 = vld [vmem:[#allocation5 + $0x1658] sm:$0xff]
    %v815 = vld [vmem:[#allocation5 + $0x1660] sm:$0xff]
    %v816 = vld [vmem:[#allocation5 + $0x1668] sm:$0xff]
    %v817 = vld [vmem:[#allocation5 + $0x1670] sm:$0xff]
    %v818 = vld [vmem:[#allocation5 + $0x1678] sm:$0xff]
    %v819 = vld [vmem:[#allocation5 + $0x1680] sm:$0xff]
    %v820 = vld [vmem:[#allocation5 + $0x1688] sm:$0xff]
    %v821 = vld [vmem:[#allocation5 + $0x1690] sm:$0xff]
    %v822 = vld [vmem:[#allocation5 + $0x1698] sm:$0xff]
    %v823 = vld [vmem:[#allocation5 + $0x16a0] sm:$0xff]
    %v824 = vld [vmem:[#allocation5 + $0x16a8] sm:$0xff]
    %v825 = vld [vmem:[#allocation5 + $0x16b0] sm:$0xff]
    %v826 = vld [vmem:[#allocation5 + $0x16b8] sm:$0xff]
    %v827 = vld [vmem:[#allocation5 + $0x16c0] sm:$0xff]
    %v828 = vld [vmem:[#allocation5 + $0x16c8] sm:$0xff]
    %v829 = vld [vmem:[#allocation5 + $0x16d0] sm:$0xff]
    %v830 = vld [vmem:[#allocation5 + $0x16d8] sm:$0xff]
    %v831 = vld [vmem:[#allocation5 + $0x16e0] sm:$0xff]
    %v832 = vld [vmem:[#allocation5 + $0x16e8] sm:$0xff]
    %v833 = vld [vmem:[#allocation5 + $0x16f0] sm:$0xff]
    %v834 = vld [vmem:[#allocation5 + $0x16f8] sm:$0xff]
    %v835 = vld [vmem:[#allocation5 + $0x1700] sm:$0xff]
    %v836 = vld [vmem:[#allocation5 + $0x1708] sm:$0xff]
    %v837 = vld [vmem:[#allocation5 + $0x1710] sm:$0xff]
    %v838 = vld [vmem:[#allocation5 + $0x1718] sm:$0xff]
    %v839 = vld [vmem:[#allocation5 + $0x1720] sm:$0xff]
    %v840 = vld [vmem:[#allocation5 + $0x1728] sm:$0xff]
    %v841 = vld [vmem:[#allocation5 + $0x1730] sm:$0xff]
    %v842 = vld [vmem:[#allocation5 + $0x1738] sm:$0xff]
    %v843 = vld [vmem:[#allocation5 + $0x1740] sm:$0xff]
    %v844 = vld [vmem:[#allocation5 + $0x1748] sm:$0xff]
    %v845 = vld [vmem:[#allocation5 + $0x1750] sm:$0xff]
    %v846 = vld [vmem:[#allocation5 + $0x1758] sm:$0xff]
    %v847 = vld [vmem:[#allocation5 + $0x1760] sm:$0xff]
    %v848 = vld [vmem:[#allocation5 + $0x1768] sm:$0xff]
    %v849 = vld [vmem:[#allocation5 + $0x1770] sm:$0xff]
    %v850 = vld [vmem:[#allocation5 + $0x1778] sm:$0xff]
    %v851 = vld [vmem:[#allocation5 + $0x1780] sm:$0xff]
    %v852 = vld [vmem:[#allocation5 + $0x1788] sm:$0xff]
    %v853 = vld [vmem:[#allocation5 + $0x1790] sm:$0xff]
    %v854 = vld [vmem:[#allocation5 + $0x1798] sm:$0xff]
    %v855 = vld [vmem:[#allocation5 + $0x17a0] sm:$0xff]
    %v856 = vld [vmem:[#allocation5 + $0x17a8] sm:$0xff]
    %v857 = vld [vmem:[#allocation5 + $0x17b0] sm:$0xff]
    %v858 = vld [vmem:[#allocation5 + $0x17b8] sm:$0xff]
    %v859 = vld [vmem:[#allocation5 + $0x17c0] sm:$0xff]
    %v860 = vld [vmem:[#allocation5 + $0x17c8] sm:$0xff]
    %v861 = vld [vmem:[#allocation5 + $0x17d0] sm:$0xff]
    %v862 = vld [vmem:[#allocation5 + $0x17d8] sm:$0xff]
    %v863 = vld [vmem:[#allocation5 + $0x17e0] sm:$0xff]
    %v864 = vld [vmem:[#allocation5 + $0x17e8] sm:$0xff]
    %v865 = vld [vmem:[#allocation5 + $0x17f0] sm:$0xff]
    %v866 = vld [vmem:[#allocation5 + $0x17f8] sm:$0xff]
    %v867 = vld [vmem:[#allocation5 + $0x1800] sm:$0xff]
    %v868 = vld [vmem:[#allocation5 + $0x1808] sm:$0xff]
    %v869 = vld [vmem:[#allocation5 + $0x1810] sm:$0xff]
    %v870 = vld [vmem:[#allocation5 + $0x1818] sm:$0xff]
    %v871 = vld [vmem:[#allocation5 + $0x1820] sm:$0xff]
    %v872 = vld [vmem:[#allocation5 + $0x1828] sm:$0xff]
    %v873 = vld [vmem:[#allocation5 + $0x1830] sm:$0xff]
    %v874 = vld [vmem:[#allocation5 + $0x1838] sm:$0xff]
    %v875 = vld [vmem:[#allocation5 + $0x1840] sm:$0xff]
    %v876 = vld [vmem:[#allocation5 + $0x1848] sm:$0xff]
    %v877 = vld [vmem:[#allocation5 + $0x1850] sm:$0xff]
    %v878 = vld [vmem:[#allocation5 + $0x1858] sm:$0xff]
    %v879 = vld [vmem:[#allocation5 + $0x1860] sm:$0xff]
    %v880 = vld [vmem:[#allocation5 + $0x1868] sm:$0xff]
    %v881 = vld [vmem:[#allocation5 + $0x1870] sm:$0xff]
    %v882 = vld [vmem:[#allocation5 + $0x1878] sm:$0xff]
    %v883 = vld [vmem:[#allocation5 + $0x1880] sm:$0xff]
    %v884 = vld [vmem:[#allocation5 + $0x1888] sm:$0xff]
    %v885 = vld [vmem:[#allocation5 + $0x1890] sm:$0xff]
    %v886 = vld [vmem:[#allocation5 + $0x1898] sm:$0xff]
    %v887 = vld [vmem:[#allocation5 + $0x18a0] sm:$0xff]
    %v888 = vld [vmem:[#allocation5 + $0x18a8] sm:$0xff]
    %v889 = vld [vmem:[#allocation5 + $0x18b0] sm:$0xff]
    %v890 = vld [vmem:[#allocation5 + $0x18b8] sm:$0xff]
    %v891 = vld [vmem:[#allocation5 + $0x18c0] sm:$0xff]
    %v892 = vld [vmem:[#allocation5 + $0x18c8] sm:$0xff]
    %v893 = vld [vmem:[#allocation5 + $0x18d0] sm:$0xff]
    %v894 = vld [vmem:[#allocation5 + $0x18d8] sm:$0xff]
    %v895 = vld [vmem:[#allocation5 + $0x18e0] sm:$0xff]
    %v896 = vld [vmem:[#allocation5 + $0x18e8] sm:$0xff]
    %v897 = vld [vmem:[#allocation5 + $0x18f0] sm:$0xff]
    %v898 = vld [vmem:[#allocation5 + $0x18f8] sm:$0xff]
    %v899 = vld [vmem:[#allocation5 + $0x1900] sm:$0xff]
    %v900 = vld [vmem:[#allocation5 + $0x1908] sm:$0xff]
    %v901 = vld [vmem:[#allocation5 + $0x1910] sm:$0xff]
    %v902 = vld [vmem:[#allocation5 + $0x1918] sm:$0xff]
    %v903 = vld [vmem:[#allocation5 + $0x1920] sm:$0xff]
    %v904 = vld [vmem:[#allocation5 + $0x1928] sm:$0xff]
    %v905 = vld [vmem:[#allocation5 + $0x1930] sm:$0xff]
    %v906 = vld [vmem:[#allocation5 + $0x1938] sm:$0xff]
    %v907 = vld [vmem:[#allocation5 + $0x1940] sm:$0xff]
    %v908 = vld [vmem:[#allocation5 + $0x1948] sm:$0xff]
    %v909 = vld [vmem:[#allocation5 + $0x1950] sm:$0xff]
    %v910 = vld [vmem:[#allocation5 + $0x1958] sm:$0xff]
    %v911 = vld [vmem:[#allocation5 + $0x1960] sm:$0xff]
    %v912 = vld [vmem:[#allocation5 + $0x1968] sm:$0xff]
    %v913 = vld [vmem:[#allocation5 + $0x1970] sm:$0xff]
    %v914 = vld [vmem:[#allocation5 + $0x1978] sm:$0xff]
    %v915 = vld [vmem:[#allocation5 + $0x1980] sm:$0xff]
    %v916 = vld [vmem:[#allocation5 + $0x1988] sm:$0xff]
    %v917 = vld [vmem:[#allocation5 + $0x1990] sm:$0xff]
    %v918 = vld [vmem:[#allocation5 + $0x1998] sm:$0xff]
    %v919 = vld [vmem:[#allocation5 + $0x19a0] sm:$0xff]
    %v920 = vld [vmem:[#allocation5 + $0x19a8] sm:$0xff]
    %v921 = vld [vmem:[#allocation5 + $0x19b0] sm:$0xff]
    %v922 = vld [vmem:[#allocation5 + $0x19b8] sm:$0xff]
    %v923 = vld [vmem:[#allocation5 + $0x19c0] sm:$0xff]
    %v924 = vld [vmem:[#allocation5 + $0x19c8] sm:$0xff]
    %v925 = vld [vmem:[#allocation5 + $0x19d0] sm:$0xff]
    %v926 = vld [vmem:[#allocation5 + $0x19d8] sm:$0xff]
    %v927 = vld [vmem:[#allocation5 + $0x19e0] sm:$0xff]
    %v928 = vld [vmem:[#allocation5 + $0x19e8] sm:$0xff]
    %v929 = vld [vmem:[#allocation5 + $0x19f0] sm:$0xff]
    %v930 = vld [vmem:[#allocation5 + $0x19f8] sm:$0xff]
    %v931 = vld [vmem:[#allocation5 + $0x1a00] sm:$0xff]
    %v932 = vld [vmem:[#allocation5 + $0x1a08] sm:$0xff]
    %v933 = vld [vmem:[#allocation5 + $0x1a10] sm:$0xff]
    %v934 = vld [vmem:[#allocation5 + $0x1a18] sm:$0xff]
    %v935 = vld [vmem:[#allocation5 + $0x1a20] sm:$0xff]
    %v936 = vld [vmem:[#allocation5 + $0x1a28] sm:$0xff]
    %v937 = vld [vmem:[#allocation5 + $0x1a30] sm:$0xff]
    %v938 = vld [vmem:[#allocation5 + $0x1a38] sm:$0xff]
    %v939 = vld [vmem:[#allocation5 + $0x1a40] sm:$0xff]
    %v940 = vld [vmem:[#allocation5 + $0x1a48] sm:$0xff]
    %v941 = vld [vmem:[#allocation5 + $0x1a50] sm:$0xff]
    %v942 = vld [vmem:[#allocation5 + $0x1a58] sm:$0xff]
    %v943 = vld [vmem:[#allocation5 + $0x1a60] sm:$0xff]
    %v944 = vld [vmem:[#allocation5 + $0x1a68] sm:$0xff]
    %v945 = vld [vmem:[#allocation5 + $0x1a70] sm:$0xff]
    %v946 = vld [vmem:[#allocation5 + $0x1a78] sm:$0xff]
    %v947 = vld [vmem:[#allocation5 + $0x1a80] sm:$0xff]
    %v948 = vld [vmem:[#allocation5 + $0x1a88] sm:$0xff]
    %v949 = vld [vmem:[#allocation5 + $0x1a90] sm:$0xff]
    %v950 = vld [vmem:[#allocation5 + $0x1a98] sm:$0xff]
    %v951 = vld [vmem:[#allocation5 + $0x1aa0] sm:$0xff]
    %v952 = vld [vmem:[#allocation5 + $0x1aa8] sm:$0xff]
    %v953 = vld [vmem:[#allocation5 + $0x1ab0] sm:$0xff]
    %v954 = vld [vmem:[#allocation5 + $0x1ab8] sm:$0xff]
    %v955 = vld [vmem:[#allocation5 + $0x1ac0] sm:$0xff]
    %v956 = vld [vmem:[#allocation5 + $0x1ac8] sm:$0xff]
    %v957 = vld [vmem:[#allocation5 + $0x1ad0] sm:$0xff]
    %v958 = vld [vmem:[#allocation5 + $0x1ad8] sm:$0xff]
    %v959 = vld [vmem:[#allocation5 + $0x1ae0] sm:$0xff]
    %v960 = vld [vmem:[#allocation5 + $0x1ae8] sm:$0xff]
    %v961 = vld [vmem:[#allocation5 + $0x1af0] sm:$0xff]
    %v962 = vld [vmem:[#allocation5 + $0x1af8] sm:$0xff]
    %v963 = vld [vmem:[#allocation5 + $0x1b00] sm:$0xff]
    %v964 = vld [vmem:[#allocation5 + $0x1b08] sm:$0xff]
    %v965 = vld [vmem:[#allocation5 + $0x1b10] sm:$0xff]
    %v966 = vld [vmem:[#allocation5 + $0x1b18] sm:$0xff]
    %v967 = vld [vmem:[#allocation5 + $0x1b20] sm:$0xff]
    %v968 = vld [vmem:[#allocation5 + $0x1b28] sm:$0xff]
    %v969 = vld [vmem:[#allocation5 + $0x1b30] sm:$0xff]
    %v970 = vld [vmem:[#allocation5 + $0x1b38] sm:$0xff]
    %v971 = vld [vmem:[#allocation5 + $0x1b40] sm:$0xff]
    %v972 = vld [vmem:[#allocation5 + $0x1b48] sm:$0xff]
    %v973 = vld [vmem:[#allocation5 + $0x1b50] sm:$0xff]
    %v974 = vld [vmem:[#allocation5 + $0x1b58] sm:$0xff]
    %v975 = vld [vmem:[#allocation5 + $0x1b60] sm:$0xff]
    %v976 = vld [vmem:[#allocation5 + $0x1b68] sm:$0xff]
    %v977 = vld [vmem:[#allocation5 + $0x1b70] sm:$0xff]
    %v978 = vld [vmem:[#allocation5 + $0x1b78] sm:$0xff]
    %v979 = vld [vmem:[#allocation5 + $0x1b80] sm:$0xff]
    %v980 = vld [vmem:[#allocation5 + $0x1b88] sm:$0xff]
    %v981 = vld [vmem:[#allocation5 + $0x1b90] sm:$0xff]
    %v982 = vld [vmem:[#allocation5 + $0x1b98] sm:$0xff]
    %v983 = vld [vmem:[#allocation5 + $0x1ba0] sm:$0xff]
    %v984 = vld [vmem:[#allocation5 + $0x1ba8] sm:$0xff]
    %v985 = vld [vmem:[#allocation5 + $0x1bb0] sm:$0xff]
    %v986 = vld [vmem:[#allocation5 + $0x1bb8] sm:$0xff]
    %v987 = vld [vmem:[#allocation5 + $0x1bc0] sm:$0xff]
    %v988 = vld [vmem:[#allocation5 + $0x1bc8] sm:$0xff]
    %v989 = vld [vmem:[#allocation5 + $0x1bd0] sm:$0xff]
    %v990 = vld [vmem:[#allocation5 + $0x1bd8] sm:$0xff]
    %v991 = vld [vmem:[#allocation5 + $0x1be0] sm:$0xff]
    %v992 = vld [vmem:[#allocation5 + $0x1be8] sm:$0xff]
    %v993 = vld [vmem:[#allocation5 + $0x1bf0] sm:$0xff]
    %v994 = vld [vmem:[#allocation5 + $0x1bf8] sm:$0xff]
    %v995 = vld [vmem:[#allocation5 + $0x1c00] sm:$0xff]
    %v996 = vld [vmem:[#allocation5 + $0x1c08] sm:$0xff]
    %v997 = vld [vmem:[#allocation5 + $0x1c10] sm:$0xff]
    %v998 = vld [vmem:[#allocation5 + $0x1c18] sm:$0xff]
    %v999 = vld [vmem:[#allocation5 + $0x1c20] sm:$0xff]
    %v1000 = vld [vmem:[#allocation5 + $0x1c28] sm:$0xff]
    %v1001 = vld [vmem:[#allocation5 + $0x1c30] sm:$0xff]
    %v1002 = vld [vmem:[#allocation5 + $0x1c38] sm:$0xff]
    %v1003 = vld [vmem:[#allocation5 + $0x1c40] sm:$0xff]
    %v1004 = vld [vmem:[#allocation5 + $0x1c48] sm:$0xff]
    %v1005 = vld [vmem:[#allocation5 + $0x1c50] sm:$0xff]
    %v1006 = vld [vmem:[#allocation5 + $0x1c58] sm:$0xff]
    %v1007 = vld [vmem:[#allocation5 + $0x1c60] sm:$0xff]
    %v1008 = vld [vmem:[#allocation5 + $0x1c68] sm:$0xff]
    %v1009 = vld [vmem:[#allocation5 + $0x1c70] sm:$0xff]
    %v1010 = vld [vmem:[#allocation5 + $0x1c78] sm:$0xff]
    %v1011 = vld [vmem:[#allocation5 + $0x1c80] sm:$0xff]
    %v1012 = vld [vmem:[#allocation5 + $0x1c88] sm:$0xff]
    %v1013 = vld [vmem:[#allocation5 + $0x1c90] sm:$0xff]
    %v1014 = vld [vmem:[#allocation5 + $0x1c98] sm:$0xff]
    %v1015 = vld [vmem:[#allocation5 + $0x1ca0] sm:$0xff]
    %v1016 = vld [vmem:[#allocation5 + $0x1ca8] sm:$0xff]
    %v1017 = vld [vmem:[#allocation5 + $0x1cb0] sm:$0xff]
    %v1018 = vld [vmem:[#allocation5 + $0x1cb8] sm:$0xff]
    %v1019 = vld [vmem:[#allocation5 + $0x1cc0] sm:$0xff]
    %v1020 = vld [vmem:[#allocation5 + $0x1cc8] sm:$0xff]
    %v1021 = vld [vmem:[#allocation5 + $0x1cd0] sm:$0xff]
    %v1022 = vld [vmem:[#allocation5 + $0x1cd8] sm:$0xff]
    %v1023 = vld [vmem:[#allocation5 + $0x1ce0] sm:$0xff]
    %v1024 = vld [vmem:[#allocation5 + $0x1ce8] sm:$0xff]
    %v1025 = vld [vmem:[#allocation5 + $0x1cf0] sm:$0xff]
    %v1026 = vld [vmem:[#allocation5 + $0x1cf8] sm:$0xff]
    %v1027 = vld [vmem:[#allocation5 + $0x1d00] sm:$0xff]
    %v1028 = vld [vmem:[#allocation5 + $0x1d08] sm:$0xff]
    %v1029 = vld [vmem:[#allocation5 + $0x1d10] sm:$0xff]
    %v1030 = vld [vmem:[#allocation5 + $0x1d18] sm:$0xff]
    %v1031 = vld [vmem:[#allocation5 + $0x1d20] sm:$0xff]
    %v1032 = vld [vmem:[#allocation5 + $0x1d28] sm:$0xff]
    %v1033 = vld [vmem:[#allocation5 + $0x1d30] sm:$0xff]
    %v1034 = vld [vmem:[#allocation5 + $0x1d38] sm:$0xff]
    %v1035 = vld [vmem:[#allocation5 + $0x1d40] sm:$0xff]
    %v1036 = vld [vmem:[#allocation5 + $0x1d48] sm:$0xff]
    %v1037 = vld [vmem:[#allocation5 + $0x1d50] sm:$0xff]
    %v1038 = vld [vmem:[#allocation5 + $0x1d58] sm:$0xff]
    %v1039 = vld [vmem:[#allocation5 + $0x1d60] sm:$0xff]
    %v1040 = vld [vmem:[#allocation5 + $0x1d68] sm:$0xff]
    %v1041 = vld [vmem:[#allocation5 + $0x1d70] sm:$0xff]
    %v1042 = vld [vmem:[#allocation5 + $0x1d78] sm:$0xff]
    %v1043 = vld [vmem:[#allocation5 + $0x1d80] sm:$0xff]
    %v1044 = vld [vmem:[#allocation5 + $0x1d88] sm:$0xff]
    %v1045 = vld [vmem:[#allocation5 + $0x1d90] sm:$0xff]
    %v1046 = vld [vmem:[#allocation5 + $0x1d98] sm:$0xff]
    %v1047 = vld [vmem:[#allocation5 + $0x1da0] sm:$0xff]
    %v1048 = vld [vmem:[#allocation5 + $0x1da8] sm:$0xff]
    %v1049 = vld [vmem:[#allocation5 + $0x1db0] sm:$0xff]
    %v1050 = vld [vmem:[#allocation5 + $0x1db8] sm:$0xff]
    %v1051 = vld [vmem:[#allocation5 + $0x1dc0] sm:$0xff]
    %v1052 = vld [vmem:[#allocation5 + $0x1dc8] sm:$0xff]
    %v1053 = vld [vmem:[#allocation5 + $0x1dd0] sm:$0xff]
    %v1054 = vld [vmem:[#allocation5 + $0x1dd8] sm:$0xff]
    %v1055 = vld [vmem:[#allocation5 + $0x1de0] sm:$0xff]
    %v1056 = vld [vmem:[#allocation5 + $0x1de8] sm:$0xff]
    %v1057 = vld [vmem:[#allocation5 + $0x1df0] sm:$0xff]
    %v1058 = vld [vmem:[#allocation5 + $0x1df8] sm:$0xff]
    %v1059 = vld [vmem:[#allocation5 + $0x1e00] sm:$0xff]
    %v1060 = vld [vmem:[#allocation5 + $0x1e08] sm:$0xff]
    %v1061 = vld [vmem:[#allocation5 + $0x1e10] sm:$0xff]
    %v1062 = vld [vmem:[#allocation5 + $0x1e18] sm:$0xff]
    %v1063 = vld [vmem:[#allocation5 + $0x1e20] sm:$0xff]
    %v1064 = vld [vmem:[#allocation5 + $0x1e28] sm:$0xff]
    %v1065 = vld [vmem:[#allocation5 + $0x1e30] sm:$0xff]
    %v1066 = vld [vmem:[#allocation5 + $0x1e38] sm:$0xff]
    %v1067 = vld [vmem:[#allocation5 + $0x1e40] sm:$0xff]
    %v1068 = vld [vmem:[#allocation5 + $0x1e48] sm:$0xff]
    %v1069 = vld [vmem:[#allocation5 + $0x1e50] sm:$0xff]
    %v1070 = vld [vmem:[#allocation5 + $0x1e58] sm:$0xff]
    %v1071 = vld [vmem:[#allocation5 + $0x1e60] sm:$0xff]
    %v1072 = vld [vmem:[#allocation5 + $0x1e68] sm:$0xff]
    %v1073 = vld [vmem:[#allocation5 + $0x1e70] sm:$0xff]
    %v1074 = vld [vmem:[#allocation5 + $0x1e78] sm:$0xff]
    %v1075 = vld [vmem:[#allocation5 + $0x1e80] sm:$0xff]
    %v1076 = vld [vmem:[#allocation5 + $0x1e88] sm:$0xff]
    %v1077 = vld [vmem:[#allocation5 + $0x1e90] sm:$0xff]
    %v1078 = vld [vmem:[#allocation5 + $0x1e98] sm:$0xff]
    %v1079 = vld [vmem:[#allocation5 + $0x1ea0] sm:$0xff]
    %v1080 = vld [vmem:[#allocation5 + $0x1ea8] sm:$0xff]
    %v1081 = vld [vmem:[#allocation5 + $0x1eb0] sm:$0xff]
    %v1082 = vld [vmem:[#allocation5 + $0x1eb8] sm:$0xff]
    %v1083 = vld [vmem:[#allocation5 + $0x1ec0] sm:$0xff]
    %v1084 = vld [vmem:[#allocation5 + $0x1ec8] sm:$0xff]
    %v1085 = vld [vmem:[#allocation5 + $0x1ed0] sm:$0xff]
    %v1086 = vld [vmem:[#allocation5 + $0x1ed8] sm:$0xff]
    %v1087 = vld [vmem:[#allocation5 + $0x1ee0] sm:$0xff]
    %v1088 = vld [vmem:[#allocation5 + $0x1ee8] sm:$0xff]
    %v1089 = vld [vmem:[#allocation5 + $0x1ef0] sm:$0xff]
    %v1090 = vld [vmem:[#allocation5 + $0x1ef8] sm:$0xff]
    %v1091 = vld [vmem:[#allocation5 + $0x1f00] sm:$0xff]
    %v1092 = vld [vmem:[#allocation5 + $0x1f08] sm:$0xff]
    %v1093 = vld [vmem:[#allocation5 + $0x1f10] sm:$0xff]
    %v1094 = vld [vmem:[#allocation5 + $0x1f18] sm:$0xff]
    %v1095 = vld [vmem:[#allocation5 + $0x1f20] sm:$0xff]
    %v1096 = vld [vmem:[#allocation5 + $0x1f28] sm:$0xff]
    %v1097 = vld [vmem:[#allocation5 + $0x1f30] sm:$0xff]
    %v1098 = vld [vmem:[#allocation5 + $0x1f38] sm:$0xff]
    %v1099 = vld [vmem:[#allocation5 + $0x1f40] sm:$0xff]
    %v1100 = vld [vmem:[#allocation5 + $0x1f48] sm:$0xff]
    %v1101 = vld [vmem:[#allocation5 + $0x1f50] sm:$0xff]
    %v1102 = vld [vmem:[#allocation5 + $0x1f58] sm:$0xff]
    %v1103 = vld [vmem:[#allocation5 + $0x1f60] sm:$0xff]
    %v1104 = vld [vmem:[#allocation5 + $0x1f68] sm:$0xff]
    %v1105 = vld [vmem:[#allocation5 + $0x1f70] sm:$0xff]
    %v1106 = vld [vmem:[#allocation5 + $0x1f78] sm:$0xff]
    %v1107 = vld [vmem:[#allocation5 + $0x1f80] sm:$0xff]
    %v1108 = vld [vmem:[#allocation5 + $0x1f88] sm:$0xff]
    %v1109 = vld [vmem:[#allocation5 + $0x1f90] sm:$0xff]
    %v1110 = vld [vmem:[#allocation5 + $0x1f98] sm:$0xff]
    %v1111 = vld [vmem:[#allocation5 + $0x1fa0] sm:$0xff]
    %v1112 = vld [vmem:[#allocation5 + $0x1fa8] sm:$0xff]
    %v1113 = vld [vmem:[#allocation5 + $0x1fb0] sm:$0xff]
    %v1114 = vld [vmem:[#allocation5 + $0x1fb8] sm:$0xff]
    %v1115 = vld [vmem:[#allocation5 + $0x1fc0] sm:$0xff]
    %v1116 = vld [vmem:[#allocation5 + $0x1fc8] sm:$0xff]
    %v1117 = vld [vmem:[#allocation5 + $0x1fd0] sm:$0xff]
    %v1118 = vld [vmem:[#allocation5 + $0x1fd8] sm:$0xff]
    %v1119 = vld [vmem:[#allocation5 + $0x1fe0] sm:$0xff]
    %v1120 = vld [vmem:[#allocation5 + $0x1fe8] sm:$0xff]
    %v1121 = vld [vmem:[#allocation5 + $0x1ff0] sm:$0xff]
    %v1122 = vld [vmem:[#allocation5 + $0x1ff8] sm:$0xff]
    %v1123 = vld [vmem:[#allocation5 + $0x2000] sm:$0xff]
    %v1124 = vld [vmem:[#allocation5 + $0x2008] sm:$0xff]
    %v1125 = vld [vmem:[#allocation5 + $0x2010] sm:$0xff]
    %v1126 = vld [vmem:[#allocation5 + $0x2018] sm:$0xff]
    %v1127 = vld [vmem:[#allocation5 + $0x2020] sm:$0xff]
    %v1128 = vld [vmem:[#allocation5 + $0x2028] sm:$0xff]
    %v1129 = vld [vmem:[#allocation5 + $0x2030] sm:$0xff]
    %v1130 = vld [vmem:[#allocation5 + $0x2038] sm:$0xff]
    %v1131 = vld [vmem:[#allocation5 + $0x2040] sm:$0xff]
    %v1132 = vld [vmem:[#allocation5 + $0x2048] sm:$0xff]
    %v1133 = vld [vmem:[#allocation5 + $0x2050] sm:$0xff]
    %v1134 = vld [vmem:[#allocation5 + $0x2058] sm:$0xff]
    %v1135 = vld [vmem:[#allocation5 + $0x2060] sm:$0xff]
    %v1136 = vld [vmem:[#allocation5 + $0x2068] sm:$0xff]
    %v1137 = vld [vmem:[#allocation5 + $0x2070] sm:$0xff]
    %v1138 = vld [vmem:[#allocation5 + $0x2078] sm:$0xff]
    %v1139 = vld [vmem:[#allocation5 + $0x2080] sm:$0xff]
    %v1140 = vld [vmem:[#allocation5 + $0x2088] sm:$0xff]
    %v1141 = vld [vmem:[#allocation5 + $0x2090] sm:$0xff]
    %v1142 = vld [vmem:[#allocation5 + $0x2098] sm:$0xff]
    %v1143 = vld [vmem:[#allocation5 + $0x20a0] sm:$0xff]
    %v1144 = vld [vmem:[#allocation5 + $0x20a8] sm:$0xff]
    %v1145 = vld [vmem:[#allocation5 + $0x20b0] sm:$0xff]
    %v1146 = vld [vmem:[#allocation5 + $0x20b8] sm:$0xff]
    %v1147 = vld [vmem:[#allocation5 + $0x20c0] sm:$0xff]
    %v1148 = vld [vmem:[#allocation5 + $0x20c8] sm:$0xff]
    %v1149 = vld [vmem:[#allocation5 + $0x20d0] sm:$0xff]
    %v1150 = vld [vmem:[#allocation5 + $0x20d8] sm:$0xff]
    %v1151 = vld [vmem:[#allocation5 + $0x20e0] sm:$0xff]
    %v1152 = vld [vmem:[#allocation5 + $0x20e8] sm:$0xff]
    %v1153 = vld [vmem:[#allocation5 + $0x20f0] sm:$0xff]
    %v1154 = vld [vmem:[#allocation5 + $0x20f8] sm:$0xff]
    %v1155 = vld [vmem:[#allocation5 + $0x2100] sm:$0xff]
    %v1156 = vld [vmem:[#allocation5 + $0x2108] sm:$0xff]
    %v1157 = vld [vmem:[#allocation5 + $0x2110] sm:$0xff]
    %v1158 = vld [vmem:[#allocation5 + $0x2118] sm:$0xff]
    %v1159 = vld [vmem:[#allocation5 + $0x2120] sm:$0xff]
    %v1160 = vld [vmem:[#allocation5 + $0x2128] sm:$0xff]
    %v1161 = vld [vmem:[#allocation5 + $0x2130] sm:$0xff]
    %v1162 = vld [vmem:[#allocation5 + $0x2138] sm:$0xff]
    %v1163 = vld [vmem:[#allocation5 + $0x2140] sm:$0xff]
    %v1164 = vld [vmem:[#allocation5 + $0x2148] sm:$0xff]
    %v1165 = vld [vmem:[#allocation5 + $0x2150] sm:$0xff]
    %v1166 = vld [vmem:[#allocation5 + $0x2158] sm:$0xff]
    %v1167 = vld [vmem:[#allocation5 + $0x2160] sm:$0xff]
    %v1168 = vld [vmem:[#allocation5 + $0x2168] sm:$0xff]
    %v1169 = vld [vmem:[#allocation5 + $0x2170] sm:$0xff]
    %v1170 = vld [vmem:[#allocation5 + $0x2178] sm:$0xff]
    %v1171 = vld [vmem:[#allocation5 + $0x2180] sm:$0xff]
    %v1172 = vld [vmem:[#allocation5 + $0x2188] sm:$0xff]
    %v1173 = vld [vmem:[#allocation5 + $0x2190] sm:$0xff]
    %v1174 = vld [vmem:[#allocation5 + $0x2198] sm:$0xff]
    %v1175 = vld [vmem:[#allocation5 + $0x21a0] sm:$0xff]
    %v1176 = vld [vmem:[#allocation5 + $0x21a8] sm:$0xff]
    %v1177 = vld [vmem:[#allocation5 + $0x21b0] sm:$0xff]
    %v1178 = vld [vmem:[#allocation5 + $0x21b8] sm:$0xff]
    %v1179 = vld [vmem:[#allocation5 + $0x21c0] sm:$0xff]
    %v1180 = vld [vmem:[#allocation5 + $0x21c8] sm:$0xff]
    %v1181 = vld [vmem:[#allocation5 + $0x21d0] sm:$0xff]
    %v1182 = vld [vmem:[#allocation5 + $0x21d8] sm:$0xff]
    %v1183 = vld [vmem:[#allocation5 + $0x21e0] sm:$0xff]
    %v1184 = vld [vmem:[#allocation5 + $0x21e8] sm:$0xff]
    %v1185 = vld [vmem:[#allocation5 + $0x21f0] sm:$0xff]
    %v1186 = vld [vmem:[#allocation5 + $0x21f8] sm:$0xff]
    %v1187 = vld [vmem:[#allocation5 + $0x2200] sm:$0xff]
    %v1188 = vld [vmem:[#allocation5 + $0x2208] sm:$0xff]
    %v1189 = vld [vmem:[#allocation5 + $0x2210] sm:$0xff]
    %v1190 = vld [vmem:[#allocation5 + $0x2218] sm:$0xff]
    %v1191 = vld [vmem:[#allocation5 + $0x2220] sm:$0xff]
    %v1192 = vld [vmem:[#allocation5 + $0x2228] sm:$0xff]
    %v1193 = vld [vmem:[#allocation5 + $0x2230] sm:$0xff]
    %v1194 = vld [vmem:[#allocation5 + $0x2238] sm:$0xff]
    %v1195 = vld [vmem:[#allocation5 + $0x2240] sm:$0xff]
    %v1196 = vld [vmem:[#allocation5 + $0x2248] sm:$0xff]
    %v1197 = vld [vmem:[#allocation5 + $0x2250] sm:$0xff]
    %v1198 = vld [vmem:[#allocation5 + $0x2258] sm:$0xff]
    %v1199 = vld [vmem:[#allocation5 + $0x2260] sm:$0xff]
    %v1200 = vld [vmem:[#allocation5 + $0x2268] sm:$0xff]
    %v1201 = vld [vmem:[#allocation5 + $0x2270] sm:$0xff]
    %v1202 = vld [vmem:[#allocation5 + $0x2278] sm:$0xff]
    %v1203 = vld [vmem:[#allocation5 + $0x2280] sm:$0xff]
    %v1204 = vld [vmem:[#allocation5 + $0x2288] sm:$0xff]
    %v1205 = vld [vmem:[#allocation5 + $0x2290] sm:$0xff]
    %v1206 = vld [vmem:[#allocation5 + $0x2298] sm:$0xff]
    %v1207 = vld [vmem:[#allocation5 + $0x22a0] sm:$0xff]
    %v1208 = vld [vmem:[#allocation5 + $0x22a8] sm:$0xff]
    %v1209 = vld [vmem:[#allocation5 + $0x22b0] sm:$0xff]
    %v1210 = vld [vmem:[#allocation5 + $0x22b8] sm:$0xff]
    %v1211 = vld [vmem:[#allocation5 + $0x22c0] sm:$0xff]
    %v1212 = vld [vmem:[#allocation5 + $0x22c8] sm:$0xff]
    %v1213 = vld [vmem:[#allocation5 + $0x22d0] sm:$0xff]
    %v1214 = vld [vmem:[#allocation5 + $0x22d8] sm:$0xff]
    %v1215 = vld [vmem:[#allocation5 + $0x22e0] sm:$0xff]
    %v1216 = vld [vmem:[#allocation5 + $0x22e8] sm:$0xff]
    %v1217 = vld [vmem:[#allocation5 + $0x22f0] sm:$0xff]
    %v1218 = vld [vmem:[#allocation5 + $0x22f8] sm:$0xff]
    %v1219 = vld [vmem:[#allocation5 + $0x2300] sm:$0xff]
    %v1220 = vld [vmem:[#allocation5 + $0x2308] sm:$0xff]
    %v1221 = vld [vmem:[#allocation5 + $0x2310] sm:$0xff]
    %v1222 = vld [vmem:[#allocation5 + $0x2318] sm:$0xff]
    %v1223 = vld [vmem:[#allocation5 + $0x2320] sm:$0xff]
    %v1224 = vld [vmem:[#allocation5 + $0x2328] sm:$0xff]
    %v1225 = vld [vmem:[#allocation5 + $0x2330] sm:$0xff]
    %v1226 = vld [vmem:[#allocation5 + $0x2338] sm:$0xff]
    %v1227 = vld [vmem:[#allocation5 + $0x2340] sm:$0xff]
    %v1228 = vld [vmem:[#allocation5 + $0x2348] sm:$0xff]
    %v1229 = vld [vmem:[#allocation5 + $0x2350] sm:$0xff]
    %v1230 = vld [vmem:[#allocation5 + $0x2358] sm:$0xff]
    %v1231 = vld [vmem:[#allocation5 + $0x2360] sm:$0xff]
    %v1232 = vld [vmem:[#allocation5 + $0x2368] sm:$0xff]
    %v1233 = vld [vmem:[#allocation5 + $0x2370] sm:$0xff]
    %v1234 = vld [vmem:[#allocation5 + $0x2378] sm:$0xff]
    %v1235 = vld [vmem:[#allocation5 + $0x2380] sm:$0xff]
    %v1236 = vld [vmem:[#allocation5 + $0x2388] sm:$0xff]
    %v1237 = vld [vmem:[#allocation5 + $0x2390] sm:$0xff]
    %v1238 = vld [vmem:[#allocation5 + $0x2398] sm:$0xff]
    %v1239 = vld [vmem:[#allocation5 + $0x23a0] sm:$0xff]
    %v1240 = vld [vmem:[#allocation5 + $0x23a8] sm:$0xff]
    %v1241 = vld [vmem:[#allocation5 + $0x23b0] sm:$0xff]
    %v1242 = vld [vmem:[#allocation5 + $0x23b8] sm:$0xff]
    %v1243 = vld [vmem:[#allocation5 + $0x23c0] sm:$0xff]
    %v1244 = vld [vmem:[#allocation5 + $0x23c8] sm:$0xff]
    %v1245 = vld [vmem:[#allocation5 + $0x23d0] sm:$0xff]
    %v1246 = vld [vmem:[#allocation5 + $0x23d8] sm:$0xff]
    %v1247 = vld [vmem:[#allocation5 + $0x23e0] sm:$0xff]
    %v1248 = vld [vmem:[#allocation5 + $0x23e8] sm:$0xff]
    %v1249 = vld [vmem:[#allocation5 + $0x23f0] sm:$0xff]
    %v1250 = vld [vmem:[#allocation5 + $0x23f8] sm:$0xff]
    %v1251 = vld [vmem:[#allocation5 + $0x2400] sm:$0xff]
    %v1252 = vld [vmem:[#allocation5 + $0x2408] sm:$0xff]
    %v1253 = vld [vmem:[#allocation5 + $0x2410] sm:$0xff]
    %v1254 = vld [vmem:[#allocation5 + $0x2418] sm:$0xff]
    %v1255 = vld [vmem:[#allocation5 + $0x2420] sm:$0xff]
    %v1256 = vld [vmem:[#allocation5 + $0x2428] sm:$0xff]
    %v1257 = vld [vmem:[#allocation5 + $0x2430] sm:$0xff]
    %v1258 = vld [vmem:[#allocation5 + $0x2438] sm:$0xff]
    %v1259 = vld [vmem:[#allocation5 + $0x2440] sm:$0xff]
    %v1260 = vld [vmem:[#allocation5 + $0x2448] sm:$0xff]
    %v1261 = vld [vmem:[#allocation5 + $0x2450] sm:$0xff]
    %v1262 = vld [vmem:[#allocation5 + $0x2458] sm:$0xff]
    %v1263 = vld [vmem:[#allocation5 + $0x2460] sm:$0xff]
    %v1264 = vld [vmem:[#allocation5 + $0x2468] sm:$0xff]
    %v1265 = vld [vmem:[#allocation5 + $0x2470] sm:$0xff]
    %v1266 = vld [vmem:[#allocation5 + $0x2478] sm:$0xff]
    %v1267 = vld [vmem:[#allocation5 + $0x2480] sm:$0xff]
    %v1268 = vld [vmem:[#allocation5 + $0x2488] sm:$0xff]
    %v1269 = vld [vmem:[#allocation5 + $0x2490] sm:$0xff]
    %v1270 = vld [vmem:[#allocation5 + $0x2498] sm:$0xff]
    %v1271 = vld [vmem:[#allocation5 + $0x24a0] sm:$0xff]
    %v1272 = vld [vmem:[#allocation5 + $0x24a8] sm:$0xff]
    %v1273 = vld [vmem:[#allocation5 + $0x24b0] sm:$0xff]
    %v1274 = vld [vmem:[#allocation5 + $0x24b8] sm:$0xff]
    %v1275 = vld [vmem:[#allocation5 + $0x24c0] sm:$0xff]
    %v1276 = vld [vmem:[#allocation5 + $0x24c8] sm:$0xff]
    %v1277 = vld [vmem:[#allocation5 + $0x24d0] sm:$0xff]
    %v1278 = vld [vmem:[#allocation5 + $0x24d8] sm:$0xff]
    %v1279 = vld [vmem:[#allocation5 + $0x24e0] sm:$0xff]
    %v1280 = vld [vmem:[#allocation5 + $0x24e8] sm:$0xff]
    %v1281 = vld [vmem:[#allocation5 + $0x24f0] sm:$0xff]
    %v1282 = vld [vmem:[#allocation5 + $0x24f8] sm:$0xff]
    %v1283 = vld [vmem:[#allocation5 + $0x2500] sm:$0xff]
    %v1284 = vld [vmem:[#allocation5 + $0x2508] sm:$0xff]
    %v1285 = vld [vmem:[#allocation5 + $0x2510] sm:$0xff]
    %v1286 = vld [vmem:[#allocation5 + $0x2518] sm:$0xff]
    %v1287 = vld [vmem:[#allocation5 + $0x2520] sm:$0xff]
    %v1288 = vld [vmem:[#allocation5 + $0x2528] sm:$0xff]
    %v1289 = vld [vmem:[#allocation5 + $0x2530] sm:$0xff]
    %v1290 = vld [vmem:[#allocation5 + $0x2538] sm:$0xff]
    %v1291 = vld [vmem:[#allocation5 + $0x2540] sm:$0xff]
    %v1292 = vld [vmem:[#allocation5 + $0x2548] sm:$0xff]
    %v1293 = vld [vmem:[#allocation5 + $0x2550] sm:$0xff]
    %v1294 = vld [vmem:[#allocation5 + $0x2558] sm:$0xff]
    %v1295 = vld [vmem:[#allocation5 + $0x2560] sm:$0xff]
    %v1296 = vld [vmem:[#allocation5 + $0x2568] sm:$0xff]
    %v1297 = vld [vmem:[#allocation5 + $0x2570] sm:$0xff]
    %v1298 = vld [vmem:[#allocation5 + $0x2578] sm:$0xff]
    %v1299 = vld [vmem:[#allocation5 + $0x2580] sm:$0xff]
    %v1300 = vld [vmem:[#allocation5 + $0x2588] sm:$0xff]
    %v1301 = vld [vmem:[#allocation5 + $0x2590] sm:$0xff]
    %v1302 = vld [vmem:[#allocation5 + $0x2598] sm:$0xff]
    %v1303 = vld [vmem:[#allocation5 + $0x25a0] sm:$0xff]
    %v1304 = vld [vmem:[#allocation5 + $0x25a8] sm:$0xff]
    %v1305 = vld [vmem:[#allocation5 + $0x25b0] sm:$0xff]
    %v1306 = vld [vmem:[#allocation5 + $0x25b8] sm:$0xff]
    %v1307 = vld [vmem:[#allocation5 + $0x25c0] sm:$0xff]
    %v1308 = vld [vmem:[#allocation5 + $0x25c8] sm:$0xff]
    %v1309 = vld [vmem:[#allocation5 + $0x25d0] sm:$0xff]
    %v1310 = vld [vmem:[#allocation5 + $0x25d8] sm:$0xff]
    %v1311 = vld [vmem:[#allocation5 + $0x25e0] sm:$0xff]
    %v1312 = vld [vmem:[#allocation5 + $0x25e8] sm:$0xff]
    %v1313 = vld [vmem:[#allocation5 + $0x25f0] sm:$0xff]
    %v1314 = vld [vmem:[#allocation5 + $0x25f8] sm:$0xff]
    %v1315 = vld [vmem:[#allocation5 + $0x2600] sm:$0xff]
    %v1316 = vld [vmem:[#allocation5 + $0x2608] sm:$0xff]
    %v1317 = vld [vmem:[#allocation5 + $0x2610] sm:$0xff]
    %v1318 = vld [vmem:[#allocation5 + $0x2618] sm:$0xff]
    %v1319 = vld [vmem:[#allocation5 + $0x2620] sm:$0xff]
    %v1320 = vld [vmem:[#allocation5 + $0x2628] sm:$0xff]
    %v1321 = vld [vmem:[#allocation5 + $0x2630] sm:$0xff]
    %v1322 = vld [vmem:[#allocation5 + $0x2638] sm:$0xff]
    %v1323 = vld [vmem:[#allocation5 + $0x2640] sm:$0xff]
    %v1324 = vld [vmem:[#allocation5 + $0x2648] sm:$0xff]
    %v1325 = vld [vmem:[#allocation5 + $0x2650] sm:$0xff]
    %v1326 = vld [vmem:[#allocation5 + $0x2658] sm:$0xff]
    %v1327 = vld [vmem:[#allocation5 + $0x2660] sm:$0xff]
    %v1328 = vld [vmem:[#allocation5 + $0x2668] sm:$0xff]
    %v1329 = vld [vmem:[#allocation5 + $0x2670] sm:$0xff]
    %v1330 = vld [vmem:[#allocation5 + $0x2678] sm:$0xff]
    %v1331 = vld [vmem:[#allocation5 + $0x2680] sm:$0xff]
    %v1332 = vld [vmem:[#allocation5 + $0x2688] sm:$0xff]
    %v1333 = vld [vmem:[#allocation5 + $0x2690] sm:$0xff]
    %v1334 = vld [vmem:[#allocation5 + $0x2698] sm:$0xff]
    %v1335 = vld [vmem:[#allocation5 + $0x26a0] sm:$0xff]
    %v1336 = vld [vmem:[#allocation5 + $0x26a8] sm:$0xff]
    %v1337 = vld [vmem:[#allocation5 + $0x26b0] sm:$0xff]
    %v1338 = vld [vmem:[#allocation5 + $0x26b8] sm:$0xff]
    %v1339 = vld [vmem:[#allocation5 + $0x26c0] sm:$0xff]
    %v1340 = vld [vmem:[#allocation5 + $0x26c8] sm:$0xff]
    %v1341 = vld [vmem:[#allocation5 + $0x26d0] sm:$0xff]
    %v1342 = vld [vmem:[#allocation5 + $0x26d8] sm:$0xff]
    %v1343 = vld [vmem:[#allocation5 + $0x26e0] sm:$0xff]
    %v1344 = vld [vmem:[#allocation5 + $0x26e8] sm:$0xff]
    %v1345 = vld [vmem:[#allocation5 + $0x26f0] sm:$0xff]
    %v1346 = vld [vmem:[#allocation5 + $0x26f8] sm:$0xff]
    %v1347 = vld [vmem:[#allocation5 + $0x2700] sm:$0xff]
    %v1348 = vld [vmem:[#allocation5 + $0x2708] sm:$0xff]
    %v1349 = vld [vmem:[#allocation5 + $0x2710] sm:$0xff]
    %v1350 = vld [vmem:[#allocation5 + $0x2718] sm:$0xff]
    %v1351 = vld [vmem:[#allocation5 + $0x2720] sm:$0xff]
    %v1352 = vld [vmem:[#allocation5 + $0x2728] sm:$0xff]
    %v1353 = vld [vmem:[#allocation5 + $0x2730] sm:$0xff]
    %v1354 = vld [vmem:[#allocation5 + $0x2738] sm:$0xff]
    %v1355 = vld [vmem:[#allocation5 + $0x2740] sm:$0xff]
    %v1356 = vld [vmem:[#allocation5 + $0x2748] sm:$0xff]
    %v1357 = vld [vmem:[#allocation5 + $0x2750] sm:$0xff]
    %v1358 = vld [vmem:[#allocation5 + $0x2758] sm:$0xff]
    %v1359 = vld [vmem:[#allocation5 + $0x2760] sm:$0xff]
    %v1360 = vld [vmem:[#allocation5 + $0x2768] sm:$0xff]
    %v1361 = vld [vmem:[#allocation5 + $0x2770] sm:$0xff]
    %v1362 = vld [vmem:[#allocation5 + $0x2778] sm:$0xff]
    %v1363 = vld [vmem:[#allocation5 + $0x2780] sm:$0xff]
    %v1364 = vld [vmem:[#allocation5 + $0x2788] sm:$0xff]
    %v1365 = vld [vmem:[#allocation5 + $0x2790] sm:$0xff]
    %v1366 = vld [vmem:[#allocation5 + $0x2798] sm:$0xff]
    %v1367 = vld [vmem:[#allocation5 + $0x27a0] sm:$0xff]
    %v1368 = vld [vmem:[#allocation5 + $0x27a8] sm:$0xff]
    %v1369 = vld [vmem:[#allocation5 + $0x27b0] sm:$0xff]
    %v1370 = vld [vmem:[#allocation5 + $0x27b8] sm:$0xff]
    %v1371 = vld [vmem:[#allocation5 + $0x27c0] sm:$0xff]
    %v1372 = vld [vmem:[#allocation5 + $0x27c8] sm:$0xff]
    %v1373 = vld [vmem:[#allocation5 + $0x27d0] sm:$0xff]
    %v1374 = vld [vmem:[#allocation5 + $0x27d8] sm:$0xff]
    %v1375 = vld [vmem:[#allocation5 + $0x27e0] sm:$0xff]
    %v1376 = vld [vmem:[#allocation5 + $0x27e8] sm:$0xff]
    %v1377 = vld [vmem:[#allocation5 + $0x27f0] sm:$0xff]
    %v1378 = vld [vmem:[#allocation5 + $0x27f8] sm:$0xff]
    %v1379 = vld [vmem:[#allocation5 + $0x2800] sm:$0xff]
    %v1380 = vld [vmem:[#allocation5 + $0x2808] sm:$0xff]
    %v1381 = vld [vmem:[#allocation5 + $0x2810] sm:$0xff]
    %v1382 = vld [vmem:[#allocation5 + $0x2818] sm:$0xff]
    %v1383 = vld [vmem:[#allocation5 + $0x2820] sm:$0xff]
    %v1384 = vld [vmem:[#allocation5 + $0x2828] sm:$0xff]
    %v1385 = vld [vmem:[#allocation5 + $0x2830] sm:$0xff]
    %v1386 = vld [vmem:[#allocation5 + $0x2838] sm:$0xff]
    %v1387 = vld [vmem:[#allocation5 + $0x2840] sm:$0xff]
    %v1388 = vld [vmem:[#allocation5 + $0x2848] sm:$0xff]
    %v1389 = vld [vmem:[#allocation5 + $0x2850] sm:$0xff]
    %v1390 = vld [vmem:[#allocation5 + $0x2858] sm:$0xff]
    %v1391 = vld [vmem:[#allocation5 + $0x2860] sm:$0xff]
    %v1392 = vld [vmem:[#allocation5 + $0x2868] sm:$0xff]
    %v1393 = vld [vmem:[#allocation5 + $0x2870] sm:$0xff]
    %v1394 = vld [vmem:[#allocation5 + $0x2878] sm:$0xff]
    %v1395 = vld [vmem:[#allocation5 + $0x2880] sm:$0xff]
    %v1396 = vld [vmem:[#allocation5 + $0x2888] sm:$0xff]
    %v1397 = vld [vmem:[#allocation5 + $0x2890] sm:$0xff]
    %v1398 = vld [vmem:[#allocation5 + $0x2898] sm:$0xff]
    %v1399 = vld [vmem:[#allocation5 + $0x28a0] sm:$0xff]
    %v1400 = vld [vmem:[#allocation5 + $0x28a8] sm:$0xff]
    %v1401 = vld [vmem:[#allocation5 + $0x28b0] sm:$0xff]
    %v1402 = vld [vmem:[#allocation5 + $0x28b8] sm:$0xff]
    %v1403 = vld [vmem:[#allocation5 + $0x28c0] sm:$0xff]
    %v1404 = vld [vmem:[#allocation5 + $0x28c8] sm:$0xff]
    %v1405 = vld [vmem:[#allocation5 + $0x28d0] sm:$0xff]
    %v1406 = vld [vmem:[#allocation5 + $0x28d8] sm:$0xff]
    %v1407 = vld [vmem:[#allocation5 + $0x28e0] sm:$0xff]
    %v1408 = vld [vmem:[#allocation5 + $0x28e8] sm:$0xff]
    %v1409 = vld [vmem:[#allocation5 + $0x28f0] sm:$0xff]
    %v1410 = vld [vmem:[#allocation5 + $0x28f8] sm:$0xff]
    %v1411 = vld [vmem:[#allocation5 + $0x2900] sm:$0xff]
    %v1412 = vld [vmem:[#allocation5 + $0x2908] sm:$0xff]
    %v1413 = vld [vmem:[#allocation5 + $0x2910] sm:$0xff]
    %v1414 = vld [vmem:[#allocation5 + $0x2918] sm:$0xff]
    %v1415 = vld [vmem:[#allocation5 + $0x2920] sm:$0xff]
    %v1416 = vld [vmem:[#allocation5 + $0x2928] sm:$0xff]
    %v1417 = vld [vmem:[#allocation5 + $0x2930] sm:$0xff]
    %v1418 = vld [vmem:[#allocation5 + $0x2938] sm:$0xff]
    %v1419 = vld [vmem:[#allocation5 + $0x2940] sm:$0xff]
    %v1420 = vld [vmem:[#allocation5 + $0x2948] sm:$0xff]
    %v1421 = vld [vmem:[#allocation5 + $0x2950] sm:$0xff]
    %v1422 = vld [vmem:[#allocation5 + $0x2958] sm:$0xff]
    %v1423 = vld [vmem:[#allocation5 + $0x2960] sm:$0xff]
    %v1424 = vld [vmem:[#allocation5 + $0x2968] sm:$0xff]
    %v1425 = vld [vmem:[#allocation5 + $0x2970] sm:$0xff]
    %v1426 = vld [vmem:[#allocation5 + $0x2978] sm:$0xff]
    %v1427 = vld [vmem:[#allocation5 + $0x2980] sm:$0xff]
    %v1428 = vld [vmem:[#allocation5 + $0x2988] sm:$0xff]
    %v1429 = vld [vmem:[#allocation5 + $0x2990] sm:$0xff]
    %v1430 = vld [vmem:[#allocation5 + $0x2998] sm:$0xff]
    %v1431 = vld [vmem:[#allocation5 + $0x29a0] sm:$0xff]
    %v1432 = vld [vmem:[#allocation5 + $0x29a8] sm:$0xff]
    %v1433 = vld [vmem:[#allocation5 + $0x29b0] sm:$0xff]
    %v1434 = vld [vmem:[#allocation5 + $0x29b8] sm:$0xff]
    %v1435 = vld [vmem:[#allocation5 + $0x29c0] sm:$0xff]
    %v1436 = vld [vmem:[#allocation5 + $0x29c8] sm:$0xff]
    %v1437 = vld [vmem:[#allocation5 + $0x29d0] sm:$0xff]
    %v1438 = vld [vmem:[#allocation5 + $0x29d8] sm:$0xff]
    %v1439 = vld [vmem:[#allocation5 + $0x29e0] sm:$0xff]
    %v1440 = vld [vmem:[#allocation5 + $0x29e8] sm:$0xff]
    %v1441 = vld [vmem:[#allocation5 + $0x29f0] sm:$0xff]
    %v1442 = vld [vmem:[#allocation5 + $0x29f8] sm:$0xff]
    %v1443 = vld [vmem:[#allocation5 + $0x2a00] sm:$0xff]
    %v1444 = vld [vmem:[#allocation5 + $0x2a08] sm:$0xff]
    %v1445 = vld [vmem:[#allocation5 + $0x2a10] sm:$0xff]
    %v1446 = vld [vmem:[#allocation5 + $0x2a18] sm:$0xff]
    %v1447 = vld [vmem:[#allocation5 + $0x2a20] sm:$0xff]
    %v1448 = vld [vmem:[#allocation5 + $0x2a28] sm:$0xff]
    %v1449 = vld [vmem:[#allocation5 + $0x2a30] sm:$0xff]
    %v1450 = vld [vmem:[#allocation5 + $0x2a38] sm:$0xff]
    %v1451 = vld [vmem:[#allocation5 + $0x2a40] sm:$0xff]
    %v1452 = vld [vmem:[#allocation5 + $0x2a48] sm:$0xff]
    %v1453 = vld [vmem:[#allocation5 + $0x2a50] sm:$0xff]
    %v1454 = vld [vmem:[#allocation5 + $0x2a58] sm:$0xff]
    %v1455 = vld [vmem:[#allocation5 + $0x2a60] sm:$0xff]
    %v1456 = vld [vmem:[#allocation5 + $0x2a68] sm:$0xff]
    %v1457 = vld [vmem:[#allocation5 + $0x2a70] sm:$0xff]
    %v1458 = vld [vmem:[#allocation5 + $0x2a78] sm:$0xff]
    %v1459 = vld [vmem:[#allocation5 + $0x2a80] sm:$0xff]
    %v1460 = vld [vmem:[#allocation5 + $0x2a88] sm:$0xff]
    %v1461 = vld [vmem:[#allocation5 + $0x2a90] sm:$0xff]
    %v1462 = vld [vmem:[#allocation5 + $0x2a98] sm:$0xff]
    %v1463 = vld [vmem:[#allocation5 + $0x2aa0] sm:$0xff]
    %v1464 = vld [vmem:[#allocation5 + $0x2aa8] sm:$0xff]
    %v1465 = vld [vmem:[#allocation5 + $0x2ab0] sm:$0xff]
    %v1466 = vld [vmem:[#allocation5 + $0x2ab8] sm:$0xff]
    %v1467 = vld [vmem:[#allocation5 + $0x2ac0] sm:$0xff]
    %v1468 = vld [vmem:[#allocation5 + $0x2ac8] sm:$0xff]
    %v1469 = vld [vmem:[#allocation5 + $0x2ad0] sm:$0xff]
    %v1470 = vld [vmem:[#allocation5 + $0x2ad8] sm:$0xff]
    %v1471 = vld [vmem:[#allocation5 + $0x2ae0] sm:$0xff]
    %v1472 = vld [vmem:[#allocation5 + $0x2ae8] sm:$0xff]
    %v1473 = vld [vmem:[#allocation5 + $0x2af0] sm:$0xff]
    %v1474 = vld [vmem:[#allocation5 + $0x2af8] sm:$0xff]
    %v1475 = vld [vmem:[#allocation5 + $0x2b00] sm:$0xff]
    %v1476 = vld [vmem:[#allocation5 + $0x2b08] sm:$0xff]
    %v1477 = vld [vmem:[#allocation5 + $0x2b10] sm:$0xff]
    %v1478 = vld [vmem:[#allocation5 + $0x2b18] sm:$0xff]
    %v1479 = vld [vmem:[#allocation5 + $0x2b20] sm:$0xff]
    %v1480 = vld [vmem:[#allocation5 + $0x2b28] sm:$0xff]
    %v1481 = vld [vmem:[#allocation5 + $0x2b30] sm:$0xff]
    %v1482 = vld [vmem:[#allocation5 + $0x2b38] sm:$0xff]
    %v1483 = vld [vmem:[#allocation5 + $0x2b40] sm:$0xff]
    %v1484 = vld [vmem:[#allocation5 + $0x2b48] sm:$0xff]
    %v1485 = vld [vmem:[#allocation5 + $0x2b50] sm:$0xff]
    %v1486 = vld [vmem:[#allocation5 + $0x2b58] sm:$0xff]
    %v1487 = vld [vmem:[#allocation5 + $0x2b60] sm:$0xff]
    %v1488 = vld [vmem:[#allocation5 + $0x2b68] sm:$0xff]
    %v1489 = vld [vmem:[#allocation5 + $0x2b70] sm:$0xff]
    %v1490 = vld [vmem:[#allocation5 + $0x2b78] sm:$0xff]
    %v1491 = vld [vmem:[#allocation5 + $0x2b80] sm:$0xff]
    %v1492 = vld [vmem:[#allocation5 + $0x2b88] sm:$0xff]
    %v1493 = vld [vmem:[#allocation5 + $0x2b90] sm:$0xff]
    %v1494 = vld [vmem:[#allocation5 + $0x2b98] sm:$0xff]
    %v1495 = vld [vmem:[#allocation5 + $0x2ba0] sm:$0xff]
    %v1496 = vld [vmem:[#allocation5 + $0x2ba8] sm:$0xff]
    %v1497 = vld [vmem:[#allocation5 + $0x2bb0] sm:$0xff]
    %v1498 = vld [vmem:[#allocation5 + $0x2bb8] sm:$0xff]
    %v1499 = vld [vmem:[#allocation5 + $0x2bc0] sm:$0xff]
    %v1500 = vld [vmem:[#allocation5 + $0x2bc8] sm:$0xff]
    %v1501 = vld [vmem:[#allocation5 + $0x2bd0] sm:$0xff]
    %v1502 = vld [vmem:[#allocation5 + $0x2bd8] sm:$0xff]
    %v1503 = vld [vmem:[#allocation5 + $0x2be0] sm:$0xff]
    %v1504 = vld [vmem:[#allocation5 + $0x2be8] sm:$0xff]
    %v1505 = vld [vmem:[#allocation5 + $0x2bf0] sm:$0xff]
    %v1506 = vld [vmem:[#allocation5 + $0x2bf8] sm:$0xff]
    %v1507 = vld [vmem:[#allocation5 + $0x2c00] sm:$0xff]
    %v1508 = vld [vmem:[#allocation5 + $0x2c08] sm:$0xff]
    %v1509 = vld [vmem:[#allocation5 + $0x2c10] sm:$0xff]
    %v1510 = vld [vmem:[#allocation5 + $0x2c18] sm:$0xff]
    %v1511 = vld [vmem:[#allocation5 + $0x2c20] sm:$0xff]
    %v1512 = vld [vmem:[#allocation5 + $0x2c28] sm:$0xff]
    %v1513 = vld [vmem:[#allocation5 + $0x2c30] sm:$0xff]
    %v1514 = vld [vmem:[#allocation5 + $0x2c38] sm:$0xff]
    %v1515 = vld [vmem:[#allocation5 + $0x2c40] sm:$0xff]
    %v1516 = vld [vmem:[#allocation5 + $0x2c48] sm:$0xff]
    %v1517 = vld [vmem:[#allocation5 + $0x2c50] sm:$0xff]
    %v1518 = vld [vmem:[#allocation5 + $0x2c58] sm:$0xff]
    %v1519 = vld [vmem:[#allocation5 + $0x2c60] sm:$0xff]
    %v1520 = vld [vmem:[#allocation5 + $0x2c68] sm:$0xff]
    %v1521 = vld [vmem:[#allocation5 + $0x2c70] sm:$0xff]
    %v1522 = vld [vmem:[#allocation5 + $0x2c78] sm:$0xff]
    %v1523 = vld [vmem:[#allocation5 + $0x2c80] sm:$0xff]
    %v1524 = vld [vmem:[#allocation5 + $0x2c88] sm:$0xff]
    %v1525 = vld [vmem:[#allocation5 + $0x2c90] sm:$0xff]
    %v1526 = vld [vmem:[#allocation5 + $0x2c98] sm:$0xff]
    %v1527 = vld [vmem:[#allocation5 + $0x2ca0] sm:$0xff]
    %v1528 = vld [vmem:[#allocation5 + $0x2ca8] sm:$0xff]
    %v1529 = vld [vmem:[#allocation5 + $0x2cb0] sm:$0xff]
    %v1530 = vld [vmem:[#allocation5 + $0x2cb8] sm:$0xff]
    %v1531 = vld [vmem:[#allocation5 + $0x2cc0] sm:$0xff]
    %v1532 = vld [vmem:[#allocation5 + $0x2cc8] sm:$0xff]
    %v1533 = vld [vmem:[#allocation5 + $0x2cd0] sm:$0xff]
    %v1534 = vld [vmem:[#allocation5 + $0x2cd8] sm:$0xff]
    %v1535 = vld [vmem:[#allocation5 + $0x2ce0] sm:$0xff]
    %v1536 = vld [vmem:[#allocation5 + $0x2ce8] sm:$0xff]
    %v1537 = vld [vmem:[#allocation5 + $0x2cf0] sm:$0xff]
    %v1538 = vld [vmem:[#allocation5 + $0x2cf8] sm:$0xff]
    %v1539 = vld [vmem:[#allocation5 + $0x2d00] sm:$0xff]
    %v1540 = vld [vmem:[#allocation5 + $0x2d08] sm:$0xff]
    %v1541 = vld [vmem:[#allocation5 + $0x2d10] sm:$0xff]
    %v1542 = vld [vmem:[#allocation5 + $0x2d18] sm:$0xff]
    %v1543 = vld [vmem:[#allocation5 + $0x2d20] sm:$0xff]
    %v1544 = vld [vmem:[#allocation5 + $0x2d28] sm:$0xff]
    %v1545 = vld [vmem:[#allocation5 + $0x2d30] sm:$0xff]
    %v1546 = vld [vmem:[#allocation5 + $0x2d38] sm:$0xff]
    %v1547 = vld [vmem:[#allocation5 + $0x2d40] sm:$0xff]
    %v1548 = vld [vmem:[#allocation5 + $0x2d48] sm:$0xff]
    %v1549 = vld [vmem:[#allocation5 + $0x2d50] sm:$0xff]
    %v1550 = vld [vmem:[#allocation5 + $0x2d58] sm:$0xff]
    %v1551 = vld [vmem:[#allocation5 + $0x2d60] sm:$0xff]
    %v1552 = vld [vmem:[#allocation5 + $0x2d68] sm:$0xff]
    %v1553 = vld [vmem:[#allocation5 + $0x2d70] sm:$0xff]
    %v1554 = vld [vmem:[#allocation5 + $0x2d78] sm:$0xff]
    %v1555 = vld [vmem:[#allocation5 + $0x2d80] sm:$0xff]
    %v1556 = vld [vmem:[#allocation5 + $0x2d88] sm:$0xff]
    %v1557 = vld [vmem:[#allocation5 + $0x2d90] sm:$0xff]
    %v1558 = vld [vmem:[#allocation5 + $0x2d98] sm:$0xff]
    %v1559 = vld [vmem:[#allocation5 + $0x2da0] sm:$0xff]
    %v1560 = vld [vmem:[#allocation5 + $0x2da8] sm:$0xff]
    %v1561 = vld [vmem:[#allocation5 + $0x2db0] sm:$0xff]
    %v1562 = vld [vmem:[#allocation5 + $0x2db8] sm:$0xff]
    %v1563 = vld [vmem:[#allocation5 + $0x2dc0] sm:$0xff]
    %v1564 = vld [vmem:[#allocation5 + $0x2dc8] sm:$0xff]
    %v1565 = vld [vmem:[#allocation5 + $0x2dd0] sm:$0xff]
    %v1566 = vld [vmem:[#allocation5 + $0x2dd8] sm:$0xff]
    %v1567 = vld [vmem:[#allocation5 + $0x2de0] sm:$0xff]
    %v1568 = vld [vmem:[#allocation5 + $0x2de8] sm:$0xff]
    %v1569 = vld [vmem:[#allocation5 + $0x2df0] sm:$0xff]
    %v1570 = vld [vmem:[#allocation5 + $0x2df8] sm:$0xff]
    %v1571 = vld [vmem:[#allocation5 + $0x2e00] sm:$0xff]
    %v1572 = vld [vmem:[#allocation5 + $0x2e08] sm:$0xff]
    %v1573 = vld [vmem:[#allocation5 + $0x2e10] sm:$0xff]
    %v1574 = vld [vmem:[#allocation5 + $0x2e18] sm:$0xff]
    %v1575 = vld [vmem:[#allocation5 + $0x2e20] sm:$0xff]
    %v1576 = vld [vmem:[#allocation5 + $0x2e28] sm:$0xff]
    %v1577 = vld [vmem:[#allocation5 + $0x2e30] sm:$0xff]
    %v1578 = vld [vmem:[#allocation5 + $0x2e38] sm:$0xff]
    %v1579 = vld [vmem:[#allocation5 + $0x2e40] sm:$0xff]
    %v1580 = vld [vmem:[#allocation5 + $0x2e48] sm:$0xff]
    %v1581 = vld [vmem:[#allocation5 + $0x2e50] sm:$0xff]
    %v1582 = vld [vmem:[#allocation5 + $0x2e58] sm:$0xff]
    %v1583 = vld [vmem:[#allocation5 + $0x2e60] sm:$0xff]
    %v1584 = vld [vmem:[#allocation5 + $0x2e68] sm:$0xff]
    %v1585 = vld [vmem:[#allocation5 + $0x2e70] sm:$0xff]
    %v1586 = vld [vmem:[#allocation5 + $0x2e78] sm:$0xff]
    %v1587 = vld [vmem:[#allocation5 + $0x2e80] sm:$0xff]
    %v1588 = vld [vmem:[#allocation5 + $0x2e88] sm:$0xff]
    %v1589 = vld [vmem:[#allocation5 + $0x2e90] sm:$0xff]
    %v1590 = vld [vmem:[#allocation5 + $0x2e98] sm:$0xff]
    %v1591 = vld [vmem:[#allocation5 + $0x2ea0] sm:$0xff]
    %v1592 = vld [vmem:[#allocation5 + $0x2ea8] sm:$0xff]
    %v1593 = vld [vmem:[#allocation5 + $0x2eb0] sm:$0xff]
    %v1594 = vld [vmem:[#allocation5 + $0x2eb8] sm:$0xff]
    %v1595 = vld [vmem:[#allocation5 + $0x2ec0] sm:$0xff]
    %v1596 = vld [vmem:[#allocation5 + $0x2ec8] sm:$0xff]
    %v1597 = vld [vmem:[#allocation5 + $0x2ed0] sm:$0xff]
    %v1598 = vld [vmem:[#allocation5 + $0x2ed8] sm:$0xff]
    %v1599 = vld [vmem:[#allocation5 + $0x2ee0] sm:$0xff]
    %v1600 = vld [vmem:[#allocation5 + $0x2ee8] sm:$0xff]
    %v1601 = vld [vmem:[#allocation5 + $0x2ef0] sm:$0xff]
    %v1602 = vld [vmem:[#allocation5 + $0x2ef8] sm:$0xff]
    %v1603 = vld [vmem:[#allocation5 + $0x2f00] sm:$0xff]
    %v1604 = vld [vmem:[#allocation5 + $0x2f08] sm:$0xff]
    %v1605 = vld [vmem:[#allocation5 + $0x2f10] sm:$0xff]
    %v1606 = vld [vmem:[#allocation5 + $0x2f18] sm:$0xff]
    %v1607 = vld [vmem:[#allocation5 + $0x2f20] sm:$0xff]
    %v1608 = vld [vmem:[#allocation5 + $0x2f28] sm:$0xff]
    %v1609 = vld [vmem:[#allocation5 + $0x2f30] sm:$0xff]
    %v1610 = vld [vmem:[#allocation5 + $0x2f38] sm:$0xff]
    %v1611 = vld [vmem:[#allocation5 + $0x2f40] sm:$0xff]
    %v1612 = vld [vmem:[#allocation5 + $0x2f48] sm:$0xff]
    %v1613 = vld [vmem:[#allocation5 + $0x2f50] sm:$0xff]
    %v1614 = vld [vmem:[#allocation5 + $0x2f58] sm:$0xff]
    %v1615 = vld [vmem:[#allocation5 + $0x2f60] sm:$0xff]
    %v1616 = vld [vmem:[#allocation5 + $0x2f68] sm:$0xff]
    %v1617 = vld [vmem:[#allocation5 + $0x2f70] sm:$0xff]
    %v1618 = vld [vmem:[#allocation5 + $0x2f78] sm:$0xff]
    %v1619 = vld [vmem:[#allocation5 + $0x2f80] sm:$0xff]
    %v1620 = vld [vmem:[#allocation5 + $0x2f88] sm:$0xff]
    %v1621 = vld [vmem:[#allocation5 + $0x2f90] sm:$0xff]
    %v1622 = vld [vmem:[#allocation5 + $0x2f98] sm:$0xff]
    %v1623 = vld [vmem:[#allocation5 + $0x2fa0] sm:$0xff]
    %v1624 = vld [vmem:[#allocation5 + $0x2fa8] sm:$0xff]
    %v1625 = vld [vmem:[#allocation5 + $0x2fb0] sm:$0xff]
    %v1626 = vld [vmem:[#allocation5 + $0x2fb8] sm:$0xff]
    %v1627 = vld [vmem:[#allocation5 + $0x2fc0] sm:$0xff]
    %v1628 = vld [vmem:[#allocation5 + $0x2fc8] sm:$0xff]
    %v1629 = vld [vmem:[#allocation5 + $0x2fd0] sm:$0xff]
    %v1630 = vld [vmem:[#allocation5 + $0x2fd8] sm:$0xff]
    %v1631 = vld [vmem:[#allocation5 + $0x2fe0] sm:$0xff]
    %v1632 = vld [vmem:[#allocation5 + $0x2fe8] sm:$0xff]
    %v1633 = vld [vmem:[#allocation5 + $0x2ff0] sm:$0xff]
    %v1634 = vld [vmem:[#allocation5 + $0x2ff8] sm:$0xff]
    %v1635 = vld [vmem:[#allocation5 + $0x3000] sm:$0xff]
    %v1636 = vld [vmem:[#allocation5 + $0x3008] sm:$0xff]
    %v1637 = vld [vmem:[#allocation5 + $0x3010] sm:$0xff]
    %v1638 = vld [vmem:[#allocation5 + $0x3018] sm:$0xff]
    %v1639 = vld [vmem:[#allocation5 + $0x3020] sm:$0xff]
    %v1640 = vld [vmem:[#allocation5 + $0x3028] sm:$0xff]
    %v1641 = vld [vmem:[#allocation5 + $0x3030] sm:$0xff]
    %v1642 = vld [vmem:[#allocation5 + $0x3038] sm:$0xff]
    %v1643 = vld [vmem:[#allocation5 + $0x3040] sm:$0xff]
    %v1644 = vld [vmem:[#allocation5 + $0x3048] sm:$0xff]
    %v1645 = vld [vmem:[#allocation5 + $0x3050] sm:$0xff]
    %v1646 = vld [vmem:[#allocation5 + $0x3058] sm:$0xff]
    %v1647 = vld [vmem:[#allocation5 + $0x3060] sm:$0xff]
    %v1648 = vld [vmem:[#allocation5 + $0x3068] sm:$0xff]
    %v1649 = vld [vmem:[#allocation5 + $0x3070] sm:$0xff]
    %v1650 = vld [vmem:[#allocation5 + $0x3078] sm:$0xff]
    %v1651 = vld [vmem:[#allocation5 + $0x3080] sm:$0xff]
    %v1652 = vld [vmem:[#allocation5 + $0x3088] sm:$0xff]
    %v1653 = vld [vmem:[#allocation5 + $0x3090] sm:$0xff]
    %v1654 = vld [vmem:[#allocation5 + $0x3098] sm:$0xff]
    %v1655 = vld [vmem:[#allocation5 + $0x30a0] sm:$0xff]
    %v1656 = vld [vmem:[#allocation5 + $0x30a8] sm:$0xff]
    %v1657 = vld [vmem:[#allocation5 + $0x30b0] sm:$0xff]
    %v1658 = vld [vmem:[#allocation5 + $0x30b8] sm:$0xff]
    %v1659 = vld [vmem:[#allocation5 + $0x30c0] sm:$0xff]
    %v1660 = vld [vmem:[#allocation5 + $0x30c8] sm:$0xff]
    %v1661 = vld [vmem:[#allocation5 + $0x30d0] sm:$0xff]
    %v1662 = vld [vmem:[#allocation5 + $0x30d8] sm:$0xff]
    %v1663 = vld [vmem:[#allocation5 + $0x30e0] sm:$0xff]
    %v1664 = vld [vmem:[#allocation5 + $0x30e8] sm:$0xff]
    %v1665 = vld [vmem:[#allocation5 + $0x30f0] sm:$0xff]
    %v1666 = vld [vmem:[#allocation5 + $0x30f8] sm:$0xff]
    %v1667 = vld [vmem:[#allocation5 + $0x3100] sm:$0xff]
    %v1668 = vld [vmem:[#allocation5 + $0x3108] sm:$0xff]
    %v1669 = vld [vmem:[#allocation5 + $0x3110] sm:$0xff]
    %v1670 = vld [vmem:[#allocation5 + $0x3118] sm:$0xff]
    %v1671 = vld [vmem:[#allocation5 + $0x3120] sm:$0xff]
    %v1672 = vld [vmem:[#allocation5 + $0x3128] sm:$0xff]
    %v1673 = vld [vmem:[#allocation5 + $0x3130] sm:$0xff]
    %v1674 = vld [vmem:[#allocation5 + $0x3138] sm:$0xff]
    %v1675 = vld [vmem:[#allocation5 + $0x3140] sm:$0xff]
    %v1676 = vld [vmem:[#allocation5 + $0x3148] sm:$0xff]
    %v1677 = vld [vmem:[#allocation5 + $0x3150] sm:$0xff]
    %v1678 = vld [vmem:[#allocation5 + $0x3158] sm:$0xff]
    %v1679 = vld [vmem:[#allocation5 + $0x3160] sm:$0xff]
    %v1680 = vld [vmem:[#allocation5 + $0x3168] sm:$0xff]
    %v1681 = vld [vmem:[#allocation5 + $0x3170] sm:$0xff]
    %v1682 = vld [vmem:[#allocation5 + $0x3178] sm:$0xff]
    %v1683 = vld [vmem:[#allocation5 + $0x3180] sm:$0xff]
    %v1684 = vld [vmem:[#allocation5 + $0x3188] sm:$0xff]
    %v1685 = vld [vmem:[#allocation5 + $0x3190] sm:$0xff]
    %v1686 = vld [vmem:[#allocation5 + $0x3198] sm:$0xff]
    %v1687 = vld [vmem:[#allocation5 + $0x31a0] sm:$0xff]
    %v1688 = vld [vmem:[#allocation5 + $0x31a8] sm:$0xff]
    %v1689 = vld [vmem:[#allocation5 + $0x31b0] sm:$0xff]
    %v1690 = vld [vmem:[#allocation5 + $0x31b8] sm:$0xff]
    %v1691 = vld [vmem:[#allocation5 + $0x31c0] sm:$0xff]
    %v1692 = vld [vmem:[#allocation5 + $0x31c8] sm:$0xff]
    %v1693 = vld [vmem:[#allocation5 + $0x31d0] sm:$0xff]
    %v1694 = vld [vmem:[#allocation5 + $0x31d8] sm:$0xff]
    %v1695 = vld [vmem:[#allocation5 + $0x31e0] sm:$0xff]
    %v1696 = vld [vmem:[#allocation5 + $0x31e8] sm:$0xff]
    %v1697 = vld [vmem:[#allocation5 + $0x31f0] sm:$0xff]
    %v1698 = vld [vmem:[#allocation5 + $0x31f8] sm:$0xff]
    %v1699 = vld [vmem:[#allocation5 + $0x3200] sm:$0xff]
    %v1700 = vld [vmem:[#allocation5 + $0x3208] sm:$0xff]
    %v1701 = vld [vmem:[#allocation5 + $0x3210] sm:$0xff]
    %v1702 = vld [vmem:[#allocation5 + $0x3218] sm:$0xff]
    %v1703 = vld [vmem:[#allocation5 + $0x3220] sm:$0xff]
    %v1704 = vld [vmem:[#allocation5 + $0x3228] sm:$0xff]
    %v1705 = vld [vmem:[#allocation5 + $0x3230] sm:$0xff]
    %v1706 = vld [vmem:[#allocation5 + $0x3238] sm:$0xff]
    %v1707 = vld [vmem:[#allocation5 + $0x3240] sm:$0xff]
    %v1708 = vld [vmem:[#allocation5 + $0x3248] sm:$0xff]
    %v1709 = vld [vmem:[#allocation5 + $0x3250] sm:$0xff]
    %v1710 = vld [vmem:[#allocation5 + $0x3258] sm:$0xff]
    %v1711 = vld [vmem:[#allocation5 + $0x3260] sm:$0xff]
    %v1712 = vld [vmem:[#allocation5 + $0x3268] sm:$0xff]
    %v1713 = vld [vmem:[#allocation5 + $0x3270] sm:$0xff]
    %v1714 = vld [vmem:[#allocation5 + $0x3278] sm:$0xff]
    %v1715 = vld [vmem:[#allocation5 + $0x3280] sm:$0xff]
    %v1716 = vld [vmem:[#allocation5 + $0x3288] sm:$0xff]
    %v1717 = vld [vmem:[#allocation5 + $0x3290] sm:$0xff]
    %v1718 = vld [vmem:[#allocation5 + $0x3298] sm:$0xff]
    %v1719 = vld [vmem:[#allocation5 + $0x32a0] sm:$0xff]
    %v1720 = vld [vmem:[#allocation5 + $0x32a8] sm:$0xff]
    %v1721 = vld [vmem:[#allocation5 + $0x32b0] sm:$0xff]
    %v1722 = vld [vmem:[#allocation5 + $0x32b8] sm:$0xff]
    %v1723 = vld [vmem:[#allocation5 + $0x32c0] sm:$0xff]
    %v1724 = vld [vmem:[#allocation5 + $0x32c8] sm:$0xff]
    %v1725 = vld [vmem:[#allocation5 + $0x32d0] sm:$0xff]
    %v1726 = vld [vmem:[#allocation5 + $0x32d8] sm:$0xff]
    %v1727 = vld [vmem:[#allocation5 + $0x32e0] sm:$0xff]
    %v1728 = vld [vmem:[#allocation5 + $0x32e8] sm:$0xff]
    %v1729 = vld [vmem:[#allocation5 + $0x32f0] sm:$0xff]
    %v1730 = vld [vmem:[#allocation5 + $0x32f8] sm:$0xff]
    %v1731 = vld [vmem:[#allocation5 + $0x3300] sm:$0xff]
    %v1732 = vld [vmem:[#allocation5 + $0x3308] sm:$0xff]
    %v1733 = vld [vmem:[#allocation5 + $0x3310] sm:$0xff]
    %v1734 = vld [vmem:[#allocation5 + $0x3318] sm:$0xff]
    %v1735 = vld [vmem:[#allocation5 + $0x3320] sm:$0xff]
    %v1736 = vld [vmem:[#allocation5 + $0x3328] sm:$0xff]
    %v1737 = vld [vmem:[#allocation5 + $0x3330] sm:$0xff]
    %v1738 = vld [vmem:[#allocation5 + $0x3338] sm:$0xff]
    %v1739 = vld [vmem:[#allocation5 + $0x3340] sm:$0xff]
    %v1740 = vld [vmem:[#allocation5 + $0x3348] sm:$0xff]
    %v1741 = vld [vmem:[#allocation5 + $0x3350] sm:$0xff]
    %v1742 = vld [vmem:[#allocation5 + $0x3358] sm:$0xff]
    %v1743 = vld [vmem:[#allocation5 + $0x3360] sm:$0xff]
    %v1744 = vld [vmem:[#allocation5 + $0x3368] sm:$0xff]
    %v1745 = vld [vmem:[#allocation5 + $0x3370] sm:$0xff]
    %v1746 = vld [vmem:[#allocation5 + $0x3378] sm:$0xff]
    %v1747 = vld [vmem:[#allocation5 + $0x3380] sm:$0xff]
    %v1748 = vld [vmem:[#allocation5 + $0x3388] sm:$0xff]
    %v1749 = vld [vmem:[#allocation5 + $0x3390] sm:$0xff]
    %v1750 = vld [vmem:[#allocation5 + $0x3398] sm:$0xff]
    %v1751 = vld [vmem:[#allocation5 + $0x33a0] sm:$0xff]
    %v1752 = vld [vmem:[#allocation5 + $0x33a8] sm:$0xff]
    %v1753 = vld [vmem:[#allocation5 + $0x33b0] sm:$0xff]
    %v1754 = vld [vmem:[#allocation5 + $0x33b8] sm:$0xff]
    %v1755 = vld [vmem:[#allocation5 + $0x33c0] sm:$0xff]
    %v1756 = vld [vmem:[#allocation5 + $0x33c8] sm:$0xff]
    %v1757 = vld [vmem:[#allocation5 + $0x33d0] sm:$0xff]
    %v1758 = vld [vmem:[#allocation5 + $0x33d8] sm:$0xff]
    %v1759 = vld [vmem:[#allocation5 + $0x33e0] sm:$0xff]
    %v1760 = vld [vmem:[#allocation5 + $0x33e8] sm:$0xff]
    %v1761 = vld [vmem:[#allocation5 + $0x33f0] sm:$0xff]
    %v1762 = vld [vmem:[#allocation5 + $0x33f8] sm:$0xff]
    %v1763 = vld [vmem:[#allocation5 + $0x3400] sm:$0xff]
    %v1764 = vld [vmem:[#allocation5 + $0x3408] sm:$0xff]
    %v1765 = vld [vmem:[#allocation5 + $0x3410] sm:$0xff]
    %v1766 = vld [vmem:[#allocation5 + $0x3418] sm:$0xff]
    %v1767 = vld [vmem:[#allocation5 + $0x3420] sm:$0xff]
    %v1768 = vld [vmem:[#allocation5 + $0x3428] sm:$0xff]
    %v1769 = vld [vmem:[#allocation5 + $0x3430] sm:$0xff]
    %v1770 = vld [vmem:[#allocation5 + $0x3438] sm:$0xff]
    %v1771 = vld [vmem:[#allocation5 + $0x3440] sm:$0xff]
    %v1772 = vld [vmem:[#allocation5 + $0x3448] sm:$0xff]
    %v1773 = vld [vmem:[#allocation5 + $0x3450] sm:$0xff]
    %v1774 = vld [vmem:[#allocation5 + $0x3458] sm:$0xff]
    %v1775 = vld [vmem:[#allocation5 + $0x3460] sm:$0xff]
    %v1776 = vld [vmem:[#allocation5 + $0x3468] sm:$0xff]
    %v1777 = vld [vmem:[#allocation5 + $0x3470] sm:$0xff]
    %v1778 = vld [vmem:[#allocation5 + $0x3478] sm:$0xff]
    %v1779 = vld [vmem:[#allocation5 + $0x3480] sm:$0xff]
    %v1780 = vld [vmem:[#allocation5 + $0x3488] sm:$0xff]
    %v1781 = vld [vmem:[#allocation5 + $0x3490] sm:$0xff]
    %v1782 = vld [vmem:[#allocation5 + $0x3498] sm:$0xff]
    %v1783 = vld [vmem:[#allocation5 + $0x34a0] sm:$0xff]
    %v1784 = vld [vmem:[#allocation5 + $0x34a8] sm:$0xff]
    %v1785 = vld [vmem:[#allocation5 + $0x34b0] sm:$0xff]
    %v1786 = vld [vmem:[#allocation5 + $0x34b8] sm:$0xff]
    %v1787 = vld [vmem:[#allocation5 + $0x34c0] sm:$0xff]
    %v1788 = vld [vmem:[#allocation5 + $0x34c8] sm:$0xff]
    %v1789 = vld [vmem:[#allocation5 + $0x34d0] sm:$0xff]
    %v1790 = vld [vmem:[#allocation5 + $0x34d8] sm:$0xff]
    %v1791 = vld [vmem:[#allocation5 + $0x34e0] sm:$0xff]
    %v1792 = vld [vmem:[#allocation5 + $0x34e8] sm:$0xff]
    %v1793 = vld [vmem:[#allocation5 + $0x34f0] sm:$0xff]
    %v1794 = vld [vmem:[#allocation5 + $0x34f8] sm:$0xff]
    %v1795 = vld [vmem:[#allocation5 + $0x3500] sm:$0xff]
    %v1796 = vld [vmem:[#allocation5 + $0x3508] sm:$0xff]
    %v1797 = vld [vmem:[#allocation5 + $0x3510] sm:$0xff]
    %v1798 = vld [vmem:[#allocation5 + $0x3518] sm:$0xff]
    %v1799 = vld [vmem:[#allocation5 + $0x3520] sm:$0xff]
    %v1800 = vld [vmem:[#allocation5 + $0x3528] sm:$0xff]
    %v1801 = vld [vmem:[#allocation5 + $0x3530] sm:$0xff]
    %v1802 = vld [vmem:[#allocation5 + $0x3538] sm:$0xff]
    %v1803 = vld [vmem:[#allocation5 + $0x3540] sm:$0xff]
    %v1804 = vld [vmem:[#allocation5 + $0x3548] sm:$0xff]
    %v1805 = vld [vmem:[#allocation5 + $0x3550] sm:$0xff]
    %v1806 = vld [vmem:[#allocation5 + $0x3558] sm:$0xff]
    %v1807 = vld [vmem:[#allocation5 + $0x3560] sm:$0xff]
    %v1808 = vld [vmem:[#allocation5 + $0x3568] sm:$0xff]
    %v1809 = vld [vmem:[#allocation5 + $0x3570] sm:$0xff]
    %v1810 = vld [vmem:[#allocation5 + $0x3578] sm:$0xff]
    %v1811 = vld [vmem:[#allocation5 + $0x3580] sm:$0xff]
    %v1812 = vld [vmem:[#allocation5 + $0x3588] sm:$0xff]
    %v1813 = vld [vmem:[#allocation5 + $0x3590] sm:$0xff]
    %v1814 = vld [vmem:[#allocation5 + $0x3598] sm:$0xff]
    %v1815 = vld [vmem:[#allocation5 + $0x35a0] sm:$0xff]
    %v1816 = vld [vmem:[#allocation5 + $0x35a8] sm:$0xff]
    %v1817 = vld [vmem:[#allocation5 + $0x35b0] sm:$0xff]
    %v1818 = vld [vmem:[#allocation5 + $0x35b8] sm:$0xff]
    %v1819 = vld [vmem:[#allocation5 + $0x35c0] sm:$0xff]
    %v1820 = vld [vmem:[#allocation5 + $0x35c8] sm:$0xff]
    %v1821 = vld [vmem:[#allocation5 + $0x35d0] sm:$0xff]
    %v1822 = vld [vmem:[#allocation5 + $0x35d8] sm:$0xff]
    %v1823 = vld [vmem:[#allocation5 + $0x35e0] sm:$0xff]
    %v1824 = vld [vmem:[#allocation5 + $0x35e8] sm:$0xff]
    %v1825 = vld [vmem:[#allocation5 + $0x35f0] sm:$0xff]
    %v1826 = vld [vmem:[#allocation5 + $0x35f8] sm:$0xff]
    %v1827 = vld [vmem:[#allocation5 + $0x3600] sm:$0xff]
    %v1828 = vld [vmem:[#allocation5 + $0x3608] sm:$0xff]
    %v1829 = vld [vmem:[#allocation5 + $0x3610] sm:$0xff]
    %v1830 = vld [vmem:[#allocation5 + $0x3618] sm:$0xff]
    %v1831 = vld [vmem:[#allocation5 + $0x3620] sm:$0xff]
    %v1832 = vld [vmem:[#allocation5 + $0x3628] sm:$0xff]
    %v1833 = vld [vmem:[#allocation5 + $0x3630] sm:$0xff]
    %v1834 = vld [vmem:[#allocation5 + $0x3638] sm:$0xff]
    %v1835 = vld [vmem:[#allocation5 + $0x3640] sm:$0xff]
    %v1836 = vld [vmem:[#allocation5 + $0x3648] sm:$0xff]
    %v1837 = vld [vmem:[#allocation5 + $0x3650] sm:$0xff]
    %v1838 = vld [vmem:[#allocation5 + $0x3658] sm:$0xff]
    %v1839 = vld [vmem:[#allocation5 + $0x3660] sm:$0xff]
    %v1840 = vld [vmem:[#allocation5 + $0x3668] sm:$0xff]
    %v1841 = vld [vmem:[#allocation5 + $0x3670] sm:$0xff]
    %v1842 = vld [vmem:[#allocation5 + $0x3678] sm:$0xff]
    %v1843 = vld [vmem:[#allocation5 + $0x3680] sm:$0xff]
    %v1844 = vld [vmem:[#allocation5 + $0x3688] sm:$0xff]
    %v1845 = vld [vmem:[#allocation5 + $0x3690] sm:$0xff]
    %v1846 = vld [vmem:[#allocation5 + $0x3698] sm:$0xff]
    %v1847 = vld [vmem:[#allocation5 + $0x36a0] sm:$0xff]
    %v1848 = vld [vmem:[#allocation5 + $0x36a8] sm:$0xff]
    %v1849 = vld [vmem:[#allocation5 + $0x36b0] sm:$0xff]
    %v1850 = vld [vmem:[#allocation5 + $0x36b8] sm:$0xff]
    %v1851 = vld [vmem:[#allocation5 + $0x36c0] sm:$0xff]
    %v1852 = vld [vmem:[#allocation5 + $0x36c8] sm:$0xff]
    %v1853 = vld [vmem:[#allocation5 + $0x36d0] sm:$0xff]
    %v1854 = vld [vmem:[#allocation5 + $0x36d8] sm:$0xff]
    %v1855 = vld [vmem:[#allocation5 + $0x36e0] sm:$0xff]
    %v1856 = vld [vmem:[#allocation5 + $0x36e8] sm:$0xff]
    %v1857 = vld [vmem:[#allocation5 + $0x36f0] sm:$0xff]
    %v1858 = vld [vmem:[#allocation5 + $0x36f8] sm:$0xff]
    %v1859 = vld [vmem:[#allocation5 + $0x3700] sm:$0xff]
    %v1860 = vld [vmem:[#allocation5 + $0x3708] sm:$0xff]
    %v1861 = vld [vmem:[#allocation5 + $0x3710] sm:$0xff]
    %v1862 = vld [vmem:[#allocation5 + $0x3718] sm:$0xff]
    %v1863 = vld [vmem:[#allocation5 + $0x3720] sm:$0xff]
    %v1864 = vld [vmem:[#allocation5 + $0x3728] sm:$0xff]
    %v1865 = vld [vmem:[#allocation5 + $0x3730] sm:$0xff]
    %v1866 = vld [vmem:[#allocation5 + $0x3738] sm:$0xff]
    %v1867 = vld [vmem:[#allocation5 + $0x3740] sm:$0xff]
    %v1868 = vld [vmem:[#allocation5 + $0x3748] sm:$0xff]
    %v1869 = vld [vmem:[#allocation5 + $0x3750] sm:$0xff]
    %v1870 = vld [vmem:[#allocation5 + $0x3758] sm:$0xff]
    %v1871 = vld [vmem:[#allocation5 + $0x3760] sm:$0xff]
    %v1872 = vld [vmem:[#allocation5 + $0x3768] sm:$0xff]
    %v1873 = vld [vmem:[#allocation5 + $0x3770] sm:$0xff]
    %v1874 = vld [vmem:[#allocation5 + $0x3778] sm:$0xff]
    %v1875 = vld [vmem:[#allocation5 + $0x3780] sm:$0xff]
    %v1876 = vld [vmem:[#allocation5 + $0x3788] sm:$0xff]
    %v1877 = vld [vmem:[#allocation5 + $0x3790] sm:$0xff]
    %v1878 = vld [vmem:[#allocation5 + $0x3798] sm:$0xff]
    %v1879 = vld [vmem:[#allocation5 + $0x37a0] sm:$0xff]
    %v1880 = vld [vmem:[#allocation5 + $0x37a8] sm:$0xff]
    %v1881 = vld [vmem:[#allocation5 + $0x37b0] sm:$0xff]
    %v1882 = vld [vmem:[#allocation5 + $0x37b8] sm:$0xff]
    %v1883 = vld [vmem:[#allocation5 + $0x37c0] sm:$0xff]
    %v1884 = vld [vmem:[#allocation5 + $0x37c8] sm:$0xff]
    %v1885 = vld [vmem:[#allocation5 + $0x37d0] sm:$0xff]
    %v1886 = vld [vmem:[#allocation5 + $0x37d8] sm:$0xff]
    %v1887 = vld [vmem:[#allocation5 + $0x37e0] sm:$0xff]
    %v1888 = vld [vmem:[#allocation5 + $0x37e8] sm:$0xff]
    %v1889 = vld [vmem:[#allocation5 + $0x37f0] sm:$0xff]
    %v1890 = vld [vmem:[#allocation5 + $0x37f8] sm:$0xff]
    %v1891 = vld [vmem:[#allocation5 + $0x3800] sm:$0xff]
    %v1892 = vld [vmem:[#allocation5 + $0x3808] sm:$0xff]
    %v1893 = vld [vmem:[#allocation5 + $0x3810] sm:$0xff]
    %v1894 = vld [vmem:[#allocation5 + $0x3818] sm:$0xff]
    %v1895 = vld [vmem:[#allocation5 + $0x3820] sm:$0xff]
    %v1896 = vld [vmem:[#allocation5 + $0x3828] sm:$0xff]
    %v1897 = vld [vmem:[#allocation5 + $0x3830] sm:$0xff]
    %v1898 = vld [vmem:[#allocation5 + $0x3838] sm:$0xff]
    %v1899 = vld [vmem:[#allocation5 + $0x3840] sm:$0xff]
    %v1900 = vld [vmem:[#allocation5 + $0x3848] sm:$0xff]
    %v1901 = vld [vmem:[#allocation5 + $0x3850] sm:$0xff]
    %v1902 = vld [vmem:[#allocation5 + $0x3858] sm:$0xff]
    %v1903 = vld [vmem:[#allocation5 + $0x3860] sm:$0xff]
    %v1904 = vld [vmem:[#allocation5 + $0x3868] sm:$0xff]
    %v1905 = vld [vmem:[#allocation5 + $0x3870] sm:$0xff]
    %v1906 = vld [vmem:[#allocation5 + $0x3878] sm:$0xff]
    %v1907 = vld [vmem:[#allocation5 + $0x3880] sm:$0xff]
    %v1908 = vld [vmem:[#allocation5 + $0x3888] sm:$0xff]
    %v1909 = vld [vmem:[#allocation5 + $0x3890] sm:$0xff]
    %v1910 = vld [vmem:[#allocation5 + $0x3898] sm:$0xff]
    %v1911 = vld [vmem:[#allocation5 + $0x38a0] sm:$0xff]
    %v1912 = vld [vmem:[#allocation5 + $0x38a8] sm:$0xff]
    %v1913 = vld [vmem:[#allocation5 + $0x38b0] sm:$0xff]
    %v1914 = vld [vmem:[#allocation5 + $0x38b8] sm:$0xff]
    %v1915 = vld [vmem:[#allocation5 + $0x38c0] sm:$0xff]
    %v1916 = vld [vmem:[#allocation5 + $0x38c8] sm:$0xff]
    %v1917 = vld [vmem:[#allocation5 + $0x38d0] sm:$0xff]
    %v1918 = vld [vmem:[#allocation5 + $0x38d8] sm:$0xff]
    %v1919 = vld [vmem:[#allocation5 + $0x38e0] sm:$0xff]
    %v1920 = vld [vmem:[#allocation5 + $0x38e8] sm:$0xff]
    %v1921 = vld [vmem:[#allocation5 + $0x38f0] sm:$0xff]
    %v1922 = vld [vmem:[#allocation5 + $0x38f8] sm:$0xff]
    %v1923 = vld [vmem:[#allocation5 + $0x3900] sm:$0xff]
    %v1924 = vld [vmem:[#allocation5 + $0x3908] sm:$0xff]
    %v1925 = vld [vmem:[#allocation5 + $0x3910] sm:$0xff]
    %v1926 = vld [vmem:[#allocation5 + $0x3918] sm:$0xff]
    %v1927 = vld [vmem:[#allocation5 + $0x3920] sm:$0xff]
    %v1928 = vld [vmem:[#allocation5 + $0x3928] sm:$0xff]
    %v1929 = vld [vmem:[#allocation5 + $0x3930] sm:$0xff]
    %v1930 = vld [vmem:[#allocation5 + $0x3938] sm:$0xff]
    %v1931 = vld [vmem:[#allocation5 + $0x3940] sm:$0xff]
    %v1932 = vld [vmem:[#allocation5 + $0x3948] sm:$0xff]
    %v1933 = vld [vmem:[#allocation5 + $0x3950] sm:$0xff]
    %v1934 = vld [vmem:[#allocation5 + $0x3958] sm:$0xff]
    %v1935 = vld [vmem:[#allocation5 + $0x3960] sm:$0xff]
    %v1936 = vld [vmem:[#allocation5 + $0x3968] sm:$0xff]
    %v1937 = vld [vmem:[#allocation5 + $0x3970] sm:$0xff]
    %v1938 = vld [vmem:[#allocation5 + $0x3978] sm:$0xff]
    %v1939 = vld [vmem:[#allocation5 + $0x3980] sm:$0xff]
    %v1940 = vld [vmem:[#allocation5 + $0x3988] sm:$0xff]
    %v1941 = vld [vmem:[#allocation5 + $0x3990] sm:$0xff]
    %v1942 = vld [vmem:[#allocation5 + $0x3998] sm:$0xff]
    %v1943 = vld [vmem:[#allocation5 + $0x39a0] sm:$0xff]
    %v1944 = vld [vmem:[#allocation5 + $0x39a8] sm:$0xff]
    %v1945 = vld [vmem:[#allocation5 + $0x39b0] sm:$0xff]
    %v1946 = vld [vmem:[#allocation5 + $0x39b8] sm:$0xff]
    %v1947 = vld [vmem:[#allocation5 + $0x39c0] sm:$0xff]
    %v1948 = vld [vmem:[#allocation5 + $0x39c8] sm:$0xff]
    %v1949 = vld [vmem:[#allocation5 + $0x39d0] sm:$0xff]
    %v1950 = vld [vmem:[#allocation5 + $0x39d8] sm:$0xff]
    %v1951 = vld [vmem:[#allocation5 + $0x39e0] sm:$0xff]
    %v1952 = vld [vmem:[#allocation5 + $0x39e8] sm:$0xff]
    %v1953 = vld [vmem:[#allocation5 + $0x39f0] sm:$0xff]
    %v1954 = vld [vmem:[#allocation5 + $0x39f8] sm:$0xff]
    %v1955 = vld [vmem:[#allocation5 + $0x3a00] sm:$0xff]
    %v1956 = vld [vmem:[#allocation5 + $0x3a08] sm:$0xff]
    %v1957 = vld [vmem:[#allocation5 + $0x3a10] sm:$0xff]
    %v1958 = vld [vmem:[#allocation5 + $0x3a18] sm:$0xff]
    %v1959 = vld [vmem:[#allocation5 + $0x3a20] sm:$0xff]
    %v1960 = vld [vmem:[#allocation5 + $0x3a28] sm:$0xff]
    %v1961 = vld [vmem:[#allocation5 + $0x3a30] sm:$0xff]
    %v1962 = vld [vmem:[#allocation5 + $0x3a38] sm:$0xff]
    %v1963 = vld [vmem:[#allocation5 + $0x3a40] sm:$0xff]
    %v1964 = vld [vmem:[#allocation5 + $0x3a48] sm:$0xff]
    %v1965 = vld [vmem:[#allocation5 + $0x3a50] sm:$0xff]
    %v1966 = vld [vmem:[#allocation5 + $0x3a58] sm:$0xff]
    %v1967 = vld [vmem:[#allocation5 + $0x3a60] sm:$0xff]
    %v1968 = vld [vmem:[#allocation5 + $0x3a68] sm:$0xff]
    %v1969 = vld [vmem:[#allocation5 + $0x3a70] sm:$0xff]
    %v1970 = vld [vmem:[#allocation5 + $0x3a78] sm:$0xff]
    %v1971 = vld [vmem:[#allocation5 + $0x3a80] sm:$0xff]
    %v1972 = vld [vmem:[#allocation5 + $0x3a88] sm:$0xff]
    %v1973 = vld [vmem:[#allocation5 + $0x3a90] sm:$0xff]
    %v1974 = vld [vmem:[#allocation5 + $0x3a98] sm:$0xff]
    %v1975 = vld [vmem:[#allocation5 + $0x3aa0] sm:$0xff]
    %v1976 = vld [vmem:[#allocation5 + $0x3aa8] sm:$0xff]
    %v1977 = vld [vmem:[#allocation5 + $0x3ab0] sm:$0xff]
    %v1978 = vld [vmem:[#allocation5 + $0x3ab8] sm:$0xff]
    %v1979 = vld [vmem:[#allocation5 + $0x3ac0] sm:$0xff]
    %v1980 = vld [vmem:[#allocation5 + $0x3ac8] sm:$0xff]
    %v1981 = vld [vmem:[#allocation5 + $0x3ad0] sm:$0xff]
    %v1982 = vld [vmem:[#allocation5 + $0x3ad8] sm:$0xff]
    %v1983 = vld [vmem:[#allocation5 + $0x3ae0] sm:$0xff]
    %v1984 = vld [vmem:[#allocation5 + $0x3ae8] sm:$0xff]
    %v1985 = vld [vmem:[#allocation5 + $0x3af0] sm:$0xff]
    %v1986 = vld [vmem:[#allocation5 + $0x3af8] sm:$0xff]
    %v1987 = vld [vmem:[#allocation5 + $0x3b00] sm:$0xff]
    %v1988 = vld [vmem:[#allocation5 + $0x3b08] sm:$0xff]
    %v1989 = vld [vmem:[#allocation5 + $0x3b10] sm:$0xff]
    %v1990 = vld [vmem:[#allocation5 + $0x3b18] sm:$0xff]
    %v1991 = vld [vmem:[#allocation5 + $0x3b20] sm:$0xff]
    %v1992 = vld [vmem:[#allocation5 + $0x3b28] sm:$0xff]
    %v1993 = vld [vmem:[#allocation5 + $0x3b30] sm:$0xff]
    %v1994 = vld [vmem:[#allocation5 + $0x3b38] sm:$0xff]
    %v1995 = vld [vmem:[#allocation5 + $0x3b40] sm:$0xff]
    %v1996 = vld [vmem:[#allocation5 + $0x3b48] sm:$0xff]
    %v1997 = vld [vmem:[#allocation5 + $0x3b50] sm:$0xff]
    %v1998 = vld [vmem:[#allocation5 + $0x3b58] sm:$0xff]
    %v1999 = vld [vmem:[#allocation5 + $0x3b60] sm:$0xff]
    %v2000 = vld [vmem:[#allocation5 + $0x3b68] sm:$0xff]
    %v2001 = vld [vmem:[#allocation5 + $0x3b70] sm:$0xff]
    %v2002 = vld [vmem:[#allocation5 + $0x3b78] sm:$0xff]
    %v2003 = vld [vmem:[#allocation5 + $0x3b80] sm:$0xff]
    %v2004 = vld [vmem:[#allocation5 + $0x3b88] sm:$0xff]
    %v2005 = vld [vmem:[#allocation5 + $0x3b90] sm:$0xff]
    %v2006 = vld [vmem:[#allocation5 + $0x3b98] sm:$0xff]
    %v2007 = vld [vmem:[#allocation5 + $0x3ba0] sm:$0xff]
    %v2008 = vld [vmem:[#allocation5 + $0x3ba8] sm:$0xff]
    %v2009 = vld [vmem:[#allocation5 + $0x3bb0] sm:$0xff]
    %v2010 = vld [vmem:[#allocation5 + $0x3bb8] sm:$0xff]
    %v2011 = vld [vmem:[#allocation5 + $0x3bc0] sm:$0xff]
    %v2012 = vld [vmem:[#allocation5 + $0x3bc8] sm:$0xff]
    %v2013 = vld [vmem:[#allocation5 + $0x3bd0] sm:$0xff]
    %v2014 = vld [vmem:[#allocation5 + $0x3bd8] sm:$0xff]
    %v2015 = vld [vmem:[#allocation5 + $0x3be0] sm:$0xff]
    %v2016 = vld [vmem:[#allocation5 + $0x3be8] sm:$0xff]
    %v2017 = vld [vmem:[#allocation5 + $0x3bf0] sm:$0xff]
    %v2018 = vld [vmem:[#allocation5 + $0x3bf8] sm:$0xff]
    %v2019 = vld [vmem:[#allocation5 + $0x3c00] sm:$0xff]
    %v2020 = vld [vmem:[#allocation5 + $0x3c08] sm:$0xff]
    %v2021 = vld [vmem:[#allocation5 + $0x3c10] sm:$0xff]
    %v2022 = vld [vmem:[#allocation5 + $0x3c18] sm:$0xff]
    %v2023 = vld [vmem:[#allocation5 + $0x3c20] sm:$0xff]
    %v2024 = vld [vmem:[#allocation5 + $0x3c28] sm:$0xff]
    %v2025 = vld [vmem:[#allocation5 + $0x3c30] sm:$0xff]
    %v2026 = vld [vmem:[#allocation5 + $0x3c38] sm:$0xff]
    %v2027 = vld [vmem:[#allocation5 + $0x3c40] sm:$0xff]
    %v2028 = vld [vmem:[#allocation5 + $0x3c48] sm:$0xff]
    %v2029 = vld [vmem:[#allocation5 + $0x3c50] sm:$0xff]
    %v2030 = vld [vmem:[#allocation5 + $0x3c58] sm:$0xff]
    %v2031 = vld [vmem:[#allocation5 + $0x3c60] sm:$0xff]
    %v2032 = vld [vmem:[#allocation5 + $0x3c68] sm:$0xff]
    %v2033 = vld [vmem:[#allocation5 + $0x3c70] sm:$0xff]
    %v2034 = vld [vmem:[#allocation5 + $0x3c78] sm:$0xff]
    %v2035 = vld [vmem:[#allocation5 + $0x3c80] sm:$0xff]
    %v2036 = vld [vmem:[#allocation5 + $0x3c88] sm:$0xff]
    %v2037 = vld [vmem:[#allocation5 + $0x3c90] sm:$0xff]
    %v2038 = vld [vmem:[#allocation5 + $0x3c98] sm:$0xff]
    %v2039 = vld [vmem:[#allocation5 + $0x3ca0] sm:$0xff]
    %v2040 = vld [vmem:[#allocation5 + $0x3ca8] sm:$0xff]
    %v2041 = vld [vmem:[#allocation5 + $0x3cb0] sm:$0xff]
    %v2042 = vld [vmem:[#allocation5 + $0x3cb8] sm:$0xff]
    %v2043 = vld [vmem:[#allocation5 + $0x3cc0] sm:$0xff]
    %v2044 = vld [vmem:[#allocation5 + $0x3cc8] sm:$0xff]
    %v2045 = vld [vmem:[#allocation5 + $0x3cd0] sm:$0xff]
    %v2046 = vld [vmem:[#allocation5 + $0x3cd8] sm:$0xff]
    %v2047 = vld [vmem:[#allocation5 + $0x3ce0] sm:$0xff]
    %v2048 = vld [vmem:[#allocation5 + $0x3ce8] sm:$0xff]
    %v2049 = vld [vmem:[#allocation5 + $0x3cf0] sm:$0xff]
    %v2050 = vld [vmem:[#allocation5 + $0x3cf8] sm:$0xff]
    %v2051 = vld [vmem:[#allocation5 + $0x3d00] sm:$0xff]
    %v2052 = vld [vmem:[#allocation5 + $0x3d08] sm:$0xff]
    %v2053 = vld [vmem:[#allocation5 + $0x3d10] sm:$0xff]
    %v2054 = vld [vmem:[#allocation5 + $0x3d18] sm:$0xff]
    %v2055 = vld [vmem:[#allocation5 + $0x3d20] sm:$0xff]
    %v2056 = vld [vmem:[#allocation5 + $0x3d28] sm:$0xff]
    %v2057 = vld [vmem:[#allocation5 + $0x3d30] sm:$0xff]
    %v2058 = vld [vmem:[#allocation5 + $0x3d38] sm:$0xff]
    %v2059 = vld [vmem:[#allocation5 + $0x3d40] sm:$0xff]
    %v2060 = vld [vmem:[#allocation5 + $0x3d48] sm:$0xff]
    %v2061 = vld [vmem:[#allocation5 + $0x3d50] sm:$0xff]
    %v2062 = vld [vmem:[#allocation5 + $0x3d58] sm:$0xff]
    %v2063 = vld [vmem:[#allocation5 + $0x3d60] sm:$0xff]
    %v2064 = vld [vmem:[#allocation5 + $0x3d68] sm:$0xff]
    %v2065 = vld [vmem:[#allocation5 + $0x3d70] sm:$0xff]
    %v2066 = vld [vmem:[#allocation5 + $0x3d78] sm:$0xff]
    %v2067 = vld [vmem:[#allocation5 + $0x3d80] sm:$0xff]
    %v2068 = vld [vmem:[#allocation5 + $0x3d88] sm:$0xff]
    %v2069 = vld [vmem:[#allocation5 + $0x3d90] sm:$0xff]
    %v2070 = vld [vmem:[#allocation5 + $0x3d98] sm:$0xff]
    %v2071 = vld [vmem:[#allocation5 + $0x3da0] sm:$0xff]
    %v2072 = vld [vmem:[#allocation5 + $0x3da8] sm:$0xff]
    %v2073 = vld [vmem:[#allocation5 + $0x3db0] sm:$0xff]
    %v2074 = vld [vmem:[#allocation5 + $0x3db8] sm:$0xff]
    %v2075 = vld [vmem:[#allocation5 + $0x3dc0] sm:$0xff]
    %v2076 = vld [vmem:[#allocation5 + $0x3dc8] sm:$0xff]
    %v2077 = vld [vmem:[#allocation5 + $0x3dd0] sm:$0xff]
    %v2078 = vld [vmem:[#allocation5 + $0x3dd8] sm:$0xff]
    %v2079 = vld [vmem:[#allocation5 + $0x3de0] sm:$0xff]
    %v2080 = vld [vmem:[#allocation5 + $0x3de8] sm:$0xff]
    %v2081 = vld [vmem:[#allocation5 + $0x3df0] sm:$0xff]
    %v2082 = vld [vmem:[#allocation5 + $0x3df8] sm:$0xff]
    %v2083 = vld [vmem:[#allocation5 + $0x3e00] sm:$0xff]
    %v2084 = vld [vmem:[#allocation5 + $0x3e08] sm:$0xff]
    %v2085 = vld [vmem:[#allocation5 + $0x3e10] sm:$0xff]
    %v2086 = vld [vmem:[#allocation5 + $0x3e18] sm:$0xff]
    %v2087 = vld [vmem:[#allocation5 + $0x3e20] sm:$0xff]
    %v2088 = vld [vmem:[#allocation5 + $0x3e28] sm:$0xff]
    %v2089 = vld [vmem:[#allocation5 + $0x3e30] sm:$0xff]
    %v2090 = vld [vmem:[#allocation5 + $0x3e38] sm:$0xff]
    %v2091 = vld [vmem:[#allocation5 + $0x3e40] sm:$0xff]
    %v2092 = vld [vmem:[#allocation5 + $0x3e48] sm:$0xff]
    %v2093 = vld [vmem:[#allocation5 + $0x3e50] sm:$0xff]
    %v2094 = vld [vmem:[#allocation5 + $0x3e58] sm:$0xff]
    %v2095 = vld [vmem:[#allocation5 + $0x3e60] sm:$0xff]
    %v2096 = vld [vmem:[#allocation5 + $0x3e68] sm:$0xff]
    %v2097 = vld [vmem:[#allocation5 + $0x3e70] sm:$0xff]
    %v2098 = vld [vmem:[#allocation5 + $0x3e78] sm:$0xff]
    %v2099 = vld [vmem:[#allocation5 + $0x3e80] sm:$0xff]
    %v2100 = vld [vmem:[#allocation5 + $0x3e88] sm:$0xff]
    %v2101 = vld [vmem:[#allocation5 + $0x3e90] sm:$0xff]
    %v2102 = vld [vmem:[#allocation5 + $0x3e98] sm:$0xff]
    %v2103 = vld [vmem:[#allocation5 + $0x3ea0] sm:$0xff]
    %v2104 = vld [vmem:[#allocation5 + $0x3ea8] sm:$0xff]
    %v2105 = vld [vmem:[#allocation5 + $0x3eb0] sm:$0xff]
    %v2106 = vld [vmem:[#allocation5 + $0x3eb8] sm:$0xff]
    %v2107 = vld [vmem:[#allocation5 + $0x3ec0] sm:$0xff]
    %v2108 = vld [vmem:[#allocation5 + $0x3ec8] sm:$0xff]
    %v2109 = vld [vmem:[#allocation5 + $0x3ed0] sm:$0xff]
    %v2110 = vld [vmem:[#allocation5 + $0x3ed8] sm:$0xff]
    %v2111 = vld [vmem:[#allocation5 + $0x3ee0] sm:$0xff]
    %v2112 = vld [vmem:[#allocation5 + $0x3ee8] sm:$0xff]
    %v2113 = vld [vmem:[#allocation5 + $0x3ef0] sm:$0xff]
    %v2114 = vld [vmem:[#allocation5 + $0x3ef8] sm:$0xff]
    %v2115 = vld [vmem:[#allocation5 + $0x3f00] sm:$0xff]
    %v2116 = vld [vmem:[#allocation5 + $0x3f08] sm:$0xff]
    %v2117 = vld [vmem:[#allocation5 + $0x3f10] sm:$0xff]
    %v2118 = vld [vmem:[#allocation5 + $0x3f18] sm:$0xff]
    %v2119 = vld [vmem:[#allocation5 + $0x3f20] sm:$0xff]
    %v2120 = vld [vmem:[#allocation5 + $0x3f28] sm:$0xff]
    %v2121 = vld [vmem:[#allocation5 + $0x3f30] sm:$0xff]
    %v2122 = vld [vmem:[#allocation5 + $0x3f38] sm:$0xff]
    %v2123 = vld [vmem:[#allocation5 + $0x3f40] sm:$0xff]
    %v2124 = vld [vmem:[#allocation5 + $0x3f48] sm:$0xff]
    %v2125 = vld [vmem:[#allocation5 + $0x3f50] sm:$0xff]
    %v2126 = vld [vmem:[#allocation5 + $0x3f58] sm:$0xff]
    %v2127 = vld [vmem:[#allocation5 + $0x3f60] sm:$0xff]
    %v2128 = vld [vmem:[#allocation5 + $0x3f68] sm:$0xff]
    %v2129 = vld [vmem:[#allocation5 + $0x3f70] sm:$0xff]
    %v2130 = vld [vmem:[#allocation5 + $0x3f78] sm:$0xff]
    %v2131 = vld [vmem:[#allocation5 + $0x3f80] sm:$0xff]
    %v2132 = vld [vmem:[#allocation5 + $0x3f88] sm:$0xff]
    %v2133 = vld [vmem:[#allocation5 + $0x3f90] sm:$0xff]
    %v2134 = vld [vmem:[#allocation5 + $0x3f98] sm:$0xff]
    %v2135 = vld [vmem:[#allocation5 + $0x3fa0] sm:$0xff]
    %v2136 = vld [vmem:[#allocation5 + $0x3fa8] sm:$0xff]
    %v2137 = vld [vmem:[#allocation5 + $0x3fb0] sm:$0xff]
    %v2138 = vld [vmem:[#allocation5 + $0x3fb8] sm:$0xff]
    %v2139 = vld [vmem:[#allocation5 + $0x3fc0] sm:$0xff]
    %v2140 = vld [vmem:[#allocation5 + $0x3fc8] sm:$0xff]
    %v2141 = vld [vmem:[#allocation5 + $0x3fd0] sm:$0xff]
    %v2142 = vld [vmem:[#allocation5 + $0x3fd8] sm:$0xff]
    %v2143 = vld [vmem:[#allocation5 + $0x3fe0] sm:$0xff]
    %v2144 = vld [vmem:[#allocation5 + $0x3fe8] sm:$0xff]
    %v2145 = vld [vmem:[#allocation5 + $0x3ff0] sm:$0xff]
    %v2146 = vld [vmem:[#allocation5 + $0x3ff8] sm:$0xff]
    %v2147 = vld [vmem:[#allocation5 + $0x4000] sm:$0xff]
    %v2148 = vld [vmem:[#allocation5 + $0x4008] sm:$0xff]
    %v2149 = vld [vmem:[#allocation5 + $0x4010] sm:$0xff]
    %v2150 = vld [vmem:[#allocation5 + $0x4018] sm:$0xff]
    %v2151 = vld [vmem:[#allocation5 + $0x4020] sm:$0xff]
    %v2152 = vld [vmem:[#allocation5 + $0x4028] sm:$0xff]
    %v2153 = vld [vmem:[#allocation5 + $0x4030] sm:$0xff]
    %v2154 = vld [vmem:[#allocation5 + $0x4038] sm:$0xff]
    %v2155 = vld [vmem:[#allocation5 + $0x4040] sm:$0xff]
    %v2156 = vld [vmem:[#allocation5 + $0x4048] sm:$0xff]
    %v2157 = vld [vmem:[#allocation5 + $0x4050] sm:$0xff]
    %v2158 = vld [vmem:[#allocation5 + $0x4058] sm:$0xff]
    %v2159 = vld [vmem:[#allocation5 + $0x4060] sm:$0xff]
    %v2160 = vld [vmem:[#allocation5 + $0x4068] sm:$0xff]
    %v2161 = vld [vmem:[#allocation5 + $0x4070] sm:$0xff]
    %v2162 = vld [vmem:[#allocation5 + $0x4078] sm:$0xff]
    %v2163 = vld [vmem:[#allocation5 + $0x4080] sm:$0xff]
    %v2164 = vld [vmem:[#allocation5 + $0x4088] sm:$0xff]
    %v2165 = vld [vmem:[#allocation5 + $0x4090] sm:$0xff]
    %v2166 = vld [vmem:[#allocation5 + $0x4098] sm:$0xff]
    %v2167 = vld [vmem:[#allocation5 + $0x40a0] sm:$0xff]
    %v2168 = vld [vmem:[#allocation5 + $0x40a8] sm:$0xff]
    %v2169 = vld [vmem:[#allocation5 + $0x40b0] sm:$0xff]
    %v2170 = vld [vmem:[#allocation5 + $0x40b8] sm:$0xff]
    %v2171 = vld [vmem:[#allocation5 + $0x40c0] sm:$0xff]
    %v2172 = vld [vmem:[#allocation5 + $0x40c8] sm:$0xff]
    %v2173 = vld [vmem:[#allocation5 + $0x40d0] sm:$0xff]
    %v2174 = vld [vmem:[#allocation5 + $0x40d8] sm:$0xff]
    %v2175 = vld [vmem:[#allocation5 + $0x40e0] sm:$0xff]
    %v2176 = vld [vmem:[#allocation5 + $0x40e8] sm:$0xff]
    %v2177 = vld [vmem:[#allocation5 + $0x40f0] sm:$0xff]
    %v2178 = vld [vmem:[#allocation5 + $0x40f8] sm:$0xff]
    %v2179 = vld [vmem:[#allocation5 + $0x4100] sm:$0xff]
    %v2180 = vld [vmem:[#allocation5 + $0x4108] sm:$0xff]
    %v2181 = vld [vmem:[#allocation5 + $0x4110] sm:$0xff]
    %v2182 = vld [vmem:[#allocation5 + $0x4118] sm:$0xff]
    %v2183 = vld [vmem:[#allocation5 + $0x4120] sm:$0xff]
    %v2184 = vld [vmem:[#allocation5 + $0x4128] sm:$0xff]
    %v2185 = vld [vmem:[#allocation5 + $0x4130] sm:$0xff]
    %v2186 = vld [vmem:[#allocation5 + $0x4138] sm:$0xff]
    %v2187 = vld [vmem:[#allocation5 + $0x4140] sm:$0xff]
    %v2188 = vld [vmem:[#allocation5 + $0x4148] sm:$0xff]
    %v2189 = vld [vmem:[#allocation5 + $0x4150] sm:$0xff]
    %v2190 = vld [vmem:[#allocation5 + $0x4158] sm:$0xff]
    %v2191 = vld [vmem:[#allocation5 + $0x4160] sm:$0xff]
    %v2192 = vld [vmem:[#allocation5 + $0x4168] sm:$0xff]
    %v2193 = vld [vmem:[#allocation5 + $0x4170] sm:$0xff]
    %v2194 = vld [vmem:[#allocation5 + $0x4178] sm:$0xff]
    %v2195 = vld [vmem:[#allocation5 + $0x4180] sm:$0xff]
    %v2196 = vld [vmem:[#allocation5 + $0x4188] sm:$0xff]
    %v2197 = vld [vmem:[#allocation5 + $0x4190] sm:$0xff]
    %v2198 = vld [vmem:[#allocation5 + $0x4198] sm:$0xff]
    %v2199 = vld [vmem:[#allocation5 + $0x41a0] sm:$0xff]
    %v2200 = vld [vmem:[#allocation5 + $0x41a8] sm:$0xff]
    %v2201 = vld [vmem:[#allocation5 + $0x41b0] sm:$0xff]
    %v2202 = vld [vmem:[#allocation5 + $0x41b8] sm:$0xff]
    %v2203 = vld [vmem:[#allocation5 + $0x41c0] sm:$0xff]
    %v2204 = vld [vmem:[#allocation5 + $0x41c8] sm:$0xff]
    %v2205 = vld [vmem:[#allocation5 + $0x41d0] sm:$0xff]
    %v2206 = vld [vmem:[#allocation5 + $0x41d8] sm:$0xff]
    %v2207 = vld [vmem:[#allocation5 + $0x41e0] sm:$0xff]
    %v2208 = vld [vmem:[#allocation5 + $0x41e8] sm:$0xff]
    %v2209 = vld [vmem:[#allocation5 + $0x41f0] sm:$0xff]
    %v2210 = vld [vmem:[#allocation5 + $0x41f8] sm:$0xff]
    %v2211 = vld [vmem:[#allocation5 + $0x4200] sm:$0xff]
    %v2212 = vld [vmem:[#allocation5 + $0x4208] sm:$0xff]
    %v2213 = vld [vmem:[#allocation5 + $0x4210] sm:$0xff]
    %v2214 = vld [vmem:[#allocation5 + $0x4218] sm:$0xff]
    %v2215 = vld [vmem:[#allocation5 + $0x4220] sm:$0xff]
    %v2216 = vld [vmem:[#allocation5 + $0x4228] sm:$0xff]
    %v2217 = vld [vmem:[#allocation5 + $0x4230] sm:$0xff]
    %v2218 = vld [vmem:[#allocation5 + $0x4238] sm:$0xff]
    %v2219 = vld [vmem:[#allocation5 + $0x4240] sm:$0xff]
    %v2220 = vld [vmem:[#allocation5 + $0x4248] sm:$0xff]
    %v2221 = vld [vmem:[#allocation5 + $0x4250] sm:$0xff]
    %v2222 = vld [vmem:[#allocation5 + $0x4258] sm:$0xff]
    %v2223 = vld [vmem:[#allocation5 + $0x4260] sm:$0xff]
    %v2224 = vld [vmem:[#allocation5 + $0x4268] sm:$0xff]
    %v2225 = vld [vmem:[#allocation5 + $0x4270] sm:$0xff]
    %v2226 = vld [vmem:[#allocation5 + $0x4278] sm:$0xff]
    %v2227 = vld [vmem:[#allocation5 + $0x4280] sm:$0xff]
    %v2228 = vld [vmem:[#allocation5 + $0x4288] sm:$0xff]
    %v2229 = vld [vmem:[#allocation5 + $0x4290] sm:$0xff]
    %v2230 = vld [vmem:[#allocation5 + $0x4298] sm:$0xff]
    %v2231 = vld [vmem:[#allocation5 + $0x42a0] sm:$0xff]
    %v2232 = vld [vmem:[#allocation5 + $0x42a8] sm:$0xff]
    %v2233 = vld [vmem:[#allocation5 + $0x42b0] sm:$0xff]
    %v2234 = vld [vmem:[#allocation5 + $0x42b8] sm:$0xff]
    %v2235 = vld [vmem:[#allocation5 + $0x42c0] sm:$0xff]
    %v2236 = vld [vmem:[#allocation5 + $0x42c8] sm:$0xff]
    %v2237 = vld [vmem:[#allocation5 + $0x42d0] sm:$0xff]
    %v2238 = vld [vmem:[#allocation5 + $0x42d8] sm:$0xff]
    %v2239 = vld [vmem:[#allocation5 + $0x42e0] sm:$0xff]
    %v2240 = vld [vmem:[#allocation5 + $0x42e8] sm:$0xff]
    %v2241 = vld [vmem:[#allocation5 + $0x42f0] sm:$0xff]
    %v2242 = vld [vmem:[#allocation5 + $0x42f8] sm:$0xff]
    %v2243 = vld [vmem:[#allocation5 + $0x4300] sm:$0xff]
    %v2244 = vld [vmem:[#allocation5 + $0x4308] sm:$0xff]
    %v2245 = vld [vmem:[#allocation5 + $0x4310] sm:$0xff]
    %v2246 = vld [vmem:[#allocation5 + $0x4318] sm:$0xff]
    %v2247 = vld [vmem:[#allocation5 + $0x4320] sm:$0xff]
    %v2248 = vld [vmem:[#allocation5 + $0x4328] sm:$0xff]
    %v2249 = vld [vmem:[#allocation5 + $0x4330] sm:$0xff]
    %v2250 = vld [vmem:[#allocation5 + $0x4338] sm:$0xff]
    %v2251 = vld [vmem:[#allocation5 + $0x4340] sm:$0xff]
    %v2252 = vld [vmem:[#allocation5 + $0x4348] sm:$0xff]
    %v2253 = vld [vmem:[#allocation5 + $0x4350] sm:$0xff]
    %v2254 = vld [vmem:[#allocation5 + $0x4358] sm:$0xff]
    %v2255 = vld [vmem:[#allocation5 + $0x4360] sm:$0xff]
    %v2256 = vld [vmem:[#allocation5 + $0x4368] sm:$0xff]
    %v2257 = vld [vmem:[#allocation5 + $0x4370] sm:$0xff]
    %v2258 = vld [vmem:[#allocation5 + $0x4378] sm:$0xff]
    %v2259 = vld [vmem:[#allocation5 + $0x4380] sm:$0xff]
    %v2260 = vld [vmem:[#allocation5 + $0x4388] sm:$0xff]
    %v2261 = vld [vmem:[#allocation5 + $0x4390] sm:$0xff]
    %v2262 = vld [vmem:[#allocation5 + $0x4398] sm:$0xff]
    %v2263 = vld [vmem:[#allocation5 + $0x43a0] sm:$0xff]
    %v2264 = vld [vmem:[#allocation5 + $0x43a8] sm:$0xff]
    %v2265 = vld [vmem:[#allocation5 + $0x43b0] sm:$0xff]
    %v2266 = vld [vmem:[#allocation5 + $0x43b8] sm:$0xff]
    %v2267 = vld [vmem:[#allocation5 + $0x43c0] sm:$0xff]
    %v2268 = vld [vmem:[#allocation5 + $0x43c8] sm:$0xff]
    %v2269 = vld [vmem:[#allocation5 + $0x43d0] sm:$0xff]
    %v2270 = vld [vmem:[#allocation5 + $0x43d8] sm:$0xff]
    %v2271 = vld [vmem:[#allocation5 + $0x43e0] sm:$0xff]
    %v2272 = vld [vmem:[#allocation5 + $0x43e8] sm:$0xff]
    %v2273 = vld [vmem:[#allocation5 + $0x43f0] sm:$0xff]
    %v2274 = vld [vmem:[#allocation5 + $0x43f8] sm:$0xff]
    %v2275 = vld [vmem:[#allocation5 + $0x4400] sm:$0xff]
    %v2276 = vld [vmem:[#allocation5 + $0x4408] sm:$0xff]
    %v2277 = vld [vmem:[#allocation5 + $0x4410] sm:$0xff]
    %v2278 = vld [vmem:[#allocation5 + $0x4418] sm:$0xff]
    %v2279 = vld [vmem:[#allocation5 + $0x4420] sm:$0xff]
    %v2280 = vld [vmem:[#allocation5 + $0x4428] sm:$0xff]
    %v2281 = vld [vmem:[#allocation5 + $0x4430] sm:$0xff]
    %v2282 = vld [vmem:[#allocation5 + $0x4438] sm:$0xff]
    %v2283 = vld [vmem:[#allocation5 + $0x4440] sm:$0xff]
    %v2284 = vld [vmem:[#allocation5 + $0x4448] sm:$0xff]
    %v2285 = vld [vmem:[#allocation5 + $0x4450] sm:$0xff]
    %v2286 = vld [vmem:[#allocation5 + $0x4458] sm:$0xff]
    %v2287 = vld [vmem:[#allocation5 + $0x4460] sm:$0xff]
    %v2288 = vld [vmem:[#allocation5 + $0x4468] sm:$0xff]
    %v2289 = vld [vmem:[#allocation5 + $0x4470] sm:$0xff]
    %v2290 = vld [vmem:[#allocation5 + $0x4478] sm:$0xff]
    %v2291 = vld [vmem:[#allocation5 + $0x4480] sm:$0xff]
    %v2292 = vld [vmem:[#allocation5 + $0x4488] sm:$0xff]
    %v2293 = vld [vmem:[#allocation5 + $0x4490] sm:$0xff]
    %v2294 = vld [vmem:[#allocation5 + $0x4498] sm:$0xff]
    %v2295 = vld [vmem:[#allocation5 + $0x44a0] sm:$0xff]
    %v2296 = vld [vmem:[#allocation5 + $0x44a8] sm:$0xff]
    %v2297 = vld [vmem:[#allocation5 + $0x44b0] sm:$0xff]
    %v2298 = vld [vmem:[#allocation5 + $0x44b8] sm:$0xff]
    %v2299 = vld [vmem:[#allocation5 + $0x44c0] sm:$0xff]
    %v2300 = vld [vmem:[#allocation5 + $0x44c8] sm:$0xff]
    %v2301 = vld [vmem:[#allocation5 + $0x44d0] sm:$0xff]
    %v2302 = vld [vmem:[#allocation5 + $0x44d8] sm:$0xff]
    %v2303 = vld [vmem:[#allocation5 + $0x44e0] sm:$0xff]
    %v2304 = vld [vmem:[#allocation5 + $0x44e8] sm:$0xff]
    %v2305 = vld [vmem:[#allocation5 + $0x44f0] sm:$0xff]
    %v2306 = vld [vmem:[#allocation5 + $0x44f8] sm:$0xff]
    %v2307 = vld [vmem:[#allocation5 + $0x4500] sm:$0xff]
    %v2308 = vld [vmem:[#allocation5 + $0x4508] sm:$0xff]
    %v2309 = vld [vmem:[#allocation5 + $0x4510] sm:$0xff]
    %v2310 = vld [vmem:[#allocation5 + $0x4518] sm:$0xff]
    %v2311 = vld [vmem:[#allocation5 + $0x4520] sm:$0xff]
    %v2312 = vld [vmem:[#allocation5 + $0x4528] sm:$0xff]
    %v2313 = vld [vmem:[#allocation5 + $0x4530] sm:$0xff]
    %v2314 = vld [vmem:[#allocation5 + $0x4538] sm:$0xff]
    %v2315 = vld [vmem:[#allocation5 + $0x4540] sm:$0xff]
    %v2316 = vld [vmem:[#allocation5 + $0x4548] sm:$0xff]
    %v2317 = vld [vmem:[#allocation5 + $0x4550] sm:$0xff]
    %v2318 = vld [vmem:[#allocation5 + $0x4558] sm:$0xff]
    %v2319 = vld [vmem:[#allocation5 + $0x4560] sm:$0xff]
    %v2320 = vld [vmem:[#allocation5 + $0x4568] sm:$0xff]
    %v2321 = vld [vmem:[#allocation5 + $0x4570] sm:$0xff]
    %v2322 = vld [vmem:[#allocation5 + $0x4578] sm:$0xff]
    %v2323 = vld [vmem:[#allocation5 + $0x4580] sm:$0xff]
    %v2324 = vld [vmem:[#allocation5 + $0x4588] sm:$0xff]
    %v2325 = vld [vmem:[#allocation5 + $0x4590] sm:$0xff]
    %v2326 = vld [vmem:[#allocation5 + $0x4598] sm:$0xff]
    %v2327 = vld [vmem:[#allocation5 + $0x45a0] sm:$0xff]
    %v2328 = vld [vmem:[#allocation5 + $0x45a8] sm:$0xff]
    %v2329 = vld [vmem:[#allocation5 + $0x45b0] sm:$0xff]
    %v2330 = vld [vmem:[#allocation5 + $0x45b8] sm:$0xff]
    %v2331 = vld [vmem:[#allocation5 + $0x45c0] sm:$0xff]
    %v2332 = vld [vmem:[#allocation5 + $0x45c8] sm:$0xff]
    %v2333 = vld [vmem:[#allocation5 + $0x45d0] sm:$0xff]
    %v2334 = vld [vmem:[#allocation5 + $0x45d8] sm:$0xff]
    %v2335 = vld [vmem:[#allocation5 + $0x45e0] sm:$0xff]
    %v2336 = vld [vmem:[#allocation5 + $0x45e8] sm:$0xff]
    %v2337 = vld [vmem:[#allocation5 + $0x45f0] sm:$0xff]
    %v2338 = vld [vmem:[#allocation5 + $0x45f8] sm:$0xff]
    %v2339 = vld [vmem:[#allocation5 + $0x4600] sm:$0xff]
    %v2340 = vld [vmem:[#allocation5 + $0x4608] sm:$0xff]
    %v2341 = vld [vmem:[#allocation5 + $0x4610] sm:$0xff]
    %v2342 = vld [vmem:[#allocation5 + $0x4618] sm:$0xff]
    %v2343 = vld [vmem:[#allocation5 + $0x4620] sm:$0xff]
    %v2344 = vld [vmem:[#allocation5 + $0x4628] sm:$0xff]
    %v2345 = vld [vmem:[#allocation5 + $0x4630] sm:$0xff]
    %v2346 = vld [vmem:[#allocation5 + $0x4638] sm:$0xff]
    %v2347 = vld [vmem:[#allocation5 + $0x4640] sm:$0xff]
    %v2348 = vld [vmem:[#allocation5 + $0x4648] sm:$0xff]
    %v2349 = vld [vmem:[#allocation5 + $0x4650] sm:$0xff]
    %v2350 = vld [vmem:[#allocation5 + $0x4658] sm:$0xff]
    %v2351 = vld [vmem:[#allocation5 + $0x4660] sm:$0xff]
    %v2352 = vld [vmem:[#allocation5 + $0x4668] sm:$0xff]
    %v2353 = vld [vmem:[#allocation5 + $0x4670] sm:$0xff]
    %v2354 = vld [vmem:[#allocation5 + $0x4678] sm:$0xff]
    %v2355 = vld [vmem:[#allocation5 + $0x4680] sm:$0xff]
    %v2356 = vld [vmem:[#allocation5 + $0x4688] sm:$0xff]
    %v2357 = vld [vmem:[#allocation5 + $0x4690] sm:$0xff]
    %v2358 = vld [vmem:[#allocation5 + $0x4698] sm:$0xff]
    %v2359 = vld [vmem:[#allocation5 + $0x46a0] sm:$0xff]
    %v2360 = vld [vmem:[#allocation5 + $0x46a8] sm:$0xff]
    %v2361 = vld [vmem:[#allocation5 + $0x46b0] sm:$0xff]
    %v2362 = vld [vmem:[#allocation5 + $0x46b8] sm:$0xff]
    %v2363 = vld [vmem:[#allocation5 + $0x46c0] sm:$0xff]
    %v2364 = vld [vmem:[#allocation5 + $0x46c8] sm:$0xff]
    %v2365 = vld [vmem:[#allocation5 + $0x46d0] sm:$0xff]
    %v2366 = vld [vmem:[#allocation5 + $0x46d8] sm:$0xff]
    %v2367 = vld [vmem:[#allocation5 + $0x46e0] sm:$0xff]
    %v2368 = vld [vmem:[#allocation5 + $0x46e8] sm:$0xff]
    %v2369 = vld [vmem:[#allocation5 + $0x46f0] sm:$0xff]
    %v2370 = vld [vmem:[#allocation5 + $0x46f8] sm:$0xff]
    %v2371 = vld [vmem:[#allocation5 + $0x4700] sm:$0xff]
    %v2372 = vld [vmem:[#allocation5 + $0x4708] sm:$0xff]
    %v2373 = vld [vmem:[#allocation5 + $0x4710] sm:$0xff]
    %v2374 = vld [vmem:[#allocation5 + $0x4718] sm:$0xff]
    %v2375 = vld [vmem:[#allocation5 + $0x4720] sm:$0xff]
    %v2376 = vld [vmem:[#allocation5 + $0x4728] sm:$0xff]
    %v2377 = vld [vmem:[#allocation5 + $0x4730] sm:$0xff]
    %v2378 = vld [vmem:[#allocation5 + $0x4738] sm:$0xff]
    %v2379 = vld [vmem:[#allocation5 + $0x4740] sm:$0xff]
    %v2380 = vld [vmem:[#allocation5 + $0x4748] sm:$0xff]
    %v2381 = vld [vmem:[#allocation5 + $0x4750] sm:$0xff]
    %v2382 = vld [vmem:[#allocation5 + $0x4758] sm:$0xff]
    %v2383 = vld [vmem:[#allocation5 + $0x4760] sm:$0xff]
    %v2384 = vld [vmem:[#allocation5 + $0x4768] sm:$0xff]
    %v2385 = vld [vmem:[#allocation5 + $0x4770] sm:$0xff]
    %v2386 = vld [vmem:[#allocation5 + $0x4778] sm:$0xff]
    %v2387 = vld [vmem:[#allocation5 + $0x4780] sm:$0xff]
    %v2388 = vld [vmem:[#allocation5 + $0x4788] sm:$0xff]
    %v2389 = vld [vmem:[#allocation5 + $0x4790] sm:$0xff]
    %v2390 = vld [vmem:[#allocation5 + $0x4798] sm:$0xff]
    %v2391 = vld [vmem:[#allocation5 + $0x47a0] sm:$0xff]
    %v2392 = vld [vmem:[#allocation5 + $0x47a8] sm:$0xff]
    %v2393 = vld [vmem:[#allocation5 + $0x47b0] sm:$0xff]
    %v2394 = vld [vmem:[#allocation5 + $0x47b8] sm:$0xff]
    %v2395 = vld [vmem:[#allocation5 + $0x47c0] sm:$0xff]
    %v2396 = vld [vmem:[#allocation5 + $0x47c8] sm:$0xff]
    %v2397 = vld [vmem:[#allocation5 + $0x47d0] sm:$0xff]
    %v2398 = vld [vmem:[#allocation5 + $0x47d8] sm:$0xff]
    %v2399 = vld [vmem:[#allocation5 + $0x47e0] sm:$0xff]
    %v2400 = vld [vmem:[#allocation5 + $0x47e8] sm:$0xff]
    %v2401 = vld [vmem:[#allocation5 + $0x47f0] sm:$0xff]
    %v2402 = vld [vmem:[#allocation5 + $0x47f8] sm:$0xff]
    %v2403 = vld [vmem:[#allocation7] sm:$0xff]
    %v2404 = vld [vmem:[#allocation7 + $0x8] sm:$0x1]
    %v2407 = vlaneseq
    %v2408 = vshrl.u32 %v2407, 7
    %v2409 = vsub.s32 0, %v2408
    %v2410 = vrot.slane %v2403, %v2409
    %v2411 = vlaneseq
    %v2412 = vshrl.u32 %v2411, 7
    %v2413 = vsub.s32 1, %v2412
    %v2414 = vrot.slane %v2403, %v2413
    %v2415 = vlaneseq
    %v2416 = vshrl.u32 %v2415, 7
    %v2417 = vsub.s32 2, %v2416
    %v2418 = vrot.slane %v2403, %v2417
    %v2419 = vlaneseq
    %v2420 = vshrl.u32 %v2419, 7
    %v2421 = vsub.s32 3, %v2420
    %v2422 = vrot.slane %v2403, %v2421
    %v2423 = vlaneseq
    %v2424 = vshrl.u32 %v2423, 7
    %v2425 = vsub.s32 4, %v2424
    %v2426 = vrot.slane %v2403, %v2425
    %v2427 = vlaneseq
    %v2428 = vshrl.u32 %v2427, 7
    %v2429 = vsub.s32 5, %v2428
    %v2430 = vrot.slane %v2403, %v2429
    %v2431 = vlaneseq
    %v2432 = vshrl.u32 %v2431, 7
    %v2433 = vsub.s32 6, %v2432
    %v2434 = vrot.slane %v2403, %v2433
    %v2435 = vlaneseq
    %v2436 = vshrl.u32 %v2435, 7
    %v2437 = vsub.s32 7, %v2436
    %v2438 = vrot.slane %v2403, %v2437
    %v2439 = vlaneseq
    %v2440 = vshrl.u32 %v2439, 7
    %v2441 = vsub.s32 0, %v2440
    %v2442 = vrot.slane %v2404, %v2441
    %2452 = vmatprep.subr.mxu0 %v100
    %2453 = vmatpush1.msra.mxu0 %v99
    %2454 = vmatprep.subr.mxu0 %v109
    %2455 = vmatpush1.msra.mxu0 %v108
    %2456 = vmatprep.subr.mxu0 %v118
    %2457 = vmatpush1.msra.mxu0 %v117
    %2458 = vmatprep.subr.mxu0 %v127
    %2459 = vmatpush1.msra.mxu0 %v126
    %2460 = vmatprep.subr.mxu0 %v136
    %2461 = vmatpush1.msra.mxu0 %v135
    %2462 = vmatprep.subr.mxu0 %v145
    %2463 = vmatpush1.msra.mxu0 %v144
    %2464 = vmatprep.subr.mxu0 %v154
    %2465 = vmatpush1.msra.mxu0 %v153
    %2466 = vmatprep.subr.mxu0 %v163
    %2467 = vmatpush1.msra.mxu0 %v162
    %2468 = vmatprep.subr.mxu0 %v172
    %2469 = vmatpush1.msra.mxu0 %v171
    %2470 = vmatprep.subr.mxu0 %v181
    %2471 = vmatpush1.msra.mxu0 %v180
    %2472 = vmatprep.subr.mxu0 %v190
    %2473 = vmatpush1.msra.mxu0 %v189
    %2474 = vmatprep.subr.mxu0 %v199
    %2475 = vmatpush1.msra.mxu0 %v198
    %2476 = vmatprep.subr.mxu0 %v208
    %2477 = vmatpush1.msra.mxu0 %v207
    %2478 = vmatprep.subr.mxu0 %v217
    %2479 = vmatpush1.msra.mxu0 %v216
    %2480 = vmatprep.subr.mxu0 %v226
    %2481 = vmatpush1.msra.mxu0 %v225
    %2482 = vmatprep.subr.mxu0 %v235
    %2483 = vmatpush1.msra.mxu0 %v234
    %2484 = vmatprep.subr.mxu0 %v244
    %2485 = vmatpush1.msra.mxu0 %v243
    %2486 = vmatprep.subr.mxu0 %v253
    %2487 = vmatpush1.msra.mxu0 %v252
    %2488 = vmatprep.subr.mxu0 %v262
    %2489 = vmatpush1.msra.mxu0 %v261
    %2490 = vmatprep.subr.mxu0 %v271
    %2491 = vmatpush1.msra.mxu0 %v270
    %2492 = vmatprep.subr.mxu0 %v280
    %2493 = vmatpush1.msra.mxu0 %v279
    %2494 = vmatprep.subr.mxu0 %v289
    %2495 = vmatpush1.msra.mxu0 %v288
    %2496 = vmatprep.subr.mxu0 %v298
    %2497 = vmatpush1.msra.mxu0 %v297
    %2498 = vmatprep.subr.mxu0 %v307
    %2499 = vmatpush1.msra.mxu0 %v306
    %2500 = vmatprep.subr.mxu0 %v316
    %2501 = vmatpush1.msra.mxu0 %v315
    %2502 = vmatprep.subr.mxu0 %v325
    %2503 = vmatpush1.msra.mxu0 %v324
    %2504 = vmatprep.subr.mxu0 %v334
    %2505 = vmatpush1.msra.mxu0 %v333
    %2506 = vmatprep.subr.mxu0 %v343
    %2507 = vmatpush1.msra.mxu0 %v342
    %2508 = vmatprep.subr.mxu0 %v352
    %2509 = vmatpush1.msra.mxu0 %v351
    %2510 = vmatprep.subr.mxu0 %v361
    %2511 = vmatpush1.msra.mxu0 %v360
    %2512 = vmatprep.subr.mxu0 %v370
    %2513 = vmatpush1.msra.mxu0 %v369
    %2514 = vmatprep.subr.mxu0 %v379
    %2515 = vmatpush1.msra.mxu0 %v378
    %2516 = vmatprep.mubr.f32.mxu0 %v84
    %2517 = vmatmul.mubr.f32.gmra.mrb[0].mxu0 %v83
    %v2518 = vpop.f32.mrb[0].mxu0
    %v2519 = vadd.f32 %v2410, %v2518
    %v2520 = vpop.f32.mrb[0].mxu0
    %v2521 = vadd.f32 %v2414, %v2520
    %2522 = vdwg.mxu0
    %2523 = vmatprep.subr.mxu0 %v388
    %2524 = vmatpush1.msra.mxu0 %v387
    %2525 = vmatprep.subr.mxu0 %v397
    %2526 = vmatpush1.msra.mxu0 %v396
    %2527 = vmatprep.subr.mxu0 %v406
    %2528 = vmatpush1.msra.mxu0 %v405
    %2529 = vmatprep.subr.mxu0 %v415
    %2530 = vmatpush1.msra.mxu0 %v414
    %2531 = vmatprep.subr.mxu0 %v424
    %2532 = vmatpush1.msra.mxu0 %v423
    %2533 = vmatprep.subr.mxu0 %v433
    %2534 = vmatpush1.msra.mxu0 %v432
    %2535 = vmatprep.subr.mxu0 %v442
    %2536 = vmatpush1.msra.mxu0 %v441
    %2537 = vmatprep.subr.mxu0 %v451
    %2538 = vmatpush1.msra.mxu0 %v450
    %2539 = vmatprep.subr.mxu0 %v460
    %2540 = vmatpush1.msra.mxu0 %v459
    %2541 = vmatprep.subr.mxu0 %v469
    %2542 = vmatpush1.msra.mxu0 %v468
    %2543 = vmatprep.subr.mxu0 %v478
    %2544 = vmatpush1.msra.mxu0 %v477
    %2545 = vmatprep.subr.mxu0 %v487
    %2546 = vmatpush1.msra.mxu0 %v486
    %2547 = vmatprep.subr.mxu0 %v496
    %2548 = vmatpush1.msra.mxu0 %v495
    %2549 = vmatprep.subr.mxu0 %v505
    %2550 = vmatpush1.msra.mxu0 %v504
    %2551 = vmatprep.subr.mxu0 %v514
    %2552 = vmatpush1.msra.mxu0 %v513
    %2553 = vmatprep.subr.mxu0 %v523
    %2554 = vmatpush1.msra.mxu0 %v522
    %2555 = vmatprep.subr.mxu0 %v532
    %2556 = vmatpush1.msra.mxu0 %v531
    %2557 = vmatprep.subr.mxu0 %v541
    %2558 = vmatpush1.msra.mxu0 %v540
    %2559 = vmatprep.subr.mxu0 %v550
    %2560 = vmatpush1.msra.mxu0 %v549
    %2561 = vmatprep.subr.mxu0 %v559
    %2562 = vmatpush1.msra.mxu0 %v558
    %2563 = vmatprep.subr.mxu0 %v568
    %2564 = vmatpush1.msra.mxu0 %v567
    %2565 = vmatprep.subr.mxu0 %v577
    %2566 = vmatpush1.msra.mxu0 %v576
    %2567 = vmatprep.subr.mxu0 %v586
    %2568 = vmatpush1.msra.mxu0 %v585
    %2569 = vmatprep.subr.mxu0 %v595
    %2570 = vmatpush1.msra.mxu0 %v594
    %2571 = vmatprep.subr.mxu0 %v604
    %2572 = vmatpush1.msra.mxu0 %v603
    %2573 = vmatprep.subr.mxu0 %v613
    %2574 = vmatpush1.msra.mxu0 %v612
    %2575 = vmatprep.subr.mxu0 %v622
    %2576 = vmatpush1.msra.mxu0 %v621
    %2577 = vmatprep.subr.mxu0 %v631
    %2578 = vmatpush1.msra.mxu0 %v630
    %2579 = vmatprep.subr.mxu0 %v640
    %2580 = vmatpush1.msra.mxu0 %v639
    %2581 = vmatprep.subr.mxu0 %v649
    %2582 = vmatpush1.msra.mxu0 %v648
    %2583 = vmatprep.subr.mxu0 %v658
    %2584 = vmatpush1.msra.mxu0 %v657
    %2585 = vmatprep.subr.mxu0 %v667
    %2586 = vmatpush1.msra.mxu0 %v666
    %2587 = vmatprep.mubr.f32.mxu0 %v86
    %2588 = vmatmul.mubr.f32.gmra.mrb[0].mxu0 %v85
    %v2589 = vpop.f32.mrb[0].mxu0
    %v2590 = vadd.f32 %v2519, %v2589
    %v2591 = vpop.f32.mrb[0].mxu0
    %v2592 = vadd.f32 %v2521, %v2591
    %2593 = vdwg.mxu0
    %2594 = vmatprep.subr.mxu0 %v676
    %2595 = vmatpush1.msra.mxu0 %v675
    %2596 = vmatprep.subr.mxu0 %v685
    %2597 = vmatpush1.msra.mxu0 %v684
    %2598 = vmatprep.subr.mxu0 %v694
    %2599 = vmatpush1.msra.mxu0 %v693
    %2600 = vmatprep.subr.mxu0 %v703
    %2601 = vmatpush1.msra.mxu0 %v702
    %2602 = vmatprep.subr.mxu0 %v712
    %2603 = vmatpush1.msra.mxu0 %v711
    %2604 = vmatprep.subr.mxu0 %v721
    %2605 = vmatpush1.msra.mxu0 %v720
    %2606 = vmatprep.subr.mxu0 %v730
    %2607 = vmatpush1.msra.mxu0 %v729
    %2608 = vmatprep.subr.mxu0 %v739
    %2609 = vmatpush1.msra.mxu0 %v738
    %2610 = vmatprep.subr.mxu0 %v748
    %2611 = vmatpush1.msra.mxu0 %v747
    %2612 = vmatprep.subr.mxu0 %v757
    %2613 = vmatpush1.msra.mxu0 %v756
    %2614 = vmatprep.subr.mxu0 %v766
    %2615 = vmatpush1.msra.mxu0 %v765
    %2616 = vmatprep.subr.mxu0 %v775
    %2617 = vmatpush1.msra.mxu0 %v774
    %2618 = vmatprep.subr.mxu0 %v784
    %2619 = vmatpush1.msra.mxu0 %v783
    %2620 = vmatprep.subr.mxu0 %v793
    %2621 = vmatpush1.msra.mxu0 %v792
    %2622 = vmatprep.subr.mxu0 %v802
    %2623 = vmatpush1.msra.mxu0 %v801
    %2624 = vmatprep.subr.mxu0 %v811
    %2625 = vmatpush1.msra.mxu0 %v810
    %2626 = vmatprep.subr.mxu0 %v820
    %2627 = vmatpush1.msra.mxu0 %v819
    %2628 = vmatprep.subr.mxu0 %v829
    %2629 = vmatpush1.msra.mxu0 %v828
    %2630 = vmatprep.subr.mxu0 %v838
    %2631 = vmatpush1.msra.mxu0 %v837
    %2632 = vmatprep.subr.mxu0 %v847
    %2633 = vmatpush1.msra.mxu0 %v846
    %2634 = vmatprep.subr.mxu0 %v856
    %2635 = vmatpush1.msra.mxu0 %v855
    %2636 = vmatprep.subr.mxu0 %v865
    %2637 = vmatpush1.msra.mxu0 %v864
    %2638 = vmatprep.subr.mxu0 %v874
    %2639 = vmatpush1.msra.mxu0 %v873
    %2640 = vmatprep.subr.mxu0 %v883
    %2641 = vmatpush1.msra.mxu0 %v882
    %2642 = vmatprep.subr.mxu0 %v892
    %2643 = vmatpush1.msra.mxu0 %v891
    %2644 = vmatprep.subr.mxu0 %v901
    %2645 = vmatpush1.msra.mxu0 %v900
    %2646 = vmatprep.subr.mxu0 %v910
    %2647 = vmatpush1.msra.mxu0 %v909
    %2648 = vmatprep.subr.mxu0 %v919
    %2649 = vmatpush1.msra.mxu0 %v918
    %2650 = vmatprep.subr.mxu0 %v928
    %2651 = vmatpush1.msra.mxu0 %v927
    %2652 = vmatprep.subr.mxu0 %v937
    %2653 = vmatpush1.msra.mxu0 %v936
    %2654 = vmatprep.subr.mxu0 %v946
    %2655 = vmatpush1.msra.mxu0 %v945
    %2656 = vmatprep.subr.mxu0 %v955
    %2657 = vmatpush1.msra.mxu0 %v954
    %2658 = vmatprep.mubr.f32.mxu0 %v88
    %2659 = vmatmul.mubr.f32.gmra.mrb[0].mxu0 %v87
    %v2660 = vpop.f32.mrb[0].mxu0
    %v2661 = vadd.f32 %v2590, %v2660
    %v2662 = vpop.f32.mrb[0].mxu0
    %v2663 = vadd.f32 %v2592, %v2662
    %2664 = vdwg.mxu0
    %2665 = vmatprep.subr.mxu0 %v964
    %2666 = vmatpush1.msra.mxu0 %v963
    %2667 = vmatprep.subr.mxu0 %v973
    %2668 = vmatpush1.msra.mxu0 %v972
    %2669 = vmatprep.subr.mxu0 %v982
    %2670 = vmatpush1.msra.mxu0 %v981
    %2671 = vmatprep.subr.mxu0 %v991
    %2672 = vmatpush1.msra.mxu0 %v990
    %2673 = vmatprep.subr.mxu0 %v1000
    %2674 = vmatpush1.msra.mxu0 %v999
    %2675 = vmatprep.subr.mxu0 %v1009
    %2676 = vmatpush1.msra.mxu0 %v1008
    %2677 = vmatprep.subr.mxu0 %v1018
    %2678 = vmatpush1.msra.mxu0 %v1017
    %2679 = vmatprep.subr.mxu0 %v1027
    %2680 = vmatpush1.msra.mxu0 %v1026
    %2681 = vmatprep.subr.mxu0 %v1036
    %2682 = vmatpush1.msra.mxu0 %v1035
    %2683 = vmatprep.subr.mxu0 %v1045
    %2684 = vmatpush1.msra.mxu0 %v1044
    %2685 = vmatprep.subr.mxu0 %v1054
    %2686 = vmatpush1.msra.mxu0 %v1053
    %2687 = vmatprep.subr.mxu0 %v1063
    %2688 = vmatpush1.msra.mxu0 %v1062
    %2689 = vmatprep.subr.mxu0 %v1072
    %2690 = vmatpush1.msra.mxu0 %v1071
    %2691 = vmatprep.subr.mxu0 %v1081
    %2692 = vmatpush1.msra.mxu0 %v1080
    %2693 = vmatprep.subr.mxu0 %v1090
    %2694 = vmatpush1.msra.mxu0 %v1089
    %2695 = vmatprep.subr.mxu0 %v1099
    %2696 = vmatpush1.msra.mxu0 %v1098
    %2697 = vmatprep.subr.mxu0 %v1108
    %2698 = vmatpush1.msra.mxu0 %v1107
    %2699 = vmatprep.subr.mxu0 %v1117
    %2700 = vmatpush1.msra.mxu0 %v1116
    %2701 = vmatprep.subr.mxu0 %v1126
    %2702 = vmatpush1.msra.mxu0 %v1125
    %2703 = vmatprep.subr.mxu0 %v1135
    %2704 = vmatpush1.msra.mxu0 %v1134
    %2705 = vmatprep.subr.mxu0 %v1144
    %2706 = vmatpush1.msra.mxu0 %v1143
    %2707 = vmatprep.subr.mxu0 %v1153
    %2708 = vmatpush1.msra.mxu0 %v1152
    %2709 = vmatprep.subr.mxu0 %v1162
    %2710 = vmatpush1.msra.mxu0 %v1161
    %2711 = vmatprep.subr.mxu0 %v1171
    %2712 = vmatpush1.msra.mxu0 %v1170
    %2713 = vmatprep.subr.mxu0 %v1180
    %2714 = vmatpush1.msra.mxu0 %v1179
    %2715 = vmatprep.subr.mxu0 %v1189
    %2716 = vmatpush1.msra.mxu0 %v1188
    %2717 = vmatprep.subr.mxu0 %v1198
    %2718 = vmatpush1.msra.mxu0 %v1197
    %2719 = vmatprep.subr.mxu0 %v1207
    %2720 = vmatpush1.msra.mxu0 %v1206
    %2721 = vmatprep.subr.mxu0 %v1216
    %2722 = vmatpush1.msra.mxu0 %v1215
    %2723 = vmatprep.subr.mxu0 %v1225
    %2724 = vmatpush1.msra.mxu0 %v1224
    %2725 = vmatprep.subr.mxu0 %v1234
    %2726 = vmatpush1.msra.mxu0 %v1233
    %2727 = vmatprep.subr.mxu0 %v1243
    %2728 = vmatpush1.msra.mxu0 %v1242
    %2729 = vmatprep.mubr.f32.mxu0 %v90
    %2730 = vmatmul.mubr.f32.gmra.mrb[0].mxu0 %v89
    %v2731 = vpop.f32.mrb[0].mxu0
    %v2732 = vadd.f32 %v2661, %v2731
    %v2733 = vpop.f32.mrb[0].mxu0
    %v2734 = vadd.f32 %v2663, %v2733
    %2735 = vdwg.mxu0
    %2736 = vmatprep.subr.mxu0 %v1252
    %2737 = vmatpush1.msra.mxu0 %v1251
    %2738 = vmatprep.subr.mxu0 %v1261
    %2739 = vmatpush1.msra.mxu0 %v1260
    %2740 = vmatprep.subr.mxu0 %v1270
    %2741 = vmatpush1.msra.mxu0 %v1269
    %2742 = vmatprep.subr.mxu0 %v1279
    %2743 = vmatpush1.msra.mxu0 %v1278
    %2744 = vmatprep.subr.mxu0 %v1288
    %2745 = vmatpush1.msra.mxu0 %v1287
    %2746 = vmatprep.subr.mxu0 %v1297
    %2747 = vmatpush1.msra.mxu0 %v1296
    %2748 = vmatprep.subr.mxu0 %v1306
    %2749 = vmatpush1.msra.mxu0 %v1305
    %2750 = vmatprep.subr.mxu0 %v1315
    %2751 = vmatpush1.msra.mxu0 %v1314
    %2752 = vmatprep.subr.mxu0 %v1324
    %2753 = vmatpush1.msra.mxu0 %v1323
    %2754 = vmatprep.subr.mxu0 %v1333
    %2755 = vmatpush1.msra.mxu0 %v1332
    %2756 = vmatprep.subr.mxu0 %v1342
    %2757 = vmatpush1.msra.mxu0 %v1341
    %2758 = vmatprep.subr.mxu0 %v1351
    %2759 = vmatpush1.msra.mxu0 %v1350
    %2760 = vmatprep.subr.mxu0 %v1360
    %2761 = vmatpush1.msra.mxu0 %v1359
    %2762 = vmatprep.subr.mxu0 %v1369
    %2763 = vmatpush1.msra.mxu0 %v1368
    %2764 = vmatprep.subr.mxu0 %v1378
    %2765 = vmatpush1.msra.mxu0 %v1377
    %2766 = vmatprep.subr.mxu0 %v1387
    %2767 = vmatpush1.msra.mxu0 %v1386
    %2768 = vmatprep.subr.mxu0 %v1396
    %2769 = vmatpush1.msra.mxu0 %v1395
    %2770 = vmatprep.subr.mxu0 %v1405
    %2771 = vmatpush1.msra.mxu0 %v1404
    %2772 = vmatprep.subr.mxu0 %v1414
    %2773 = vmatpush1.msra.mxu0 %v1413
    %2774 = vmatprep.subr.mxu0 %v1423
    %2775 = vmatpush1.msra.mxu0 %v1422
    %2776 = vmatprep.subr.mxu0 %v1432
    %2777 = vmatpush1.msra.mxu0 %v1431
    %2778 = vmatprep.subr.mxu0 %v1441
    %2779 = vmatpush1.msra.mxu0 %v1440
    %2780 = vmatprep.subr.mxu0 %v1450
    %2781 = vmatpush1.msra.mxu0 %v1449
    %2782 = vmatprep.subr.mxu0 %v1459
    %2783 = vmatpush1.msra.mxu0 %v1458
    %2784 = vmatprep.subr.mxu0 %v1468
    %2785 = vmatpush1.msra.mxu0 %v1467
    %2786 = vmatprep.subr.mxu0 %v1477
    %2787 = vmatpush1.msra.mxu0 %v1476
    %2788 = vmatprep.subr.mxu0 %v1486
    %2789 = vmatpush1.msra.mxu0 %v1485
    %2790 = vmatprep.subr.mxu0 %v1495
    %2791 = vmatpush1.msra.mxu0 %v1494
    %2792 = vmatprep.subr.mxu0 %v1504
    %2793 = vmatpush1.msra.mxu0 %v1503
    %2794 = vmatprep.subr.mxu0 %v1513
    %2795 = vmatpush1.msra.mxu0 %v1512
    %2796 = vmatprep.subr.mxu0 %v1522
    %2797 = vmatpush1.msra.mxu0 %v1521
    %2798 = vmatprep.subr.mxu0 %v1531
    %2799 = vmatpush1.msra.mxu0 %v1530
    %2800 = vmatprep.mubr.f32.mxu0 %v92
    %2801 = vmatmul.mubr.f32.gmra.mrb[0].mxu0 %v91
    %v2802 = vpop.f32.mrb[0].mxu0
    %v2803 = vadd.f32 %v2732, %v2802
    %v2804 = vpop.f32.mrb[0].mxu0
    %v2805 = vadd.f32 %v2734, %v2804
    %2806 = vdwg.mxu0
    %2807 = vmatprep.subr.mxu0 %v1540
    %2808 = vmatpush1.msra.mxu0 %v1539
    %2809 = vmatprep.subr.mxu0 %v1549
    %2810 = vmatpush1.msra.mxu0 %v1548
    %2811 = vmatprep.subr.mxu0 %v1558
    %2812 = vmatpush1.msra.mxu0 %v1557
    %2813 = vmatprep.subr.mxu0 %v1567
    %2814 = vmatpush1.msra.mxu0 %v1566
    %2815 = vmatprep.subr.mxu0 %v1576
    %2816 = vmatpush1.msra.mxu0 %v1575
    %2817 = vmatprep.subr.mxu0 %v1585
    %2818 = vmatpush1.msra.mxu0 %v1584
    %2819 = vmatprep.subr.mxu0 %v1594
    %2820 = vmatpush1.msra.mxu0 %v1593
    %2821 = vmatprep.subr.mxu0 %v1603
    %2822 = vmatpush1.msra.mxu0 %v1602
    %2823 = vmatprep.subr.mxu0 %v1612
    %2824 = vmatpush1.msra.mxu0 %v1611
    %2825 = vmatprep.subr.mxu0 %v1621
    %2826 = vmatpush1.msra.mxu0 %v1620
    %2827 = vmatprep.subr.mxu0 %v1630
    %2828 = vmatpush1.msra.mxu0 %v1629
    %2829 = vmatprep.subr.mxu0 %v1639
    %2830 = vmatpush1.msra.mxu0 %v1638
    %2831 = vmatprep.subr.mxu0 %v1648
    %2832 = vmatpush1.msra.mxu0 %v1647
    %2833 = vmatprep.subr.mxu0 %v1657
    %2834 = vmatpush1.msra.mxu0 %v1656
    %2835 = vmatprep.subr.mxu0 %v1666
    %2836 = vmatpush1.msra.mxu0 %v1665
    %2837 = vmatprep.subr.mxu0 %v1675
    %2838 = vmatpush1.msra.mxu0 %v1674
    %2839 = vmatprep.subr.mxu0 %v1684
    %2840 = vmatpush1.msra.mxu0 %v1683
    %2841 = vmatprep.subr.mxu0 %v1693
    %2842 = vmatpush1.msra.mxu0 %v1692
    %2843 = vmatprep.subr.mxu0 %v1702
    %2844 = vmatpush1.msra.mxu0 %v1701
    %2845 = vmatprep.subr.mxu0 %v1711
    %2846 = vmatpush1.msra.mxu0 %v1710
    %2847 = vmatprep.subr.mxu0 %v1720
    %2848 = vmatpush1.msra.mxu0 %v1719
    %2849 = vmatprep.subr.mxu0 %v1729
    %2850 = vmatpush1.msra.mxu0 %v1728
    %2851 = vmatprep.subr.mxu0 %v1738
    %2852 = vmatpush1.msra.mxu0 %v1737
    %2853 = vmatprep.subr.mxu0 %v1747
    %2854 = vmatpush1.msra.mxu0 %v1746
    %2855 = vmatprep.subr.mxu0 %v1756
    %2856 = vmatpush1.msra.mxu0 %v1755
    %2857 = vmatprep.subr.mxu0 %v1765
    %2858 = vmatpush1.msra.mxu0 %v1764
    %2859 = vmatprep.subr.mxu0 %v1774
    %2860 = vmatpush1.msra.mxu0 %v1773
    %2861 = vmatprep.subr.mxu0 %v1783
    %2862 = vmatpush1.msra.mxu0 %v1782
    %2863 = vmatprep.subr.mxu0 %v1792
    %2864 = vmatpush1.msra.mxu0 %v1791
    %2865 = vmatprep.subr.mxu0 %v1801
    %2866 = vmatpush1.msra.mxu0 %v1800
    %2867 = vmatprep.subr.mxu0 %v1810
    %2868 = vmatpush1.msra.mxu0 %v1809
    %2869 = vmatprep.subr.mxu0 %v1819
    %2870 = vmatpush1.msra.mxu0 %v1818
    %2871 = vmatprep.mubr.f32.mxu0 %v94
    %2872 = vmatmul.mubr.f32.gmra.mrb[0].mxu0 %v93
    %v2873 = vpop.f32.mrb[0].mxu0
    %v2874 = vadd.f32 %v2803, %v2873
    %v2875 = vpop.f32.mrb[0].mxu0
    %v2876 = vadd.f32 %v2805, %v2875
    %2877 = vdwg.mxu0
    %2878 = vmatprep.subr.mxu0 %v1828
    %2879 = vmatpush1.msra.mxu0 %v1827
    %2880 = vmatprep.subr.mxu0 %v1837
    %2881 = vmatpush1.msra.mxu0 %v1836
    %2882 = vmatprep.subr.mxu0 %v1846
    %2883 = vmatpush1.msra.mxu0 %v1845
    %2884 = vmatprep.subr.mxu0 %v1855
    %2885 = vmatpush1.msra.mxu0 %v1854
    %2886 = vmatprep.subr.mxu0 %v1864
    %2887 = vmatpush1.msra.mxu0 %v1863
    %2888 = vmatprep.subr.mxu0 %v1873
    %2889 = vmatpush1.msra.mxu0 %v1872
    %2890 = vmatprep.subr.mxu0 %v1882
    %2891 = vmatpush1.msra.mxu0 %v1881
    %2892 = vmatprep.subr.mxu0 %v1891
    %2893 = vmatpush1.msra.mxu0 %v1890
    %2894 = vmatprep.subr.mxu0 %v1900
    %2895 = vmatpush1.msra.mxu0 %v1899
    %2896 = vmatprep.subr.mxu0 %v1909
    %2897 = vmatpush1.msra.mxu0 %v1908
    %2898 = vmatprep.subr.mxu0 %v1918
    %2899 = vmatpush1.msra.mxu0 %v1917
    %2900 = vmatprep.subr.mxu0 %v1927
    %2901 = vmatpush1.msra.mxu0 %v1926
    %2902 = vmatprep.subr.mxu0 %v1936
    %2903 = vmatpush1.msra.mxu0 %v1935
    %2904 = vmatprep.subr.mxu0 %v1945
    %2905 = vmatpush1.msra.mxu0 %v1944
    %2906 = vmatprep.subr.mxu0 %v1954
    %2907 = vmatpush1.msra.mxu0 %v1953
    %2908 = vmatprep.subr.mxu0 %v1963
    %2909 = vmatpush1.msra.mxu0 %v1962
    %2910 = vmatprep.subr.mxu0 %v1972
    %2911 = vmatpush1.msra.mxu0 %v1971
    %2912 = vmatprep.subr.mxu0 %v1981
    %2913 = vmatpush1.msra.mxu0 %v1980
    %2914 = vmatprep.subr.mxu0 %v1990
    %2915 = vmatpush1.msra.mxu0 %v1989
    %2916 = vmatprep.subr.mxu0 %v1999
    %2917 = vmatpush1.msra.mxu0 %v1998
    %2918 = vmatprep.subr.mxu0 %v2008
    %2919 = vmatpush1.msra.mxu0 %v2007
    %2920 = vmatprep.subr.mxu0 %v2017
    %2921 = vmatpush1.msra.mxu0 %v2016
    %2922 = vmatprep.subr.mxu0 %v2026
    %2923 = vmatpush1.msra.mxu0 %v2025
    %2924 = vmatprep.subr.mxu0 %v2035
    %2925 = vmatpush1.msra.mxu0 %v2034
    %2926 = vmatprep.subr.mxu0 %v2044
    %2927 = vmatpush1.msra.mxu0 %v2043
    %2928 = vmatprep.subr.mxu0 %v2053
    %2929 = vmatpush1.msra.mxu0 %v2052
    %2930 = vmatprep.subr.mxu0 %v2062
    %2931 = vmatpush1.msra.mxu0 %v2061
    %2932 = vmatprep.subr.mxu0 %v2071
    %2933 = vmatpush1.msra.mxu0 %v2070
    %2934 = vmatprep.subr.mxu0 %v2080
    %2935 = vmatpush1.msra.mxu0 %v2079
    %2936 = vmatprep.subr.mxu0 %v2089
    %2937 = vmatpush1.msra.mxu0 %v2088
    %2938 = vmatprep.subr.mxu0 %v2098
    %2939 = vmatpush1.msra.mxu0 %v2097
    %2940 = vmatprep.subr.mxu0 %v2107
    %2941 = vmatpush1.msra.mxu0 %v2106
    %2942 = vmatprep.mubr.f32.mxu0 %v96
    %2943 = vmatmul.mubr.f32.gmra.mrb[0].mxu0 %v95
    %v2944 = vpop.f32.mrb[0].mxu0
    %v2945 = vadd.f32 %v2874, %v2944
    %v2946 = vpop.f32.mrb[0].mxu0
    %v2947 = vadd.f32 %v2876, %v2946
    %2948 = vdwg.mxu0
    %2949 = vmatprep.subr.mxu0 %v2116
    %2950 = vmatpush1.msra.mxu0 %v2115
    %2951 = vmatprep.subr.mxu0 %v2125
    %2952 = vmatpush1.msra.mxu0 %v2124
    %2953 = vmatprep.subr.mxu0 %v2134
    %2954 = vmatpush1.msra.mxu0 %v2133
    %2955 = vmatprep.subr.mxu0 %v2143
    %2956 = vmatpush1.msra.mxu0 %v2142
    %2957 = vmatprep.subr.mxu0 %v2152
    %2958 = vmatpush1.msra.mxu0 %v2151
    %2959 = vmatprep.subr.mxu0 %v2161
    %2960 = vmatpush1.msra.mxu0 %v2160
    %2961 = vmatprep.subr.mxu0 %v2170
    %2962 = vmatpush1.msra.mxu0 %v2169
    %2963 = vmatprep.subr.mxu0 %v2179
    %2964 = vmatpush1.msra.mxu0 %v2178
    %2965 = vmatprep.subr.mxu0 %v2188
    %2966 = vmatpush1.msra.mxu0 %v2187
    %2967 = vmatprep.subr.mxu0 %v2197
    %2968 = vmatpush1.msra.mxu0 %v2196
    %2969 = vmatprep.subr.mxu0 %v2206
    %2970 = vmatpush1.msra.mxu0 %v2205
    %2971 = vmatprep.subr.mxu0 %v2215
    %2972 = vmatpush1.msra.mxu0 %v2214
    %2973 = vmatprep.subr.mxu0 %v2224
    %2974 = vmatpush1.msra.mxu0 %v2223
    %2975 = vmatprep.subr.mxu0 %v2233
    %2976 = vmatpush1.msra.mxu0 %v2232
    %2977 = vmatprep.subr.mxu0 %v2242
    %2978 = vmatpush1.msra.mxu0 %v2241
    %2979 = vmatprep.subr.mxu0 %v2251
    %2980 = vmatpush1.msra.mxu0 %v2250
    %2981 = vmatprep.subr.mxu0 %v2260
    %2982 = vmatpush1.msra.mxu0 %v2259
    %2983 = vmatprep.subr.mxu0 %v2269
    %2984 = vmatpush1.msra.mxu0 %v2268
    %2985 = vmatprep.subr.mxu0 %v2278
    %2986 = vmatpush1.msra.mxu0 %v2277
    %2987 = vmatprep.subr.mxu0 %v2287
    %2988 = vmatpush1.msra.mxu0 %v2286
    %2989 = vmatprep.subr.mxu0 %v2296
    %2990 = vmatpush1.msra.mxu0 %v2295
    %2991 = vmatprep.subr.mxu0 %v2305
    %2992 = vmatpush1.msra.mxu0 %v2304
    %2993 = vmatprep.subr.mxu0 %v2314
    %2994 = vmatpush1.msra.mxu0 %v2313
    %2995 = vmatprep.subr.mxu0 %v2323
    %2996 = vmatpush1.msra.mxu0 %v2322
    %2997 = vmatprep.subr.mxu0 %v2332
    %2998 = vmatpush1.msra.mxu0 %v2331
    %2999 = vmatprep.subr.mxu0 %v2341
    %3000 = vmatpush1.msra.mxu0 %v2340
    %3001 = vmatprep.subr.mxu0 %v2350
    %3002 = vmatpush1.msra.mxu0 %v2349
    %3003 = vmatprep.subr.mxu0 %v2359
    %3004 = vmatpush1.msra.mxu0 %v2358
    %3005 = vmatprep.subr.mxu0 %v2368
    %3006 = vmatpush1.msra.mxu0 %v2367
    %3007 = vmatprep.subr.mxu0 %v2377
    %3008 = vmatpush1.msra.mxu0 %v2376
    %3009 = vmatprep.subr.mxu0 %v2386
    %3010 = vmatpush1.msra.mxu0 %v2385
    %3011 = vmatprep.subr.mxu0 %v2395
    %3012 = vmatpush1.msra.mxu0 %v2394
    %3013 = vmatprep.mubr.f32.mxu0 %v98
    %3014 = vmatmul.mubr.f32.gmra.mrb[0].mxu0 %v97
    %v3015 = vpop.f32.mrb[0].mxu0
    %v3016 = vadd.f32 %v2945, %v3015
    %v3017 = vpop.f32.mrb[0].mxu0
    %v3018 = vadd.f32 %v2947, %v3017
    %3019 = vdwg.mxu0
    %3020 = vmatprep.subr.mxu0 %v102
    %3021 = vmatpush1.msra.mxu0 %v101
    %3022 = vmatprep.subr.mxu0 %v111
    %3023 = vmatpush1.msra.mxu0 %v110
    %3024 = vmatprep.subr.mxu0 %v120
    %3025 = vmatpush1.msra.mxu0 %v119
    %3026 = vmatprep.subr.mxu0 %v129
    %3027 = vmatpush1.msra.mxu0 %v128
    %3028 = vmatprep.subr.mxu0 %v138
    %3029 = vmatpush1.msra.mxu0 %v137
    %3030 = vmatprep.subr.mxu0 %v147
    %3031 = vmatpush1.msra.mxu0 %v146
    %3032 = vmatprep.subr.mxu0 %v156
    %3033 = vmatpush1.msra.mxu0 %v155
    %3034 = vmatprep.subr.mxu0 %v165
    %3035 = vmatpush1.msra.mxu0 %v164
    %3036 = vmatprep.subr.mxu0 %v174
    %3037 = vmatpush1.msra.mxu0 %v173
    %3038 = vmatprep.subr.mxu0 %v183
    %3039 = vmatpush1.msra.mxu0 %v182
    %3040 = vmatprep.subr.mxu0 %v192
    %3041 = vmatpush1.msra.mxu0 %v191
    %3042 = vmatprep.subr.mxu0 %v201
    %3043 = vmatpush1.msra.mxu0 %v200
    %3044 = vmatprep.subr.mxu0 %v210
    %3045 = vmatpush1.msra.mxu0 %v209
    %3046 = vmatprep.subr.mxu0 %v219
    %3047 = vmatpush1.msra.mxu0 %v218
    %3048 = vmatprep.subr.mxu0 %v228
    %3049 = vmatpush1.msra.mxu0 %v227
    %3050 = vmatprep.subr.mxu0 %v237
    %3051 = vmatpush1.msra.mxu0 %v236
    %3052 = vmatprep.subr.mxu0 %v246
    %3053 = vmatpush1.msra.mxu0 %v245
    %3054 = vmatprep.subr.mxu0 %v255
    %3055 = vmatpush1.msra.mxu0 %v254
    %3056 = vmatprep.subr.mxu0 %v264
    %3057 = vmatpush1.msra.mxu0 %v263
    %3058 = vmatprep.subr.mxu0 %v273
    %3059 = vmatpush1.msra.mxu0 %v272
    %3060 = vmatprep.subr.mxu0 %v282
    %3061 = vmatpush1.msra.mxu0 %v281
    %3062 = vmatprep.subr.mxu0 %v291
    %3063 = vmatpush1.msra.mxu0 %v290
    %3064 = vmatprep.subr.mxu0 %v300
    %3065 = vmatpush1.msra.mxu0 %v299
    %3066 = vmatprep.subr.mxu0 %v309
    %3067 = vmatpush1.msra.mxu0 %v308
    %3068 = vmatprep.subr.mxu0 %v318
    %3069 = vmatpush1.msra.mxu0 %v317
    %3070 = vmatprep.subr.mxu0 %v327
    %3071 = vmatpush1.msra.mxu0 %v326
    %3072 = vmatprep.subr.mxu0 %v336
    %3073 = vmatpush1.msra.mxu0 %v335
    %3074 = vmatprep.subr.mxu0 %v345
    %3075 = vmatpush1.msra.mxu0 %v344
    %3076 = vmatprep.subr.mxu0 %v354
    %3077 = vmatpush1.msra.mxu0 %v353
    %3078 = vmatprep.subr.mxu0 %v363
    %3079 = vmatpush1.msra.mxu0 %v362
    %3080 = vmatprep.subr.mxu0 %v372
    %3081 = vmatpush1.msra.mxu0 %v371
    %3082 = vmatprep.subr.mxu0 %v381
    %3083 = vmatpush1.msra.mxu0 %v380
    %3084 = vmatprep.mubr.f32.mxu0 %v84
    %3085 = vmatmul.mubr.f32.gmra.mrb[0].mxu0 %v83
    %v3086 = vpop.f32.mrb[0].mxu0
    %v3087 = vadd.f32 %v2418, %v3086
    %v3088 = vpop.f32.mrb[0].mxu0
    %v3089 = vadd.f32 %v2422, %v3088
    %3090 = vdwg.mxu0
    %3091 = vmatprep.subr.mxu0 %v390
    %3092 = vmatpush1.msra.mxu0 %v389
    %3093 = vmatprep.subr.mxu0 %v399
    %3094 = vmatpush1.msra.mxu0 %v398
    %3095 = vmatprep.subr.mxu0 %v408
    %3096 = vmatpush1.msra.mxu0 %v407
    %3097 = vmatprep.subr.mxu0 %v417
    %3098 = vmatpush1.msra.mxu0 %v416
    %3099 = vmatprep.subr.mxu0 %v426
    %3100 = vmatpush1.msra.mxu0 %v425
    %3101 = vmatprep.subr.mxu0 %v435
    %3102 = vmatpush1.msra.mxu0 %v434
    %3103 = vmatprep.subr.mxu0 %v444
    %3104 = vmatpush1.msra.mxu0 %v443
    %3105 = vmatprep.subr.mxu0 %v453
    %3106 = vmatpush1.msra.mxu0 %v452
    %3107 = vmatprep.subr.mxu0 %v462
    %3108 = vmatpush1.msra.mxu0 %v461
    %3109 = vmatprep.subr.mxu0 %v471
    %3110 = vmatpush1.msra.mxu0 %v470
    %3111 = vmatprep.subr.mxu0 %v480
    %3112 = vmatpush1.msra.mxu0 %v479
    %3113 = vmatprep.subr.mxu0 %v489
    %3114 = vmatpush1.msra.mxu0 %v488
    %3115 = vmatprep.subr.mxu0 %v498
    %3116 = vmatpush1.msra.mxu0 %v497
    %3117 = vmatprep.subr.mxu0 %v507
    %3118 = vmatpush1.msra.mxu0 %v506
    %3119 = vmatprep.subr.mxu0 %v516
    %3120 = vmatpush1.msra.mxu0 %v515
    %3121 = vmatprep.subr.mxu0 %v525
    %3122 = vmatpush1.msra.mxu0 %v524
    %3123 = vmatprep.subr.mxu0 %v534
    %3124 = vmatpush1.msra.mxu0 %v533
    %3125 = vmatprep.subr.mxu0 %v543
    %3126 = vmatpush1.msra.mxu0 %v542
    %3127 = vmatprep.subr.mxu0 %v552
    %3128 = vmatpush1.msra.mxu0 %v551
    %3129 = vmatprep.subr.mxu0 %v561
    %3130 = vmatpush1.msra.mxu0 %v560
    %3131 = vmatprep.subr.mxu0 %v570
    %3132 = vmatpush1.msra.mxu0 %v569
    %3133 = vmatprep.subr.mxu0 %v579
    %3134 = vmatpush1.msra.mxu0 %v578
    %3135 = vmatprep.subr.mxu0 %v588
    %3136 = vmatpush1.msra.mxu0 %v587
    %3137 = vmatprep.subr.mxu0 %v597
    %3138 = vmatpush1.msra.mxu0 %v596
    %3139 = vmatprep.subr.mxu0 %v606
    %3140 = vmatpush1.msra.mxu0 %v605
    %3141 = vmatprep.subr.mxu0 %v615
    %3142 = vmatpush1.msra.mxu0 %v614
    %3143 = vmatprep.subr.mxu0 %v624
    %3144 = vmatpush1.msra.mxu0 %v623
    %3145 = vmatprep.subr.mxu0 %v633
    %3146 = vmatpush1.msra.mxu0 %v632
    %3147 = vmatprep.subr.mxu0 %v642
    %3148 = vmatpush1.msra.mxu0 %v641
    %3149 = vmatprep.subr.mxu0 %v651
    %3150 = vmatpush1.msra.mxu0 %v650
    %3151 = vmatprep.subr.mxu0 %v660
    %3152 = vmatpush1.msra.mxu0 %v659
    %3153 = vmatprep.subr.mxu0 %v669
    %3154 = vmatpush1.msra.mxu0 %v668
    %3155 = vmatprep.mubr.f32.mxu0 %v86
    %3156 = vmatmul.mubr.f32.gmra.mrb[0].mxu0 %v85
    %v3157 = vpop.f32.mrb[0].mxu0
    %v3158 = vadd.f32 %v3087, %v3157
    %v3159 = vpop.f32.mrb[0].mxu0
    %v3160 = vadd.f32 %v3089, %v3159
    %3161 = vdwg.mxu0
    %3162 = vmatprep.subr.mxu0 %v678
    %3163 = vmatpush1.msra.mxu0 %v677
    %3164 = vmatprep.subr.mxu0 %v687
    %3165 = vmatpush1.msra.mxu0 %v686
    %3166 = vmatprep.subr.mxu0 %v696
    %3167 = vmatpush1.msra.mxu0 %v695
    %3168 = vmatprep.subr.mxu0 %v705
    %3169 = vmatpush1.msra.mxu0 %v704
    %3170 = vmatprep.subr.mxu0 %v714
    %3171 = vmatpush1.msra.mxu0 %v713
    %3172 = vmatprep.subr.mxu0 %v723
    %3173 = vmatpush1.msra.mxu0 %v722
    %3174 = vmatprep.subr.mxu0 %v732
    %3175 = vmatpush1.msra.mxu0 %v731
    %3176 = vmatprep.subr.mxu0 %v741
    %3177 = vmatpush1.msra.mxu0 %v740
    %3178 = vmatprep.subr.mxu0 %v750
    %3179 = vmatpush1.msra.mxu0 %v749
    %3180 = vmatprep.subr.mxu0 %v759
    %3181 = vmatpush1.msra.mxu0 %v758
    %3182 = vmatprep.subr.mxu0 %v768
    %3183 = vmatpush1.msra.mxu0 %v767
    %3184 = vmatprep.subr.mxu0 %v777
    %3185 = vmatpush1.msra.mxu0 %v776
    %3186 = vmatprep.subr.mxu0 %v786
    %3187 = vmatpush1.msra.mxu0 %v785
    %3188 = vmatprep.subr.mxu0 %v795
    %3189 = vmatpush1.msra.mxu0 %v794
    %3190 = vmatprep.subr.mxu0 %v804
    %3191 = vmatpush1.msra.mxu0 %v803
    %3192 = vmatprep.subr.mxu0 %v813
    %3193 = vmatpush1.msra.mxu0 %v812
    %3194 = vmatprep.subr.mxu0 %v822
    %3195 = vmatpush1.msra.mxu0 %v821
    %3196 = vmatprep.subr.mxu0 %v831
    %3197 = vmatpush1.msra.mxu0 %v830
    %3198 = vmatprep.subr.mxu0 %v840
    %3199 = vmatpush1.msra.mxu0 %v839
    %3200 = vmatprep.subr.mxu0 %v849
    %3201 = vmatpush1.msra.mxu0 %v848
    %3202 = vmatprep.subr.mxu0 %v858
    %3203 = vmatpush1.msra.mxu0 %v857
    %3204 = vmatprep.subr.mxu0 %v867
    %3205 = vmatpush1.msra.mxu0 %v866
    %3206 = vmatprep.subr.mxu0 %v876
    %3207 = vmatpush1.msra.mxu0 %v875
    %3208 = vmatprep.subr.mxu0 %v885
    %3209 = vmatpush1.msra.mxu0 %v884
    %3210 = vmatprep.subr.mxu0 %v894
    %3211 = vmatpush1.msra.mxu0 %v893
    %3212 = vmatprep.subr.mxu0 %v903
    %3213 = vmatpush1.msra.mxu0 %v902
    %3214 = vmatprep.subr.mxu0 %v912
    %3215 = vmatpush1.msra.mxu0 %v911
    %3216 = vmatprep.subr.mxu0 %v921
    %3217 = vmatpush1.msra.mxu0 %v920
    %3218 = vmatprep.subr.mxu0 %v930
    %3219 = vmatpush1.msra.mxu0 %v929
    %3220 = vmatprep.subr.mxu0 %v939
    %3221 = vmatpush1.msra.mxu0 %v938
    %3222 = vmatprep.subr.mxu0 %v948
    %3223 = vmatpush1.msra.mxu0 %v947
    %3224 = vmatprep.subr.mxu0 %v957
    %3225 = vmatpush1.msra.mxu0 %v956
    %3226 = vmatprep.mubr.f32.mxu0 %v88
    %3227 = vmatmul.mubr.f32.gmra.mrb[0].mxu0 %v87
    %v3228 = vpop.f32.mrb[0].mxu0
    %v3229 = vadd.f32 %v3158, %v3228
    %v3230 = vpop.f32.mrb[0].mxu0
    %v3231 = vadd.f32 %v3160, %v3230
    %3232 = vdwg.mxu0
    %3233 = vmatprep.subr.mxu0 %v966
    %3234 = vmatpush1.msra.mxu0 %v965
    %3235 = vmatprep.subr.mxu0 %v975
    %3236 = vmatpush1.msra.mxu0 %v974
    %3237 = vmatprep.subr.mxu0 %v984
    %3238 = vmatpush1.msra.mxu0 %v983
    %3239 = vmatprep.subr.mxu0 %v993
    %3240 = vmatpush1.msra.mxu0 %v992
    %3241 = vmatprep.subr.mxu0 %v1002
    %3242 = vmatpush1.msra.mxu0 %v1001
    %3243 = vmatprep.subr.mxu0 %v1011
    %3244 = vmatpush1.msra.mxu0 %v1010
    %3245 = vmatprep.subr.mxu0 %v1020
    %3246 = vmatpush1.msra.mxu0 %v1019
    %3247 = vmatprep.subr.mxu0 %v1029
    %3248 = vmatpush1.msra.mxu0 %v1028
    %3249 = vmatprep.subr.mxu0 %v1038
    %3250 = vmatpush1.msra.mxu0 %v1037
    %3251 = vmatprep.subr.mxu0 %v1047
    %3252 = vmatpush1.msra.mxu0 %v1046
    %3253 = vmatprep.subr.mxu0 %v1056
    %3254 = vmatpush1.msra.mxu0 %v1055
    %3255 = vmatprep.subr.mxu0 %v1065
    %3256 = vmatpush1.msra.mxu0 %v1064
    %3257 = vmatprep.subr.mxu0 %v1074
    %3258 = vmatpush1.msra.mxu0 %v1073
    %3259 = vmatprep.subr.mxu0 %v1083
    %3260 = vmatpush1.msra.mxu0 %v1082
    %3261 = vmatprep.subr.mxu0 %v1092
    %3262 = vmatpush1.msra.mxu0 %v1091
    %3263 = vmatprep.subr.mxu0 %v1101
    %3264 = vmatpush1.msra.mxu0 %v1100
    %3265 = vmatprep.subr.mxu0 %v1110
    %3266 = vmatpush1.msra.mxu0 %v1109
    %3267 = vmatprep.subr.mxu0 %v1119
    %3268 = vmatpush1.msra.mxu0 %v1118
    %3269 = vmatprep.subr.mxu0 %v1128
    %3270 = vmatpush1.msra.mxu0 %v1127
    %3271 = vmatprep.subr.mxu0 %v1137
    %3272 = vmatpush1.msra.mxu0 %v1136
    %3273 = vmatprep.subr.mxu0 %v1146
    %3274 = vmatpush1.msra.mxu0 %v1145
    %3275 = vmatprep.subr.mxu0 %v1155
    %3276 = vmatpush1.msra.mxu0 %v1154
    %3277 = vmatprep.subr.mxu0 %v1164
    %3278 = vmatpush1.msra.mxu0 %v1163
    %3279 = vmatprep.subr.mxu0 %v1173
    %3280 = vmatpush1.msra.mxu0 %v1172
    %3281 = vmatprep.subr.mxu0 %v1182
    %3282 = vmatpush1.msra.mxu0 %v1181
    %3283 = vmatprep.subr.mxu0 %v1191
    %3284 = vmatpush1.msra.mxu0 %v1190
    %3285 = vmatprep.subr.mxu0 %v1200
    %3286 = vmatpush1.msra.mxu0 %v1199
    %3287 = vmatprep.subr.mxu0 %v1209
    %3288 = vmatpush1.msra.mxu0 %v1208
    %3289 = vmatprep.subr.mxu0 %v1218
    %3290 = vmatpush1.msra.mxu0 %v1217
    %3291 = vmatprep.subr.mxu0 %v1227
    %3292 = vmatpush1.msra.mxu0 %v1226
    %3293 = vmatprep.subr.mxu0 %v1236
    %3294 = vmatpush1.msra.mxu0 %v1235
    %3295 = vmatprep.subr.mxu0 %v1245
    %3296 = vmatpush1.msra.mxu0 %v1244
    %3297 = vmatprep.mubr.f32.mxu0 %v90
    %3298 = vmatmul.mubr.f32.gmra.mrb[0].mxu0 %v89
    %v3299 = vpop.f32.mrb[0].mxu0
    %v3300 = vadd.f32 %v3229, %v3299
    %v3301 = vpop.f32.mrb[0].mxu0
    %v3302 = vadd.f32 %v3231, %v3301
    %3303 = vdwg.mxu0
    %3304 = vmatprep.subr.mxu0 %v1254
    %3305 = vmatpush1.msra.mxu0 %v1253
    %3306 = vmatprep.subr.mxu0 %v1263
    %3307 = vmatpush1.msra.mxu0 %v1262
    %3308 = vmatprep.subr.mxu0 %v1272
    %3309 = vmatpush1.msra.mxu0 %v1271
    %3310 = vmatprep.subr.mxu0 %v1281
    %3311 = vmatpush1.msra.mxu0 %v1280
    %3312 = vmatprep.subr.mxu0 %v1290
    %3313 = vmatpush1.msra.mxu0 %v1289
    %3314 = vmatprep.subr.mxu0 %v1299
    %3315 = vmatpush1.msra.mxu0 %v1298
    %3316 = vmatprep.subr.mxu0 %v1308
    %3317 = vmatpush1.msra.mxu0 %v1307
    %3318 = vmatprep.subr.mxu0 %v1317
    %3319 = vmatpush1.msra.mxu0 %v1316
    %3320 = vmatprep.subr.mxu0 %v1326
    %3321 = vmatpush1.msra.mxu0 %v1325
    %3322 = vmatprep.subr.mxu0 %v1335
    %3323 = vmatpush1.msra.mxu0 %v1334
    %3324 = vmatprep.subr.mxu0 %v1344
    %3325 = vmatpush1.msra.mxu0 %v1343
    %3326 = vmatprep.subr.mxu0 %v1353
    %3327 = vmatpush1.msra.mxu0 %v1352
    %3328 = vmatprep.subr.mxu0 %v1362
    %3329 = vmatpush1.msra.mxu0 %v1361
    %3330 = vmatprep.subr.mxu0 %v1371
    %3331 = vmatpush1.msra.mxu0 %v1370
    %3332 = vmatprep.subr.mxu0 %v1380
    %3333 = vmatpush1.msra.mxu0 %v1379
    %3334 = vmatprep.subr.mxu0 %v1389
    %3335 = vmatpush1.msra.mxu0 %v1388
    %3336 = vmatprep.subr.mxu0 %v1398
    %3337 = vmatpush1.msra.mxu0 %v1397
    %3338 = vmatprep.subr.mxu0 %v1407
    %3339 = vmatpush1.msra.mxu0 %v1406
    %3340 = vmatprep.subr.mxu0 %v1416
    %3341 = vmatpush1.msra.mxu0 %v1415
    %3342 = vmatprep.subr.mxu0 %v1425
    %3343 = vmatpush1.msra.mxu0 %v1424
    %3344 = vmatprep.subr.mxu0 %v1434
    %3345 = vmatpush1.msra.mxu0 %v1433
    %3346 = vmatprep.subr.mxu0 %v1443
    %3347 = vmatpush1.msra.mxu0 %v1442
    %3348 = vmatprep.subr.mxu0 %v1452
    %3349 = vmatpush1.msra.mxu0 %v1451
    %3350 = vmatprep.subr.mxu0 %v1461
    %3351 = vmatpush1.msra.mxu0 %v1460
    %3352 = vmatprep.subr.mxu0 %v1470
    %3353 = vmatpush1.msra.mxu0 %v1469
    %3354 = vmatprep.subr.mxu0 %v1479
    %3355 = vmatpush1.msra.mxu0 %v1478
    %3356 = vmatprep.subr.mxu0 %v1488
    %3357 = vmatpush1.msra.mxu0 %v1487
    %3358 = vmatprep.subr.mxu0 %v1497
    %3359 = vmatpush1.msra.mxu0 %v1496
    %3360 = vmatprep.subr.mxu0 %v1506
    %3361 = vmatpush1.msra.mxu0 %v1505
    %3362 = vmatprep.subr.mxu0 %v1515
    %3363 = vmatpush1.msra.mxu0 %v1514
    %3364 = vmatprep.subr.mxu0 %v1524
    %3365 = vmatpush1.msra.mxu0 %v1523
    %3366 = vmatprep.subr.mxu0 %v1533
    %3367 = vmatpush1.msra.mxu0 %v1532
    %3368 = vmatprep.mubr.f32.mxu0 %v92
    %3369 = vmatmul.mubr.f32.gmra.mrb[0].mxu0 %v91
    %v3370 = vpop.f32.mrb[0].mxu0
    %v3371 = vadd.f32 %v3300, %v3370
    %v3372 = vpop.f32.mrb[0].mxu0
    %v3373 = vadd.f32 %v3302, %v3372
    %3374 = vdwg.mxu0
    %3375 = vmatprep.subr.mxu0 %v1542
    %3376 = vmatpush1.msra.mxu0 %v1541
    %3377 = vmatprep.subr.mxu0 %v1551
    %3378 = vmatpush1.msra.mxu0 %v1550
    %3379 = vmatprep.subr.mxu0 %v1560
    %3380 = vmatpush1.msra.mxu0 %v1559
    %3381 = vmatprep.subr.mxu0 %v1569
    %3382 = vmatpush1.msra.mxu0 %v1568
    %3383 = vmatprep.subr.mxu0 %v1578
    %3384 = vmatpush1.msra.mxu0 %v1577
    %3385 = vmatprep.subr.mxu0 %v1587
    %3386 = vmatpush1.msra.mxu0 %v1586
    %3387 = vmatprep.subr.mxu0 %v1596
    %3388 = vmatpush1.msra.mxu0 %v1595
    %3389 = vmatprep.subr.mxu0 %v1605
    %3390 = vmatpush1.msra.mxu0 %v1604
    %3391 = vmatprep.subr.mxu0 %v1614
    %3392 = vmatpush1.msra.mxu0 %v1613
    %3393 = vmatprep.subr.mxu0 %v1623
    %3394 = vmatpush1.msra.mxu0 %v1622
    %3395 = vmatprep.subr.mxu0 %v1632
    %3396 = vmatpush1.msra.mxu0 %v1631
    %3397 = vmatprep.subr.mxu0 %v1641
    %3398 = vmatpush1.msra.mxu0 %v1640
    %3399 = vmatprep.subr.mxu0 %v1650
    %3400 = vmatpush1.msra.mxu0 %v1649
    %3401 = vmatprep.subr.mxu0 %v1659
    %3402 = vmatpush1.msra.mxu0 %v1658
    %3403 = vmatprep.subr.mxu0 %v1668
    %3404 = vmatpush1.msra.mxu0 %v1667
    %3405 = vmatprep.subr.mxu0 %v1677
    %3406 = vmatpush1.msra.mxu0 %v1676
    %3407 = vmatprep.subr.mxu0 %v1686
    %3408 = vmatpush1.msra.mxu0 %v1685
    %3409 = vmatprep.subr.mxu0 %v1695
    %3410 = vmatpush1.msra.mxu0 %v1694
    %3411 = vmatprep.subr.mxu0 %v1704
    %3412 = vmatpush1.msra.mxu0 %v1703
    %3413 = vmatprep.subr.mxu0 %v1713
    %3414 = vmatpush1.msra.mxu0 %v1712
    %3415 = vmatprep.subr.mxu0 %v1722
    %3416 = vmatpush1.msra.mxu0 %v1721
    %3417 = vmatprep.subr.mxu0 %v1731
    %3418 = vmatpush1.msra.mxu0 %v1730
    %3419 = vmatprep.subr.mxu0 %v1740
    %3420 = vmatpush1.msra.mxu0 %v1739
    %3421 = vmatprep.subr.mxu0 %v1749
    %3422 = vmatpush1.msra.mxu0 %v1748
    %3423 = vmatprep.subr.mxu0 %v1758
    %3424 = vmatpush1.msra.mxu0 %v1757
    %3425 = vmatprep.subr.mxu0 %v1767
    %3426 = vmatpush1.msra.mxu0 %v1766
    %3427 = vmatprep.subr.mxu0 %v1776
    %3428 = vmatpush1.msra.mxu0 %v1775
    %3429 = vmatprep.subr.mxu0 %v1785
    %3430 = vmatpush1.msra.mxu0 %v1784
    %3431 = vmatprep.subr.mxu0 %v1794
    %3432 = vmatpush1.msra.mxu0 %v1793
    %3433 = vmatprep.subr.mxu0 %v1803
    %3434 = vmatpush1.msra.mxu0 %v1802
    %3435 = vmatprep.subr.mxu0 %v1812
    %3436 = vmatpush1.msra.mxu0 %v1811
    %3437 = vmatprep.subr.mxu0 %v1821
    %3438 = vmatpush1.msra.mxu0 %v1820
    %3439 = vmatprep.mubr.f32.mxu0 %v94
    %3440 = vmatmul.mubr.f32.gmra.mrb[0].mxu0 %v93
    %v3441 = vpop.f32.mrb[0].mxu0
    %v3442 = vadd.f32 %v3371, %v3441
    %v3443 = vpop.f32.mrb[0].mxu0
    %v3444 = vadd.f32 %v3373, %v3443
    %3445 = vdwg.mxu0
    %3446 = vmatprep.subr.mxu0 %v1830
    %3447 = vmatpush1.msra.mxu0 %v1829
    %3448 = vmatprep.subr.mxu0 %v1839
    %3449 = vmatpush1.msra.mxu0 %v1838
    %3450 = vmatprep.subr.mxu0 %v1848
    %3451 = vmatpush1.msra.mxu0 %v1847
    %3452 = vmatprep.subr.mxu0 %v1857
    %3453 = vmatpush1.msra.mxu0 %v1856
    %3454 = vmatprep.subr.mxu0 %v1866
    %3455 = vmatpush1.msra.mxu0 %v1865
    %3456 = vmatprep.subr.mxu0 %v1875
    %3457 = vmatpush1.msra.mxu0 %v1874
    %3458 = vmatprep.subr.mxu0 %v1884
    %3459 = vmatpush1.msra.mxu0 %v1883
    %3460 = vmatprep.subr.mxu0 %v1893
    %3461 = vmatpush1.msra.mxu0 %v1892
    %3462 = vmatprep.subr.mxu0 %v1902
    %3463 = vmatpush1.msra.mxu0 %v1901
    %3464 = vmatprep.subr.mxu0 %v1911
    %3465 = vmatpush1.msra.mxu0 %v1910
    %3466 = vmatprep.subr.mxu0 %v1920
    %3467 = vmatpush1.msra.mxu0 %v1919
    %3468 = vmatprep.subr.mxu0 %v1929
    %3469 = vmatpush1.msra.mxu0 %v1928
    %3470 = vmatprep.subr.mxu0 %v1938
    %3471 = vmatpush1.msra.mxu0 %v1937
    %3472 = vmatprep.subr.mxu0 %v1947
    %3473 = vmatpush1.msra.mxu0 %v1946
    %3474 = vmatprep.subr.mxu0 %v1956
    %3475 = vmatpush1.msra.mxu0 %v1955
    %3476 = vmatprep.subr.mxu0 %v1965
    %3477 = vmatpush1.msra.mxu0 %v1964
    %3478 = vmatprep.subr.mxu0 %v1974
    %3479 = vmatpush1.msra.mxu0 %v1973
    %3480 = vmatprep.subr.mxu0 %v1983
    %3481 = vmatpush1.msra.mxu0 %v1982
    %3482 = vmatprep.subr.mxu0 %v1992
    %3483 = vmatpush1.msra.mxu0 %v1991
    %3484 = vmatprep.subr.mxu0 %v2001
    %3485 = vmatpush1.msra.mxu0 %v2000
    %3486 = vmatprep.subr.mxu0 %v2010
    %3487 = vmatpush1.msra.mxu0 %v2009
    %3488 = vmatprep.subr.mxu0 %v2019
    %3489 = vmatpush1.msra.mxu0 %v2018
    %3490 = vmatprep.subr.mxu0 %v2028
    %3491 = vmatpush1.msra.mxu0 %v2027
    %3492 = vmatprep.subr.mxu0 %v2037
    %3493 = vmatpush1.msra.mxu0 %v2036
    %3494 = vmatprep.subr.mxu0 %v2046
    %3495 = vmatpush1.msra.mxu0 %v2045
    %3496 = vmatprep.subr.mxu0 %v2055
    %3497 = vmatpush1.msra.mxu0 %v2054
    %3498 = vmatprep.subr.mxu0 %v2064
    %3499 = vmatpush1.msra.mxu0 %v2063
    %3500 = vmatprep.subr.mxu0 %v2073
    %3501 = vmatpush1.msra.mxu0 %v2072
    %3502 = vmatprep.subr.mxu0 %v2082
    %3503 = vmatpush1.msra.mxu0 %v2081
    %3504 = vmatprep.subr.mxu0 %v2091
    %3505 = vmatpush1.msra.mxu0 %v2090
    %3506 = vmatprep.subr.mxu0 %v2100
    %3507 = vmatpush1.msra.mxu0 %v2099
    %3508 = vmatprep.subr.mxu0 %v2109
    %3509 = vmatpush1.msra.mxu0 %v2108
    %3510 = vmatprep.mubr.f32.mxu0 %v96
    %3511 = vmatmul.mubr.f32.gmra.mrb[0].mxu0 %v95
    %v3512 = vpop.f32.mrb[0].mxu0
    %v3513 = vadd.f32 %v3442, %v3512
    %v3514 = vpop.f32.mrb[0].mxu0
    %v3515 = vadd.f32 %v3444, %v3514
    %3516 = vdwg.mxu0
    %3517 = vmatprep.subr.mxu0 %v2118
    %3518 = vmatpush1.msra.mxu0 %v2117
    %3519 = vmatprep.subr.mxu0 %v2127
    %3520 = vmatpush1.msra.mxu0 %v2126
    %3521 = vmatprep.subr.mxu0 %v2136
    %3522 = vmatpush1.msra.mxu0 %v2135
    %3523 = vmatprep.subr.mxu0 %v2145
    %3524 = vmatpush1.msra.mxu0 %v2144
    %3525 = vmatprep.subr.mxu0 %v2154
    %3526 = vmatpush1.msra.mxu0 %v2153
    %3527 = vmatprep.subr.mxu0 %v2163
    %3528 = vmatpush1.msra.mxu0 %v2162
    %3529 = vmatprep.subr.mxu0 %v2172
    %3530 = vmatpush1.msra.mxu0 %v2171
    %3531 = vmatprep.subr.mxu0 %v2181
    %3532 = vmatpush1.msra.mxu0 %v2180
    %3533 = vmatprep.subr.mxu0 %v2190
    %3534 = vmatpush1.msra.mxu0 %v2189
    %3535 = vmatprep.subr.mxu0 %v2199
    %3536 = vmatpush1.msra.mxu0 %v2198
    %3537 = vmatprep.subr.mxu0 %v2208
    %3538 = vmatpush1.msra.mxu0 %v2207
    %3539 = vmatprep.subr.mxu0 %v2217
    %3540 = vmatpush1.msra.mxu0 %v2216
    %3541 = vmatprep.subr.mxu0 %v2226
    %3542 = vmatpush1.msra.mxu0 %v2225
    %3543 = vmatprep.subr.mxu0 %v2235
    %3544 = vmatpush1.msra.mxu0 %v2234
    %3545 = vmatprep.subr.mxu0 %v2244
    %3546 = vmatpush1.msra.mxu0 %v2243
    %3547 = vmatprep.subr.mxu0 %v2253
    %3548 = vmatpush1.msra.mxu0 %v2252
    %3549 = vmatprep.subr.mxu0 %v2262
    %3550 = vmatpush1.msra.mxu0 %v2261
    %3551 = vmatprep.subr.mxu0 %v2271
    %3552 = vmatpush1.msra.mxu0 %v2270
    %3553 = vmatprep.subr.mxu0 %v2280
    %3554 = vmatpush1.msra.mxu0 %v2279
    %3555 = vmatprep.subr.mxu0 %v2289
    %3556 = vmatpush1.msra.mxu0 %v2288
    %3557 = vmatprep.subr.mxu0 %v2298
    %3558 = vmatpush1.msra.mxu0 %v2297
    %3559 = vmatprep.subr.mxu0 %v2307
    %3560 = vmatpush1.msra.mxu0 %v2306
    %3561 = vmatprep.subr.mxu0 %v2316
    %3562 = vmatpush1.msra.mxu0 %v2315
    %3563 = vmatprep.subr.mxu0 %v2325
    %3564 = vmatpush1.msra.mxu0 %v2324
    %3565 = vmatprep.subr.mxu0 %v2334
    %3566 = vmatpush1.msra.mxu0 %v2333
    %3567 = vmatprep.subr.mxu0 %v2343
    %3568 = vmatpush1.msra.mxu0 %v2342
    %3569 = vmatprep.subr.mxu0 %v2352
    %3570 = vmatpush1.msra.mxu0 %v2351
    %3571 = vmatprep.subr.mxu0 %v2361
    %3572 = vmatpush1.msra.mxu0 %v2360
    %3573 = vmatprep.subr.mxu0 %v2370
    %3574 = vmatpush1.msra.mxu0 %v2369
    %3575 = vmatprep.subr.mxu0 %v2379
    %3576 = vmatpush1.msra.mxu0 %v2378
    %3577 = vmatprep.subr.mxu0 %v2388
    %3578 = vmatpush1.msra.mxu0 %v2387
    %3579 = vmatprep.subr.mxu0 %v2397
    %3580 = vmatpush1.msra.mxu0 %v2396
    %3581 = vmatprep.mubr.f32.mxu0 %v98
    %3582 = vmatmul.mubr.f32.gmra.mrb[0].mxu0 %v97
    %v3583 = vpop.f32.mrb[0].mxu0
    %v3584 = vadd.f32 %v3513, %v3583
    %v3585 = vpop.f32.mrb[0].mxu0
    %v3586 = vadd.f32 %v3515, %v3585
    %3587 = vdwg.mxu0
    %3588 = vmatprep.subr.mxu0 %v104
    %3589 = vmatpush1.msra.mxu0 %v103
    %3590 = vmatprep.subr.mxu0 %v113
    %3591 = vmatpush1.msra.mxu0 %v112
    %3592 = vmatprep.subr.mxu0 %v122
    %3593 = vmatpush1.msra.mxu0 %v121
    %3594 = vmatprep.subr.mxu0 %v131
    %3595 = vmatpush1.msra.mxu0 %v130
    %3596 = vmatprep.subr.mxu0 %v140
    %3597 = vmatpush1.msra.mxu0 %v139
    %3598 = vmatprep.subr.mxu0 %v149
    %3599 = vmatpush1.msra.mxu0 %v148
    %3600 = vmatprep.subr.mxu0 %v158
    %3601 = vmatpush1.msra.mxu0 %v157
    %3602 = vmatprep.subr.mxu0 %v167
    %3603 = vmatpush1.msra.mxu0 %v166
    %3604 = vmatprep.subr.mxu0 %v176
    %3605 = vmatpush1.msra.mxu0 %v175
    %3606 = vmatprep.subr.mxu0 %v185
    %3607 = vmatpush1.msra.mxu0 %v184
    %3608 = vmatprep.subr.mxu0 %v194
    %3609 = vmatpush1.msra.mxu0 %v193
    %3610 = vmatprep.subr.mxu0 %v203
    %3611 = vmatpush1.msra.mxu0 %v202
    %3612 = vmatprep.subr.mxu0 %v212
    %3613 = vmatpush1.msra.mxu0 %v211
    %3614 = vmatprep.subr.mxu0 %v221
    %3615 = vmatpush1.msra.mxu0 %v220
    %3616 = vmatprep.subr.mxu0 %v230
    %3617 = vmatpush1.msra.mxu0 %v229
    %3618 = vmatprep.subr.mxu0 %v239
    %3619 = vmatpush1.msra.mxu0 %v238
    %3620 = vmatprep.subr.mxu0 %v248
    %3621 = vmatpush1.msra.mxu0 %v247
    %3622 = vmatprep.subr.mxu0 %v257
    %3623 = vmatpush1.msra.mxu0 %v256
    %3624 = vmatprep.subr.mxu0 %v266
    %3625 = vmatpush1.msra.mxu0 %v265
    %3626 = vmatprep.subr.mxu0 %v275
    %3627 = vmatpush1.msra.mxu0 %v274
    %3628 = vmatprep.subr.mxu0 %v284
    %3629 = vmatpush1.msra.mxu0 %v283
    %3630 = vmatprep.subr.mxu0 %v293
    %3631 = vmatpush1.msra.mxu0 %v292
    %3632 = vmatprep.subr.mxu0 %v302
    %3633 = vmatpush1.msra.mxu0 %v301
    %3634 = vmatprep.subr.mxu0 %v311
    %3635 = vmatpush1.msra.mxu0 %v310
    %3636 = vmatprep.subr.mxu0 %v320
    %3637 = vmatpush1.msra.mxu0 %v319
    %3638 = vmatprep.subr.mxu0 %v329
    %3639 = vmatpush1.msra.mxu0 %v328
    %3640 = vmatprep.subr.mxu0 %v338
    %3641 = vmatpush1.msra.mxu0 %v337
    %3642 = vmatprep.subr.mxu0 %v347
    %3643 = vmatpush1.msra.mxu0 %v346
    %3644 = vmatprep.subr.mxu0 %v356
    %3645 = vmatpush1.msra.mxu0 %v355
    %3646 = vmatprep.subr.mxu0 %v365
    %3647 = vmatpush1.msra.mxu0 %v364
    %3648 = vmatprep.subr.mxu0 %v374
    %3649 = vmatpush1.msra.mxu0 %v373
    %3650 = vmatprep.subr.mxu0 %v383
    %3651 = vmatpush1.msra.mxu0 %v382
    %3652 = vmatprep.mubr.f32.mxu0 %v84
    %3653 = vmatmul.mubr.f32.gmra.mrb[0].mxu0 %v83
    %v3654 = vpop.f32.mrb[0].mxu0
    %v3655 = vadd.f32 %v2426, %v3654
    %v3656 = vpop.f32.mrb[0].mxu0
    %v3657 = vadd.f32 %v2430, %v3656
    %3658 = vdwg.mxu0
    %3659 = vmatprep.subr.mxu0 %v392
    %3660 = vmatpush1.msra.mxu0 %v391
    %3661 = vmatprep.subr.mxu0 %v401
    %3662 = vmatpush1.msra.mxu0 %v400
    %3663 = vmatprep.subr.mxu0 %v410
    %3664 = vmatpush1.msra.mxu0 %v409
    %3665 = vmatprep.subr.mxu0 %v419
    %3666 = vmatpush1.msra.mxu0 %v418
    %3667 = vmatprep.subr.mxu0 %v428
    %3668 = vmatpush1.msra.mxu0 %v427
    %3669 = vmatprep.subr.mxu0 %v437
    %3670 = vmatpush1.msra.mxu0 %v436
    %3671 = vmatprep.subr.mxu0 %v446
    %3672 = vmatpush1.msra.mxu0 %v445
    %3673 = vmatprep.subr.mxu0 %v455
    %3674 = vmatpush1.msra.mxu0 %v454
    %3675 = vmatprep.subr.mxu0 %v464
    %3676 = vmatpush1.msra.mxu0 %v463
    %3677 = vmatprep.subr.mxu0 %v473
    %3678 = vmatpush1.msra.mxu0 %v472
    %3679 = vmatprep.subr.mxu0 %v482
    %3680 = vmatpush1.msra.mxu0 %v481
    %3681 = vmatprep.subr.mxu0 %v491
    %3682 = vmatpush1.msra.mxu0 %v490
    %3683 = vmatprep.subr.mxu0 %v500
    %3684 = vmatpush1.msra.mxu0 %v499
    %3685 = vmatprep.subr.mxu0 %v509
    %3686 = vmatpush1.msra.mxu0 %v508
    %3687 = vmatprep.subr.mxu0 %v518
    %3688 = vmatpush1.msra.mxu0 %v517
    %3689 = vmatprep.subr.mxu0 %v527
    %3690 = vmatpush1.msra.mxu0 %v526
    %3691 = vmatprep.subr.mxu0 %v536
    %3692 = vmatpush1.msra.mxu0 %v535
    %3693 = vmatprep.subr.mxu0 %v545
    %3694 = vmatpush1.msra.mxu0 %v544
    %3695 = vmatprep.subr.mxu0 %v554
    %3696 = vmatpush1.msra.mxu0 %v553
    %3697 = vmatprep.subr.mxu0 %v563
    %3698 = vmatpush1.msra.mxu0 %v562
    %3699 = vmatprep.subr.mxu0 %v572
    %3700 = vmatpush1.msra.mxu0 %v571
    %3701 = vmatprep.subr.mxu0 %v581
    %3702 = vmatpush1.msra.mxu0 %v580
    %3703 = vmatprep.subr.mxu0 %v590
    %3704 = vmatpush1.msra.mxu0 %v589
    %3705 = vmatprep.subr.mxu0 %v599
    %3706 = vmatpush1.msra.mxu0 %v598
    %3707 = vmatprep.subr.mxu0 %v608
    %3708 = vmatpush1.msra.mxu0 %v607
    %3709 = vmatprep.subr.mxu0 %v617
    %3710 = vmatpush1.msra.mxu0 %v616
    %3711 = vmatprep.subr.mxu0 %v626
    %3712 = vmatpush1.msra.mxu0 %v625
    %3713 = vmatprep.subr.mxu0 %v635
    %3714 = vmatpush1.msra.mxu0 %v634
    %3715 = vmatprep.subr.mxu0 %v644
    %3716 = vmatpush1.msra.mxu0 %v643
    %3717 = vmatprep.subr.mxu0 %v653
    %3718 = vmatpush1.msra.mxu0 %v652
    %3719 = vmatprep.subr.mxu0 %v662
    %3720 = vmatpush1.msra.mxu0 %v661
    %3721 = vmatprep.subr.mxu0 %v671
    %3722 = vmatpush1.msra.mxu0 %v670
    %3723 = vmatprep.mubr.f32.mxu0 %v86
    %3724 = vmatmul.mubr.f32.gmra.mrb[0].mxu0 %v85
    %v3725 = vpop.f32.mrb[0].mxu0
    %v3726 = vadd.f32 %v3655, %v3725
    %v3727 = vpop.f32.mrb[0].mxu0
    %v3728 = vadd.f32 %v3657, %v3727
    %3729 = vdwg.mxu0
    %3730 = vmatprep.subr.mxu0 %v680
    %3731 = vmatpush1.msra.mxu0 %v679
    %3732 = vmatprep.subr.mxu0 %v689
    %3733 = vmatpush1.msra.mxu0 %v688
    %3734 = vmatprep.subr.mxu0 %v698
    %3735 = vmatpush1.msra.mxu0 %v697
    %3736 = vmatprep.subr.mxu0 %v707
    %3737 = vmatpush1.msra.mxu0 %v706
    %3738 = vmatprep.subr.mxu0 %v716
    %3739 = vmatpush1.msra.mxu0 %v715
    %3740 = vmatprep.subr.mxu0 %v725
    %3741 = vmatpush1.msra.mxu0 %v724
    %3742 = vmatprep.subr.mxu0 %v734
    %3743 = vmatpush1.msra.mxu0 %v733
    %3744 = vmatprep.subr.mxu0 %v743
    %3745 = vmatpush1.msra.mxu0 %v742
    %3746 = vmatprep.subr.mxu0 %v752
    %3747 = vmatpush1.msra.mxu0 %v751
    %3748 = vmatprep.subr.mxu0 %v761
    %3749 = vmatpush1.msra.mxu0 %v760
    %3750 = vmatprep.subr.mxu0 %v770
    %3751 = vmatpush1.msra.mxu0 %v769
    %3752 = vmatprep.subr.mxu0 %v779
    %3753 = vmatpush1.msra.mxu0 %v778
    %3754 = vmatprep.subr.mxu0 %v788
    %3755 = vmatpush1.msra.mxu0 %v787
    %3756 = vmatprep.subr.mxu0 %v797
    %3757 = vmatpush1.msra.mxu0 %v796
    %3758 = vmatprep.subr.mxu0 %v806
    %3759 = vmatpush1.msra.mxu0 %v805
    %3760 = vmatprep.subr.mxu0 %v815
    %3761 = vmatpush1.msra.mxu0 %v814
    %3762 = vmatprep.subr.mxu0 %v824
    %3763 = vmatpush1.msra.mxu0 %v823
    %3764 = vmatprep.subr.mxu0 %v833
    %3765 = vmatpush1.msra.mxu0 %v832
    %3766 = vmatprep.subr.mxu0 %v842
    %3767 = vmatpush1.msra.mxu0 %v841
    %3768 = vmatprep.subr.mxu0 %v851
    %3769 = vmatpush1.msra.mxu0 %v850
    %3770 = vmatprep.subr.mxu0 %v860
    %3771 = vmatpush1.msra.mxu0 %v859
    %3772 = vmatprep.subr.mxu0 %v869
    %3773 = vmatpush1.msra.mxu0 %v868
    %3774 = vmatprep.subr.mxu0 %v878
    %3775 = vmatpush1.msra.mxu0 %v877
    %3776 = vmatprep.subr.mxu0 %v887
    %3777 = vmatpush1.msra.mxu0 %v886
    %3778 = vmatprep.subr.mxu0 %v896
    %3779 = vmatpush1.msra.mxu0 %v895
    %3780 = vmatprep.subr.mxu0 %v905
    %3781 = vmatpush1.msra.mxu0 %v904
    %3782 = vmatprep.subr.mxu0 %v914
    %3783 = vmatpush1.msra.mxu0 %v913
    %3784 = vmatprep.subr.mxu0 %v923
    %3785 = vmatpush1.msra.mxu0 %v922
    %3786 = vmatprep.subr.mxu0 %v932
    %3787 = vmatpush1.msra.mxu0 %v931
    %3788 = vmatprep.subr.mxu0 %v941
    %3789 = vmatpush1.msra.mxu0 %v940
    %3790 = vmatprep.subr.mxu0 %v950
    %3791 = vmatpush1.msra.mxu0 %v949
    %3792 = vmatprep.subr.mxu0 %v959
    %3793 = vmatpush1.msra.mxu0 %v958
    %3794 = vmatprep.mubr.f32.mxu0 %v88
    %3795 = vmatmul.mubr.f32.gmra.mrb[0].mxu0 %v87
    %v3796 = vpop.f32.mrb[0].mxu0
    %v3797 = vadd.f32 %v3726, %v3796
    %v3798 = vpop.f32.mrb[0].mxu0
    %v3799 = vadd.f32 %v3728, %v3798
    %3800 = vdwg.mxu0
    %3801 = vmatprep.subr.mxu0 %v968
    %3802 = vmatpush1.msra.mxu0 %v967
    %3803 = vmatprep.subr.mxu0 %v977
    %3804 = vmatpush1.msra.mxu0 %v976
    %3805 = vmatprep.subr.mxu0 %v986
    %3806 = vmatpush1.msra.mxu0 %v985
    %3807 = vmatprep.subr.mxu0 %v995
    %3808 = vmatpush1.msra.mxu0 %v994
    %3809 = vmatprep.subr.mxu0 %v1004
    %3810 = vmatpush1.msra.mxu0 %v1003
    %3811 = vmatprep.subr.mxu0 %v1013
    %3812 = vmatpush1.msra.mxu0 %v1012
    %3813 = vmatprep.subr.mxu0 %v1022
    %3814 = vmatpush1.msra.mxu0 %v1021
    %3815 = vmatprep.subr.mxu0 %v1031
    %3816 = vmatpush1.msra.mxu0 %v1030
    %3817 = vmatprep.subr.mxu0 %v1040
    %3818 = vmatpush1.msra.mxu0 %v1039
    %3819 = vmatprep.subr.mxu0 %v1049
    %3820 = vmatpush1.msra.mxu0 %v1048
    %3821 = vmatprep.subr.mxu0 %v1058
    %3822 = vmatpush1.msra.mxu0 %v1057
    %3823 = vmatprep.subr.mxu0 %v1067
    %3824 = vmatpush1.msra.mxu0 %v1066
    %3825 = vmatprep.subr.mxu0 %v1076
    %3826 = vmatpush1.msra.mxu0 %v1075
    %3827 = vmatprep.subr.mxu0 %v1085
    %3828 = vmatpush1.msra.mxu0 %v1084
    %3829 = vmatprep.subr.mxu0 %v1094
    %3830 = vmatpush1.msra.mxu0 %v1093
    %3831 = vmatprep.subr.mxu0 %v1103
    %3832 = vmatpush1.msra.mxu0 %v1102
    %3833 = vmatprep.subr.mxu0 %v1112
    %3834 = vmatpush1.msra.mxu0 %v1111
    %3835 = vmatprep.subr.mxu0 %v1121
    %3836 = vmatpush1.msra.mxu0 %v1120
    %3837 = vmatprep.subr.mxu0 %v1130
    %3838 = vmatpush1.msra.mxu0 %v1129
    %3839 = vmatprep.subr.mxu0 %v1139
    %3840 = vmatpush1.msra.mxu0 %v1138
    %3841 = vmatprep.subr.mxu0 %v1148
    %3842 = vmatpush1.msra.mxu0 %v1147
    %3843 = vmatprep.subr.mxu0 %v1157
    %3844 = vmatpush1.msra.mxu0 %v1156
    %3845 = vmatprep.subr.mxu0 %v1166
    %3846 = vmatpush1.msra.mxu0 %v1165
    %3847 = vmatprep.subr.mxu0 %v1175
    %3848 = vmatpush1.msra.mxu0 %v1174
    %3849 = vmatprep.subr.mxu0 %v1184
    %3850 = vmatpush1.msra.mxu0 %v1183
    %3851 = vmatprep.subr.mxu0 %v1193
    %3852 = vmatpush1.msra.mxu0 %v1192
    %3853 = vmatprep.subr.mxu0 %v1202
    %3854 = vmatpush1.msra.mxu0 %v1201
    %3855 = vmatprep.subr.mxu0 %v1211
    %3856 = vmatpush1.msra.mxu0 %v1210
    %3857 = vmatprep.subr.mxu0 %v1220
    %3858 = vmatpush1.msra.mxu0 %v1219
    %3859 = vmatprep.subr.mxu0 %v1229
    %3860 = vmatpush1.msra.mxu0 %v1228
    %3861 = vmatprep.subr.mxu0 %v1238
    %3862 = vmatpush1.msra.mxu0 %v1237
    %3863 = vmatprep.subr.mxu0 %v1247
    %3864 = vmatpush1.msra.mxu0 %v1246
    %3865 = vmatprep.mubr.f32.mxu0 %v90
    %3866 = vmatmul.mubr.f32.gmra.mrb[0].mxu0 %v89
    %v3867 = vpop.f32.mrb[0].mxu0
    %v3868 = vadd.f32 %v3797, %v3867
    %v3869 = vpop.f32.mrb[0].mxu0
    %v3870 = vadd.f32 %v3799, %v3869
    %3871 = vdwg.mxu0
    %3872 = vmatprep.subr.mxu0 %v1256
    %3873 = vmatpush1.msra.mxu0 %v1255
    %3874 = vmatprep.subr.mxu0 %v1265
    %3875 = vmatpush1.msra.mxu0 %v1264
    %3876 = vmatprep.subr.mxu0 %v1274
    %3877 = vmatpush1.msra.mxu0 %v1273
    %3878 = vmatprep.subr.mxu0 %v1283
    %3879 = vmatpush1.msra.mxu0 %v1282
    %3880 = vmatprep.subr.mxu0 %v1292
    %3881 = vmatpush1.msra.mxu0 %v1291
    %3882 = vmatprep.subr.mxu0 %v1301
    %3883 = vmatpush1.msra.mxu0 %v1300
    %3884 = vmatprep.subr.mxu0 %v1310
    %3885 = vmatpush1.msra.mxu0 %v1309
    %3886 = vmatprep.subr.mxu0 %v1319
    %3887 = vmatpush1.msra.mxu0 %v1318
    %3888 = vmatprep.subr.mxu0 %v1328
    %3889 = vmatpush1.msra.mxu0 %v1327
    %3890 = vmatprep.subr.mxu0 %v1337
    %3891 = vmatpush1.msra.mxu0 %v1336
    %3892 = vmatprep.subr.mxu0 %v1346
    %3893 = vmatpush1.msra.mxu0 %v1345
    %3894 = vmatprep.subr.mxu0 %v1355
    %3895 = vmatpush1.msra.mxu0 %v1354
    %3896 = vmatprep.subr.mxu0 %v1364
    %3897 = vmatpush1.msra.mxu0 %v1363
    %3898 = vmatprep.subr.mxu0 %v1373
    %3899 = vmatpush1.msra.mxu0 %v1372
    %3900 = vmatprep.subr.mxu0 %v1382
    %3901 = vmatpush1.msra.mxu0 %v1381
    %3902 = vmatprep.subr.mxu0 %v1391
    %3903 = vmatpush1.msra.mxu0 %v1390
    %3904 = vmatprep.subr.mxu0 %v1400
    %3905 = vmatpush1.msra.mxu0 %v1399
    %3906 = vmatprep.subr.mxu0 %v1409
    %3907 = vmatpush1.msra.mxu0 %v1408
    %3908 = vmatprep.subr.mxu0 %v1418
    %3909 = vmatpush1.msra.mxu0 %v1417
    %3910 = vmatprep.subr.mxu0 %v1427
    %3911 = vmatpush1.msra.mxu0 %v1426
    %3912 = vmatprep.subr.mxu0 %v1436
    %3913 = vmatpush1.msra.mxu0 %v1435
    %3914 = vmatprep.subr.mxu0 %v1445
    %3915 = vmatpush1.msra.mxu0 %v1444
    %3916 = vmatprep.subr.mxu0 %v1454
    %3917 = vmatpush1.msra.mxu0 %v1453
    %3918 = vmatprep.subr.mxu0 %v1463
    %3919 = vmatpush1.msra.mxu0 %v1462
    %3920 = vmatprep.subr.mxu0 %v1472
    %3921 = vmatpush1.msra.mxu0 %v1471
    %3922 = vmatprep.subr.mxu0 %v1481
    %3923 = vmatpush1.msra.mxu0 %v1480
    %3924 = vmatprep.subr.mxu0 %v1490
    %3925 = vmatpush1.msra.mxu0 %v1489
    %3926 = vmatprep.subr.mxu0 %v1499
    %3927 = vmatpush1.msra.mxu0 %v1498
    %3928 = vmatprep.subr.mxu0 %v1508
    %3929 = vmatpush1.msra.mxu0 %v1507
    %3930 = vmatprep.subr.mxu0 %v1517
    %3931 = vmatpush1.msra.mxu0 %v1516
    %3932 = vmatprep.subr.mxu0 %v1526
    %3933 = vmatpush1.msra.mxu0 %v1525
    %3934 = vmatprep.subr.mxu0 %v1535
    %3935 = vmatpush1.msra.mxu0 %v1534
    %3936 = vmatprep.mubr.f32.mxu0 %v92
    %3937 = vmatmul.mubr.f32.gmra.mrb[0].mxu0 %v91
    %v3938 = vpop.f32.mrb[0].mxu0
    %v3939 = vadd.f32 %v3868, %v3938
    %v3940 = vpop.f32.mrb[0].mxu0
    %v3941 = vadd.f32 %v3870, %v3940
    %3942 = vdwg.mxu0
    %3943 = vmatprep.subr.mxu0 %v1544
    %3944 = vmatpush1.msra.mxu0 %v1543
    %3945 = vmatprep.subr.mxu0 %v1553
    %3946 = vmatpush1.msra.mxu0 %v1552
    %3947 = vmatprep.subr.mxu0 %v1562
    %3948 = vmatpush1.msra.mxu0 %v1561
    %3949 = vmatprep.subr.mxu0 %v1571
    %3950 = vmatpush1.msra.mxu0 %v1570
    %3951 = vmatprep.subr.mxu0 %v1580
    %3952 = vmatpush1.msra.mxu0 %v1579
    %3953 = vmatprep.subr.mxu0 %v1589
    %3954 = vmatpush1.msra.mxu0 %v1588
    %3955 = vmatprep.subr.mxu0 %v1598
    %3956 = vmatpush1.msra.mxu0 %v1597
    %3957 = vmatprep.subr.mxu0 %v1607
    %3958 = vmatpush1.msra.mxu0 %v1606
    %3959 = vmatprep.subr.mxu0 %v1616
    %3960 = vmatpush1.msra.mxu0 %v1615
    %3961 = vmatprep.subr.mxu0 %v1625
    %3962 = vmatpush1.msra.mxu0 %v1624
    %3963 = vmatprep.subr.mxu0 %v1634
    %3964 = vmatpush1.msra.mxu0 %v1633
    %3965 = vmatprep.subr.mxu0 %v1643
    %3966 = vmatpush1.msra.mxu0 %v1642
    %3967 = vmatprep.subr.mxu0 %v1652
    %3968 = vmatpush1.msra.mxu0 %v1651
    %3969 = vmatprep.subr.mxu0 %v1661
    %3970 = vmatpush1.msra.mxu0 %v1660
    %3971 = vmatprep.subr.mxu0 %v1670
    %3972 = vmatpush1.msra.mxu0 %v1669
    %3973 = vmatprep.subr.mxu0 %v1679
    %3974 = vmatpush1.msra.mxu0 %v1678
    %3975 = vmatprep.subr.mxu0 %v1688
    %3976 = vmatpush1.msra.mxu0 %v1687
    %3977 = vmatprep.subr.mxu0 %v1697
    %3978 = vmatpush1.msra.mxu0 %v1696
    %3979 = vmatprep.subr.mxu0 %v1706
    %3980 = vmatpush1.msra.mxu0 %v1705
    %3981 = vmatprep.subr.mxu0 %v1715
    %3982 = vmatpush1.msra.mxu0 %v1714
    %3983 = vmatprep.subr.mxu0 %v1724
    %3984 = vmatpush1.msra.mxu0 %v1723
    %3985 = vmatprep.subr.mxu0 %v1733
    %3986 = vmatpush1.msra.mxu0 %v1732
    %3987 = vmatprep.subr.mxu0 %v1742
    %3988 = vmatpush1.msra.mxu0 %v1741
    %3989 = vmatprep.subr.mxu0 %v1751
    %3990 = vmatpush1.msra.mxu0 %v1750
    %3991 = vmatprep.subr.mxu0 %v1760
    %3992 = vmatpush1.msra.mxu0 %v1759
    %3993 = vmatprep.subr.mxu0 %v1769
    %3994 = vmatpush1.msra.mxu0 %v1768
    %3995 = vmatprep.subr.mxu0 %v1778
    %3996 = vmatpush1.msra.mxu0 %v1777
    %3997 = vmatprep.subr.mxu0 %v1787
    %3998 = vmatpush1.msra.mxu0 %v1786
    %3999 = vmatprep.subr.mxu0 %v1796
    %4000 = vmatpush1.msra.mxu0 %v1795
    %4001 = vmatprep.subr.mxu0 %v1805
    %4002 = vmatpush1.msra.mxu0 %v1804
    %4003 = vmatprep.subr.mxu0 %v1814
    %4004 = vmatpush1.msra.mxu0 %v1813
    %4005 = vmatprep.subr.mxu0 %v1823
    %4006 = vmatpush1.msra.mxu0 %v1822
    %4007 = vmatprep.mubr.f32.mxu0 %v94
    %4008 = vmatmul.mubr.f32.gmra.mrb[0].mxu0 %v93
    %v4009 = vpop.f32.mrb[0].mxu0
    %v4010 = vadd.f32 %v3939, %v4009
    %v4011 = vpop.f32.mrb[0].mxu0
    %v4012 = vadd.f32 %v3941, %v4011
    %4013 = vdwg.mxu0
    %4014 = vmatprep.subr.mxu0 %v1832
    %4015 = vmatpush1.msra.mxu0 %v1831
    %4016 = vmatprep.subr.mxu0 %v1841
    %4017 = vmatpush1.msra.mxu0 %v1840
    %4018 = vmatprep.subr.mxu0 %v1850
    %4019 = vmatpush1.msra.mxu0 %v1849
    %4020 = vmatprep.subr.mxu0 %v1859
    %4021 = vmatpush1.msra.mxu0 %v1858
    %4022 = vmatprep.subr.mxu0 %v1868
    %4023 = vmatpush1.msra.mxu0 %v1867
    %4024 = vmatprep.subr.mxu0 %v1877
    %4025 = vmatpush1.msra.mxu0 %v1876
    %4026 = vmatprep.subr.mxu0 %v1886
    %4027 = vmatpush1.msra.mxu0 %v1885
    %4028 = vmatprep.subr.mxu0 %v1895
    %4029 = vmatpush1.msra.mxu0 %v1894
    %4030 = vmatprep.subr.mxu0 %v1904
    %4031 = vmatpush1.msra.mxu0 %v1903
    %4032 = vmatprep.subr.mxu0 %v1913
    %4033 = vmatpush1.msra.mxu0 %v1912
    %4034 = vmatprep.subr.mxu0 %v1922
    %4035 = vmatpush1.msra.mxu0 %v1921
    %4036 = vmatprep.subr.mxu0 %v1931
    %4037 = vmatpush1.msra.mxu0 %v1930
    %4038 = vmatprep.subr.mxu0 %v1940
    %4039 = vmatpush1.msra.mxu0 %v1939
    %4040 = vmatprep.subr.mxu0 %v1949
    %4041 = vmatpush1.msra.mxu0 %v1948
    %4042 = vmatprep.subr.mxu0 %v1958
    %4043 = vmatpush1.msra.mxu0 %v1957
    %4044 = vmatprep.subr.mxu0 %v1967
    %4045 = vmatpush1.msra.mxu0 %v1966
    %4046 = vmatprep.subr.mxu0 %v1976
    %4047 = vmatpush1.msra.mxu0 %v1975
    %4048 = vmatprep.subr.mxu0 %v1985
    %4049 = vmatpush1.msra.mxu0 %v1984
    %4050 = vmatprep.subr.mxu0 %v1994
    %4051 = vmatpush1.msra.mxu0 %v1993
    %4052 = vmatprep.subr.mxu0 %v2003
    %4053 = vmatpush1.msra.mxu0 %v2002
    %4054 = vmatprep.subr.mxu0 %v2012
    %4055 = vmatpush1.msra.mxu0 %v2011
    %4056 = vmatprep.subr.mxu0 %v2021
    %4057 = vmatpush1.msra.mxu0 %v2020
    %4058 = vmatprep.subr.mxu0 %v2030
    %4059 = vmatpush1.msra.mxu0 %v2029
    %4060 = vmatprep.subr.mxu0 %v2039
    %4061 = vmatpush1.msra.mxu0 %v2038
    %4062 = vmatprep.subr.mxu0 %v2048
    %4063 = vmatpush1.msra.mxu0 %v2047
    %4064 = vmatprep.subr.mxu0 %v2057
    %4065 = vmatpush1.msra.mxu0 %v2056
    %4066 = vmatprep.subr.mxu0 %v2066
    %4067 = vmatpush1.msra.mxu0 %v2065
    %4068 = vmatprep.subr.mxu0 %v2075
    %4069 = vmatpush1.msra.mxu0 %v2074
    %4070 = vmatprep.subr.mxu0 %v2084
    %4071 = vmatpush1.msra.mxu0 %v2083
    %4072 = vmatprep.subr.mxu0 %v2093
    %4073 = vmatpush1.msra.mxu0 %v2092
    %4074 = vmatprep.subr.mxu0 %v2102
    %4075 = vmatpush1.msra.mxu0 %v2101
    %4076 = vmatprep.subr.mxu0 %v2111
    %4077 = vmatpush1.msra.mxu0 %v2110
    %4078 = vmatprep.mubr.f32.mxu0 %v96
    %4079 = vmatmul.mubr.f32.gmra.mrb[0].mxu0 %v95
    %v4080 = vpop.f32.mrb[0].mxu0
    %v4081 = vadd.f32 %v4010, %v4080
    %v4082 = vpop.f32.mrb[0].mxu0
    %v4083 = vadd.f32 %v4012, %v4082
    %4084 = vdwg.mxu0
    %4085 = vmatprep.subr.mxu0 %v2120
    %4086 = vmatpush1.msra.mxu0 %v2119
    %4087 = vmatprep.subr.mxu0 %v2129
    %4088 = vmatpush1.msra.mxu0 %v2128
    %4089 = vmatprep.subr.mxu0 %v2138
    %4090 = vmatpush1.msra.mxu0 %v2137
    %4091 = vmatprep.subr.mxu0 %v2147
    %4092 = vmatpush1.msra.mxu0 %v2146
    %4093 = vmatprep.subr.mxu0 %v2156
    %4094 = vmatpush1.msra.mxu0 %v2155
    %4095 = vmatprep.subr.mxu0 %v2165
    %4096 = vmatpush1.msra.mxu0 %v2164
    %4097 = vmatprep.subr.mxu0 %v2174
    %4098 = vmatpush1.msra.mxu0 %v2173
    %4099 = vmatprep.subr.mxu0 %v2183
    %4100 = vmatpush1.msra.mxu0 %v2182
    %4101 = vmatprep.subr.mxu0 %v2192
    %4102 = vmatpush1.msra.mxu0 %v2191
    %4103 = vmatprep.subr.mxu0 %v2201
    %4104 = vmatpush1.msra.mxu0 %v2200
    %4105 = vmatprep.subr.mxu0 %v2210
    %4106 = vmatpush1.msra.mxu0 %v2209
    %4107 = vmatprep.subr.mxu0 %v2219
    %4108 = vmatpush1.msra.mxu0 %v2218
    %4109 = vmatprep.subr.mxu0 %v2228
    %4110 = vmatpush1.msra.mxu0 %v2227
    %4111 = vmatprep.subr.mxu0 %v2237
    %4112 = vmatpush1.msra.mxu0 %v2236
    %4113 = vmatprep.subr.mxu0 %v2246
    %4114 = vmatpush1.msra.mxu0 %v2245
    %4115 = vmatprep.subr.mxu0 %v2255
    %4116 = vmatpush1.msra.mxu0 %v2254
    %4117 = vmatprep.subr.mxu0 %v2264
    %4118 = vmatpush1.msra.mxu0 %v2263
    %4119 = vmatprep.subr.mxu0 %v2273
    %4120 = vmatpush1.msra.mxu0 %v2272
    %4121 = vmatprep.subr.mxu0 %v2282
    %4122 = vmatpush1.msra.mxu0 %v2281
    %4123 = vmatprep.subr.mxu0 %v2291
    %4124 = vmatpush1.msra.mxu0 %v2290
    %4125 = vmatprep.subr.mxu0 %v2300
    %4126 = vmatpush1.msra.mxu0 %v2299
    %4127 = vmatprep.subr.mxu0 %v2309
    %4128 = vmatpush1.msra.mxu0 %v2308
    %4129 = vmatprep.subr.mxu0 %v2318
    %4130 = vmatpush1.msra.mxu0 %v2317
    %4131 = vmatprep.subr.mxu0 %v2327
    %4132 = vmatpush1.msra.mxu0 %v2326
    %4133 = vmatprep.subr.mxu0 %v2336
    %4134 = vmatpush1.msra.mxu0 %v2335
    %4135 = vmatprep.subr.mxu0 %v2345
    %4136 = vmatpush1.msra.mxu0 %v2344
    %4137 = vmatprep.subr.mxu0 %v2354
    %4138 = vmatpush1.msra.mxu0 %v2353
    %4139 = vmatprep.subr.mxu0 %v2363
    %4140 = vmatpush1.msra.mxu0 %v2362
    %4141 = vmatprep.subr.mxu0 %v2372
    %4142 = vmatpush1.msra.mxu0 %v2371
    %4143 = vmatprep.subr.mxu0 %v2381
    %4144 = vmatpush1.msra.mxu0 %v2380
    %4145 = vmatprep.subr.mxu0 %v2390
    %4146 = vmatpush1.msra.mxu0 %v2389
    %4147 = vmatprep.subr.mxu0 %v2399
    %4148 = vmatpush1.msra.mxu0 %v2398
    %4149 = vmatprep.mubr.f32.mxu0 %v98
    %4150 = vmatmul.mubr.f32.gmra.mrb[0].mxu0 %v97
    %v4151 = vpop.f32.mrb[0].mxu0
    %v4152 = vadd.f32 %v4081, %v4151
    %v4153 = vpop.f32.mrb[0].mxu0
    %v4154 = vadd.f32 %v4083, %v4153
    %4155 = vdwg.mxu0
    %4156 = vmatprep.subr.mxu0 %v106
    %4157 = vmatpush1.msra.mxu0 %v105
    %4158 = vmatprep.subr.mxu0 %v115
    %4159 = vmatpush1.msra.mxu0 %v114
    %4160 = vmatprep.subr.mxu0 %v124
    %4161 = vmatpush1.msra.mxu0 %v123
    %4162 = vmatprep.subr.mxu0 %v133
    %4163 = vmatpush1.msra.mxu0 %v132
    %4164 = vmatprep.subr.mxu0 %v142
    %4165 = vmatpush1.msra.mxu0 %v141
    %4166 = vmatprep.subr.mxu0 %v151
    %4167 = vmatpush1.msra.mxu0 %v150
    %4168 = vmatprep.subr.mxu0 %v160
    %4169 = vmatpush1.msra.mxu0 %v159
    %4170 = vmatprep.subr.mxu0 %v169
    %4171 = vmatpush1.msra.mxu0 %v168
    %4172 = vmatprep.subr.mxu0 %v178
    %4173 = vmatpush1.msra.mxu0 %v177
    %4174 = vmatprep.subr.mxu0 %v187
    %4175 = vmatpush1.msra.mxu0 %v186
    %4176 = vmatprep.subr.mxu0 %v196
    %4177 = vmatpush1.msra.mxu0 %v195
    %4178 = vmatprep.subr.mxu0 %v205
    %4179 = vmatpush1.msra.mxu0 %v204
    %4180 = vmatprep.subr.mxu0 %v214
    %4181 = vmatpush1.msra.mxu0 %v213
    %4182 = vmatprep.subr.mxu0 %v223
    %4183 = vmatpush1.msra.mxu0 %v222
    %4184 = vmatprep.subr.mxu0 %v232
    %4185 = vmatpush1.msra.mxu0 %v231
    %4186 = vmatprep.subr.mxu0 %v241
    %4187 = vmatpush1.msra.mxu0 %v240
    %4188 = vmatprep.subr.mxu0 %v250
    %4189 = vmatpush1.msra.mxu0 %v249
    %4190 = vmatprep.subr.mxu0 %v259
    %4191 = vmatpush1.msra.mxu0 %v258
    %4192 = vmatprep.subr.mxu0 %v268
    %4193 = vmatpush1.msra.mxu0 %v267
    %4194 = vmatprep.subr.mxu0 %v277
    %4195 = vmatpush1.msra.mxu0 %v276
    %4196 = vmatprep.subr.mxu0 %v286
    %4197 = vmatpush1.msra.mxu0 %v285
    %4198 = vmatprep.subr.mxu0 %v295
    %4199 = vmatpush1.msra.mxu0 %v294
    %4200 = vmatprep.subr.mxu0 %v304
    %4201 = vmatpush1.msra.mxu0 %v303
    %4202 = vmatprep.subr.mxu0 %v313
    %4203 = vmatpush1.msra.mxu0 %v312
    %4204 = vmatprep.subr.mxu0 %v322
    %4205 = vmatpush1.msra.mxu0 %v321
    %4206 = vmatprep.subr.mxu0 %v331
    %4207 = vmatpush1.msra.mxu0 %v330
    %4208 = vmatprep.subr.mxu0 %v340
    %4209 = vmatpush1.msra.mxu0 %v339
    %4210 = vmatprep.subr.mxu0 %v349
    %4211 = vmatpush1.msra.mxu0 %v348
    %4212 = vmatprep.subr.mxu0 %v358
    %4213 = vmatpush1.msra.mxu0 %v357
    %4214 = vmatprep.subr.mxu0 %v367
    %4215 = vmatpush1.msra.mxu0 %v366
    %4216 = vmatprep.subr.mxu0 %v376
    %4217 = vmatpush1.msra.mxu0 %v375
    %4218 = vmatprep.subr.mxu0 %v385
    %4219 = vmatpush1.msra.mxu0 %v384
    %4220 = vmatprep.mubr.f32.mxu0 %v84
    %4221 = vmatmul.mubr.f32.gmra.mrb[0].mxu0 %v83
    %v4222 = vpop.f32.mrb[0].mxu0
    %v4223 = vadd.f32 %v2434, %v4222
    %v4224 = vpop.f32.mrb[0].mxu0
    %v4225 = vadd.f32 %v2438, %v4224
    %4226 = vdwg.mxu0
    %4227 = vmatprep.subr.mxu0 %v394
    %4228 = vmatpush1.msra.mxu0 %v393
    %4229 = vmatprep.subr.mxu0 %v403
    %4230 = vmatpush1.msra.mxu0 %v402
    %4231 = vmatprep.subr.mxu0 %v412
    %4232 = vmatpush1.msra.mxu0 %v411
    %4233 = vmatprep.subr.mxu0 %v421
    %4234 = vmatpush1.msra.mxu0 %v420
    %4235 = vmatprep.subr.mxu0 %v430
    %4236 = vmatpush1.msra.mxu0 %v429
    %4237 = vmatprep.subr.mxu0 %v439
    %4238 = vmatpush1.msra.mxu0 %v438
    %4239 = vmatprep.subr.mxu0 %v448
    %4240 = vmatpush1.msra.mxu0 %v447
    %4241 = vmatprep.subr.mxu0 %v457
    %4242 = vmatpush1.msra.mxu0 %v456
    %4243 = vmatprep.subr.mxu0 %v466
    %4244 = vmatpush1.msra.mxu0 %v465
    %4245 = vmatprep.subr.mxu0 %v475
    %4246 = vmatpush1.msra.mxu0 %v474
    %4247 = vmatprep.subr.mxu0 %v484
    %4248 = vmatpush1.msra.mxu0 %v483
    %4249 = vmatprep.subr.mxu0 %v493
    %4250 = vmatpush1.msra.mxu0 %v492
    %4251 = vmatprep.subr.mxu0 %v502
    %4252 = vmatpush1.msra.mxu0 %v501
    %4253 = vmatprep.subr.mxu0 %v511
    %4254 = vmatpush1.msra.mxu0 %v510
    %4255 = vmatprep.subr.mxu0 %v520
    %4256 = vmatpush1.msra.mxu0 %v519
    %4257 = vmatprep.subr.mxu0 %v529
    %4258 = vmatpush1.msra.mxu0 %v528
    %4259 = vmatprep.subr.mxu0 %v538
    %4260 = vmatpush1.msra.mxu0 %v537
    %4261 = vmatprep.subr.mxu0 %v547
    %4262 = vmatpush1.msra.mxu0 %v546
    %4263 = vmatprep.subr.mxu0 %v556
    %4264 = vmatpush1.msra.mxu0 %v555
    %4265 = vmatprep.subr.mxu0 %v565
    %4266 = vmatpush1.msra.mxu0 %v564
    %4267 = vmatprep.subr.mxu0 %v574
    %4268 = vmatpush1.msra.mxu0 %v573
    %4269 = vmatprep.subr.mxu0 %v583
    %4270 = vmatpush1.msra.mxu0 %v582
    %4271 = vmatprep.subr.mxu0 %v592
    %4272 = vmatpush1.msra.mxu0 %v591
    %4273 = vmatprep.subr.mxu0 %v601
    %4274 = vmatpush1.msra.mxu0 %v600
    %4275 = vmatprep.subr.mxu0 %v610
    %4276 = vmatpush1.msra.mxu0 %v609
    %4277 = vmatprep.subr.mxu0 %v619
    %4278 = vmatpush1.msra.mxu0 %v618
    %4279 = vmatprep.subr.mxu0 %v628
    %4280 = vmatpush1.msra.mxu0 %v627
    %4281 = vmatprep.subr.mxu0 %v637
    %4282 = vmatpush1.msra.mxu0 %v636
    %4283 = vmatprep.subr.mxu0 %v646
    %4284 = vmatpush1.msra.mxu0 %v645
    %4285 = vmatprep.subr.mxu0 %v655
    %4286 = vmatpush1.msra.mxu0 %v654
    %4287 = vmatprep.subr.mxu0 %v664
    %4288 = vmatpush1.msra.mxu0 %v663
    %4289 = vmatprep.subr.mxu0 %v673
    %4290 = vmatpush1.msra.mxu0 %v672
    %4291 = vmatprep.mubr.f32.mxu0 %v86
    %4292 = vmatmul.mubr.f32.gmra.mrb[0].mxu0 %v85
    %v4293 = vpop.f32.mrb[0].mxu0
    %v4294 = vadd.f32 %v4223, %v4293
    %v4295 = vpop.f32.mrb[0].mxu0
    %v4296 = vadd.f32 %v4225, %v4295
    %4297 = vdwg.mxu0
    %4298 = vmatprep.subr.mxu0 %v682
    %4299 = vmatpush1.msra.mxu0 %v681
    %4300 = vmatprep.subr.mxu0 %v691
    %4301 = vmatpush1.msra.mxu0 %v690
    %4302 = vmatprep.subr.mxu0 %v700
    %4303 = vmatpush1.msra.mxu0 %v699
    %4304 = vmatprep.subr.mxu0 %v709
    %4305 = vmatpush1.msra.mxu0 %v708
    %4306 = vmatprep.subr.mxu0 %v718
    %4307 = vmatpush1.msra.mxu0 %v717
    %4308 = vmatprep.subr.mxu0 %v727
    %4309 = vmatpush1.msra.mxu0 %v726
    %4310 = vmatprep.subr.mxu0 %v736
    %4311 = vmatpush1.msra.mxu0 %v735
    %4312 = vmatprep.subr.mxu0 %v745
    %4313 = vmatpush1.msra.mxu0 %v744
    %4314 = vmatprep.subr.mxu0 %v754
    %4315 = vmatpush1.msra.mxu0 %v753
    %4316 = vmatprep.subr.mxu0 %v763
    %4317 = vmatpush1.msra.mxu0 %v762
    %4318 = vmatprep.subr.mxu0 %v772
    %4319 = vmatpush1.msra.mxu0 %v771
    %4320 = vmatprep.subr.mxu0 %v781
    %4321 = vmatpush1.msra.mxu0 %v780
    %4322 = vmatprep.subr.mxu0 %v790
    %4323 = vmatpush1.msra.mxu0 %v789
    %4324 = vmatprep.subr.mxu0 %v799
    %4325 = vmatpush1.msra.mxu0 %v798
    %4326 = vmatprep.subr.mxu0 %v808
    %4327 = vmatpush1.msra.mxu0 %v807
    %4328 = vmatprep.subr.mxu0 %v817
    %4329 = vmatpush1.msra.mxu0 %v816
    %4330 = vmatprep.subr.mxu0 %v826
    %4331 = vmatpush1.msra.mxu0 %v825
    %4332 = vmatprep.subr.mxu0 %v835
    %4333 = vmatpush1.msra.mxu0 %v834
    %4334 = vmatprep.subr.mxu0 %v844
    %4335 = vmatpush1.msra.mxu0 %v843
    %4336 = vmatprep.subr.mxu0 %v853
    %4337 = vmatpush1.msra.mxu0 %v852
    %4338 = vmatprep.subr.mxu0 %v862
    %4339 = vmatpush1.msra.mxu0 %v861
    %4340 = vmatprep.subr.mxu0 %v871
    %4341 = vmatpush1.msra.mxu0 %v870
    %4342 = vmatprep.subr.mxu0 %v880
    %4343 = vmatpush1.msra.mxu0 %v879
    %4344 = vmatprep.subr.mxu0 %v889
    %4345 = vmatpush1.msra.mxu0 %v888
    %4346 = vmatprep.subr.mxu0 %v898
    %4347 = vmatpush1.msra.mxu0 %v897
    %4348 = vmatprep.subr.mxu0 %v907
    %4349 = vmatpush1.msra.mxu0 %v906
    %4350 = vmatprep.subr.mxu0 %v916
    %4351 = vmatpush1.msra.mxu0 %v915
    %4352 = vmatprep.subr.mxu0 %v925
    %4353 = vmatpush1.msra.mxu0 %v924
    %4354 = vmatprep.subr.mxu0 %v934
    %4355 = vmatpush1.msra.mxu0 %v933
    %4356 = vmatprep.subr.mxu0 %v943
    %4357 = vmatpush1.msra.mxu0 %v942
    %4358 = vmatprep.subr.mxu0 %v952
    %4359 = vmatpush1.msra.mxu0 %v951
    %4360 = vmatprep.subr.mxu0 %v961
    %4361 = vmatpush1.msra.mxu0 %v960
    %4362 = vmatprep.mubr.f32.mxu0 %v88
    %4363 = vmatmul.mubr.f32.gmra.mrb[0].mxu0 %v87
    %v4364 = vpop.f32.mrb[0].mxu0
    %v4365 = vadd.f32 %v4294, %v4364
    %v4366 = vpop.f32.mrb[0].mxu0
    %v4367 = vadd.f32 %v4296, %v4366
    %4368 = vdwg.mxu0
    %4369 = vmatprep.subr.mxu0 %v970
    %4370 = vmatpush1.msra.mxu0 %v969
    %4371 = vmatprep.subr.mxu0 %v979
    %4372 = vmatpush1.msra.mxu0 %v978
    %4373 = vmatprep.subr.mxu0 %v988
    %4374 = vmatpush1.msra.mxu0 %v987
    %4375 = vmatprep.subr.mxu0 %v997
    %4376 = vmatpush1.msra.mxu0 %v996
    %4377 = vmatprep.subr.mxu0 %v1006
    %4378 = vmatpush1.msra.mxu0 %v1005
    %4379 = vmatprep.subr.mxu0 %v1015
    %4380 = vmatpush1.msra.mxu0 %v1014
    %4381 = vmatprep.subr.mxu0 %v1024
    %4382 = vmatpush1.msra.mxu0 %v1023
    %4383 = vmatprep.subr.mxu0 %v1033
    %4384 = vmatpush1.msra.mxu0 %v1032
    %4385 = vmatprep.subr.mxu0 %v1042
    %4386 = vmatpush1.msra.mxu0 %v1041
    %4387 = vmatprep.subr.mxu0 %v1051
    %4388 = vmatpush1.msra.mxu0 %v1050
    %4389 = vmatprep.subr.mxu0 %v1060
    %4390 = vmatpush1.msra.mxu0 %v1059
    %4391 = vmatprep.subr.mxu0 %v1069
    %4392 = vmatpush1.msra.mxu0 %v1068
    %4393 = vmatprep.subr.mxu0 %v1078
    %4394 = vmatpush1.msra.mxu0 %v1077
    %4395 = vmatprep.subr.mxu0 %v1087
    %4396 = vmatpush1.msra.mxu0 %v1086
    %4397 = vmatprep.subr.mxu0 %v1096
    %4398 = vmatpush1.msra.mxu0 %v1095
    %4399 = vmatprep.subr.mxu0 %v1105
    %4400 = vmatpush1.msra.mxu0 %v1104
    %4401 = vmatprep.subr.mxu0 %v1114
    %4402 = vmatpush1.msra.mxu0 %v1113
    %4403 = vmatprep.subr.mxu0 %v1123
    %4404 = vmatpush1.msra.mxu0 %v1122
    %4405 = vmatprep.subr.mxu0 %v1132
    %4406 = vmatpush1.msra.mxu0 %v1131
    %4407 = vmatprep.subr.mxu0 %v1141
    %4408 = vmatpush1.msra.mxu0 %v1140
    %4409 = vmatprep.subr.mxu0 %v1150
    %4410 = vmatpush1.msra.mxu0 %v1149
    %4411 = vmatprep.subr.mxu0 %v1159
    %4412 = vmatpush1.msra.mxu0 %v1158
    %4413 = vmatprep.subr.mxu0 %v1168
    %4414 = vmatpush1.msra.mxu0 %v1167
    %4415 = vmatprep.subr.mxu0 %v1177
    %4416 = vmatpush1.msra.mxu0 %v1176
    %4417 = vmatprep.subr.mxu0 %v1186
    %4418 = vmatpush1.msra.mxu0 %v1185
    %4419 = vmatprep.subr.mxu0 %v1195
    %4420 = vmatpush1.msra.mxu0 %v1194
    %4421 = vmatprep.subr.mxu0 %v1204
    %4422 = vmatpush1.msra.mxu0 %v1203
    %4423 = vmatprep.subr.mxu0 %v1213
    %4424 = vmatpush1.msra.mxu0 %v1212
    %4425 = vmatprep.subr.mxu0 %v1222
    %4426 = vmatpush1.msra.mxu0 %v1221
    %4427 = vmatprep.subr.mxu0 %v1231
    %4428 = vmatpush1.msra.mxu0 %v1230
    %4429 = vmatprep.subr.mxu0 %v1240
    %4430 = vmatpush1.msra.mxu0 %v1239
    %4431 = vmatprep.subr.mxu0 %v1249
    %4432 = vmatpush1.msra.mxu0 %v1248
    %4433 = vmatprep.mubr.f32.mxu0 %v90
    %4434 = vmatmul.mubr.f32.gmra.mrb[0].mxu0 %v89
    %v4435 = vpop.f32.mrb[0].mxu0
    %v4436 = vadd.f32 %v4365, %v4435
    %v4437 = vpop.f32.mrb[0].mxu0
    %v4438 = vadd.f32 %v4367, %v4437
    %4439 = vdwg.mxu0
    %4440 = vmatprep.subr.mxu0 %v1258
    %4441 = vmatpush1.msra.mxu0 %v1257
    %4442 = vmatprep.subr.mxu0 %v1267
    %4443 = vmatpush1.msra.mxu0 %v1266
    %4444 = vmatprep.subr.mxu0 %v1276
    %4445 = vmatpush1.msra.mxu0 %v1275
    %4446 = vmatprep.subr.mxu0 %v1285
    %4447 = vmatpush1.msra.mxu0 %v1284
    %4448 = vmatprep.subr.mxu0 %v1294
    %4449 = vmatpush1.msra.mxu0 %v1293
    %4450 = vmatprep.subr.mxu0 %v1303
    %4451 = vmatpush1.msra.mxu0 %v1302
    %4452 = vmatprep.subr.mxu0 %v1312
    %4453 = vmatpush1.msra.mxu0 %v1311
    %4454 = vmatprep.subr.mxu0 %v1321
    %4455 = vmatpush1.msra.mxu0 %v1320
    %4456 = vmatprep.subr.mxu0 %v1330
    %4457 = vmatpush1.msra.mxu0 %v1329
    %4458 = vmatprep.subr.mxu0 %v1339
    %4459 = vmatpush1.msra.mxu0 %v1338
    %4460 = vmatprep.subr.mxu0 %v1348
    %4461 = vmatpush1.msra.mxu0 %v1347
    %4462 = vmatprep.subr.mxu0 %v1357
    %4463 = vmatpush1.msra.mxu0 %v1356
    %4464 = vmatprep.subr.mxu0 %v1366
    %4465 = vmatpush1.msra.mxu0 %v1365
    %4466 = vmatprep.subr.mxu0 %v1375
    %4467 = vmatpush1.msra.mxu0 %v1374
    %4468 = vmatprep.subr.mxu0 %v1384
    %4469 = vmatpush1.msra.mxu0 %v1383
    %4470 = vmatprep.subr.mxu0 %v1393
    %4471 = vmatpush1.msra.mxu0 %v1392
    %4472 = vmatprep.subr.mxu0 %v1402
    %4473 = vmatpush1.msra.mxu0 %v1401
    %4474 = vmatprep.subr.mxu0 %v1411
    %4475 = vmatpush1.msra.mxu0 %v1410
    %4476 = vmatprep.subr.mxu0 %v1420
    %4477 = vmatpush1.msra.mxu0 %v1419
    %4478 = vmatprep.subr.mxu0 %v1429
    %4479 = vmatpush1.msra.mxu0 %v1428
    %4480 = vmatprep.subr.mxu0 %v1438
    %4481 = vmatpush1.msra.mxu0 %v1437
    %4482 = vmatprep.subr.mxu0 %v1447
    %4483 = vmatpush1.msra.mxu0 %v1446
    %4484 = vmatprep.subr.mxu0 %v1456
    %4485 = vmatpush1.msra.mxu0 %v1455
    %4486 = vmatprep.subr.mxu0 %v1465
    %4487 = vmatpush1.msra.mxu0 %v1464
    %4488 = vmatprep.subr.mxu0 %v1474
    %4489 = vmatpush1.msra.mxu0 %v1473
    %4490 = vmatprep.subr.mxu0 %v1483
    %4491 = vmatpush1.msra.mxu0 %v1482
    %4492 = vmatprep.subr.mxu0 %v1492
    %4493 = vmatpush1.msra.mxu0 %v1491
    %4494 = vmatprep.subr.mxu0 %v1501
    %4495 = vmatpush1.msra.mxu0 %v1500
    %4496 = vmatprep.subr.mxu0 %v1510
    %4497 = vmatpush1.msra.mxu0 %v1509
    %4498 = vmatprep.subr.mxu0 %v1519
    %4499 = vmatpush1.msra.mxu0 %v1518
    %4500 = vmatprep.subr.mxu0 %v1528
    %4501 = vmatpush1.msra.mxu0 %v1527
    %4502 = vmatprep.subr.mxu0 %v1537
    %4503 = vmatpush1.msra.mxu0 %v1536
    %4504 = vmatprep.mubr.f32.mxu0 %v92
    %4505 = vmatmul.mubr.f32.gmra.mrb[0].mxu0 %v91
    %v4506 = vpop.f32.mrb[0].mxu0
    %v4507 = vadd.f32 %v4436, %v4506
    %v4508 = vpop.f32.mrb[0].mxu0
    %v4509 = vadd.f32 %v4438, %v4508
    %4510 = vdwg.mxu0
    %4511 = vmatprep.subr.mxu0 %v1546
    %4512 = vmatpush1.msra.mxu0 %v1545
    %4513 = vmatprep.subr.mxu0 %v1555
    %4514 = vmatpush1.msra.mxu0 %v1554
    %4515 = vmatprep.subr.mxu0 %v1564
    %4516 = vmatpush1.msra.mxu0 %v1563
    %4517 = vmatprep.subr.mxu0 %v1573
    %4518 = vmatpush1.msra.mxu0 %v1572
    %4519 = vmatprep.subr.mxu0 %v1582
    %4520 = vmatpush1.msra.mxu0 %v1581
    %4521 = vmatprep.subr.mxu0 %v1591
    %4522 = vmatpush1.msra.mxu0 %v1590
    %4523 = vmatprep.subr.mxu0 %v1600
    %4524 = vmatpush1.msra.mxu0 %v1599
    %4525 = vmatprep.subr.mxu0 %v1609
    %4526 = vmatpush1.msra.mxu0 %v1608
    %4527 = vmatprep.subr.mxu0 %v1618
    %4528 = vmatpush1.msra.mxu0 %v1617
    %4529 = vmatprep.subr.mxu0 %v1627
    %4530 = vmatpush1.msra.mxu0 %v1626
    %4531 = vmatprep.subr.mxu0 %v1636
    %4532 = vmatpush1.msra.mxu0 %v1635
    %4533 = vmatprep.subr.mxu0 %v1645
    %4534 = vmatpush1.msra.mxu0 %v1644
    %4535 = vmatprep.subr.mxu0 %v1654
    %4536 = vmatpush1.msra.mxu0 %v1653
    %4537 = vmatprep.subr.mxu0 %v1663
    %4538 = vmatpush1.msra.mxu0 %v1662
    %4539 = vmatprep.subr.mxu0 %v1672
    %4540 = vmatpush1.msra.mxu0 %v1671
    %4541 = vmatprep.subr.mxu0 %v1681
    %4542 = vmatpush1.msra.mxu0 %v1680
    %4543 = vmatprep.subr.mxu0 %v1690
    %4544 = vmatpush1.msra.mxu0 %v1689
    %4545 = vmatprep.subr.mxu0 %v1699
    %4546 = vmatpush1.msra.mxu0 %v1698
    %4547 = vmatprep.subr.mxu0 %v1708
    %4548 = vmatpush1.msra.mxu0 %v1707
    %4549 = vmatprep.subr.mxu0 %v1717
    %4550 = vmatpush1.msra.mxu0 %v1716
    %4551 = vmatprep.subr.mxu0 %v1726
    %4552 = vmatpush1.msra.mxu0 %v1725
    %4553 = vmatprep.subr.mxu0 %v1735
    %4554 = vmatpush1.msra.mxu0 %v1734
    %4555 = vmatprep.subr.mxu0 %v1744
    %4556 = vmatpush1.msra.mxu0 %v1743
    %4557 = vmatprep.subr.mxu0 %v1753
    %4558 = vmatpush1.msra.mxu0 %v1752
    %4559 = vmatprep.subr.mxu0 %v1762
    %4560 = vmatpush1.msra.mxu0 %v1761
    %4561 = vmatprep.subr.mxu0 %v1771
    %4562 = vmatpush1.msra.mxu0 %v1770
    %4563 = vmatprep.subr.mxu0 %v1780
    %4564 = vmatpush1.msra.mxu0 %v1779
    %4565 = vmatprep.subr.mxu0 %v1789
    %4566 = vmatpush1.msra.mxu0 %v1788
    %4567 = vmatprep.subr.mxu0 %v1798
    %4568 = vmatpush1.msra.mxu0 %v1797
    %4569 = vmatprep.subr.mxu0 %v1807
    %4570 = vmatpush1.msra.mxu0 %v1806
    %4571 = vmatprep.subr.mxu0 %v1816
    %4572 = vmatpush1.msra.mxu0 %v1815
    %4573 = vmatprep.subr.mxu0 %v1825
    %4574 = vmatpush1.msra.mxu0 %v1824
    %4575 = vmatprep.mubr.f32.mxu0 %v94
    %4576 = vmatmul.mubr.f32.gmra.mrb[0].mxu0 %v93
    %v4577 = vpop.f32.mrb[0].mxu0
    %v4578 = vadd.f32 %v4507, %v4577
    %v4579 = vpop.f32.mrb[0].mxu0
    %v4580 = vadd.f32 %v4509, %v4579
    %4581 = vdwg.mxu0
    %4582 = vmatprep.subr.mxu0 %v1834
    %4583 = vmatpush1.msra.mxu0 %v1833
    %4584 = vmatprep.subr.mxu0 %v1843
    %4585 = vmatpush1.msra.mxu0 %v1842
    %4586 = vmatprep.subr.mxu0 %v1852
    %4587 = vmatpush1.msra.mxu0 %v1851
    %4588 = vmatprep.subr.mxu0 %v1861
    %4589 = vmatpush1.msra.mxu0 %v1860
    %4590 = vmatprep.subr.mxu0 %v1870
    %4591 = vmatpush1.msra.mxu0 %v1869
    %4592 = vmatprep.subr.mxu0 %v1879
    %4593 = vmatpush1.msra.mxu0 %v1878
    %4594 = vmatprep.subr.mxu0 %v1888
    %4595 = vmatpush1.msra.mxu0 %v1887
    %4596 = vmatprep.subr.mxu0 %v1897
    %4597 = vmatpush1.msra.mxu0 %v1896
    %4598 = vmatprep.subr.mxu0 %v1906
    %4599 = vmatpush1.msra.mxu0 %v1905
    %4600 = vmatprep.subr.mxu0 %v1915
    %4601 = vmatpush1.msra.mxu0 %v1914
    %4602 = vmatprep.subr.mxu0 %v1924
    %4603 = vmatpush1.msra.mxu0 %v1923
    %4604 = vmatprep.subr.mxu0 %v1933
    %4605 = vmatpush1.msra.mxu0 %v1932
    %4606 = vmatprep.subr.mxu0 %v1942
    %4607 = vmatpush1.msra.mxu0 %v1941
    %4608 = vmatprep.subr.mxu0 %v1951
    %4609 = vmatpush1.msra.mxu0 %v1950
    %4610 = vmatprep.subr.mxu0 %v1960
    %4611 = vmatpush1.msra.mxu0 %v1959
    %4612 = vmatprep.subr.mxu0 %v1969
    %4613 = vmatpush1.msra.mxu0 %v1968
    %4614 = vmatprep.subr.mxu0 %v1978
    %4615 = vmatpush1.msra.mxu0 %v1977
    %4616 = vmatprep.subr.mxu0 %v1987
    %4617 = vmatpush1.msra.mxu0 %v1986
    %4618 = vmatprep.subr.mxu0 %v1996
    %4619 = vmatpush1.msra.mxu0 %v1995
    %4620 = vmatprep.subr.mxu0 %v2005
    %4621 = vmatpush1.msra.mxu0 %v2004
    %4622 = vmatprep.subr.mxu0 %v2014
    %4623 = vmatpush1.msra.mxu0 %v2013
    %4624 = vmatprep.subr.mxu0 %v2023
    %4625 = vmatpush1.msra.mxu0 %v2022
    %4626 = vmatprep.subr.mxu0 %v2032
    %4627 = vmatpush1.msra.mxu0 %v2031
    %4628 = vmatprep.subr.mxu0 %v2041
    %4629 = vmatpush1.msra.mxu0 %v2040
    %4630 = vmatprep.subr.mxu0 %v2050
    %4631 = vmatpush1.msra.mxu0 %v2049
    %4632 = vmatprep.subr.mxu0 %v2059
    %4633 = vmatpush1.msra.mxu0 %v2058
    %4634 = vmatprep.subr.mxu0 %v2068
    %4635 = vmatpush1.msra.mxu0 %v2067
    %4636 = vmatprep.subr.mxu0 %v2077
    %4637 = vmatpush1.msra.mxu0 %v2076
    %4638 = vmatprep.subr.mxu0 %v2086
    %4639 = vmatpush1.msra.mxu0 %v2085
    %4640 = vmatprep.subr.mxu0 %v2095
    %4641 = vmatpush1.msra.mxu0 %v2094
    %4642 = vmatprep.subr.mxu0 %v2104
    %4643 = vmatpush1.msra.mxu0 %v2103
    %4644 = vmatprep.subr.mxu0 %v2113
    %4645 = vmatpush1.msra.mxu0 %v2112
    %4646 = vmatprep.mubr.f32.mxu0 %v96
    %4647 = vmatmul.mubr.f32.gmra.mrb[0].mxu0 %v95
    %v4648 = vpop.f32.mrb[0].mxu0
    %v4649 = vadd.f32 %v4578, %v4648
    %v4650 = vpop.f32.mrb[0].mxu0
    %v4651 = vadd.f32 %v4580, %v4650
    %4652 = vdwg.mxu0
    %4653 = vmatprep.subr.mxu0 %v2122
    %4654 = vmatpush1.msra.mxu0 %v2121
    %4655 = vmatprep.subr.mxu0 %v2131
    %4656 = vmatpush1.msra.mxu0 %v2130
    %4657 = vmatprep.subr.mxu0 %v2140
    %4658 = vmatpush1.msra.mxu0 %v2139
    %4659 = vmatprep.subr.mxu0 %v2149
    %4660 = vmatpush1.msra.mxu0 %v2148
    %4661 = vmatprep.subr.mxu0 %v2158
    %4662 = vmatpush1.msra.mxu0 %v2157
    %4663 = vmatprep.subr.mxu0 %v2167
    %4664 = vmatpush1.msra.mxu0 %v2166
    %4665 = vmatprep.subr.mxu0 %v2176
    %4666 = vmatpush1.msra.mxu0 %v2175
    %4667 = vmatprep.subr.mxu0 %v2185
    %4668 = vmatpush1.msra.mxu0 %v2184
    %4669 = vmatprep.subr.mxu0 %v2194
    %4670 = vmatpush1.msra.mxu0 %v2193
    %4671 = vmatprep.subr.mxu0 %v2203
    %4672 = vmatpush1.msra.mxu0 %v2202
    %4673 = vmatprep.subr.mxu0 %v2212
    %4674 = vmatpush1.msra.mxu0 %v2211
    %4675 = vmatprep.subr.mxu0 %v2221
    %4676 = vmatpush1.msra.mxu0 %v2220
    %4677 = vmatprep.subr.mxu0 %v2230
    %4678 = vmatpush1.msra.mxu0 %v2229
    %4679 = vmatprep.subr.mxu0 %v2239
    %4680 = vmatpush1.msra.mxu0 %v2238
    %4681 = vmatprep.subr.mxu0 %v2248
    %4682 = vmatpush1.msra.mxu0 %v2247
    %4683 = vmatprep.subr.mxu0 %v2257
    %4684 = vmatpush1.msra.mxu0 %v2256
    %4685 = vmatprep.subr.mxu0 %v2266
    %4686 = vmatpush1.msra.mxu0 %v2265
    %4687 = vmatprep.subr.mxu0 %v2275
    %4688 = vmatpush1.msra.mxu0 %v2274
    %4689 = vmatprep.subr.mxu0 %v2284
    %4690 = vmatpush1.msra.mxu0 %v2283
    %4691 = vmatprep.subr.mxu0 %v2293
    %4692 = vmatpush1.msra.mxu0 %v2292
    %4693 = vmatprep.subr.mxu0 %v2302
    %4694 = vmatpush1.msra.mxu0 %v2301
    %4695 = vmatprep.subr.mxu0 %v2311
    %4696 = vmatpush1.msra.mxu0 %v2310
    %4697 = vmatprep.subr.mxu0 %v2320
    %4698 = vmatpush1.msra.mxu0 %v2319
    %4699 = vmatprep.subr.mxu0 %v2329
    %4700 = vmatpush1.msra.mxu0 %v2328
    %4701 = vmatprep.subr.mxu0 %v2338
    %4702 = vmatpush1.msra.mxu0 %v2337
    %4703 = vmatprep.subr.mxu0 %v2347
    %4704 = vmatpush1.msra.mxu0 %v2346
    %4705 = vmatprep.subr.mxu0 %v2356
    %4706 = vmatpush1.msra.mxu0 %v2355
    %4707 = vmatprep.subr.mxu0 %v2365
    %4708 = vmatpush1.msra.mxu0 %v2364
    %4709 = vmatprep.subr.mxu0 %v2374
    %4710 = vmatpush1.msra.mxu0 %v2373
    %4711 = vmatprep.subr.mxu0 %v2383
    %4712 = vmatpush1.msra.mxu0 %v2382
    %4713 = vmatprep.subr.mxu0 %v2392
    %4714 = vmatpush1.msra.mxu0 %v2391
    %4715 = vmatprep.subr.mxu0 %v2401
    %4716 = vmatpush1.msra.mxu0 %v2400
    %4717 = vmatprep.mubr.f32.mxu0 %v98
    %4718 = vmatmul.mubr.f32.gmra.mrb[0].mxu0 %v97
    %v4719 = vpop.f32.mrb[0].mxu0
    %v4720 = vadd.f32 %v4649, %v4719
    %v4721 = vpop.f32.mrb[0].mxu0
    %v4722 = vadd.f32 %v4651, %v4721
    %4723 = vdwg.mxu0
    %4724 = vmatprep.subr.mxu0 0.0
    %4725 = vmatpush1.msra.mxu0 %v107
    %4726 = vmatprep.subr.mxu0 0.0
    %4727 = vmatpush1.msra.mxu0 %v116
    %4728 = vmatprep.subr.mxu0 0.0
    %4729 = vmatpush1.msra.mxu0 %v125
    %4730 = vmatprep.subr.mxu0 0.0
    %4731 = vmatpush1.msra.mxu0 %v134
    %4732 = vmatprep.subr.mxu0 0.0
    %4733 = vmatpush1.msra.mxu0 %v143
    %4734 = vmatprep.subr.mxu0 0.0
    %4735 = vmatpush1.msra.mxu0 %v152
    %4736 = vmatprep.subr.mxu0 0.0
    %4737 = vmatpush1.msra.mxu0 %v161
    %4738 = vmatprep.subr.mxu0 0.0
    %4739 = vmatpush1.msra.mxu0 %v170
    %4740 = vmatprep.subr.mxu0 0.0
    %4741 = vmatpush1.msra.mxu0 %v179
    %4742 = vmatprep.subr.mxu0 0.0
    %4743 = vmatpush1.msra.mxu0 %v188
    %4744 = vmatprep.subr.mxu0 0.0
    %4745 = vmatpush1.msra.mxu0 %v197
    %4746 = vmatprep.subr.mxu0 0.0
    %4747 = vmatpush1.msra.mxu0 %v206
    %4748 = vmatprep.subr.mxu0 0.0
    %4749 = vmatpush1.msra.mxu0 %v215
    %4750 = vmatprep.subr.mxu0 0.0
    %4751 = vmatpush1.msra.mxu0 %v224
    %4752 = vmatprep.subr.mxu0 0.0
    %4753 = vmatpush1.msra.mxu0 %v233
    %4754 = vmatprep.subr.mxu0 0.0
    %4755 = vmatpush1.msra.mxu0 %v242
    %4756 = vmatprep.subr.mxu0 0.0
    %4757 = vmatpush1.msra.mxu0 %v251
    %4758 = vmatprep.subr.mxu0 0.0
    %4759 = vmatpush1.msra.mxu0 %v260
    %4760 = vmatprep.subr.mxu0 0.0
    %4761 = vmatpush1.msra.mxu0 %v269
    %4762 = vmatprep.subr.mxu0 0.0
    %4763 = vmatpush1.msra.mxu0 %v278
    %4764 = vmatprep.subr.mxu0 0.0
    %4765 = vmatpush1.msra.mxu0 %v287
    %4766 = vmatprep.subr.mxu0 0.0
    %4767 = vmatpush1.msra.mxu0 %v296
    %4768 = vmatprep.subr.mxu0 0.0
    %4769 = vmatpush1.msra.mxu0 %v305
    %4770 = vmatprep.subr.mxu0 0.0
    %4771 = vmatpush1.msra.mxu0 %v314
    %4772 = vmatprep.subr.mxu0 0.0
    %4773 = vmatpush1.msra.mxu0 %v323
    %4774 = vmatprep.subr.mxu0 0.0
    %4775 = vmatpush1.msra.mxu0 %v332
    %4776 = vmatprep.subr.mxu0 0.0
    %4777 = vmatpush1.msra.mxu0 %v341
    %4778 = vmatprep.subr.mxu0 0.0
    %4779 = vmatpush1.msra.mxu0 %v350
    %4780 = vmatprep.subr.mxu0 0.0
    %4781 = vmatpush1.msra.mxu0 %v359
    %4782 = vmatprep.subr.mxu0 0.0
    %4783 = vmatpush1.msra.mxu0 %v368
    %4784 = vmatprep.subr.mxu0 0.0
    %4785 = vmatpush1.msra.mxu0 %v377
    %4786 = vmatprep.subr.mxu0 0.0
    %4787 = vmatpush1.msra.mxu0 %v386
    %4788 = vmatprep.mubr.f32.mxu0 %v84
    %4789 = vmatmul.mubr.f32.gmra.mrb[0].mxu0 %v83
    %v4790 = vpop.f32.mrb[0].mxu0
    %v4791 = vadd.f32 %v2442, %v4790
    %v4792 = vpop.f32.mrb[0].mxu0
    %4793 = vdwg.mxu0
    %4794 = vmatprep.subr.mxu0 0.0
    %4795 = vmatpush1.msra.mxu0 %v395
    %4796 = vmatprep.subr.mxu0 0.0
    %4797 = vmatpush1.msra.mxu0 %v404
    %4798 = vmatprep.subr.mxu0 0.0
    %4799 = vmatpush1.msra.mxu0 %v413
    %4800 = vmatprep.subr.mxu0 0.0
    %4801 = vmatpush1.msra.mxu0 %v422
    %4802 = vmatprep.subr.mxu0 0.0
    %4803 = vmatpush1.msra.mxu0 %v431
    %4804 = vmatprep.subr.mxu0 0.0
    %4805 = vmatpush1.msra.mxu0 %v440
    %4806 = vmatprep.subr.mxu0 0.0
    %4807 = vmatpush1.msra.mxu0 %v449
    %4808 = vmatprep.subr.mxu0 0.0
    %4809 = vmatpush1.msra.mxu0 %v458
    %4810 = vmatprep.subr.mxu0 0.0
    %4811 = vmatpush1.msra.mxu0 %v467
    %4812 = vmatprep.subr.mxu0 0.0
    %4813 = vmatpush1.msra.mxu0 %v476
    %4814 = vmatprep.subr.mxu0 0.0
    %4815 = vmatpush1.msra.mxu0 %v485
    %4816 = vmatprep.subr.mxu0 0.0
    %4817 = vmatpush1.msra.mxu0 %v494
    %4818 = vmatprep.subr.mxu0 0.0
    %4819 = vmatpush1.msra.mxu0 %v503
    %4820 = vmatprep.subr.mxu0 0.0
    %4821 = vmatpush1.msra.mxu0 %v512
    %4822 = vmatprep.subr.mxu0 0.0
    %4823 = vmatpush1.msra.mxu0 %v521
    %4824 = vmatprep.subr.mxu0 0.0
    %4825 = vmatpush1.msra.mxu0 %v530
    %4826 = vmatprep.subr.mxu0 0.0
    %4827 = vmatpush1.msra.mxu0 %v539
    %4828 = vmatprep.subr.mxu0 0.0
    %4829 = vmatpush1.msra.mxu0 %v548
    %4830 = vmatprep.subr.mxu0 0.0
    %4831 = vmatpush1.msra.mxu0 %v557
    %4832 = vmatprep.subr.mxu0 0.0
    %4833 = vmatpush1.msra.mxu0 %v566
    %4834 = vmatprep.subr.mxu0 0.0
    %4835 = vmatpush1.msra.mxu0 %v575
    %4836 = vmatprep.subr.mxu0 0.0
    %4837 = vmatpush1.msra.mxu0 %v584
    %4838 = vmatprep.subr.mxu0 0.0
    %4839 = vmatpush1.msra.mxu0 %v593
    %4840 = vmatprep.subr.mxu0 0.0
    %4841 = vmatpush1.msra.mxu0 %v602
    %4842 = vmatprep.subr.mxu0 0.0
    %4843 = vmatpush1.msra.mxu0 %v611
    %4844 = vmatprep.subr.mxu0 0.0
    %4845 = vmatpush1.msra.mxu0 %v620
    %4846 = vmatprep.subr.mxu0 0.0
    %4847 = vmatpush1.msra.mxu0 %v629
    %4848 = vmatprep.subr.mxu0 0.0
    %4849 = vmatpush1.msra.mxu0 %v638
    %4850 = vmatprep.subr.mxu0 0.0
    %4851 = vmatpush1.msra.mxu0 %v647
    %4852 = vmatprep.subr.mxu0 0.0
    %4853 = vmatpush1.msra.mxu0 %v656
    %4854 = vmatprep.subr.mxu0 0.0
    %4855 = vmatpush1.msra.mxu0 %v665
    %4856 = vmatprep.subr.mxu0 0.0
    %4857 = vmatpush1.msra.mxu0 %v674
    %4858 = vmatprep.mubr.f32.mxu0 %v86
    %4859 = vmatmul.mubr.f32.gmra.mrb[0].mxu0 %v85
    %v4860 = vpop.f32.mrb[0].mxu0
    %v4861 = vadd.f32 %v4791, %v4860
    %v4862 = vpop.f32.mrb[0].mxu0
    %4863 = vdwg.mxu0
    %4864 = vmatprep.subr.mxu0 0.0
    %4865 = vmatpush1.msra.mxu0 %v683
    %4866 = vmatprep.subr.mxu0 0.0
    %4867 = vmatpush1.msra.mxu0 %v692
    %4868 = vmatprep.subr.mxu0 0.0
    %4869 = vmatpush1.msra.mxu0 %v701
    %4870 = vmatprep.subr.mxu0 0.0
    %4871 = vmatpush1.msra.mxu0 %v710
    %4872 = vmatprep.subr.mxu0 0.0
    %4873 = vmatpush1.msra.mxu0 %v719
    %4874 = vmatprep.subr.mxu0 0.0
    %4875 = vmatpush1.msra.mxu0 %v728
    %4876 = vmatprep.subr.mxu0 0.0
    %4877 = vmatpush1.msra.mxu0 %v737
    %4878 = vmatprep.subr.mxu0 0.0
    %4879 = vmatpush1.msra.mxu0 %v746
    %4880 = vmatprep.subr.mxu0 0.0
    %4881 = vmatpush1.msra.mxu0 %v755
    %4882 = vmatprep.subr.mxu0 0.0
    %4883 = vmatpush1.msra.mxu0 %v764
    %4884 = vmatprep.subr.mxu0 0.0
    %4885 = vmatpush1.msra.mxu0 %v773
    %4886 = vmatprep.subr.mxu0 0.0
    %4887 = vmatpush1.msra.mxu0 %v782
    %4888 = vmatprep.subr.mxu0 0.0
    %4889 = vmatpush1.msra.mxu0 %v791
    %4890 = vmatprep.subr.mxu0 0.0
    %4891 = vmatpush1.msra.mxu0 %v800
    %4892 = vmatprep.subr.mxu0 0.0
    %4893 = vmatpush1.msra.mxu0 %v809
    %4894 = vmatprep.subr.mxu0 0.0
    %4895 = vmatpush1.msra.mxu0 %v818
    %4896 = vmatprep.subr.mxu0 0.0
    %4897 = vmatpush1.msra.mxu0 %v827
    %4898 = vmatprep.subr.mxu0 0.0
    %4899 = vmatpush1.msra.mxu0 %v836
    %4900 = vmatprep.subr.mxu0 0.0
    %4901 = vmatpush1.msra.mxu0 %v845
    %4902 = vmatprep.subr.mxu0 0.0
    %4903 = vmatpush1.msra.mxu0 %v854
    %4904 = vmatprep.subr.mxu0 0.0
    %4905 = vmatpush1.msra.mxu0 %v863
    %4906 = vmatprep.subr.mxu0 0.0
    %4907 = vmatpush1.msra.mxu0 %v872
    %4908 = vmatprep.subr.mxu0 0.0
    %4909 = vmatpush1.msra.mxu0 %v881
    %4910 = vmatprep.subr.mxu0 0.0
    %4911 = vmatpush1.msra.mxu0 %v890
    %4912 = vmatprep.subr.mxu0 0.0
    %4913 = vmatpush1.msra.mxu0 %v899
    %4914 = vmatprep.subr.mxu0 0.0
    %4915 = vmatpush1.msra.mxu0 %v908
    %4916 = vmatprep.subr.mxu0 0.0
    %4917 = vmatpush1.msra.mxu0 %v917
    %4918 = vmatprep.subr.mxu0 0.0
    %4919 = vmatpush1.msra.mxu0 %v926
    %4920 = vmatprep.subr.mxu0 0.0
    %4921 = vmatpush1.msra.mxu0 %v935
    %4922 = vmatprep.subr.mxu0 0.0
    %4923 = vmatpush1.msra.mxu0 %v944
    %4924 = vmatprep.subr.mxu0 0.0
    %4925 = vmatpush1.msra.mxu0 %v953
    %4926 = vmatprep.subr.mxu0 0.0
    %4927 = vmatpush1.msra.mxu0 %v962
    %4928 = vmatprep.mubr.f32.mxu0 %v88
    %4929 = vmatmul.mubr.f32.gmra.mrb[0].mxu0 %v87
    %v4930 = vpop.f32.mrb[0].mxu0
    %v4931 = vadd.f32 %v4861, %v4930
    %v4932 = vpop.f32.mrb[0].mxu0
    %4933 = vdwg.mxu0
    %4934 = vmatprep.subr.mxu0 0.0
    %4935 = vmatpush1.msra.mxu0 %v971
    %4936 = vmatprep.subr.mxu0 0.0
    %4937 = vmatpush1.msra.mxu0 %v980
    %4938 = vmatprep.subr.mxu0 0.0
    %4939 = vmatpush1.msra.mxu0 %v989
    %4940 = vmatprep.subr.mxu0 0.0
    %4941 = vmatpush1.msra.mxu0 %v998
    %4942 = vmatprep.subr.mxu0 0.0
    %4943 = vmatpush1.msra.mxu0 %v1007
    %4944 = vmatprep.subr.mxu0 0.0
    %4945 = vmatpush1.msra.mxu0 %v1016
    %4946 = vmatprep.subr.mxu0 0.0
    %4947 = vmatpush1.msra.mxu0 %v1025
    %4948 = vmatprep.subr.mxu0 0.0
    %4949 = vmatpush1.msra.mxu0 %v1034
    %4950 = vmatprep.subr.mxu0 0.0
    %4951 = vmatpush1.msra.mxu0 %v1043
    %4952 = vmatprep.subr.mxu0 0.0
    %4953 = vmatpush1.msra.mxu0 %v1052
    %4954 = vmatprep.subr.mxu0 0.0
    %4955 = vmatpush1.msra.mxu0 %v1061
    %4956 = vmatprep.subr.mxu0 0.0
    %4957 = vmatpush1.msra.mxu0 %v1070
    %4958 = vmatprep.subr.mxu0 0.0
    %4959 = vmatpush1.msra.mxu0 %v1079
    %4960 = vmatprep.subr.mxu0 0.0
    %4961 = vmatpush1.msra.mxu0 %v1088
    %4962 = vmatprep.subr.mxu0 0.0
    %4963 = vmatpush1.msra.mxu0 %v1097
    %4964 = vmatprep.subr.mxu0 0.0
    %4965 = vmatpush1.msra.mxu0 %v1106
    %4966 = vmatprep.subr.mxu0 0.0
    %4967 = vmatpush1.msra.mxu0 %v1115
    %4968 = vmatprep.subr.mxu0 0.0
    %4969 = vmatpush1.msra.mxu0 %v1124
    %4970 = vmatprep.subr.mxu0 0.0
    %4971 = vmatpush1.msra.mxu0 %v1133
    %4972 = vmatprep.subr.mxu0 0.0
    %4973 = vmatpush1.msra.mxu0 %v1142
    %4974 = vmatprep.subr.mxu0 0.0
    %4975 = vmatpush1.msra.mxu0 %v1151
    %4976 = vmatprep.subr.mxu0 0.0
    %4977 = vmatpush1.msra.mxu0 %v1160
    %4978 = vmatprep.subr.mxu0 0.0
    %4979 = vmatpush1.msra.mxu0 %v1169
    %4980 = vmatprep.subr.mxu0 0.0
    %4981 = vmatpush1.msra.mxu0 %v1178
    %4982 = vmatprep.subr.mxu0 0.0
    %4983 = vmatpush1.msra.mxu0 %v1187
    %4984 = vmatprep.subr.mxu0 0.0
    %4985 = vmatpush1.msra.mxu0 %v1196
    %4986 = vmatprep.subr.mxu0 0.0
    %4987 = vmatpush1.msra.mxu0 %v1205
    %4988 = vmatprep.subr.mxu0 0.0
    %4989 = vmatpush1.msra.mxu0 %v1214
    %4990 = vmatprep.subr.mxu0 0.0
    %4991 = vmatpush1.msra.mxu0 %v1223
    %4992 = vmatprep.subr.mxu0 0.0
    %4993 = vmatpush1.msra.mxu0 %v1232
    %4994 = vmatprep.subr.mxu0 0.0
    %4995 = vmatpush1.msra.mxu0 %v1241
    %4996 = vmatprep.subr.mxu0 0.0
    %4997 = vmatpush1.msra.mxu0 %v1250
    %4998 = vmatprep.mubr.f32.mxu0 %v90
    %4999 = vmatmul.mubr.f32.gmra.mrb[0].mxu0 %v89
    %v5000 = vpop.f32.mrb[0].mxu0
    %v5001 = vadd.f32 %v4931, %v5000
    %v5002 = vpop.f32.mrb[0].mxu0
    %5003 = vdwg.mxu0
    %5004 = vmatprep.subr.mxu0 0.0
    %5005 = vmatpush1.msra.mxu0 %v1259
    %5006 = vmatprep.subr.mxu0 0.0
    %5007 = vmatpush1.msra.mxu0 %v1268
    %5008 = vmatprep.subr.mxu0 0.0
    %5009 = vmatpush1.msra.mxu0 %v1277
    %5010 = vmatprep.subr.mxu0 0.0
    %5011 = vmatpush1.msra.mxu0 %v1286
    %5012 = vmatprep.subr.mxu0 0.0
    %5013 = vmatpush1.msra.mxu0 %v1295
    %5014 = vmatprep.subr.mxu0 0.0
    %5015 = vmatpush1.msra.mxu0 %v1304
    %5016 = vmatprep.subr.mxu0 0.0
    %5017 = vmatpush1.msra.mxu0 %v1313
    %5018 = vmatprep.subr.mxu0 0.0
    %5019 = vmatpush1.msra.mxu0 %v1322
    %5020 = vmatprep.subr.mxu0 0.0
    %5021 = vmatpush1.msra.mxu0 %v1331
    %5022 = vmatprep.subr.mxu0 0.0
    %5023 = vmatpush1.msra.mxu0 %v1340
    %5024 = vmatprep.subr.mxu0 0.0
    %5025 = vmatpush1.msra.mxu0 %v1349
    %5026 = vmatprep.subr.mxu0 0.0
    %5027 = vmatpush1.msra.mxu0 %v1358
    %5028 = vmatprep.subr.mxu0 0.0
    %5029 = vmatpush1.msra.mxu0 %v1367
    %5030 = vmatprep.subr.mxu0 0.0
    %5031 = vmatpush1.msra.mxu0 %v1376
    %5032 = vmatprep.subr.mxu0 0.0
    %5033 = vmatpush1.msra.mxu0 %v1385
    %5034 = vmatprep.subr.mxu0 0.0
    %5035 = vmatpush1.msra.mxu0 %v1394
    %5036 = vmatprep.subr.mxu0 0.0
    %5037 = vmatpush1.msra.mxu0 %v1403
    %5038 = vmatprep.subr.mxu0 0.0
    %5039 = vmatpush1.msra.mxu0 %v1412
    %5040 = vmatprep.subr.mxu0 0.0
    %5041 = vmatpush1.msra.mxu0 %v1421
    %5042 = vmatprep.subr.mxu0 0.0
    %5043 = vmatpush1.msra.mxu0 %v1430
    %5044 = vmatprep.subr.mxu0 0.0
    %5045 = vmatpush1.msra.mxu0 %v1439
    %5046 = vmatprep.subr.mxu0 0.0
    %5047 = vmatpush1.msra.mxu0 %v1448
    %5048 = vmatprep.subr.mxu0 0.0
    %5049 = vmatpush1.msra.mxu0 %v1457
    %5050 = vmatprep.subr.mxu0 0.0
    %5051 = vmatpush1.msra.mxu0 %v1466
    %5052 = vmatprep.subr.mxu0 0.0
    %5053 = vmatpush1.msra.mxu0 %v1475
    %5054 = vmatprep.subr.mxu0 0.0
    %5055 = vmatpush1.msra.mxu0 %v1484
    %5056 = vmatprep.subr.mxu0 0.0
    %5057 = vmatpush1.msra.mxu0 %v1493
    %5058 = vmatprep.subr.mxu0 0.0
    %5059 = vmatpush1.msra.mxu0 %v1502
    %5060 = vmatprep.subr.mxu0 0.0
    %5061 = vmatpush1.msra.mxu0 %v1511
    %5062 = vmatprep.subr.mxu0 0.0
    %5063 = vmatpush1.msra.mxu0 %v1520
    %5064 = vmatprep.subr.mxu0 0.0
    %5065 = vmatpush1.msra.mxu0 %v1529
    %5066 = vmatprep.subr.mxu0 0.0
    %5067 = vmatpush1.msra.mxu0 %v1538
    %5068 = vmatprep.mubr.f32.mxu0 %v92
    %5069 = vmatmul.mubr.f32.gmra.mrb[0].mxu0 %v91
    %v5070 = vpop.f32.mrb[0].mxu0
    %v5071 = vadd.f32 %v5001, %v5070
    %v5072 = vpop.f32.mrb[0].mxu0
    %5073 = vdwg.mxu0
    %5074 = vmatprep.subr.mxu0 0.0
    %5075 = vmatpush1.msra.mxu0 %v1547
    %5076 = vmatprep.subr.mxu0 0.0
    %5077 = vmatpush1.msra.mxu0 %v1556
    %5078 = vmatprep.subr.mxu0 0.0
    %5079 = vmatpush1.msra.mxu0 %v1565
    %5080 = vmatprep.subr.mxu0 0.0
    %5081 = vmatpush1.msra.mxu0 %v1574
    %5082 = vmatprep.subr.mxu0 0.0
    %5083 = vmatpush1.msra.mxu0 %v1583
    %5084 = vmatprep.subr.mxu0 0.0
    %5085 = vmatpush1.msra.mxu0 %v1592
    %5086 = vmatprep.subr.mxu0 0.0
    %5087 = vmatpush1.msra.mxu0 %v1601
    %5088 = vmatprep.subr.mxu0 0.0
    %5089 = vmatpush1.msra.mxu0 %v1610
    %5090 = vmatprep.subr.mxu0 0.0
    %5091 = vmatpush1.msra.mxu0 %v1619
    %5092 = vmatprep.subr.mxu0 0.0
    %5093 = vmatpush1.msra.mxu0 %v1628
    %5094 = vmatprep.subr.mxu0 0.0
    %5095 = vmatpush1.msra.mxu0 %v1637
    %5096 = vmatprep.subr.mxu0 0.0
    %5097 = vmatpush1.msra.mxu0 %v1646
    %5098 = vmatprep.subr.mxu0 0.0
    %5099 = vmatpush1.msra.mxu0 %v1655
    %5100 = vmatprep.subr.mxu0 0.0
    %5101 = vmatpush1.msra.mxu0 %v1664
    %5102 = vmatprep.subr.mxu0 0.0
    %5103 = vmatpush1.msra.mxu0 %v1673
    %5104 = vmatprep.subr.mxu0 0.0
    %5105 = vmatpush1.msra.mxu0 %v1682
    %5106 = vmatprep.subr.mxu0 0.0
    %5107 = vmatpush1.msra.mxu0 %v1691
    %5108 = vmatprep.subr.mxu0 0.0
    %5109 = vmatpush1.msra.mxu0 %v1700
    %5110 = vmatprep.subr.mxu0 0.0
    %5111 = vmatpush1.msra.mxu0 %v1709
    %5112 = vmatprep.subr.mxu0 0.0
    %5113 = vmatpush1.msra.mxu0 %v1718
    %5114 = vmatprep.subr.mxu0 0.0
    %5115 = vmatpush1.msra.mxu0 %v1727
    %5116 = vmatprep.subr.mxu0 0.0
    %5117 = vmatpush1.msra.mxu0 %v1736
    %5118 = vmatprep.subr.mxu0 0.0
    %5119 = vmatpush1.msra.mxu0 %v1745
    %5120 = vmatprep.subr.mxu0 0.0
    %5121 = vmatpush1.msra.mxu0 %v1754
    %5122 = vmatprep.subr.mxu0 0.0
    %5123 = vmatpush1.msra.mxu0 %v1763
    %5124 = vmatprep.subr.mxu0 0.0
    %5125 = vmatpush1.msra.mxu0 %v1772
    %5126 = vmatprep.subr.mxu0 0.0
    %5127 = vmatpush1.msra.mxu0 %v1781
    %5128 = vmatprep.subr.mxu0 0.0
    %5129 = vmatpush1.msra.mxu0 %v1790
    %5130 = vmatprep.subr.mxu0 0.0
    %5131 = vmatpush1.msra.mxu0 %v1799
    %5132 = vmatprep.subr.mxu0 0.0
    %5133 = vmatpush1.msra.mxu0 %v1808
    %5134 = vmatprep.subr.mxu0 0.0
    %5135 = vmatpush1.msra.mxu0 %v1817
    %5136 = vmatprep.subr.mxu0 0.0
    %5137 = vmatpush1.msra.mxu0 %v1826
    %5138 = vmatprep.mubr.f32.mxu0 %v94
    %5139 = vmatmul.mubr.f32.gmra.mrb[0].mxu0 %v93
    %v5140 = vpop.f32.mrb[0].mxu0
    %v5141 = vadd.f32 %v5071, %v5140
    %v5142 = vpop.f32.mrb[0].mxu0
    %5143 = vdwg.mxu0
    %5144 = vmatprep.subr.mxu0 0.0
    %5145 = vmatpush1.msra.mxu0 %v1835
    %5146 = vmatprep.subr.mxu0 0.0
    %5147 = vmatpush1.msra.mxu0 %v1844
    %5148 = vmatprep.subr.mxu0 0.0
    %5149 = vmatpush1.msra.mxu0 %v1853
    %5150 = vmatprep.subr.mxu0 0.0
    %5151 = vmatpush1.msra.mxu0 %v1862
    %5152 = vmatprep.subr.mxu0 0.0
    %5153 = vmatpush1.msra.mxu0 %v1871
    %5154 = vmatprep.subr.mxu0 0.0
    %5155 = vmatpush1.msra.mxu0 %v1880
    %5156 = vmatprep.subr.mxu0 0.0
    %5157 = vmatpush1.msra.mxu0 %v1889
    %5158 = vmatprep.subr.mxu0 0.0
    %5159 = vmatpush1.msra.mxu0 %v1898
    %5160 = vmatprep.subr.mxu0 0.0
    %5161 = vmatpush1.msra.mxu0 %v1907
    %5162 = vmatprep.subr.mxu0 0.0
    %5163 = vmatpush1.msra.mxu0 %v1916
    %5164 = vmatprep.subr.mxu0 0.0
    %5165 = vmatpush1.msra.mxu0 %v1925
    %5166 = vmatprep.subr.mxu0 0.0
    %5167 = vmatpush1.msra.mxu0 %v1934
    %5168 = vmatprep.subr.mxu0 0.0
    %5169 = vmatpush1.msra.mxu0 %v1943
    %5170 = vmatprep.subr.mxu0 0.0
    %5171 = vmatpush1.msra.mxu0 %v1952
    %5172 = vmatprep.subr.mxu0 0.0
    %5173 = vmatpush1.msra.mxu0 %v1961
    %5174 = vmatprep.subr.mxu0 0.0
    %5175 = vmatpush1.msra.mxu0 %v1970
    %5176 = vmatprep.subr.mxu0 0.0
    %5177 = vmatpush1.msra.mxu0 %v1979
    %5178 = vmatprep.subr.mxu0 0.0
    %5179 = vmatpush1.msra.mxu0 %v1988
    %5180 = vmatprep.subr.mxu0 0.0
    %5181 = vmatpush1.msra.mxu0 %v1997
    %5182 = vmatprep.subr.mxu0 0.0
    %5183 = vmatpush1.msra.mxu0 %v2006
    %5184 = vmatprep.subr.mxu0 0.0
    %5185 = vmatpush1.msra.mxu0 %v2015
    %5186 = vmatprep.subr.mxu0 0.0
    %5187 = vmatpush1.msra.mxu0 %v2024
    %5188 = vmatprep.subr.mxu0 0.0
    %5189 = vmatpush1.msra.mxu0 %v2033
    %5190 = vmatprep.subr.mxu0 0.0
    %5191 = vmatpush1.msra.mxu0 %v2042
    %5192 = vmatprep.subr.mxu0 0.0
    %5193 = vmatpush1.msra.mxu0 %v2051
    %5194 = vmatprep.subr.mxu0 0.0
    %5195 = vmatpush1.msra.mxu0 %v2060
    %5196 = vmatprep.subr.mxu0 0.0
    %5197 = vmatpush1.msra.mxu0 %v2069
    %5198 = vmatprep.subr.mxu0 0.0
    %5199 = vmatpush1.msra.mxu0 %v2078
    %5200 = vmatprep.subr.mxu0 0.0
    %5201 = vmatpush1.msra.mxu0 %v2087
    %5202 = vmatprep.subr.mxu0 0.0
    %5203 = vmatpush1.msra.mxu0 %v2096
    %5204 = vmatprep.subr.mxu0 0.0
    %5205 = vmatpush1.msra.mxu0 %v2105
    %5206 = vmatprep.subr.mxu0 0.0
    %5207 = vmatpush1.msra.mxu0 %v2114
    %5208 = vmatprep.mubr.f32.mxu0 %v96
    %5209 = vmatmul.mubr.f32.gmra.mrb[0].mxu0 %v95
    %v5210 = vpop.f32.mrb[0].mxu0
    %v5211 = vadd.f32 %v5141, %v5210
    %v5212 = vpop.f32.mrb[0].mxu0
    %5213 = vdwg.mxu0
    %5214 = vmatprep.subr.mxu0 0.0
    %5215 = vmatpush1.msra.mxu0 %v2123
    %5216 = vmatprep.subr.mxu0 0.0
    %5217 = vmatpush1.msra.mxu0 %v2132
    %5218 = vmatprep.subr.mxu0 0.0
    %5219 = vmatpush1.msra.mxu0 %v2141
    %5220 = vmatprep.subr.mxu0 0.0
    %5221 = vmatpush1.msra.mxu0 %v2150
    %5222 = vmatprep.subr.mxu0 0.0
    %5223 = vmatpush1.msra.mxu0 %v2159
    %5224 = vmatprep.subr.mxu0 0.0
    %5225 = vmatpush1.msra.mxu0 %v2168
    %5226 = vmatprep.subr.mxu0 0.0
    %5227 = vmatpush1.msra.mxu0 %v2177
    %5228 = vmatprep.subr.mxu0 0.0
    %5229 = vmatpush1.msra.mxu0 %v2186
    %5230 = vmatprep.subr.mxu0 0.0
    %5231 = vmatpush1.msra.mxu0 %v2195
    %5232 = vmatprep.subr.mxu0 0.0
    %5233 = vmatpush1.msra.mxu0 %v2204
    %5234 = vmatprep.subr.mxu0 0.0
    %5235 = vmatpush1.msra.mxu0 %v2213
    %5236 = vmatprep.subr.mxu0 0.0
    %5237 = vmatpush1.msra.mxu0 %v2222
    %5238 = vmatprep.subr.mxu0 0.0
    %5239 = vmatpush1.msra.mxu0 %v2231
    %5240 = vmatprep.subr.mxu0 0.0
    %5241 = vmatpush1.msra.mxu0 %v2240
    %5242 = vmatprep.subr.mxu0 0.0
    %5243 = vmatpush1.msra.mxu0 %v2249
    %5244 = vmatprep.subr.mxu0 0.0
    %5245 = vmatpush1.msra.mxu0 %v2258
    %5246 = vmatprep.subr.mxu0 0.0
    %5247 = vmatpush1.msra.mxu0 %v2267
    %5248 = vmatprep.subr.mxu0 0.0
    %5249 = vmatpush1.msra.mxu0 %v2276
    %5250 = vmatprep.subr.mxu0 0.0
    %5251 = vmatpush1.msra.mxu0 %v2285
    %5252 = vmatprep.subr.mxu0 0.0
    %5253 = vmatpush1.msra.mxu0 %v2294
    %5254 = vmatprep.subr.mxu0 0.0
    %5255 = vmatpush1.msra.mxu0 %v2303
    %5256 = vmatprep.subr.mxu0 0.0
    %5257 = vmatpush1.msra.mxu0 %v2312
    %5258 = vmatprep.subr.mxu0 0.0
    %5259 = vmatpush1.msra.mxu0 %v2321
    %5260 = vmatprep.subr.mxu0 0.0
    %5261 = vmatpush1.msra.mxu0 %v2330
    %5262 = vmatprep.subr.mxu0 0.0
    %5263 = vmatpush1.msra.mxu0 %v2339
    %5264 = vmatprep.subr.mxu0 0.0
    %5265 = vmatpush1.msra.mxu0 %v2348
    %5266 = vmatprep.subr.mxu0 0.0
    %5267 = vmatpush1.msra.mxu0 %v2357
    %5268 = vmatprep.subr.mxu0 0.0
    %5269 = vmatpush1.msra.mxu0 %v2366
    %5270 = vmatprep.subr.mxu0 0.0
    %5271 = vmatpush1.msra.mxu0 %v2375
    %5272 = vmatprep.subr.mxu0 0.0
    %5273 = vmatpush1.msra.mxu0 %v2384
    %5274 = vmatprep.subr.mxu0 0.0
    %5275 = vmatpush1.msra.mxu0 %v2393
    %5276 = vmatprep.subr.mxu0 0.0
    %5277 = vmatpush1.msra.mxu0 %v2402
    %5278 = vmatprep.mubr.f32.mxu0 %v98
    %5279 = vmatmul.mubr.f32.gmra.mrb[0].mxu0 %v97
    %v5280 = vpop.f32.mrb[0].mxu0
    %v5281 = vadd.f32 %v5211, %v5280
    %v5282 = vpop.f32.mrb[0].mxu0
    %5283 = vdwg.mxu0
    %v5284 = vmax.f32 %v3016, 0.0
    %v5285 = vmax.f32 %v3018, 0.0
    %v5286 = vmax.f32 %v3584, 0.0
    %v5287 = vmax.f32 %v3586, 0.0
    %v5288 = vmax.f32 %v4152, 0.0
    %v5289 = vmax.f32 %v4154, 0.0
    %v5290 = vmax.f32 %v4720, 0.0
    %v5291 = vmax.f32 %v4722, 0.0
    %v5292 = vmax.f32 %v5281, 0.0
    %v5293 = vld [vmem:[#allocation8] sm:$0xff]
    %v5294 = vld [vmem:[#allocation8 + $0x8] sm:$0xff]
    %v5295 = vld [vmem:[#allocation8 + $0x10] sm:$0xff]
    %v5296 = vld [vmem:[#allocation8 + $0x18] sm:$0xff]
    %v5297 = vld [vmem:[#allocation8 + $0x20] sm:$0xff]
    %v5298 = vld [vmem:[#allocation8 + $0x28] sm:$0xff]
    %v5299 = vld [vmem:[#allocation8 + $0x30] sm:$0xff]
    %v5300 = vld [vmem:[#allocation8 + $0x38] sm:$0xff]
    %v5301 = vld [vmem:[#allocation8 + $0x40] sm:$0xff]
    %v5302 = vld [vmem:[#allocation8 + $0x48] sm:$0xff]
    %v5303 = vld [vmem:[#allocation8 + $0x50] sm:$0xff]
    %v5304 = vld [vmem:[#allocation8 + $0x58] sm:$0xff]
    %v5305 = vld [vmem:[#allocation8 + $0x60] sm:$0xff]
    %v5306 = vld [vmem:[#allocation8 + $0x68] sm:$0xff]
    %v5307 = vld [vmem:[#allocation8 + $0x70] sm:$0xff]
    %v5308 = vld [vmem:[#allocation8 + $0x78] sm:$0xff]
    %v5309 = vld [vmem:[#allocation8 + $0x80] sm:$0xff]
    %v5310 = vld [vmem:[#allocation8 + $0x88] sm:$0xff]
    %v5311 = vld [vmem:[#allocation8 + $0x90] sm:$0xff]
    %v5312 = vld [vmem:[#allocation8 + $0x98] sm:$0xff]
    %v5313 = vld [vmem:[#allocation8 + $0xa0] sm:$0xff]
    %v5314 = vld [vmem:[#allocation8 + $0xa8] sm:$0xff]
    %v5315 = vld [vmem:[#allocation8 + $0xb0] sm:$0xff]
    %v5316 = vld [vmem:[#allocation8 + $0xb8] sm:$0xff]
    %v5317 = vld [vmem:[#allocation8 + $0xc0] sm:$0xff]
    %v5318 = vld [vmem:[#allocation8 + $0xc8] sm:$0xff]
    %v5319 = vld [vmem:[#allocation8 + $0xd0] sm:$0xff]
    %v5320 = vld [vmem:[#allocation8 + $0xd8] sm:$0xff]
    %v5321 = vld [vmem:[#allocation8 + $0xe0] sm:$0xff]
    %v5322 = vld [vmem:[#allocation8 + $0xe8] sm:$0xff]
    %v5323 = vld [vmem:[#allocation8 + $0xf0] sm:$0xff]
    %v5324 = vld [vmem:[#allocation8 + $0xf8] sm:$0xff]
    %v5325 = vld [vmem:[#allocation8 + $0x100] sm:$0xff]
    %v5326 = vld [vmem:[#allocation8 + $0x108] sm:$0xff]
    %v5327 = vld [vmem:[#allocation8 + $0x110] sm:$0xff]
    %v5328 = vld [vmem:[#allocation8 + $0x118] sm:$0xff]
    %v5329 = vld [vmem:[#allocation8 + $0x120] sm:$0xff]
    %v5330 = vld [vmem:[#allocation8 + $0x128] sm:$0xff]
    %v5331 = vld [vmem:[#allocation8 + $0x130] sm:$0xff]
    %v5332 = vld [vmem:[#allocation8 + $0x138] sm:$0xff]
    %v5333 = vld [vmem:[#allocation8 + $0x140] sm:$0xff]
    %v5334 = vld [vmem:[#allocation8 + $0x148] sm:$0xff]
    %v5335 = vld [vmem:[#allocation8 + $0x150] sm:$0xff]
    %v5336 = vld [vmem:[#allocation8 + $0x158] sm:$0xff]
    %v5337 = vld [vmem:[#allocation8 + $0x160] sm:$0xff]
    %v5338 = vld [vmem:[#allocation8 + $0x168] sm:$0xff]
    %v5339 = vld [vmem:[#allocation8 + $0x170] sm:$0xff]
    %v5340 = vld [vmem:[#allocation8 + $0x178] sm:$0xff]
    %v5341 = vld [vmem:[#allocation8 + $0x180] sm:$0xff]
    %v5342 = vld [vmem:[#allocation8 + $0x188] sm:$0xff]
    %v5343 = vld [vmem:[#allocation8 + $0x190] sm:$0xff]
    %v5344 = vld [vmem:[#allocation8 + $0x198] sm:$0xff]
    %v5345 = vld [vmem:[#allocation8 + $0x1a0] sm:$0xff]
    %v5346 = vld [vmem:[#allocation8 + $0x1a8] sm:$0xff]
    %v5347 = vld [vmem:[#allocation8 + $0x1b0] sm:$0xff]
    %v5348 = vld [vmem:[#allocation8 + $0x1b8] sm:$0xff]
    %v5349 = vld [vmem:[#allocation8 + $0x1c0] sm:$0xff]
    %v5350 = vld [vmem:[#allocation8 + $0x1c8] sm:$0xff]
    %v5351 = vld [vmem:[#allocation8 + $0x1d0] sm:$0xff]
    %v5352 = vld [vmem:[#allocation8 + $0x1d8] sm:$0xff]
    %v5353 = vld [vmem:[#allocation8 + $0x1e0] sm:$0xff]
    %v5354 = vld [vmem:[#allocation8 + $0x1e8] sm:$0xff]
    %v5355 = vld [vmem:[#allocation8 + $0x1f0] sm:$0xff]
    %v5356 = vld [vmem:[#allocation8 + $0x1f8] sm:$0xff]
    %v5357 = vld [vmem:[#allocation8 + $0x200] sm:$0xff]
    %v5358 = vld [vmem:[#allocation8 + $0x208] sm:$0xff]
    %v5359 = vld [vmem:[#allocation8 + $0x210] sm:$0xff]
    %v5360 = vld [vmem:[#allocation8 + $0x218] sm:$0xff]
    %v5361 = vld [vmem:[#allocation8 + $0x220] sm:$0xff]
    %v5362 = vld [vmem:[#allocation8 + $0x228] sm:$0xff]
    %v5363 = vld [vmem:[#allocation8 + $0x230] sm:$0xff]
    %v5364 = vld [vmem:[#allocation8 + $0x238] sm:$0xff]
    %v5365 = vld [vmem:[#allocation8 + $0x240] sm:$0xff]
    %v5366 = vld [vmem:[#allocation8 + $0x248] sm:$0xff]
    %v5367 = vld [vmem:[#allocation8 + $0x250] sm:$0xff]
    %v5368 = vld [vmem:[#allocation8 + $0x258] sm:$0xff]
    %v5369 = vld [vmem:[#allocation8 + $0x260] sm:$0xff]
    %v5370 = vld [vmem:[#allocation8 + $0x268] sm:$0xff]
    %v5371 = vld [vmem:[#allocation8 + $0x270] sm:$0xff]
    %v5372 = vld [vmem:[#allocation8 + $0x278] sm:$0xff]
    %v5373 = vld [vmem:[#allocation8 + $0x280] sm:$0xff]
    %v5374 = vld [vmem:[#allocation8 + $0x288] sm:$0xff]
    %v5375 = vld [vmem:[#allocation8 + $0x290] sm:$0xff]
    %v5376 = vld [vmem:[#allocation8 + $0x298] sm:$0xff]
    %v5377 = vld [vmem:[#allocation8 + $0x2a0] sm:$0xff]
    %v5378 = vld [vmem:[#allocation8 + $0x2a8] sm:$0xff]
    %v5379 = vld [vmem:[#allocation8 + $0x2b0] sm:$0xff]
    %v5380 = vld [vmem:[#allocation8 + $0x2b8] sm:$0xff]
    %v5381 = vld [vmem:[#allocation8 + $0x2c0] sm:$0xff]
    %v5382 = vld [vmem:[#allocation8 + $0x2c8] sm:$0xff]
    %v5383 = vld [vmem:[#allocation8 + $0x2d0] sm:$0xff]
    %v5384 = vld [vmem:[#allocation8 + $0x2d8] sm:$0xff]
    %v5385 = vld [vmem:[#allocation8 + $0x2e0] sm:$0xff]
    %v5386 = vld [vmem:[#allocation8 + $0x2e8] sm:$0xff]
    %v5387 = vld [vmem:[#allocation8 + $0x2f0] sm:$0xff]
    %v5388 = vld [vmem:[#allocation8 + $0x2f8] sm:$0xff]
    %v5389 = vld [vmem:[#allocation8 + $0x300] sm:$0xff]
    %v5390 = vld [vmem:[#allocation8 + $0x308] sm:$0xff]
    %v5391 = vld [vmem:[#allocation8 + $0x310] sm:$0xff]
    %v5392 = vld [vmem:[#allocation8 + $0x318] sm:$0xff]
    %v5393 = vld [vmem:[#allocation8 + $0x320] sm:$0xff]
    %v5394 = vld [vmem:[#allocation8 + $0x328] sm:$0xff]
    %v5395 = vld [vmem:[#allocation8 + $0x330] sm:$0xff]
    %v5396 = vld [vmem:[#allocation8 + $0x338] sm:$0xff]
    %v5397 = vld [vmem:[#allocation8 + $0x340] sm:$0xff]
    %v5398 = vld [vmem:[#allocation8 + $0x348] sm:$0xff]
    %v5399 = vld [vmem:[#allocation8 + $0x350] sm:$0xff]
    %v5400 = vld [vmem:[#allocation8 + $0x358] sm:$0xff]
    %v5401 = vld [vmem:[#allocation8 + $0x360] sm:$0xff]
    %v5402 = vld [vmem:[#allocation8 + $0x368] sm:$0xff]
    %v5403 = vld [vmem:[#allocation8 + $0x370] sm:$0xff]
    %v5404 = vld [vmem:[#allocation8 + $0x378] sm:$0xff]
    %v5405 = vld [vmem:[#allocation8 + $0x380] sm:$0xff]
    %v5406 = vld [vmem:[#allocation8 + $0x388] sm:$0xff]
    %v5407 = vld [vmem:[#allocation8 + $0x390] sm:$0xff]
    %v5408 = vld [vmem:[#allocation8 + $0x398] sm:$0xff]
    %v5409 = vld [vmem:[#allocation8 + $0x3a0] sm:$0xff]
    %v5410 = vld [vmem:[#allocation8 + $0x3a8] sm:$0xff]
    %v5411 = vld [vmem:[#allocation8 + $0x3b0] sm:$0xff]
    %v5412 = vld [vmem:[#allocation8 + $0x3b8] sm:$0xff]
    %v5413 = vld [vmem:[#allocation8 + $0x3c0] sm:$0xff]
    %v5414 = vld [vmem:[#allocation8 + $0x3c8] sm:$0xff]
    %v5415 = vld [vmem:[#allocation8 + $0x3d0] sm:$0xff]
    %v5416 = vld [vmem:[#allocation8 + $0x3d8] sm:$0xff]
    %v5417 = vld [vmem:[#allocation8 + $0x3e0] sm:$0xff]
    %v5418 = vld [vmem:[#allocation8 + $0x3e8] sm:$0xff]
    %v5419 = vld [vmem:[#allocation8 + $0x3f0] sm:$0xff]
    %v5420 = vld [vmem:[#allocation8 + $0x3f8] sm:$0xff]
    %v5421 = vld [vmem:[#allocation8 + $0x400] sm:$0xff]
    %v5422 = vld [vmem:[#allocation8 + $0x408] sm:$0xff]
    %v5423 = vld [vmem:[#allocation8 + $0x410] sm:$0xff]
    %v5424 = vld [vmem:[#allocation8 + $0x418] sm:$0xff]
    %v5425 = vld [vmem:[#allocation8 + $0x420] sm:$0xff]
    %v5426 = vld [vmem:[#allocation8 + $0x428] sm:$0xff]
    %v5427 = vld [vmem:[#allocation8 + $0x430] sm:$0xff]
    %v5428 = vld [vmem:[#allocation8 + $0x438] sm:$0xff]
    %v5429 = vld [vmem:[#allocation8 + $0x440] sm:$0xff]
    %v5430 = vld [vmem:[#allocation8 + $0x448] sm:$0xff]
    %v5431 = vld [vmem:[#allocation8 + $0x450] sm:$0xff]
    %v5432 = vld [vmem:[#allocation8 + $0x458] sm:$0xff]
    %v5433 = vld [vmem:[#allocation8 + $0x460] sm:$0xff]
    %v5434 = vld [vmem:[#allocation8 + $0x468] sm:$0xff]
    %v5435 = vld [vmem:[#allocation8 + $0x470] sm:$0xff]
    %v5436 = vld [vmem:[#allocation8 + $0x478] sm:$0xff]
    %v5437 = vld [vmem:[#allocation10] sm:$0x1]
    %v5439 = vlaneseq
    %v5440 = vshrl.u32 %v5439, 7
    %v5441 = vsub.s32 0, %v5440
    %v5442 = vrot.slane %v5437, %v5441
    %5444 = vmatprep.subr.mxu0 0.0
    %5445 = vmatpush1.msra.mxu0 %v5293
    %5446 = vmatprep.subr.mxu0 0.0
    %5447 = vmatpush1.msra.mxu0 %v5294
    %5448 = vmatprep.subr.mxu0 0.0
    %5449 = vmatpush1.msra.mxu0 %v5295
    %5450 = vmatprep.subr.mxu0 0.0
    %5451 = vmatpush1.msra.mxu0 %v5296
    %5452 = vmatprep.subr.mxu0 0.0
    %5453 = vmatpush1.msra.mxu0 %v5297
    %5454 = vmatprep.subr.mxu0 0.0
    %5455 = vmatpush1.msra.mxu0 %v5298
    %5456 = vmatprep.subr.mxu0 0.0
    %5457 = vmatpush1.msra.mxu0 %v5299
    %5458 = vmatprep.subr.mxu0 0.0
    %5459 = vmatpush1.msra.mxu0 %v5300
    %5460 = vmatprep.subr.mxu0 0.0
    %5461 = vmatpush1.msra.mxu0 %v5301
    %5462 = vmatprep.subr.mxu0 0.0
    %5463 = vmatpush1.msra.mxu0 %v5302
    %5464 = vmatprep.subr.mxu0 0.0
    %5465 = vmatpush1.msra.mxu0 %v5303
    %5466 = vmatprep.subr.mxu0 0.0
    %5467 = vmatpush1.msra.mxu0 %v5304
    %5468 = vmatprep.subr.mxu0 0.0
    %5469 = vmatpush1.msra.mxu0 %v5305
    %5470 = vmatprep.subr.mxu0 0.0
    %5471 = vmatpush1.msra.mxu0 %v5306
    %5472 = vmatprep.subr.mxu0 0.0
    %5473 = vmatpush1.msra.mxu0 %v5307
    %5474 = vmatprep.subr.mxu0 0.0
    %5475 = vmatpush1.msra.mxu0 %v5308
    %5476 = vmatprep.subr.mxu0 0.0
    %5477 = vmatpush1.msra.mxu0 %v5309
    %5478 = vmatprep.subr.mxu0 0.0
    %5479 = vmatpush1.msra.mxu0 %v5310
    %5480 = vmatprep.subr.mxu0 0.0
    %5481 = vmatpush1.msra.mxu0 %v5311
    %5482 = vmatprep.subr.mxu0 0.0
    %5483 = vmatpush1.msra.mxu0 %v5312
    %5484 = vmatprep.subr.mxu0 0.0
    %5485 = vmatpush1.msra.mxu0 %v5313
    %5486 = vmatprep.subr.mxu0 0.0
    %5487 = vmatpush1.msra.mxu0 %v5314
    %5488 = vmatprep.subr.mxu0 0.0
    %5489 = vmatpush1.msra.mxu0 %v5315
    %5490 = vmatprep.subr.mxu0 0.0
    %5491 = vmatpush1.msra.mxu0 %v5316
    %5492 = vmatprep.subr.mxu0 0.0
    %5493 = vmatpush1.msra.mxu0 %v5317
    %5494 = vmatprep.subr.mxu0 0.0
    %5495 = vmatpush1.msra.mxu0 %v5318
    %5496 = vmatprep.subr.mxu0 0.0
    %5497 = vmatpush1.msra.mxu0 %v5319
    %5498 = vmatprep.subr.mxu0 0.0
    %5499 = vmatpush1.msra.mxu0 %v5320
    %5500 = vmatprep.subr.mxu0 0.0
    %5501 = vmatpush1.msra.mxu0 %v5321
    %5502 = vmatprep.subr.mxu0 0.0
    %5503 = vmatpush1.msra.mxu0 %v5322
    %5504 = vmatprep.subr.mxu0 0.0
    %5505 = vmatpush1.msra.mxu0 %v5323
    %5506 = vmatprep.subr.mxu0 0.0
    %5507 = vmatpush1.msra.mxu0 %v5324
    %5508 = vmatprep.mubr.f32.mxu0 %v5285
    %5509 = vmatmul.mubr.f32.gmra.mrb[0].mxu0 %v5284
    %v5510 = vpop.f32.mrb[0].mxu0
    %v5511 = vadd.f32 %v5442, %v5510
    %v5512 = vpop.f32.mrb[0].mxu0
    %5513 = vdwg.mxu0
    %5514 = vmatprep.subr.mxu0 0.0
    %5515 = vmatpush1.msra.mxu0 %v5325
    %5516 = vmatprep.subr.mxu0 0.0
    %5517 = vmatpush1.msra.mxu0 %v5326
    %5518 = vmatprep.subr.mxu0 0.0
    %5519 = vmatpush1.msra.mxu0 %v5327
    %5520 = vmatprep.subr.mxu0 0.0
    %5521 = vmatpush1.msra.mxu0 %v5328
    %5522 = vmatprep.subr.mxu0 0.0
    %5523 = vmatpush1.msra.mxu0 %v5329
    %5524 = vmatprep.subr.mxu0 0.0
    %5525 = vmatpush1.msra.mxu0 %v5330
    %5526 = vmatprep.subr.mxu0 0.0
    %5527 = vmatpush1.msra.mxu0 %v5331
    %5528 = vmatprep.subr.mxu0 0.0
    %5529 = vmatpush1.msra.mxu0 %v5332
    %5530 = vmatprep.subr.mxu0 0.0
    %5531 = vmatpush1.msra.mxu0 %v5333
    %5532 = vmatprep.subr.mxu0 0.0
    %5533 = vmatpush1.msra.mxu0 %v5334
    %5534 = vmatprep.subr.mxu0 0.0
    %5535 = vmatpush1.msra.mxu0 %v5335
    %5536 = vmatprep.subr.mxu0 0.0
    %5537 = vmatpush1.msra.mxu0 %v5336
    %5538 = vmatprep.subr.mxu0 0.0
    %5539 = vmatpush1.msra.mxu0 %v5337
    %5540 = vmatprep.subr.mxu0 0.0
    %5541 = vmatpush1.msra.mxu0 %v5338
    %5542 = vmatprep.subr.mxu0 0.0
    %5543 = vmatpush1.msra.mxu0 %v5339
    %5544 = vmatprep.subr.mxu0 0.0
    %5545 = vmatpush1.msra.mxu0 %v5340
    %5546 = vmatprep.subr.mxu0 0.0
    %5547 = vmatpush1.msra.mxu0 %v5341
    %5548 = vmatprep.subr.mxu0 0.0
    %5549 = vmatpush1.msra.mxu0 %v5342
    %5550 = vmatprep.subr.mxu0 0.0
    %5551 = vmatpush1.msra.mxu0 %v5343
    %5552 = vmatprep.subr.mxu0 0.0
    %5553 = vmatpush1.msra.mxu0 %v5344
    %5554 = vmatprep.subr.mxu0 0.0
    %5555 = vmatpush1.msra.mxu0 %v5345
    %5556 = vmatprep.subr.mxu0 0.0
    %5557 = vmatpush1.msra.mxu0 %v5346
    %5558 = vmatprep.subr.mxu0 0.0
    %5559 = vmatpush1.msra.mxu0 %v5347
    %5560 = vmatprep.subr.mxu0 0.0
    %5561 = vmatpush1.msra.mxu0 %v5348
    %5562 = vmatprep.subr.mxu0 0.0
    %5563 = vmatpush1.msra.mxu0 %v5349
    %5564 = vmatprep.subr.mxu0 0.0
    %5565 = vmatpush1.msra.mxu0 %v5350
    %5566 = vmatprep.subr.mxu0 0.0
    %5567 = vmatpush1.msra.mxu0 %v5351
    %5568 = vmatprep.subr.mxu0 0.0
    %5569 = vmatpush1.msra.mxu0 %v5352
    %5570 = vmatprep.subr.mxu0 0.0
    %5571 = vmatpush1.msra.mxu0 %v5353
    %5572 = vmatprep.subr.mxu0 0.0
    %5573 = vmatpush1.msra.mxu0 %v5354
    %5574 = vmatprep.subr.mxu0 0.0
    %5575 = vmatpush1.msra.mxu0 %v5355
    %5576 = vmatprep.subr.mxu0 0.0
    %5577 = vmatpush1.msra.mxu0 %v5356
    %5578 = vmatprep.mubr.f32.mxu0 %v5287
    %5579 = vmatmul.mubr.f32.gmra.mrb[0].mxu0 %v5286
    %v5580 = vpop.f32.mrb[0].mxu0
    %v5581 = vadd.f32 %v5511, %v5580
    %v5582 = vpop.f32.mrb[0].mxu0
    %5583 = vdwg.mxu0
    %5584 = vmatprep.subr.mxu0 0.0
    %5585 = vmatpush1.msra.mxu0 %v5357
    %5586 = vmatprep.subr.mxu0 0.0
    %5587 = vmatpush1.msra.mxu0 %v5358
    %5588 = vmatprep.subr.mxu0 0.0
    %5589 = vmatpush1.msra.mxu0 %v5359
    %5590 = vmatprep.subr.mxu0 0.0
    %5591 = vmatpush1.msra.mxu0 %v5360
    %5592 = vmatprep.subr.mxu0 0.0
    %5593 = vmatpush1.msra.mxu0 %v5361
    %5594 = vmatprep.subr.mxu0 0.0
    %5595 = vmatpush1.msra.mxu0 %v5362
    %5596 = vmatprep.subr.mxu0 0.0
    %5597 = vmatpush1.msra.mxu0 %v5363
    %5598 = vmatprep.subr.mxu0 0.0
    %5599 = vmatpush1.msra.mxu0 %v5364
    %5600 = vmatprep.subr.mxu0 0.0
    %5601 = vmatpush1.msra.mxu0 %v5365
    %5602 = vmatprep.subr.mxu0 0.0
    %5603 = vmatpush1.msra.mxu0 %v5366
    %5604 = vmatprep.subr.mxu0 0.0
    %5605 = vmatpush1.msra.mxu0 %v5367
    %5606 = vmatprep.subr.mxu0 0.0
    %5607 = vmatpush1.msra.mxu0 %v5368
    %5608 = vmatprep.subr.mxu0 0.0
    %5609 = vmatpush1.msra.mxu0 %v5369
    %5610 = vmatprep.subr.mxu0 0.0
    %5611 = vmatpush1.msra.mxu0 %v5370
    %5612 = vmatprep.subr.mxu0 0.0
    %5613 = vmatpush1.msra.mxu0 %v5371
    %5614 = vmatprep.subr.mxu0 0.0
    %5615 = vmatpush1.msra.mxu0 %v5372
    %5616 = vmatprep.subr.mxu0 0.0
    %5617 = vmatpush1.msra.mxu0 %v5373
    %5618 = vmatprep.subr.mxu0 0.0
    %5619 = vmatpush1.msra.mxu0 %v5374
    %5620 = vmatprep.subr.mxu0 0.0
    %5621 = vmatpush1.msra.mxu0 %v5375
    %5622 = vmatprep.subr.mxu0 0.0
    %5623 = vmatpush1.msra.mxu0 %v5376
    %5624 = vmatprep.subr.mxu0 0.0
    %5625 = vmatpush1.msra.mxu0 %v5377
    %5626 = vmatprep.subr.mxu0 0.0
    %5627 = vmatpush1.msra.mxu0 %v5378
    %5628 = vmatprep.subr.mxu0 0.0
    %5629 = vmatpush1.msra.mxu0 %v5379
    %5630 = vmatprep.subr.mxu0 0.0
    %5631 = vmatpush1.msra.mxu0 %v5380
    %5632 = vmatprep.subr.mxu0 0.0
    %5633 = vmatpush1.msra.mxu0 %v5381
    %5634 = vmatprep.subr.mxu0 0.0
    %5635 = vmatpush1.msra.mxu0 %v5382
    %5636 = vmatprep.subr.mxu0 0.0
    %5637 = vmatpush1.msra.mxu0 %v5383
    %5638 = vmatprep.subr.mxu0 0.0
    %5639 = vmatpush1.msra.mxu0 %v5384
    %5640 = vmatprep.subr.mxu0 0.0
    %5641 = vmatpush1.msra.mxu0 %v5385
    %5642 = vmatprep.subr.mxu0 0.0
    %5643 = vmatpush1.msra.mxu0 %v5386
    %5644 = vmatprep.subr.mxu0 0.0
    %5645 = vmatpush1.msra.mxu0 %v5387
    %5646 = vmatprep.subr.mxu0 0.0
    %5647 = vmatpush1.msra.mxu0 %v5388
    %5648 = vmatprep.mubr.f32.mxu0 %v5289
    %5649 = vmatmul.mubr.f32.gmra.mrb[0].mxu0 %v5288
    %v5650 = vpop.f32.mrb[0].mxu0
    %v5651 = vadd.f32 %v5581, %v5650
    %v5652 = vpop.f32.mrb[0].mxu0
    %5653 = vdwg.mxu0
    %5654 = vmatprep.subr.mxu0 0.0
    %5655 = vmatpush1.msra.mxu0 %v5389
    %5656 = vmatprep.subr.mxu0 0.0
    %5657 = vmatpush1.msra.mxu0 %v5390
    %5658 = vmatprep.subr.mxu0 0.0
    %5659 = vmatpush1.msra.mxu0 %v5391
    %5660 = vmatprep.subr.mxu0 0.0
    %5661 = vmatpush1.msra.mxu0 %v5392
    %5662 = vmatprep.subr.mxu0 0.0
    %5663 = vmatpush1.msra.mxu0 %v5393
    %5664 = vmatprep.subr.mxu0 0.0
    %5665 = vmatpush1.msra.mxu0 %v5394
    %5666 = vmatprep.subr.mxu0 0.0
    %5667 = vmatpush1.msra.mxu0 %v5395
    %5668 = vmatprep.subr.mxu0 0.0
    %5669 = vmatpush1.msra.mxu0 %v5396
    %5670 = vmatprep.subr.mxu0 0.0
    %5671 = vmatpush1.msra.mxu0 %v5397
    %5672 = vmatprep.subr.mxu0 0.0
    %5673 = vmatpush1.msra.mxu0 %v5398
    %5674 = vmatprep.subr.mxu0 0.0
    %5675 = vmatpush1.msra.mxu0 %v5399
    %5676 = vmatprep.subr.mxu0 0.0
    %5677 = vmatpush1.msra.mxu0 %v5400
    %5678 = vmatprep.subr.mxu0 0.0
    %5679 = vmatpush1.msra.mxu0 %v5401
    %5680 = vmatprep.subr.mxu0 0.0
    %5681 = vmatpush1.msra.mxu0 %v5402
    %5682 = vmatprep.subr.mxu0 0.0
    %5683 = vmatpush1.msra.mxu0 %v5403
    %5684 = vmatprep.subr.mxu0 0.0
    %5685 = vmatpush1.msra.mxu0 %v5404
    %5686 = vmatprep.subr.mxu0 0.0
    %5687 = vmatpush1.msra.mxu0 %v5405
    %5688 = vmatprep.subr.mxu0 0.0
    %5689 = vmatpush1.msra.mxu0 %v5406
    %5690 = vmatprep.subr.mxu0 0.0
    %5691 = vmatpush1.msra.mxu0 %v5407
    %5692 = vmatprep.subr.mxu0 0.0
    %5693 = vmatpush1.msra.mxu0 %v5408
    %5694 = vmatprep.subr.mxu0 0.0
    %5695 = vmatpush1.msra.mxu0 %v5409
    %5696 = vmatprep.subr.mxu0 0.0
    %5697 = vmatpush1.msra.mxu0 %v5410
    %5698 = vmatprep.subr.mxu0 0.0
    %5699 = vmatpush1.msra.mxu0 %v5411
    %5700 = vmatprep.subr.mxu0 0.0
    %5701 = vmatpush1.msra.mxu0 %v5412
    %5702 = vmatprep.subr.mxu0 0.0
    %5703 = vmatpush1.msra.mxu0 %v5413
    %5704 = vmatprep.subr.mxu0 0.0
    %5705 = vmatpush1.msra.mxu0 %v5414
    %5706 = vmatprep.subr.mxu0 0.0
    %5707 = vmatpush1.msra.mxu0 %v5415
    %5708 = vmatprep.subr.mxu0 0.0
    %5709 = vmatpush1.msra.mxu0 %v5416
    %5710 = vmatprep.subr.mxu0 0.0
    %5711 = vmatpush1.msra.mxu0 %v5417
    %5712 = vmatprep.subr.mxu0 0.0
    %5713 = vmatpush1.msra.mxu0 %v5418
    %5714 = vmatprep.subr.mxu0 0.0
    %5715 = vmatpush1.msra.mxu0 %v5419
    %5716 = vmatprep.subr.mxu0 0.0
    %5717 = vmatpush1.msra.mxu0 %v5420
    %5718 = vmatprep.mubr.f32.mxu0 %v5291
    %5719 = vmatmul.mubr.f32.gmra.mrb[0].mxu0 %v5290
    %v5720 = vpop.f32.mrb[0].mxu0
    %v5721 = vadd.f32 %v5651, %v5720
    %v5722 = vpop.f32.mrb[0].mxu0
    %5723 = vdwg.mxu0
    %5724 = vmatprep.subr.mxu0 0.0
    %5725 = vmatpush1.msra.mxu0 %v5421
    %5726 = vmatprep.subr.mxu0 0.0
    %5727 = vmatpush1.msra.mxu0 %v5422
    %5728 = vmatprep.subr.mxu0 0.0
    %5729 = vmatpush1.msra.mxu0 %v5423
    %5730 = vmatprep.subr.mxu0 0.0
    %5731 = vmatpush1.msra.mxu0 %v5424
    %5732 = vmatprep.subr.mxu0 0.0
    %5733 = vmatpush1.msra.mxu0 %v5425
    %5734 = vmatprep.subr.mxu0 0.0
    %5735 = vmatpush1.msra.mxu0 %v5426
    %5736 = vmatprep.subr.mxu0 0.0
    %5737 = vmatpush1.msra.mxu0 %v5427
    %5738 = vmatprep.subr.mxu0 0.0
    %5739 = vmatpush1.msra.mxu0 %v5428
    %5740 = vmatprep.subr.mxu0 0.0
    %5741 = vmatpush1.msra.mxu0 %v5429
    %5742 = vmatprep.subr.mxu0 0.0
    %5743 = vmatpush1.msra.mxu0 %v5430
    %5744 = vmatprep.subr.mxu0 0.0
    %5745 = vmatpush1.msra.mxu0 %v5431
    %5746 = vmatprep.subr.mxu0 0.0
    %5747 = vmatpush1.msra.mxu0 %v5432
    %5748 = vmatprep.subr.mxu0 0.0
    %5749 = vmatpush1.msra.mxu0 %v5433
    %5750 = vmatprep.subr.mxu0 0.0
    %5751 = vmatpush1.msra.mxu0 %v5434
    %5752 = vmatprep.subr.mxu0 0.0
    %5753 = vmatpush1.msra.mxu0 %v5435
    %5754 = vmatprep.subr.mxu0 0.0
    %5755 = vmatpush1.msra.mxu0 %v5436
    %5756 = vmatprep.subr.mxu0 0.0
    %5757 = vmatpush1.msra.mxu0 0.0
    %5758 = vmatprep.subr.mxu0 0.0
    %5759 = vmatpush1.msra.mxu0 0.0
    %5760 = vmatprep.subr.mxu0 0.0
    %5761 = vmatpush1.msra.mxu0 0.0
    %5762 = vmatprep.subr.mxu0 0.0
    %5763 = vmatpush1.msra.mxu0 0.0
    %5764 = vmatprep.subr.mxu0 0.0
    %5765 = vmatpush1.msra.mxu0 0.0
    %5766 = vmatprep.subr.mxu0 0.0
    %5767 = vmatpush1.msra.mxu0 0.0
    %5768 = vmatprep.subr.mxu0 0.0
    %5769 = vmatpush1.msra.mxu0 0.0
    %5770 = vmatprep.subr.mxu0 0.0
    %5771 = vmatpush1.msra.mxu0 0.0
    %5772 = vmatprep.subr.mxu0 0.0
    %5773 = vmatpush1.msra.mxu0 0.0
    %5774 = vmatprep.subr.mxu0 0.0
    %5775 = vmatpush1.msra.mxu0 0.0
    %5776 = vmatprep.subr.mxu0 0.0
    %5777 = vmatpush1.msra.mxu0 0.0
    %5778 = vmatprep.subr.mxu0 0.0
    %5779 = vmatpush1.msra.mxu0 0.0
    %5780 = vmatprep.subr.mxu0 0.0
    %5781 = vmatpush1.msra.mxu0 0.0
    %5782 = vmatprep.subr.mxu0 0.0
    %5783 = vmatpush1.msra.mxu0 0.0
    %5784 = vmatprep.subr.mxu0 0.0
    %5785 = vmatpush1.msra.mxu0 0.0
    %5786 = vmatprep.subr.mxu0 0.0
    %5787 = vmatpush1.msra.mxu0 0.0
    %5788 = vmatprep.mubr.f32.mxu0 0.0
    %5789 = vmatmul.mubr.f32.gmra.mrb[0].mxu0 %v5292
    %v5790 = vpop.f32.mrb[0].mxu0
    %v5791 = vadd.f32 %v5721, %v5790
    %v5792 = vpop.f32.mrb[0].mxu0
    %5793 = vdwg.mxu0
    %5794 = vst [vmem:[#allocation11] sm:$0xff] %v5791
    // Predicated region
    $region42: #{classifier_forward.1} parent=1 // pred_check
      _
    $region43: #{classifier_forward.1} parent=1 // pred_check_branch
      %5796 = sbr.rel (0) target = $region45
    $region44: #{classifier_forward.1} parent=1 // pred_region
      %s5798 = ssub.s32 128, 128
      %5799 = vsyncadd [#allocation4], %s5798
      %s5801 = sshll.u32 [#allocation11], 4
      %s5802 = int_to_ptr.vmem [resolvable:$true] %s5801
      %5804 = dma.vmem_to_hbm [thread:$0]  %s5802, 128, %s5, [#allocation4]
    $region45: #{classifier_forward.1} parent=1 // pred_fallthru
      _
    // Predicated region
    $region46: #{classifier_forward.1} parent=1 // pred_check
      _
    $region47: #{classifier_forward.1} parent=1 // pred_check_branch
      %5806 = sbr.rel (0) target = $region49
    $region48: #{classifier_forward.1} parent=1 // pred_region
      %5807 = dma.done [#allocation4], 128
    $region49: #{classifier_forward.1} parent=1 // pred_fallthru
      _
    %5808 = vsyncpa [#allocation3], 1
    %5809 = vsyncpa [#allocation6], 1
    %5810 = vsyncpa [#allocation9], 1
    %5811 = vsyncpa [#allocation4], 1

</llo_original>
